<compile_context>
chip_gen: v7x
topology: tpu7x:2x2x1
jax: 0.10.0
libtpu: 0.0.40
codegen_flags: <defaults>
</compile_context>

<pallas_src>
import jax
import jax.numpy as jnp
from jax.experimental import pallas as pl
from jax.experimental.pallas import tpu as pltpu

HP = 128   # per-gate lane block (VPU/MXU lane width); also padded input width
BP = 8     # batch padded to one sublane tile


def _gate_block(g, d):
    """Column block for gate g (0=r,1=z,2=n) and direction d (0=fwd,1=bwd).

    Gate-major order [r_f, r_b, z_f, z_b, n_f, n_b]: the r/z slice and the n
    slice are each one contiguous, 128-aligned lane range."""
    return 2 * g + d


# ----------------------------------------------------------------------------
# Fused Pallas kernel (whole model, no grid)
# ----------------------------------------------------------------------------
def make_fused_kernel(T, num_layers):
    W = 6 * HP      # combined gate width (both directions)
    NH = 2 * HP     # combined hidden width [h_f | h_b]

    def kernel(*refs):
        # refs = x_comb, layer0:(wih, whh, bgi, bghn),
        #        layer>=1:(wih_a, wih_b, whh, bgi, bghn), wlin, blin, out
        x_ref = refs[0]
        idx = 1
        layer_refs = []
        for l in range(num_layers):
            n_refs = 4 if l == 0 else 5
            layer_refs.append(tuple(refs[idx:idx + n_refs]))
            idx += n_refs
        wlin_ref, blin_ref, out_ref = refs[idx], refs[idx + 1], refs[idx + 2]

        y_all = y_rev = None
        h = None
        for l in range(num_layers):
            # ---- hoisted input projection: big MXU matmuls give the input
            # gates of BOTH directions for ALL timesteps of this layer.
            if l == 0:
                wih, whh, bgi, bghn = layer_refs[l]
                gi_all = jnp.dot(x_ref[...], wih[...],
                                 preferred_element_type=jnp.float32) + bgi[...]
            else:
                wih_a, wih_b, whh, bgi, bghn = layer_refs[l]
                gi_all = (jnp.dot(y_all, wih_a[...], preferred_element_type=jnp.float32)
                          + jnp.dot(y_rev, wih_b[...], preferred_element_type=jnp.float32)
                          + bgi[...])
            whh_m = whh[...]                                    # (2*HP, 6*HP)
            bghn_full = jnp.broadcast_to(bghn[...], (BP, NH))   # hoisted broadcast

            # ---- serial recurrence: both directions advance together; one
            # block-diagonal h @ Whh matmul per step serves both directions.
            h = jnp.zeros((BP, NH), jnp.float32)
            outs = [None] * T
            for s in range(T):                                  # trace-time unrolled
                gi = gi_all[s * BP:(s + 1) * BP]                # (BP, 6*HP) tile-aligned
                gh = jnp.dot(h, whh_m, preferred_element_type=jnp.float32)
                rz = jax.nn.sigmoid(gi[:, :4 * HP] + gh[:, :4 * HP])   # one EUP pass
                r = rz[:, :NH]                                  # [r_f | r_b]
                z = rz[:, NH:]                                  # [z_f | z_b]
                n = jnp.tanh(gi[:, 4 * HP:] + r * (gh[:, 4 * HP:] + bghn_full))
                h = n + z * (h - n)                             # == (1-z)*n + z*h
                outs[s] = h                                     # [y_f[s] | y_b[T-1-s]]

            if l + 1 < num_layers:
                # Whole-tile (8, 2*HP) chunks; reversed copy is a trace-time
                # list reversal (no runtime reverse / sublane shuffles).
                y_all = jnp.concatenate(outs, axis=0)           # (T*BP, 2*HP)
                y_rev = jnp.concatenate(outs[::-1], axis=0)

        # ---- linear head + softmax on the final combined hidden [h_f | h_b]
        # (matches h_n[2L-2], h_n[2L-1] of the PyTorch module).
        logits = (jnp.dot(h, wlin_ref[...], preferred_element_type=jnp.float32)
                  + blin_ref[...])
        m = jnp.max(logits, axis=1, keepdims=True)
        e = jnp.exp(logits - m)
        out_ref[...] = e / jnp.sum(e, axis=1, keepdims=True)

    return kernel


# ----------------------------------------------------------------------------
# Wrapper (single pallas_call; only tiny layout prep outside the kernel)
# ----------------------------------------------------------------------------
def birnn_gru_classifier(x_btd, packed_layers, wlin, blin):
    """x_btd: (B, T, 50) batch_first, like the PyTorch module."""
    B, T, I = x_btd.shape
    C = wlin.shape[1]
    num_layers = len(packed_layers)
    assert I <= HP and B <= BP

    # Time-major, batch padded to 8 rows, features padded to 128 lanes, and the
    # time-reversed copy lane-concatenated so layer 0's projection for both
    # directions is a single matmul: row-block s = [x[s] | x[T-1-s]].
    x_tm = jnp.transpose(x_btd, (1, 0, 2)).astype(jnp.float32)          # (T, B, I)
    x_pad = jnp.zeros((T, BP, HP), jnp.float32).at[:, :B, :I].set(x_tm)
    x_comb = jnp.concatenate([x_pad, x_pad[::-1]], axis=-1).reshape(T * BP, 2 * HP)

    flat_inputs = [x_comb]
    for layer in packed_layers:
        flat_inputs.extend(layer)
    flat_inputs.extend([wlin, blin])

    kernel = make_fused_kernel(T, num_layers)
    out = pl.pallas_call(
        kernel,
        out_shape=jax.ShapeDtypeStruct((BP, C), jnp.float32),
        compiler_params=pltpu.CompilerParams(vmem_limit_bytes=32 * 1024 * 1024),
    )(*flat_inputs)
    return out[:B]


birnn_gru_classifier_jit = jax.jit(birnn_gru_classifier)


# ----------------------------------------------------------------------------
# Deterministic raw parameter init (PyTorch-style uniform(-1/sqrt(H), 1/sqrt(H)))
# Raw layout: wih (in, 3H), whh (H, 3H), bih/bhh (1, 3H), gate order r|z|n.
# ----------------------------------------------------------------------------
def init_params(key, input_size, hidden_size, num_layers, num_classes):
    H = hidden_size
    k_gru = 1.0 / jnp.sqrt(H)
    layers = []
    for layer in range(num_layers):
        in_size = input_size if layer == 0 else 2 * H
        dirs = []
        for _ in range(2):
            key, k0, k1, k2, k3 = jax.random.split(key, 5)
            wih = jax.random.uniform(k0, (in_size, 3 * H),
                                     minval=-k_gru, maxval=k_gru, dtype=jnp.float32)
            whh = jax.random.uniform(k1, (H, 3 * H),
                                     minval=-k_gru, maxval=k_gru, dtype=jnp.float32)
            bih = jax.random.uniform(k2, (1, 3 * H),
                                     minval=-k_gru, maxval=k_gru, dtype=jnp.float32)
            bhh = jax.random.uniform(k3, (1, 3 * H),
                                     minval=-k_gru, maxval=k_gru, dtype=jnp.float32)
            dirs.append((wih, whh, bih, bhh))
        layers.append(tuple(dirs))
    k_lin = 1.0 / jnp.sqrt(2 * H)
    key, k0, k1 = jax.random.split(key, 3)
    w_lin = jax.random.uniform(k0, (2 * H, num_classes),
                               minval=-k_lin, maxval=k_lin, dtype=jnp.float32)
    b_lin = jax.random.uniform(k1, (1, num_classes),
                               minval=-k_lin, maxval=k_lin, dtype=jnp.float32)
    return layers, w_lin, b_lin


# ----------------------------------------------------------------------------
# Host-side packing into the 128-lane-aligned, direction-fused kernel layout.
# r/z biases pre-folded (bih+bhh); only bhh_n stays inside the r-gate product.
# All pad rows/columns are explicitly zero.
# ----------------------------------------------------------------------------
def pack_params(layers_raw, w_lin, b_lin, input_size, hidden_size):
    H = hidden_size
    assert H <= HP and input_size <= HP
    W = 6 * HP
    packed_layers = []
    for l, (fwd, bwd) in enumerate(layers_raw):
        wih_f, whh_f, bih_f, bhh_f = fwd
        wih_b, whh_b, bih_b, bhh_b = bwd

        # Recurrent weights: h layout [h_f rows 0:H | h_b rows HP:HP+H].
        whh = jnp.zeros((2 * HP, W), jnp.float32)
        for g in range(3):
            cf = _gate_block(g, 0) * HP
            cb = _gate_block(g, 1) * HP
            whh = whh.at[0:H, cf:cf + H].set(whh_f[:, g * H:(g + 1) * H])
            whh = whh.at[HP:HP + H, cb:cb + H].set(whh_b[:, g * H:(g + 1) * H])

        # Input-gate biases (r/z folded, n = bih_n only) and bhh_n.
        bgi = jnp.zeros((1, W), jnp.float32)
        for d, (bih, bhh) in enumerate(((bih_f, bhh_f), (bih_b, bhh_b))):
            for g in range(2):                                   # r, z
                c0 = _gate_block(g, d) * HP
                bgi = bgi.at[:, c0:c0 + H].set(bih[:, g * H:(g + 1) * H]
                                               + bhh[:, g * H:(g + 1) * H])
            c0 = _gate_block(2, d) * HP                          # n
            bgi = bgi.at[:, c0:c0 + H].set(bih[:, 2 * H:3 * H])
        bghn = jnp.zeros((1, 2 * HP), jnp.float32)
        bghn = bghn.at[:, 0:H].set(bhh_f[:, 2 * H:3 * H])
        bghn = bghn.at[:, HP:HP + H].set(bhh_b[:, 2 * H:3 * H])

        if l == 0:
            # x_comb row-block s = [x[s] lanes 0:I | x[T-1-s] lanes HP:HP+I].
            I = input_size
            wih = jnp.zeros((2 * HP, W), jnp.float32)
            for g in range(3):
                cf = _gate_block(g, 0) * HP
                cb = _gate_block(g, 1) * HP
                wih = wih.at[0:I, cf:cf + H].set(wih_f[:, g * H:(g + 1) * H])
                wih = wih.at[HP:HP + I, cb:cb + H].set(wih_b[:, g * H:(g + 1) * H])
            packed_layers.append((wih, whh, bgi, bghn))
        else:
            # y_all row-block s = [y_f[s] 0:H | y_b[T-1-s] HP:HP+H]
            # y_rev row-block s = [y_f[T-1-s] 0:H | y_b[s]   HP:HP+H]
            wih_a = jnp.zeros((2 * HP, W), jnp.float32)   # applied to y_all
            wih_r = jnp.zeros((2 * HP, W), jnp.float32)   # applied to y_rev
            for g in range(3):
                cf = _gate_block(g, 0) * HP
                cb = _gate_block(g, 1) * HP
                # forward gates need y_f[s] (y_all[:H]) and y_b[s] (y_rev[HP:]).
                wih_a = wih_a.at[0:H, cf:cf + H].set(wih_f[0:H, g * H:(g + 1) * H])
                wih_r = wih_r.at[HP:HP + H, cf:cf + H].set(wih_f[H:2 * H, g * H:(g + 1) * H])
                # backward gates need y_f[T-1-s] (y_rev[:H]) and y_b[T-1-s] (y_all[HP:]).
                wih_r = wih_r.at[0:H, cb:cb + H].set(wih_b[0:H, g * H:(g + 1) * H])
                wih_a = wih_a.at[HP:HP + H, cb:cb + H].set(wih_b[H:2 * H, g * H:(g + 1) * H])
            packed_layers.append((wih_a, wih_r, whh, bgi, bghn))

    # Head: rows 0:H = forward half, rows HP:HP+H = backward half.
    C = w_lin.shape[1]
    wlin = jnp.zeros((2 * HP, C), jnp.float32)
    wlin = wlin.at[0:H, :].set(w_lin[:H])
    wlin = wlin.at[HP:HP + H, :].set(w_lin[H:2 * H])
    return packed_layers, wlin, b_lin


# ----------------------------------------------------------------------------
# Pure-JAX reference (PyTorch GRU semantics, raw parameters) for sanity check
# ----------------------------------------------------------------------------
def ref_gru_dir(x_tbi, wih, whh, bih, bhh):
    T, B, _ = x_tbi.shape
    H = whh.shape[0]
    h = jnp.zeros((B, H), jnp.float32)
    ys = []
    for t in range(T):
        gi = x_tbi[t] @ wih + bih
        gh = h @ whh + bhh
        r = jax.nn.sigmoid(gi[:, :H] + gh[:, :H])
        z = jax.nn.sigmoid(gi[:, H:2 * H] + gh[:, H:2 * H])
        n = jnp.tanh(gi[:, 2 * H:] + r * gh[:, 2 * H:])
        h = (1.0 - z) * n + z * h
        ys.append(h)
    return jnp.stack(ys, axis=0), h


def ref_forward(x_btd, layers, w_lin, b_lin):
    x = jnp.transpose(x_btd, (1, 0, 2))
    h_f_last = h_b_last = None
    for (fwd, bwd) in layers:
        y_f, h_f_last = ref_gru_dir(x, *fwd)
        y_b_rev, h_b_last = ref_gru_dir(x[::-1], *bwd)
        x = jnp.concatenate([y_f, y_b_rev[::-1]], axis=-1)
    logits = jnp.concatenate([h_f_last, h_b_last], axis=-1) @ w_lin + b_lin
    m = jnp.max(logits, axis=1, keepdims=True)
    e = jnp.exp(logits - m)
    return e / jnp.sum(e, axis=1, keepdims=True)


# ----------------------------------------------------------------------------
if __name__ == "__main__":
    B, T, D_IN = 2, 8, 50          # embedding dim fixed to 50 by the module
    HIDDEN, NUM_LAYERS, NUM_CLASSES = 32, 2, 4

    key = jax.random.PRNGKey(0)
    key, kx, kp = jax.random.split(key, 3)
    x = jax.random.normal(kx, (B, T, D_IN), dtype=jnp.float32)

    layers_raw, w_lin, b_lin = init_params(kp, D_IN, HIDDEN, NUM_LAYERS, NUM_CLASSES)
    packed_layers, wlin_p, blin_p = pack_params(layers_raw, w_lin, b_lin, D_IN, HIDDEN)

    out = birnn_gru_classifier_jit(x, packed_layers, wlin_p, blin_p)
    out = jax.block_until_ready(out)

    ref = ref_forward(x, layers_raw, w_lin, b_lin)
    assert out.shape == (B, NUM_CLASSES)
    assert jnp.allclose(jnp.sum(out, axis=1), 1.0, atol=1e-5)
    assert jnp.allclose(out, ref, rtol=1e-5, atol=1e-5)

    print("KERNEL_OK")
</pallas_src>

<mosaic_0001>
module attributes {stable_mosaic.version = 11 : i64} {
  func.func @kernel(%arg0: memref<64x256xf32, #tpu.memory_space<vmem>>, %arg1: memref<256x768xf32, #tpu.memory_space<vmem>>, %arg2: memref<256x768xf32, #tpu.memory_space<vmem>>, %arg3: memref<1x768xf32, #tpu.memory_space<vmem>>, %arg4: memref<1x256xf32, #tpu.memory_space<vmem>>, %arg5: memref<256x768xf32, #tpu.memory_space<vmem>>, %arg6: memref<256x768xf32, #tpu.memory_space<vmem>>, %arg7: memref<256x768xf32, #tpu.memory_space<vmem>>, %arg8: memref<1x768xf32, #tpu.memory_space<vmem>>, %arg9: memref<1x256xf32, #tpu.memory_space<vmem>>, %arg10: memref<256x4xf32, #tpu.memory_space<vmem>>, %arg11: memref<1x4xf32, #tpu.memory_space<vmem>>, %arg12: memref<8x4xf32, #tpu.memory_space<vmem>>) attributes {dimension_semantics = [], scalar_prefetch = 0 : i64, scratch_operands = 0 : i64, tpu.core_type = #tpu.core_type<tc>} {
    %c0 = arith.constant 0 : index
    %c0_0 = arith.constant 0 : index
    %0 = vector.load %arg0[%c0, %c0_0] : memref<64x256xf32, #tpu.memory_space<vmem>>, vector<64x256xf32>
    %c0_1 = arith.constant 0 : index
    %c0_2 = arith.constant 0 : index
    %1 = vector.load %arg1[%c0_1, %c0_2] : memref<256x768xf32, #tpu.memory_space<vmem>>, vector<256x768xf32>
    %cst = arith.constant dense<0.000000e+00> : vector<64x768xf32>
    %2 = tpu.matmul %0, %1, %cst {dimension_numbers = #tpu.dot_dimension_numbers<[1], [0], [0], [1], [0, 0, 1, 1], [], []>} : vector<64x256xf32>, vector<256x768xf32>, vector<64x768xf32> -> vector<64x768xf32>
    %c0_3 = arith.constant 0 : index
    %c0_4 = arith.constant 0 : index
    %3 = vector.load %arg3[%c0_3, %c0_4] : memref<1x768xf32, #tpu.memory_space<vmem>>, vector<1x768xf32>
    %4 = vector.broadcast %3 : vector<1x768xf32> to vector<64x768xf32>
    %5 = arith.addf %2, %4 : vector<64x768xf32>
    %c0_5 = arith.constant 0 : index
    %c0_6 = arith.constant 0 : index
    %6 = vector.load %arg2[%c0_5, %c0_6] : memref<256x768xf32, #tpu.memory_space<vmem>>, vector<256x768xf32>
    %c0_7 = arith.constant 0 : index
    %c0_8 = arith.constant 0 : index
    %7 = vector.load %arg4[%c0_7, %c0_8] : memref<1x256xf32, #tpu.memory_space<vmem>>, vector<1x256xf32>
    %8 = vector.shape_cast %7 : vector<1x256xf32> to vector<1x256xf32>
    %9 = vector.broadcast %8 : vector<1x256xf32> to vector<8x256xf32>
    %cst_9 = arith.constant 0.000000e+00 : f32
    %10 = vector.broadcast %cst_9 : f32 to vector<8x256xf32>
    %11 = vector.extract_strided_slice %5 {offsets = [0, 0], sizes = [8, 768], strides = [1, 1]} : vector<64x768xf32> to vector<8x768xf32>
    %cst_10 = arith.constant dense<0.000000e+00> : vector<8x768xf32>
    %12 = tpu.matmul %10, %6, %cst_10 {dimension_numbers = #tpu.dot_dimension_numbers<[1], [0], [0], [1], [0, 0, 1, 1], [], []>} : vector<8x256xf32>, vector<256x768xf32>, vector<8x768xf32> -> vector<8x768xf32>
    %13 = vector.extract_strided_slice %11 {offsets = [0, 0], sizes = [8, 512], strides = [1, 1]} : vector<8x768xf32> to vector<8x512xf32>
    %14 = vector.extract_strided_slice %12 {offsets = [0, 0], sizes = [8, 512], strides = [1, 1]} : vector<8x768xf32> to vector<8x512xf32>
    %15 = arith.addf %13, %14 : vector<8x512xf32>
    %16 = arith.negf %15 : vector<8x512xf32>
    %17 = math.exp %16 : vector<8x512xf32>
    %cst_11 = arith.constant 1.000000e+00 : f32
    %18 = vector.broadcast %cst_11 : f32 to vector<8x512xf32>
    %19 = arith.addf %18, %17 : vector<8x512xf32>
    %20 = arith.divf %18, %19 : vector<8x512xf32>
    %21 = vector.extract_strided_slice %20 {offsets = [0, 0], sizes = [8, 256], strides = [1, 1]} : vector<8x512xf32> to vector<8x256xf32>
    %22 = vector.extract_strided_slice %20 {offsets = [0, 256], sizes = [8, 256], strides = [1, 1]} : vector<8x512xf32> to vector<8x256xf32>
    %23 = vector.extract_strided_slice %11 {offsets = [0, 512], sizes = [8, 256], strides = [1, 1]} : vector<8x768xf32> to vector<8x256xf32>
    %24 = vector.extract_strided_slice %12 {offsets = [0, 512], sizes = [8, 256], strides = [1, 1]} : vector<8x768xf32> to vector<8x256xf32>
    %25 = arith.addf %24, %9 : vector<8x256xf32>
    %26 = arith.mulf %21, %25 : vector<8x256xf32>
    %27 = arith.addf %23, %26 : vector<8x256xf32>
    %28 = math.tanh %27 : vector<8x256xf32>
    %29 = arith.subf %10, %28 : vector<8x256xf32>
    %30 = arith.mulf %22, %29 : vector<8x256xf32>
    %31 = arith.addf %28, %30 : vector<8x256xf32>
    %32 = vector.extract_strided_slice %5 {offsets = [8, 0], sizes = [8, 768], strides = [1, 1]} : vector<64x768xf32> to vector<8x768xf32>
    %cst_12 = arith.constant dense<0.000000e+00> : vector<8x768xf32>
    %33 = tpu.matmul %31, %6, %cst_12 {dimension_numbers = #tpu.dot_dimension_numbers<[1], [0], [0], [1], [0, 0, 1, 1], [], []>} : vector<8x256xf32>, vector<256x768xf32>, vector<8x768xf32> -> vector<8x768xf32>
    %34 = vector.extract_strided_slice %32 {offsets = [0, 0], sizes = [8, 512], strides = [1, 1]} : vector<8x768xf32> to vector<8x512xf32>
    %35 = vector.extract_strided_slice %33 {offsets = [0, 0], sizes = [8, 512], strides = [1, 1]} : vector<8x768xf32> to vector<8x512xf32>
    %36 = arith.addf %34, %35 : vector<8x512xf32>
    %37 = arith.negf %36 : vector<8x512xf32>
    %38 = math.exp %37 : vector<8x512xf32>
    %cst_13 = arith.constant 1.000000e+00 : f32
    %39 = vector.broadcast %cst_13 : f32 to vector<8x512xf32>
    %40 = arith.addf %39, %38 : vector<8x512xf32>
    %41 = arith.divf %39, %40 : vector<8x512xf32>
    %42 = vector.extract_strided_slice %41 {offsets = [0, 0], sizes = [8, 256], strides = [1, 1]} : vector<8x512xf32> to vector<8x256xf32>
    %43 = vector.extract_strided_slice %41 {offsets = [0, 256], sizes = [8, 256], strides = [1, 1]} : vector<8x512xf32> to vector<8x256xf32>
    %44 = vector.extract_strided_slice %32 {offsets = [0, 512], sizes = [8, 256], strides = [1, 1]} : vector<8x768xf32> to vector<8x256xf32>
    %45 = vector.extract_strided_slice %33 {offsets = [0, 512], sizes = [8, 256], strides = [1, 1]} : vector<8x768xf32> to vector<8x256xf32>
    %46 = arith.addf %45, %9 : vector<8x256xf32>
    %47 = arith.mulf %42, %46 : vector<8x256xf32>
    %48 = arith.addf %44, %47 : vector<8x256xf32>
    %49 = math.tanh %48 : vector<8x256xf32>
    %50 = arith.subf %31, %49 : vector<8x256xf32>
    %51 = arith.mulf %43, %50 : vector<8x256xf32>
    %52 = arith.addf %49, %51 : vector<8x256xf32>
    %53 = vector.extract_strided_slice %5 {offsets = [16, 0], sizes = [8, 768], strides = [1, 1]} : vector<64x768xf32> to vector<8x768xf32>
    %cst_14 = arith.constant dense<0.000000e+00> : vector<8x768xf32>
    %54 = tpu.matmul %52, %6, %cst_14 {dimension_numbers = #tpu.dot_dimension_numbers<[1], [0], [0], [1], [0, 0, 1, 1], [], []>} : vector<8x256xf32>, vector<256x768xf32>, vector<8x768xf32> -> vector<8x768xf32>
    %55 = vector.extract_strided_slice %53 {offsets = [0, 0], sizes = [8, 512], strides = [1, 1]} : vector<8x768xf32> to vector<8x512xf32>
    %56 = vector.extract_strided_slice %54 {offsets = [0, 0], sizes = [8, 512], strides = [1, 1]} : vector<8x768xf32> to vector<8x512xf32>
    %57 = arith.addf %55, %56 : vector<8x512xf32>
    %58 = arith.negf %57 : vector<8x512xf32>
    %59 = math.exp %58 : vector<8x512xf32>
    %cst_15 = arith.constant 1.000000e+00 : f32
    %60 = vector.broadcast %cst_15 : f32 to vector<8x512xf32>
    %61 = arith.addf %60, %59 : vector<8x512xf32>
    %62 = arith.divf %60, %61 : vector<8x512xf32>
    %63 = vector.extract_strided_slice %62 {offsets = [0, 0], sizes = [8, 256], strides = [1, 1]} : vector<8x512xf32> to vector<8x256xf32>
    %64 = vector.extract_strided_slice %62 {offsets = [0, 256], sizes = [8, 256], strides = [1, 1]} : vector<8x512xf32> to vector<8x256xf32>
    %65 = vector.extract_strided_slice %53 {offsets = [0, 512], sizes = [8, 256], strides = [1, 1]} : vector<8x768xf32> to vector<8x256xf32>
    %66 = vector.extract_strided_slice %54 {offsets = [0, 512], sizes = [8, 256], strides = [1, 1]} : vector<8x768xf32> to vector<8x256xf32>
    %67 = arith.addf %66, %9 : vector<8x256xf32>
    %68 = arith.mulf %63, %67 : vector<8x256xf32>
    %69 = arith.addf %65, %68 : vector<8x256xf32>
    %70 = math.tanh %69 : vector<8x256xf32>
    %71 = arith.subf %52, %70 : vector<8x256xf32>
    %72 = arith.mulf %64, %71 : vector<8x256xf32>
    %73 = arith.addf %70, %72 : vector<8x256xf32>
    %74 = vector.extract_strided_slice %5 {offsets = [24, 0], sizes = [8, 768], strides = [1, 1]} : vector<64x768xf32> to vector<8x768xf32>
    %cst_16 = arith.constant dense<0.000000e+00> : vector<8x768xf32>
    %75 = tpu.matmul %73, %6, %cst_16 {dimension_numbers = #tpu.dot_dimension_numbers<[1], [0], [0], [1], [0, 0, 1, 1], [], []>} : vector<8x256xf32>, vector<256x768xf32>, vector<8x768xf32> -> vector<8x768xf32>
    %76 = vector.extract_strided_slice %74 {offsets = [0, 0], sizes = [8, 512], strides = [1, 1]} : vector<8x768xf32> to vector<8x512xf32>
    %77 = vector.extract_strided_slice %75 {offsets = [0, 0], sizes = [8, 512], strides = [1, 1]} : vector<8x768xf32> to vector<8x512xf32>
    %78 = arith.addf %76, %77 : vector<8x512xf32>
    %79 = arith.negf %78 : vector<8x512xf32>
    %80 = math.exp %79 : vector<8x512xf32>
    %cst_17 = arith.constant 1.000000e+00 : f32
    %81 = vector.broadcast %cst_17 : f32 to vector<8x512xf32>
    %82 = arith.addf %81, %80 : vector<8x512xf32>
    %83 = arith.divf %81, %82 : vector<8x512xf32>
    %84 = vector.extract_strided_slice %83 {offsets = [0, 0], sizes = [8, 256], strides = [1, 1]} : vector<8x512xf32> to vector<8x256xf32>
    %85 = vector.extract_strided_slice %83 {offsets = [0, 256], sizes = [8, 256], strides = [1, 1]} : vector<8x512xf32> to vector<8x256xf32>
    %86 = vector.extract_strided_slice %74 {offsets = [0, 512], sizes = [8, 256], strides = [1, 1]} : vector<8x768xf32> to vector<8x256xf32>
    %87 = vector.extract_strided_slice %75 {offsets = [0, 512], sizes = [8, 256], strides = [1, 1]} : vector<8x768xf32> to vector<8x256xf32>
    %88 = arith.addf %87, %9 : vector<8x256xf32>
    %89 = arith.mulf %84, %88 : vector<8x256xf32>
    %90 = arith.addf %86, %89 : vector<8x256xf32>
    %91 = math.tanh %90 : vector<8x256xf32>
    %92 = arith.subf %73, %91 : vector<8x256xf32>
    %93 = arith.mulf %85, %92 : vector<8x256xf32>
    %94 = arith.addf %91, %93 : vector<8x256xf32>
    %95 = vector.extract_strided_slice %5 {offsets = [32, 0], sizes = [8, 768], strides = [1, 1]} : vector<64x768xf32> to vector<8x768xf32>
    %cst_18 = arith.constant dense<0.000000e+00> : vector<8x768xf32>
    %96 = tpu.matmul %94, %6, %cst_18 {dimension_numbers = #tpu.dot_dimension_numbers<[1], [0], [0], [1], [0, 0, 1, 1], [], []>} : vector<8x256xf32>, vector<256x768xf32>, vector<8x768xf32> -> vector<8x768xf32>
    %97 = vector.extract_strided_slice %95 {offsets = [0, 0], sizes = [8, 512], strides = [1, 1]} : vector<8x768xf32> to vector<8x512xf32>
    %98 = vector.extract_strided_slice %96 {offsets = [0, 0], sizes = [8, 512], strides = [1, 1]} : vector<8x768xf32> to vector<8x512xf32>
    %99 = arith.addf %97, %98 : vector<8x512xf32>
    %100 = arith.negf %99 : vector<8x512xf32>
    %101 = math.exp %100 : vector<8x512xf32>
    %cst_19 = arith.constant 1.000000e+00 : f32
    %102 = vector.broadcast %cst_19 : f32 to vector<8x512xf32>
    %103 = arith.addf %102, %101 : vector<8x512xf32>
    %104 = arith.divf %102, %103 : vector<8x512xf32>
    %105 = vector.extract_strided_slice %104 {offsets = [0, 0], sizes = [8, 256], strides = [1, 1]} : vector<8x512xf32> to vector<8x256xf32>
    %106 = vector.extract_strided_slice %104 {offsets = [0, 256], sizes = [8, 256], strides = [1, 1]} : vector<8x512xf32> to vector<8x256xf32>
    %107 = vector.extract_strided_slice %95 {offsets = [0, 512], sizes = [8, 256], strides = [1, 1]} : vector<8x768xf32> to vector<8x256xf32>
    %108 = vector.extract_strided_slice %96 {offsets = [0, 512], sizes = [8, 256], strides = [1, 1]} : vector<8x768xf32> to vector<8x256xf32>
    %109 = arith.addf %108, %9 : vector<8x256xf32>
    %110 = arith.mulf %105, %109 : vector<8x256xf32>
    %111 = arith.addf %107, %110 : vector<8x256xf32>
    %112 = math.tanh %111 : vector<8x256xf32>
    %113 = arith.subf %94, %112 : vector<8x256xf32>
    %114 = arith.mulf %106, %113 : vector<8x256xf32>
    %115 = arith.addf %112, %114 : vector<8x256xf32>
    %116 = vector.extract_strided_slice %5 {offsets = [40, 0], sizes = [8, 768], strides = [1, 1]} : vector<64x768xf32> to vector<8x768xf32>
    %cst_20 = arith.constant dense<0.000000e+00> : vector<8x768xf32>
    %117 = tpu.matmul %115, %6, %cst_20 {dimension_numbers = #tpu.dot_dimension_numbers<[1], [0], [0], [1], [0, 0, 1, 1], [], []>} : vector<8x256xf32>, vector<256x768xf32>, vector<8x768xf32> -> vector<8x768xf32>
    %118 = vector.extract_strided_slice %116 {offsets = [0, 0], sizes = [8, 512], strides = [1, 1]} : vector<8x768xf32> to vector<8x512xf32>
    %119 = vector.extract_strided_slice %117 {offsets = [0, 0], sizes = [8, 512], strides = [1, 1]} : vector<8x768xf32> to vector<8x512xf32>
    %120 = arith.addf %118, %119 : vector<8x512xf32>
    %121 = arith.negf %120 : vector<8x512xf32>
    %122 = math.exp %121 : vector<8x512xf32>
    %cst_21 = arith.constant 1.000000e+00 : f32
    %123 = vector.broadcast %cst_21 : f32 to vector<8x512xf32>
    %124 = arith.addf %123, %122 : vector<8x512xf32>
    %125 = arith.divf %123, %124 : vector<8x512xf32>
    %126 = vector.extract_strided_slice %125 {offsets = [0, 0], sizes = [8, 256], strides = [1, 1]} : vector<8x512xf32> to vector<8x256xf32>
    %127 = vector.extract_strided_slice %125 {offsets = [0, 256], sizes = [8, 256], strides = [1, 1]} : vector<8x512xf32> to vector<8x256xf32>
    %128 = vector.extract_strided_slice %116 {offsets = [0, 512], sizes = [8, 256], strides = [1, 1]} : vector<8x768xf32> to vector<8x256xf32>
    %129 = vector.extract_strided_slice %117 {offsets = [0, 512], sizes = [8, 256], strides = [1, 1]} : vector<8x768xf32> to vector<8x256xf32>
    %130 = arith.addf %129, %9 : vector<8x256xf32>
    %131 = arith.mulf %126, %130 : vector<8x256xf32>
    %132 = arith.addf %128, %131 : vector<8x256xf32>
    %133 = math.tanh %132 : vector<8x256xf32>
    %134 = arith.subf %115, %133 : vector<8x256xf32>
    %135 = arith.mulf %127, %134 : vector<8x256xf32>
    %136 = arith.addf %133, %135 : vector<8x256xf32>
    %137 = vector.extract_strided_slice %5 {offsets = [48, 0], sizes = [8, 768], strides = [1, 1]} : vector<64x768xf32> to vector<8x768xf32>
    %cst_22 = arith.constant dense<0.000000e+00> : vector<8x768xf32>
    %138 = tpu.matmul %136, %6, %cst_22 {dimension_numbers = #tpu.dot_dimension_numbers<[1], [0], [0], [1], [0, 0, 1, 1], [], []>} : vector<8x256xf32>, vector<256x768xf32>, vector<8x768xf32> -> vector<8x768xf32>
    %139 = vector.extract_strided_slice %137 {offsets = [0, 0], sizes = [8, 512], strides = [1, 1]} : vector<8x768xf32> to vector<8x512xf32>
    %140 = vector.extract_strided_slice %138 {offsets = [0, 0], sizes = [8, 512], strides = [1, 1]} : vector<8x768xf32> to vector<8x512xf32>
    %141 = arith.addf %139, %140 : vector<8x512xf32>
    %142 = arith.negf %141 : vector<8x512xf32>
    %143 = math.exp %142 : vector<8x512xf32>
    %cst_23 = arith.constant 1.000000e+00 : f32
    %144 = vector.broadcast %cst_23 : f32 to vector<8x512xf32>
    %145 = arith.addf %144, %143 : vector<8x512xf32>
    %146 = arith.divf %144, %145 : vector<8x512xf32>
    %147 = vector.extract_strided_slice %146 {offsets = [0, 0], sizes = [8, 256], strides = [1, 1]} : vector<8x512xf32> to vector<8x256xf32>
    %148 = vector.extract_strided_slice %146 {offsets = [0, 256], sizes = [8, 256], strides = [1, 1]} : vector<8x512xf32> to vector<8x256xf32>
    %149 = vector.extract_strided_slice %137 {offsets = [0, 512], sizes = [8, 256], strides = [1, 1]} : vector<8x768xf32> to vector<8x256xf32>
    %150 = vector.extract_strided_slice %138 {offsets = [0, 512], sizes = [8, 256], strides = [1, 1]} : vector<8x768xf32> to vector<8x256xf32>
    %151 = arith.addf %150, %9 : vector<8x256xf32>
    %152 = arith.mulf %147, %151 : vector<8x256xf32>
    %153 = arith.addf %149, %152 : vector<8x256xf32>
    %154 = math.tanh %153 : vector<8x256xf32>
    %155 = arith.subf %136, %154 : vector<8x256xf32>
    %156 = arith.mulf %148, %155 : vector<8x256xf32>
    %157 = arith.addf %154, %156 : vector<8x256xf32>
    %158 = vector.extract_strided_slice %5 {offsets = [56, 0], sizes = [8, 768], strides = [1, 1]} : vector<64x768xf32> to vector<8x768xf32>
    %cst_24 = arith.constant dense<0.000000e+00> : vector<8x768xf32>
    %159 = tpu.matmul %157, %6, %cst_24 {dimension_numbers = #tpu.dot_dimension_numbers<[1], [0], [0], [1], [0, 0, 1, 1], [], []>} : vector<8x256xf32>, vector<256x768xf32>, vector<8x768xf32> -> vector<8x768xf32>
    %160 = vector.extract_strided_slice %158 {offsets = [0, 0], sizes = [8, 512], strides = [1, 1]} : vector<8x768xf32> to vector<8x512xf32>
    %161 = vector.extract_strided_slice %159 {offsets = [0, 0], sizes = [8, 512], strides = [1, 1]} : vector<8x768xf32> to vector<8x512xf32>
    %162 = arith.addf %160, %161 : vector<8x512xf32>
    %163 = arith.negf %162 : vector<8x512xf32>
    %164 = math.exp %163 : vector<8x512xf32>
    %cst_25 = arith.constant 1.000000e+00 : f32
    %165 = vector.broadcast %cst_25 : f32 to vector<8x512xf32>
    %166 = arith.addf %165, %164 : vector<8x512xf32>
    %167 = arith.divf %165, %166 : vector<8x512xf32>
    %168 = vector.extract_strided_slice %167 {offsets = [0, 0], sizes = [8, 256], strides = [1, 1]} : vector<8x512xf32> to vector<8x256xf32>
    %169 = vector.extract_strided_slice %167 {offsets = [0, 256], sizes = [8, 256], strides = [1, 1]} : vector<8x512xf32> to vector<8x256xf32>
    %170 = vector.extract_strided_slice %158 {offsets = [0, 512], sizes = [8, 256], strides = [1, 1]} : vector<8x768xf32> to vector<8x256xf32>
    %171 = vector.extract_strided_slice %159 {offsets = [0, 512], sizes = [8, 256], strides = [1, 1]} : vector<8x768xf32> to vector<8x256xf32>
    %172 = arith.addf %171, %9 : vector<8x256xf32>
    %173 = arith.mulf %168, %172 : vector<8x256xf32>
    %174 = arith.addf %170, %173 : vector<8x256xf32>
    %175 = math.tanh %174 : vector<8x256xf32>
    %176 = arith.subf %157, %175 : vector<8x256xf32>
    %177 = arith.mulf %169, %176 : vector<8x256xf32>
    %178 = arith.addf %175, %177 : vector<8x256xf32>
    %179 = tpu.concatenate %31, %52, %73, %94, %115, %136, %157, %178 in 0 : vector<8x256xf32>, vector<8x256xf32>, vector<8x256xf32>, vector<8x256xf32>, vector<8x256xf32>, vector<8x256xf32>, vector<8x256xf32>, vector<8x256xf32> -> vector<64x256xf32>
    %180 = tpu.concatenate %178, %157, %136, %115, %94, %73, %52, %31 in 0 : vector<8x256xf32>, vector<8x256xf32>, vector<8x256xf32>, vector<8x256xf32>, vector<8x256xf32>, vector<8x256xf32>, vector<8x256xf32>, vector<8x256xf32> -> vector<64x256xf32>
    %c0_26 = arith.constant 0 : index
    %c0_27 = arith.constant 0 : index
    %181 = vector.load %arg5[%c0_26, %c0_27] : memref<256x768xf32, #tpu.memory_space<vmem>>, vector<256x768xf32>
    %cst_28 = arith.constant dense<0.000000e+00> : vector<64x768xf32>
    %182 = tpu.matmul %179, %181, %cst_28 {dimension_numbers = #tpu.dot_dimension_numbers<[1], [0], [0], [1], [0, 0, 1, 1], [], []>} : vector<64x256xf32>, vector<256x768xf32>, vector<64x768xf32> -> vector<64x768xf32>
    %c0_29 = arith.constant 0 : index
    %c0_30 = arith.constant 0 : index
    %183 = vector.load %arg6[%c0_29, %c0_30] : memref<256x768xf32, #tpu.memory_space<vmem>>, vector<256x768xf32>
    %cst_31 = arith.constant dense<0.000000e+00> : vector<64x768xf32>
    %184 = tpu.matmul %180, %183, %cst_31 {dimension_numbers = #tpu.dot_dimension_numbers<[1], [0], [0], [1], [0, 0, 1, 1], [], []>} : vector<64x256xf32>, vector<256x768xf32>, vector<64x768xf32> -> vector<64x768xf32>
    %185 = arith.addf %182, %184 : vector<64x768xf32>
    %c0_32 = arith.constant 0 : index
    %c0_33 = arith.constant 0 : index
    %186 = vector.load %arg8[%c0_32, %c0_33] : memref<1x768xf32, #tpu.memory_space<vmem>>, vector<1x768xf32>
    %187 = vector.broadcast %186 : vector<1x768xf32> to vector<64x768xf32>
    %188 = arith.addf %185, %187 : vector<64x768xf32>
    %c0_34 = arith.constant 0 : index
    %c0_35 = arith.constant 0 : index
    %189 = vector.load %arg7[%c0_34, %c0_35] : memref<256x768xf32, #tpu.memory_space<vmem>>, vector<256x768xf32>
    %c0_36 = arith.constant 0 : index
    %c0_37 = arith.constant 0 : index
    %190 = vector.load %arg9[%c0_36, %c0_37] : memref<1x256xf32, #tpu.memory_space<vmem>>, vector<1x256xf32>
    %191 = vector.shape_cast %190 : vector<1x256xf32> to vector<1x256xf32>
    %192 = vector.broadcast %191 : vector<1x256xf32> to vector<8x256xf32>
    %cst_38 = arith.constant 0.000000e+00 : f32
    %193 = vector.broadcast %cst_38 : f32 to vector<8x256xf32>
    %194 = vector.extract_strided_slice %188 {offsets = [0, 0], sizes = [8, 768], strides = [1, 1]} : vector<64x768xf32> to vector<8x768xf32>
    %cst_39 = arith.constant dense<0.000000e+00> : vector<8x768xf32>
    %195 = tpu.matmul %193, %189, %cst_39 {dimension_numbers = #tpu.dot_dimension_numbers<[1], [0], [0], [1], [0, 0, 1, 1], [], []>} : vector<8x256xf32>, vector<256x768xf32>, vector<8x768xf32> -> vector<8x768xf32>
    %196 = vector.extract_strided_slice %194 {offsets = [0, 0], sizes = [8, 512], strides = [1, 1]} : vector<8x768xf32> to vector<8x512xf32>
    %197 = vector.extract_strided_slice %195 {offsets = [0, 0], sizes = [8, 512], strides = [1, 1]} : vector<8x768xf32> to vector<8x512xf32>
    %198 = arith.addf %196, %197 : vector<8x512xf32>
    %199 = arith.negf %198 : vector<8x512xf32>
    %200 = math.exp %199 : vector<8x512xf32>
    %cst_40 = arith.constant 1.000000e+00 : f32
    %201 = vector.broadcast %cst_40 : f32 to vector<8x512xf32>
    %202 = arith.addf %201, %200 : vector<8x512xf32>
    %203 = arith.divf %201, %202 : vector<8x512xf32>
    %204 = vector.extract_strided_slice %203 {offsets = [0, 0], sizes = [8, 256], strides = [1, 1]} : vector<8x512xf32> to vector<8x256xf32>
    %205 = vector.extract_strided_slice %203 {offsets = [0, 256], sizes = [8, 256], strides = [1, 1]} : vector<8x512xf32> to vector<8x256xf32>
    %206 = vector.extract_strided_slice %194 {offsets = [0, 512], sizes = [8, 256], strides = [1, 1]} : vector<8x768xf32> to vector<8x256xf32>
    %207 = vector.extract_strided_slice %195 {offsets = [0, 512], sizes = [8, 256], strides = [1, 1]} : vector<8x768xf32> to vector<8x256xf32>
    %208 = arith.addf %207, %192 : vector<8x256xf32>
    %209 = arith.mulf %204, %208 : vector<8x256xf32>
    %210 = arith.addf %206, %209 : vector<8x256xf32>
    %211 = math.tanh %210 : vector<8x256xf32>
    %212 = arith.subf %193, %211 : vector<8x256xf32>
    %213 = arith.mulf %205, %212 : vector<8x256xf32>
    %214 = arith.addf %211, %213 : vector<8x256xf32>
    %215 = vector.extract_strided_slice %188 {offsets = [8, 0], sizes = [8, 768], strides = [1, 1]} : vector<64x768xf32> to vector<8x768xf32>
    %cst_41 = arith.constant dense<0.000000e+00> : vector<8x768xf32>
    %216 = tpu.matmul %214, %189, %cst_41 {dimension_numbers = #tpu.dot_dimension_numbers<[1], [0], [0], [1], [0, 0, 1, 1], [], []>} : vector<8x256xf32>, vector<256x768xf32>, vector<8x768xf32> -> vector<8x768xf32>
    %217 = vector.extract_strided_slice %215 {offsets = [0, 0], sizes = [8, 512], strides = [1, 1]} : vector<8x768xf32> to vector<8x512xf32>
    %218 = vector.extract_strided_slice %216 {offsets = [0, 0], sizes = [8, 512], strides = [1, 1]} : vector<8x768xf32> to vector<8x512xf32>
    %219 = arith.addf %217, %218 : vector<8x512xf32>
    %220 = arith.negf %219 : vector<8x512xf32>
    %221 = math.exp %220 : vector<8x512xf32>
    %cst_42 = arith.constant 1.000000e+00 : f32
    %222 = vector.broadcast %cst_42 : f32 to vector<8x512xf32>
    %223 = arith.addf %222, %221 : vector<8x512xf32>
    %224 = arith.divf %222, %223 : vector<8x512xf32>
    %225 = vector.extract_strided_slice %224 {offsets = [0, 0], sizes = [8, 256], strides = [1, 1]} : vector<8x512xf32> to vector<8x256xf32>
    %226 = vector.extract_strided_slice %224 {offsets = [0, 256], sizes = [8, 256], strides = [1, 1]} : vector<8x512xf32> to vector<8x256xf32>
    %227 = vector.extract_strided_slice %215 {offsets = [0, 512], sizes = [8, 256], strides = [1, 1]} : vector<8x768xf32> to vector<8x256xf32>
    %228 = vector.extract_strided_slice %216 {offsets = [0, 512], sizes = [8, 256], strides = [1, 1]} : vector<8x768xf32> to vector<8x256xf32>
    %229 = arith.addf %228, %192 : vector<8x256xf32>
    %230 = arith.mulf %225, %229 : vector<8x256xf32>
    %231 = arith.addf %227, %230 : vector<8x256xf32>
    %232 = math.tanh %231 : vector<8x256xf32>
    %233 = arith.subf %214, %232 : vector<8x256xf32>
    %234 = arith.mulf %226, %233 : vector<8x256xf32>
    %235 = arith.addf %232, %234 : vector<8x256xf32>
    %236 = vector.extract_strided_slice %188 {offsets = [16, 0], sizes = [8, 768], strides = [1, 1]} : vector<64x768xf32> to vector<8x768xf32>
    %cst_43 = arith.constant dense<0.000000e+00> : vector<8x768xf32>
    %237 = tpu.matmul %235, %189, %cst_43 {dimension_numbers = #tpu.dot_dimension_numbers<[1], [0], [0], [1], [0, 0, 1, 1], [], []>} : vector<8x256xf32>, vector<256x768xf32>, vector<8x768xf32> -> vector<8x768xf32>
    %238 = vector.extract_strided_slice %236 {offsets = [0, 0], sizes = [8, 512], strides = [1, 1]} : vector<8x768xf32> to vector<8x512xf32>
    %239 = vector.extract_strided_slice %237 {offsets = [0, 0], sizes = [8, 512], strides = [1, 1]} : vector<8x768xf32> to vector<8x512xf32>
    %240 = arith.addf %238, %239 : vector<8x512xf32>
    %241 = arith.negf %240 : vector<8x512xf32>
    %242 = math.exp %241 : vector<8x512xf32>
    %cst_44 = arith.constant 1.000000e+00 : f32
    %243 = vector.broadcast %cst_44 : f32 to vector<8x512xf32>
    %244 = arith.addf %243, %242 : vector<8x512xf32>
    %245 = arith.divf %243, %244 : vector<8x512xf32>
    %246 = vector.extract_strided_slice %245 {offsets = [0, 0], sizes = [8, 256], strides = [1, 1]} : vector<8x512xf32> to vector<8x256xf32>
    %247 = vector.extract_strided_slice %245 {offsets = [0, 256], sizes = [8, 256], strides = [1, 1]} : vector<8x512xf32> to vector<8x256xf32>
    %248 = vector.extract_strided_slice %236 {offsets = [0, 512], sizes = [8, 256], strides = [1, 1]} : vector<8x768xf32> to vector<8x256xf32>
    %249 = vector.extract_strided_slice %237 {offsets = [0, 512], sizes = [8, 256], strides = [1, 1]} : vector<8x768xf32> to vector<8x256xf32>
    %250 = arith.addf %249, %192 : vector<8x256xf32>
    %251 = arith.mulf %246, %250 : vector<8x256xf32>
    %252 = arith.addf %248, %251 : vector<8x256xf32>
    %253 = math.tanh %252 : vector<8x256xf32>
    %254 = arith.subf %235, %253 : vector<8x256xf32>
    %255 = arith.mulf %247, %254 : vector<8x256xf32>
    %256 = arith.addf %253, %255 : vector<8x256xf32>
    %257 = vector.extract_strided_slice %188 {offsets = [24, 0], sizes = [8, 768], strides = [1, 1]} : vector<64x768xf32> to vector<8x768xf32>
    %cst_45 = arith.constant dense<0.000000e+00> : vector<8x768xf32>
    %258 = tpu.matmul %256, %189, %cst_45 {dimension_numbers = #tpu.dot_dimension_numbers<[1], [0], [0], [1], [0, 0, 1, 1], [], []>} : vector<8x256xf32>, vector<256x768xf32>, vector<8x768xf32> -> vector<8x768xf32>
    %259 = vector.extract_strided_slice %257 {offsets = [0, 0], sizes = [8, 512], strides = [1, 1]} : vector<8x768xf32> to vector<8x512xf32>
    %260 = vector.extract_strided_slice %258 {offsets = [0, 0], sizes = [8, 512], strides = [1, 1]} : vector<8x768xf32> to vector<8x512xf32>
    %261 = arith.addf %259, %260 : vector<8x512xf32>
    %262 = arith.negf %261 : vector<8x512xf32>
    %263 = math.exp %262 : vector<8x512xf32>
    %cst_46 = arith.constant 1.000000e+00 : f32
    %264 = vector.broadcast %cst_46 : f32 to vector<8x512xf32>
    %265 = arith.addf %264, %263 : vector<8x512xf32>
    %266 = arith.divf %264, %265 : vector<8x512xf32>
    %267 = vector.extract_strided_slice %266 {offsets = [0, 0], sizes = [8, 256], strides = [1, 1]} : vector<8x512xf32> to vector<8x256xf32>
    %268 = vector.extract_strided_slice %266 {offsets = [0, 256], sizes = [8, 256], strides = [1, 1]} : vector<8x512xf32> to vector<8x256xf32>
    %269 = vector.extract_strided_slice %257 {offsets = [0, 512], sizes = [8, 256], strides = [1, 1]} : vector<8x768xf32> to vector<8x256xf32>
    %270 = vector.extract_strided_slice %258 {offsets = [0, 512], sizes = [8, 256], strides = [1, 1]} : vector<8x768xf32> to vector<8x256xf32>
    %271 = arith.addf %270, %192 : vector<8x256xf32>
    %272 = arith.mulf %267, %271 : vector<8x256xf32>
    %273 = arith.addf %269, %272 : vector<8x256xf32>
    %274 = math.tanh %273 : vector<8x256xf32>
    %275 = arith.subf %256, %274 : vector<8x256xf32>
    %276 = arith.mulf %268, %275 : vector<8x256xf32>
    %277 = arith.addf %274, %276 : vector<8x256xf32>
    %278 = vector.extract_strided_slice %188 {offsets = [32, 0], sizes = [8, 768], strides = [1, 1]} : vector<64x768xf32> to vector<8x768xf32>
    %cst_47 = arith.constant dense<0.000000e+00> : vector<8x768xf32>
    %279 = tpu.matmul %277, %189, %cst_47 {dimension_numbers = #tpu.dot_dimension_numbers<[1], [0], [0], [1], [0, 0, 1, 1], [], []>} : vector<8x256xf32>, vector<256x768xf32>, vector<8x768xf32> -> vector<8x768xf32>
    %280 = vector.extract_strided_slice %278 {offsets = [0, 0], sizes = [8, 512], strides = [1, 1]} : vector<8x768xf32> to vector<8x512xf32>
    %281 = vector.extract_strided_slice %279 {offsets = [0, 0], sizes = [8, 512], strides = [1, 1]} : vector<8x768xf32> to vector<8x512xf32>
    %282 = arith.addf %280, %281 : vector<8x512xf32>
    %283 = arith.negf %282 : vector<8x512xf32>
    %284 = math.exp %283 : vector<8x512xf32>
    %cst_48 = arith.constant 1.000000e+00 : f32
    %285 = vector.broadcast %cst_48 : f32 to vector<8x512xf32>
    %286 = arith.addf %285, %284 : vector<8x512xf32>
    %287 = arith.divf %285, %286 : vector<8x512xf32>
    %288 = vector.extract_strided_slice %287 {offsets = [0, 0], sizes = [8, 256], strides = [1, 1]} : vector<8x512xf32> to vector<8x256xf32>
    %289 = vector.extract_strided_slice %287 {offsets = [0, 256], sizes = [8, 256], strides = [1, 1]} : vector<8x512xf32> to vector<8x256xf32>
    %290 = vector.extract_strided_slice %278 {offsets = [0, 512], sizes = [8, 256], strides = [1, 1]} : vector<8x768xf32> to vector<8x256xf32>
    %291 = vector.extract_strided_slice %279 {offsets = [0, 512], sizes = [8, 256], strides = [1, 1]} : vector<8x768xf32> to vector<8x256xf32>
    %292 = arith.addf %291, %192 : vector<8x256xf32>
    %293 = arith.mulf %288, %292 : vector<8x256xf32>
    %294 = arith.addf %290, %293 : vector<8x256xf32>
    %295 = math.tanh %294 : vector<8x256xf32>
    %296 = arith.subf %277, %295 : vector<8x256xf32>
    %297 = arith.mulf %289, %296 : vector<8x256xf32>
    %298 = arith.addf %295, %297 : vector<8x256xf32>
    %299 = vector.extract_strided_slice %188 {offsets = [40, 0], sizes = [8, 768], strides = [1, 1]} : vector<64x768xf32> to vector<8x768xf32>
    %cst_49 = arith.constant dense<0.000000e+00> : vector<8x768xf32>
    %300 = tpu.matmul %298, %189, %cst_49 {dimension_numbers = #tpu.dot_dimension_numbers<[1], [0], [0], [1], [0, 0, 1, 1], [], []>} : vector<8x256xf32>, vector<256x768xf32>, vector<8x768xf32> -> vector<8x768xf32>
    %301 = vector.extract_strided_slice %299 {offsets = [0, 0], sizes = [8, 512], strides = [1, 1]} : vector<8x768xf32> to vector<8x512xf32>
    %302 = vector.extract_strided_slice %300 {offsets = [0, 0], sizes = [8, 512], strides = [1, 1]} : vector<8x768xf32> to vector<8x512xf32>
    %303 = arith.addf %301, %302 : vector<8x512xf32>
    %304 = arith.negf %303 : vector<8x512xf32>
    %305 = math.exp %304 : vector<8x512xf32>
    %cst_50 = arith.constant 1.000000e+00 : f32
    %306 = vector.broadcast %cst_50 : f32 to vector<8x512xf32>
    %307 = arith.addf %306, %305 : vector<8x512xf32>
    %308 = arith.divf %306, %307 : vector<8x512xf32>
    %309 = vector.extract_strided_slice %308 {offsets = [0, 0], sizes = [8, 256], strides = [1, 1]} : vector<8x512xf32> to vector<8x256xf32>
    %310 = vector.extract_strided_slice %308 {offsets = [0, 256], sizes = [8, 256], strides = [1, 1]} : vector<8x512xf32> to vector<8x256xf32>
    %311 = vector.extract_strided_slice %299 {offsets = [0, 512], sizes = [8, 256], strides = [1, 1]} : vector<8x768xf32> to vector<8x256xf32>
    %312 = vector.extract_strided_slice %300 {offsets = [0, 512], sizes = [8, 256], strides = [1, 1]} : vector<8x768xf32> to vector<8x256xf32>
    %313 = arith.addf %312, %192 : vector<8x256xf32>
    %314 = arith.mulf %309, %313 : vector<8x256xf32>
    %315 = arith.addf %311, %314 : vector<8x256xf32>
    %316 = math.tanh %315 : vector<8x256xf32>
    %317 = arith.subf %298, %316 : vector<8x256xf32>
    %318 = arith.mulf %310, %317 : vector<8x256xf32>
    %319 = arith.addf %316, %318 : vector<8x256xf32>
    %320 = vector.extract_strided_slice %188 {offsets = [48, 0], sizes = [8, 768], strides = [1, 1]} : vector<64x768xf32> to vector<8x768xf32>
    %cst_51 = arith.constant dense<0.000000e+00> : vector<8x768xf32>
    %321 = tpu.matmul %319, %189, %cst_51 {dimension_numbers = #tpu.dot_dimension_numbers<[1], [0], [0], [1], [0, 0, 1, 1], [], []>} : vector<8x256xf32>, vector<256x768xf32>, vector<8x768xf32> -> vector<8x768xf32>
    %322 = vector.extract_strided_slice %320 {offsets = [0, 0], sizes = [8, 512], strides = [1, 1]} : vector<8x768xf32> to vector<8x512xf32>
    %323 = vector.extract_strided_slice %321 {offsets = [0, 0], sizes = [8, 512], strides = [1, 1]} : vector<8x768xf32> to vector<8x512xf32>
    %324 = arith.addf %322, %323 : vector<8x512xf32>
    %325 = arith.negf %324 : vector<8x512xf32>
    %326 = math.exp %325 : vector<8x512xf32>
    %cst_52 = arith.constant 1.000000e+00 : f32
    %327 = vector.broadcast %cst_52 : f32 to vector<8x512xf32>
    %328 = arith.addf %327, %326 : vector<8x512xf32>
    %329 = arith.divf %327, %328 : vector<8x512xf32>
    %330 = vector.extract_strided_slice %329 {offsets = [0, 0], sizes = [8, 256], strides = [1, 1]} : vector<8x512xf32> to vector<8x256xf32>
    %331 = vector.extract_strided_slice %329 {offsets = [0, 256], sizes = [8, 256], strides = [1, 1]} : vector<8x512xf32> to vector<8x256xf32>
    %332 = vector.extract_strided_slice %320 {offsets = [0, 512], sizes = [8, 256], strides = [1, 1]} : vector<8x768xf32> to vector<8x256xf32>
    %333 = vector.extract_strided_slice %321 {offsets = [0, 512], sizes = [8, 256], strides = [1, 1]} : vector<8x768xf32> to vector<8x256xf32>
    %334 = arith.addf %333, %192 : vector<8x256xf32>
    %335 = arith.mulf %330, %334 : vector<8x256xf32>
    %336 = arith.addf %332, %335 : vector<8x256xf32>
    %337 = math.tanh %336 : vector<8x256xf32>
    %338 = arith.subf %319, %337 : vector<8x256xf32>
    %339 = arith.mulf %331, %338 : vector<8x256xf32>
    %340 = arith.addf %337, %339 : vector<8x256xf32>
    %341 = vector.extract_strided_slice %188 {offsets = [56, 0], sizes = [8, 768], strides = [1, 1]} : vector<64x768xf32> to vector<8x768xf32>
    %cst_53 = arith.constant dense<0.000000e+00> : vector<8x768xf32>
    %342 = tpu.matmul %340, %189, %cst_53 {dimension_numbers = #tpu.dot_dimension_numbers<[1], [0], [0], [1], [0, 0, 1, 1], [], []>} : vector<8x256xf32>, vector<256x768xf32>, vector<8x768xf32> -> vector<8x768xf32>
    %343 = vector.extract_strided_slice %341 {offsets = [0, 0], sizes = [8, 512], strides = [1, 1]} : vector<8x768xf32> to vector<8x512xf32>
    %344 = vector.extract_strided_slice %342 {offsets = [0, 0], sizes = [8, 512], strides = [1, 1]} : vector<8x768xf32> to vector<8x512xf32>
    %345 = arith.addf %343, %344 : vector<8x512xf32>
    %346 = arith.negf %345 : vector<8x512xf32>
    %347 = math.exp %346 : vector<8x512xf32>
    %cst_54 = arith.constant 1.000000e+00 : f32
    %348 = vector.broadcast %cst_54 : f32 to vector<8x512xf32>
    %349 = arith.addf %348, %347 : vector<8x512xf32>
    %350 = arith.divf %348, %349 : vector<8x512xf32>
    %351 = vector.extract_strided_slice %350 {offsets = [0, 0], sizes = [8, 256], strides = [1, 1]} : vector<8x512xf32> to vector<8x256xf32>
    %352 = vector.extract_strided_slice %350 {offsets = [0, 256], sizes = [8, 256], strides = [1, 1]} : vector<8x512xf32> to vector<8x256xf32>
    %353 = vector.extract_strided_slice %341 {offsets = [0, 512], sizes = [8, 256], strides = [1, 1]} : vector<8x768xf32> to vector<8x256xf32>
    %354 = vector.extract_strided_slice %342 {offsets = [0, 512], sizes = [8, 256], strides = [1, 1]} : vector<8x768xf32> to vector<8x256xf32>
    %355 = arith.addf %354, %192 : vector<8x256xf32>
    %356 = arith.mulf %351, %355 : vector<8x256xf32>
    %357 = arith.addf %353, %356 : vector<8x256xf32>
    %358 = math.tanh %357 : vector<8x256xf32>
    %359 = arith.subf %340, %358 : vector<8x256xf32>
    %360 = arith.mulf %352, %359 : vector<8x256xf32>
    %361 = arith.addf %358, %360 : vector<8x256xf32>
    %c0_55 = arith.constant 0 : index
    %c0_56 = arith.constant 0 : index
    %362 = vector.load %arg10[%c0_55, %c0_56] : memref<256x4xf32, #tpu.memory_space<vmem>>, vector<256x4xf32>
    %cst_57 = arith.constant dense<0.000000e+00> : vector<8x4xf32>
    %363 = tpu.matmul %361, %362, %cst_57 {dimension_numbers = #tpu.dot_dimension_numbers<[1], [0], [0], [1], [0, 0, 1, 1], [], []>} : vector<8x256xf32>, vector<256x4xf32>, vector<8x4xf32> -> vector<8x4xf32>
    %c0_58 = arith.constant 0 : index
    %c0_59 = arith.constant 0 : index
    %364 = vector.load %arg11[%c0_58, %c0_59] : memref<1x4xf32, #tpu.memory_space<vmem>>, vector<1x4xf32>
    %365 = vector.broadcast %364 : vector<1x4xf32> to vector<8x4xf32>
    %366 = arith.addf %363, %365 : vector<8x4xf32>
    %cst_60 = arith.constant dense<0xFF800000> : vector<8xf32>
    %367 = vector.multi_reduction <maximumf>, %366, %cst_60 [1] : vector<8x4xf32> to vector<8xf32>
    %368 = vector.shape_cast %367 : vector<8xf32> to vector<8x1xf32>
    %369 = vector.broadcast %368 : vector<8x1xf32> to vector<8x4xf32>
    %370 = arith.subf %366, %369 : vector<8x4xf32>
    %371 = math.exp %370 : vector<8x4xf32>
    %cst_61 = arith.constant dense<0.000000e+00> : vector<8xf32>
    %372 = vector.multi_reduction <add>, %371, %cst_61 [1] : vector<8x4xf32> to vector<8xf32>
    %373 = vector.shape_cast %372 : vector<8xf32> to vector<8x1xf32>
    %374 = vector.broadcast %373 : vector<8x1xf32> to vector<8x4xf32>
    %375 = arith.divf %371, %374 : vector<8x4xf32>
    %c0_62 = arith.constant 0 : index
    %c0_63 = arith.constant 0 : index
    %376 = vector.load %arg12[%c0_62, %c0_63] : memref<8x4xf32, #tpu.memory_space<vmem>>, vector<8x4xf32>
    tpu.vector_store %arg12[%c0_62, %c0_63], %375 {strides = array<i32>} : memref<8x4xf32, #tpu.memory_space<vmem>>, vector<8x4xf32>,
    return
  }
}

</mosaic_0001>

<llo_original>
// kernel: birnn_gru_classifier.1
$region0: #{birnn_gru_classifier.1}
  #allocation0 [shape = 'u32[]', space=smem, size = 0x4, offset = 0x4, fixed_abs, tag = 'smem constant byte address 0x4 - core index']
  #allocation1 [shape = 'u32[144,128]{1,0:T(1,128)}', space=vmem, size = 0x12000, scoped, tag = 'internal scratch']
  %s0 = inlined_call_operand.vmem [shape: f32[64,256], index: 0, kind: input, shape index: {}]
  %s1 = inlined_call_operand.hbm [shape: f32[256,768], index: 1, kind: input, shape index: {}]
  %s2 = inlined_call_operand.hbm [shape: f32[256,768], index: 2, kind: input, shape index: {}]
  %s3 = inlined_call_operand.vmem [shape: f32[1,768], index: 3, kind: input, shape index: {}]
  %s4 = inlined_call_operand.vmem [shape: f32[1,256], index: 4, kind: input, shape index: {}]
  %s5 = inlined_call_operand.hbm [shape: f32[256,768], index: 5, kind: input, shape index: {}]
  %s6 = inlined_call_operand.hbm [shape: f32[256,768], index: 6, kind: input, shape index: {}]
  %s7 = inlined_call_operand.hbm [shape: f32[256,768], index: 7, kind: input, shape index: {}]
  %s8 = inlined_call_operand.vmem [shape: f32[1,768], index: 8, kind: input, shape index: {}]
  %s9 = inlined_call_operand.vmem [shape: f32[1,256], index: 9, kind: input, shape index: {}]
  %s10 = inlined_call_operand.vmem [shape: f32[256,4], index: 10, kind: input, shape index: {}]
  %s11 = inlined_call_operand.vmem [shape: f32[1,4], index: 11, kind: input, shape index: {}]
  %s12 = inlined_call_operand.vmem [shape: f32[8,4], index: 12, kind: output, shape index: {}]
  %s13 = sld [smem:[#allocation0]]
  $region78: #{birnn_gru_classifier.1} parent=0
    _
  %s15 = ssub.s32 1, %s13
  %s16 = scalar_select 0, %s15, %s13
  $region1: #{birnn_gru_classifier.1} parent=0
    #allocation2 [shape = 'u8[786432]{0}', space=vmem, size = 0xc0000, scoped, tag = 'input window, operand 1, single buffered']
    #allocation3 [shape = 's32[1]{0}', space=sflag, size = 0x4, scoped, tag = 'scoped memory for birnn_gru_classifier.1']
    #allocation4 [shape = 'u8[786432]{0}', space=vmem, size = 0xc0000, scoped, tag = 'input window, operand 2, single buffered']
    #allocation5 [shape = 's32[1]{0}', space=sflag, size = 0x4, scoped, tag = 'scoped memory for birnn_gru_classifier.1']
    #allocation6 [shape = 'u8[786432]{0}', space=vmem, size = 0xc0000, scoped, tag = 'input window, operand 5, single buffered']
    #allocation7 [shape = 'u8[786432]{0}', space=vmem, size = 0xc0000, scoped, tag = 'input window, operand 6, single buffered']
    #allocation8 [shape = 's32[1]{0}', space=sflag, size = 0x4, scoped, tag = 'scoped memory for birnn_gru_classifier.1']
    #allocation9 [shape = 'u8[786432]{0}', space=vmem, size = 0xc0000, scoped, tag = 'input window, operand 7, single buffered']
    %17 = vsyncpa [#allocation3], 0
    %18 = vsyncpa [#allocation5], 0
    %19 = vsyncpa [#allocation8], 0
    // Predicated region
    $region2: #{birnn_gru_classifier.1} parent=1 // pred_check
      _
    $region3: #{birnn_gru_classifier.1} parent=1 // pred_check_branch
      %21 = sbr.rel (0) target = $region5
    $region4: #{birnn_gru_classifier.1} parent=1 // pred_region
      _
    $region5: #{birnn_gru_classifier.1} parent=1 // pred_fallthru
      _
    // Predicated region
    $region6: #{birnn_gru_classifier.1} parent=1 // pred_check
      _
    $region7: #{birnn_gru_classifier.1} parent=1 // pred_check_branch
      %23 = sbr.rel (0) target = $region9
    $region8: #{birnn_gru_classifier.1} parent=1 // pred_region
      %s25 = ssub.s32 24576, 24576
      %26 = vsyncadd [#allocation3], %s25
      %s27 = sshll.u32 [#allocation2], 4
      %s28 = int_to_ptr.vmem [resolvable:$true] %s27
      %33 = dma.hbm_to_vmem [thread:$0]  %s1, 24576, %s28, [#allocation3], 768, 768, 48
    $region9: #{birnn_gru_classifier.1} parent=1 // pred_fallthru
      _
    // Predicated region
    $region10: #{birnn_gru_classifier.1} parent=1 // pred_check
      _
    $region11: #{birnn_gru_classifier.1} parent=1 // pred_check_branch
      %35 = sbr.rel (0) target = $region13
    $region12: #{birnn_gru_classifier.1} parent=1 // pred_region
      %s37 = ssub.s32 24576, 24576
      %38 = vsyncadd [#allocation5], %s37
      %s39 = sshll.u32 [#allocation4], 4
      %s40 = int_to_ptr.vmem [resolvable:$true] %s39
      %45 = dma.hbm_to_vmem [thread:$0]  %s2, 24576, %s40, [#allocation5], 768, 768, 48
    $region13: #{birnn_gru_classifier.1} parent=1 // pred_fallthru
      _
    // Predicated region
    $region14: #{birnn_gru_classifier.1} parent=1 // pred_check
      _
    $region15: #{birnn_gru_classifier.1} parent=1 // pred_check_branch
      %47 = sbr.rel (0) target = $region17
    $region16: #{birnn_gru_classifier.1} parent=1 // pred_region
      _
    $region17: #{birnn_gru_classifier.1} parent=1 // pred_fallthru
      _
    // Predicated region
    $region18: #{birnn_gru_classifier.1} parent=1 // pred_check
      _
    $region19: #{birnn_gru_classifier.1} parent=1 // pred_check_branch
      %49 = sbr.rel (0) target = $region21
    $region20: #{birnn_gru_classifier.1} parent=1 // pred_region
      _
    $region21: #{birnn_gru_classifier.1} parent=1 // pred_fallthru
      _
    // Predicated region
    $region22: #{birnn_gru_classifier.1} parent=1 // pred_check
      _
    $region23: #{birnn_gru_classifier.1} parent=1 // pred_check_branch
      %51 = sbr.rel (0) target = $region25
    $region24: #{birnn_gru_classifier.1} parent=1 // pred_region
      %s53 = ssub.s32 24576, 24576
      %54 = vsyncadd [#allocation5], %s53
      %s55 = sshll.u32 [#allocation6], 4
      %s56 = int_to_ptr.vmem [resolvable:$true] %s55
      %61 = dma.hbm_to_vmem [thread:$0]  %s5, 24576, %s56, [#allocation5], 768, 768, 48
    $region25: #{birnn_gru_classifier.1} parent=1 // pred_fallthru
      _
    // Predicated region
    $region26: #{birnn_gru_classifier.1} parent=1 // pred_check
      _
    $region27: #{birnn_gru_classifier.1} parent=1 // pred_check_branch
      %63 = sbr.rel (0) target = $region29
    $region28: #{birnn_gru_classifier.1} parent=1 // pred_region
      %s65 = ssub.s32 24576, 24576
      %66 = vsyncadd [#allocation8], %s65
      %s67 = sshll.u32 [#allocation7], 4
      %s68 = int_to_ptr.vmem [resolvable:$true] %s67
      %73 = dma.hbm_to_vmem [thread:$0]  %s6, 24576, %s68, [#allocation8], 768, 768, 48
    $region29: #{birnn_gru_classifier.1} parent=1 // pred_fallthru
      _
    // Predicated region
    $region30: #{birnn_gru_classifier.1} parent=1 // pred_check
      _
    $region31: #{birnn_gru_classifier.1} parent=1 // pred_check_branch
      %75 = sbr.rel (0) target = $region33
    $region32: #{birnn_gru_classifier.1} parent=1 // pred_region
      %s77 = ssub.s32 24576, 24576
      %78 = vsyncadd [#allocation8], %s77
      %s79 = sshll.u32 [#allocation9], 4
      %s80 = int_to_ptr.vmem [resolvable:$true] %s79
      %85 = dma.hbm_to_vmem [thread:$0]  %s7, 24576, %s80, [#allocation8], 768, 768, 48
    $region33: #{birnn_gru_classifier.1} parent=1 // pred_fallthru
      _
    // Predicated region
    $region34: #{birnn_gru_classifier.1} parent=1 // pred_check
      _
    $region35: #{birnn_gru_classifier.1} parent=1 // pred_check_branch
      %87 = sbr.rel (0) target = $region37
    $region36: #{birnn_gru_classifier.1} parent=1 // pred_region
      _
    $region37: #{birnn_gru_classifier.1} parent=1 // pred_fallthru
      _
    // Predicated region
    $region38: #{birnn_gru_classifier.1} parent=1 // pred_check
      _
    $region39: #{birnn_gru_classifier.1} parent=1 // pred_check_branch
      %89 = sbr.rel (0) target = $region41
    $region40: #{birnn_gru_classifier.1} parent=1 // pred_region
      _
    $region41: #{birnn_gru_classifier.1} parent=1 // pred_fallthru
      _
    // Predicated region
    $region42: #{birnn_gru_classifier.1} parent=1 // pred_check
      _
    $region43: #{birnn_gru_classifier.1} parent=1 // pred_check_branch
      %91 = sbr.rel (0) target = $region45
    $region44: #{birnn_gru_classifier.1} parent=1 // pred_region
      _
    $region45: #{birnn_gru_classifier.1} parent=1 // pred_fallthru
      _
    // Predicated region
    $region46: #{birnn_gru_classifier.1} parent=1 // pred_check
      _
    $region47: #{birnn_gru_classifier.1} parent=1 // pred_check_branch
      %93 = sbr.rel (0) target = $region49
    $region48: #{birnn_gru_classifier.1} parent=1 // pred_region
      _
    $region49: #{birnn_gru_classifier.1} parent=1 // pred_fallthru
      _
    // Predicated region
    $region50: #{birnn_gru_classifier.1} parent=1 // pred_check
      _
    $region51: #{birnn_gru_classifier.1} parent=1 // pred_check_branch
      %95 = sbr.rel (0) target = $region53
    $region52: #{birnn_gru_classifier.1} parent=1 // pred_region
      %96 = dma.done [#allocation3], 24576
    $region53: #{birnn_gru_classifier.1} parent=1 // pred_fallthru
      _
    // Predicated region
    $region54: #{birnn_gru_classifier.1} parent=1 // pred_check
      _
    $region55: #{birnn_gru_classifier.1} parent=1 // pred_check_branch
      %98 = sbr.rel (0) target = $region57
    $region56: #{birnn_gru_classifier.1} parent=1 // pred_region
      %99 = dma.done [#allocation5], 24576
    $region57: #{birnn_gru_classifier.1} parent=1 // pred_fallthru
      _
    // Predicated region
    $region58: #{birnn_gru_classifier.1} parent=1 // pred_check
      _
    $region59: #{birnn_gru_classifier.1} parent=1 // pred_check_branch
      %101 = sbr.rel (0) target = $region61
    $region60: #{birnn_gru_classifier.1} parent=1 // pred_region
      %102 = dma.done [#allocation5], 24576
    $region61: #{birnn_gru_classifier.1} parent=1 // pred_fallthru
      _
    // Predicated region
    $region62: #{birnn_gru_classifier.1} parent=1 // pred_check
      _
    $region63: #{birnn_gru_classifier.1} parent=1 // pred_check_branch
      %104 = sbr.rel (0) target = $region65
    $region64: #{birnn_gru_classifier.1} parent=1 // pred_region
      %105 = dma.done [#allocation8], 24576
    $region65: #{birnn_gru_classifier.1} parent=1 // pred_fallthru
      _
    // Predicated region
    $region66: #{birnn_gru_classifier.1} parent=1 // pred_check
      _
    $region67: #{birnn_gru_classifier.1} parent=1 // pred_check_branch
      %107 = sbr.rel (0) target = $region69
    $region68: #{birnn_gru_classifier.1} parent=1 // pred_region
      %108 = dma.done [#allocation8], 24576
    $region69: #{birnn_gru_classifier.1} parent=1 // pred_fallthru
      _
    %v109 = vld [vmem:[%s0] sm:$0xff]
    %v110 = vld [vmem:[%s0 + $0x8] sm:$0xff]
    %v111 = vld [vmem:[%s0 + $0x10] sm:$0xff]
    %v112 = vld [vmem:[%s0 + $0x18] sm:$0xff]
    %v113 = vld [vmem:[%s0 + $0x20] sm:$0xff]
    %v114 = vld [vmem:[%s0 + $0x28] sm:$0xff]
    %v115 = vld [vmem:[%s0 + $0x30] sm:$0xff]
    %v116 = vld [vmem:[%s0 + $0x38] sm:$0xff]
    %v117 = vld [vmem:[%s0 + $0x40] sm:$0xff]
    %v118 = vld [vmem:[%s0 + $0x48] sm:$0xff]
    %v119 = vld [vmem:[%s0 + $0x50] sm:$0xff]
    %v120 = vld [vmem:[%s0 + $0x58] sm:$0xff]
    %v121 = vld [vmem:[%s0 + $0x60] sm:$0xff]
    %v122 = vld [vmem:[%s0 + $0x68] sm:$0xff]
    %v123 = vld [vmem:[%s0 + $0x70] sm:$0xff]
    %v124 = vld [vmem:[%s0 + $0x78] sm:$0xff]
    %v125 = vld [vmem:[#allocation2] sm:$0xff]
    %v126 = vld [vmem:[#allocation2 + $0x8] sm:$0xff]
    %v127 = vld [vmem:[#allocation2 + $0x10] sm:$0xff]
    %v128 = vld [vmem:[#allocation2 + $0x18] sm:$0xff]
    %v129 = vld [vmem:[#allocation2 + $0x20] sm:$0xff]
    %v130 = vld [vmem:[#allocation2 + $0x28] sm:$0xff]
    %v131 = vld [vmem:[#allocation2 + $0x30] sm:$0xff]
    %v132 = vld [vmem:[#allocation2 + $0x38] sm:$0xff]
    %v133 = vld [vmem:[#allocation2 + $0x40] sm:$0xff]
    %v134 = vld [vmem:[#allocation2 + $0x48] sm:$0xff]
    %v135 = vld [vmem:[#allocation2 + $0x50] sm:$0xff]
    %v136 = vld [vmem:[#allocation2 + $0x58] sm:$0xff]
    %v137 = vld [vmem:[#allocation2 + $0x60] sm:$0xff]
    %v138 = vld [vmem:[#allocation2 + $0x68] sm:$0xff]
    %v139 = vld [vmem:[#allocation2 + $0x70] sm:$0xff]
    %v140 = vld [vmem:[#allocation2 + $0x78] sm:$0xff]
    %v141 = vld [vmem:[#allocation2 + $0x80] sm:$0xff]
    %v142 = vld [vmem:[#allocation2 + $0x88] sm:$0xff]
    %v143 = vld [vmem:[#allocation2 + $0x90] sm:$0xff]
    %v144 = vld [vmem:[#allocation2 + $0x98] sm:$0xff]
    %v145 = vld [vmem:[#allocation2 + $0xa0] sm:$0xff]
    %v146 = vld [vmem:[#allocation2 + $0xa8] sm:$0xff]
    %v147 = vld [vmem:[#allocation2 + $0xb0] sm:$0xff]
    %v148 = vld [vmem:[#allocation2 + $0xb8] sm:$0xff]
    %v149 = vld [vmem:[#allocation2 + $0xc0] sm:$0xff]
    %v150 = vld [vmem:[#allocation2 + $0xc8] sm:$0xff]
    %v151 = vld [vmem:[#allocation2 + $0xd0] sm:$0xff]
    %v152 = vld [vmem:[#allocation2 + $0xd8] sm:$0xff]
    %v153 = vld [vmem:[#allocation2 + $0xe0] sm:$0xff]
    %v154 = vld [vmem:[#allocation2 + $0xe8] sm:$0xff]
    %v155 = vld [vmem:[#allocation2 + $0xf0] sm:$0xff]
    %v156 = vld [vmem:[#allocation2 + $0xf8] sm:$0xff]
    %v157 = vld [vmem:[#allocation2 + $0x100] sm:$0xff]
    %v158 = vld [vmem:[#allocation2 + $0x108] sm:$0xff]
    %v159 = vld [vmem:[#allocation2 + $0x110] sm:$0xff]
    %v160 = vld [vmem:[#allocation2 + $0x118] sm:$0xff]
    %v161 = vld [vmem:[#allocation2 + $0x120] sm:$0xff]
    %v162 = vld [vmem:[#allocation2 + $0x128] sm:$0xff]
    %v163 = vld [vmem:[#allocation2 + $0x130] sm:$0xff]
    %v164 = vld [vmem:[#allocation2 + $0x138] sm:$0xff]
    %v165 = vld [vmem:[#allocation2 + $0x140] sm:$0xff]
    %v166 = vld [vmem:[#allocation2 + $0x148] sm:$0xff]
    %v167 = vld [vmem:[#allocation2 + $0x150] sm:$0xff]
    %v168 = vld [vmem:[#allocation2 + $0x158] sm:$0xff]
    %v169 = vld [vmem:[#allocation2 + $0x160] sm:$0xff]
    %v170 = vld [vmem:[#allocation2 + $0x168] sm:$0xff]
    %v171 = vld [vmem:[#allocation2 + $0x170] sm:$0xff]
    %v172 = vld [vmem:[#allocation2 + $0x178] sm:$0xff]
    %v173 = vld [vmem:[#allocation2 + $0x180] sm:$0xff]
    %v174 = vld [vmem:[#allocation2 + $0x188] sm:$0xff]
    %v175 = vld [vmem:[#allocation2 + $0x190] sm:$0xff]
    %v176 = vld [vmem:[#allocation2 + $0x198] sm:$0xff]
    %v177 = vld [vmem:[#allocation2 + $0x1a0] sm:$0xff]
    %v178 = vld [vmem:[#allocation2 + $0x1a8] sm:$0xff]
    %v179 = vld [vmem:[#allocation2 + $0x1b0] sm:$0xff]
    %v180 = vld [vmem:[#allocation2 + $0x1b8] sm:$0xff]
    %v181 = vld [vmem:[#allocation2 + $0x1c0] sm:$0xff]
    %v182 = vld [vmem:[#allocation2 + $0x1c8] sm:$0xff]
    %v183 = vld [vmem:[#allocation2 + $0x1d0] sm:$0xff]
    %v184 = vld [vmem:[#allocation2 + $0x1d8] sm:$0xff]
    %v185 = vld [vmem:[#allocation2 + $0x1e0] sm:$0xff]
    %v186 = vld [vmem:[#allocation2 + $0x1e8] sm:$0xff]
    %v187 = vld [vmem:[#allocation2 + $0x1f0] sm:$0xff]
    %v188 = vld [vmem:[#allocation2 + $0x1f8] sm:$0xff]
    %v189 = vld [vmem:[#allocation2 + $0x200] sm:$0xff]
    %v190 = vld [vmem:[#allocation2 + $0x208] sm:$0xff]
    %v191 = vld [vmem:[#allocation2 + $0x210] sm:$0xff]
    %v192 = vld [vmem:[#allocation2 + $0x218] sm:$0xff]
    %v193 = vld [vmem:[#allocation2 + $0x220] sm:$0xff]
    %v194 = vld [vmem:[#allocation2 + $0x228] sm:$0xff]
    %v195 = vld [vmem:[#allocation2 + $0x230] sm:$0xff]
    %v196 = vld [vmem:[#allocation2 + $0x238] sm:$0xff]
    %v197 = vld [vmem:[#allocation2 + $0x240] sm:$0xff]
    %v198 = vld [vmem:[#allocation2 + $0x248] sm:$0xff]
    %v199 = vld [vmem:[#allocation2 + $0x250] sm:$0xff]
    %v200 = vld [vmem:[#allocation2 + $0x258] sm:$0xff]
    %v201 = vld [vmem:[#allocation2 + $0x260] sm:$0xff]
    %v202 = vld [vmem:[#allocation2 + $0x268] sm:$0xff]
    %v203 = vld [vmem:[#allocation2 + $0x270] sm:$0xff]
    %v204 = vld [vmem:[#allocation2 + $0x278] sm:$0xff]
    %v205 = vld [vmem:[#allocation2 + $0x280] sm:$0xff]
    %v206 = vld [vmem:[#allocation2 + $0x288] sm:$0xff]
    %v207 = vld [vmem:[#allocation2 + $0x290] sm:$0xff]
    %v208 = vld [vmem:[#allocation2 + $0x298] sm:$0xff]
    %v209 = vld [vmem:[#allocation2 + $0x2a0] sm:$0xff]
    %v210 = vld [vmem:[#allocation2 + $0x2a8] sm:$0xff]
    %v211 = vld [vmem:[#allocation2 + $0x2b0] sm:$0xff]
    %v212 = vld [vmem:[#allocation2 + $0x2b8] sm:$0xff]
    %v213 = vld [vmem:[#allocation2 + $0x2c0] sm:$0xff]
    %v214 = vld [vmem:[#allocation2 + $0x2c8] sm:$0xff]
    %v215 = vld [vmem:[#allocation2 + $0x2d0] sm:$0xff]
    %v216 = vld [vmem:[#allocation2 + $0x2d8] sm:$0xff]
    %v217 = vld [vmem:[#allocation2 + $0x2e0] sm:$0xff]
    %v218 = vld [vmem:[#allocation2 + $0x2e8] sm:$0xff]
    %v219 = vld [vmem:[#allocation2 + $0x2f0] sm:$0xff]
    %v220 = vld [vmem:[#allocation2 + $0x2f8] sm:$0xff]
    %v221 = vld [vmem:[#allocation2 + $0x300] sm:$0xff]
    %v222 = vld [vmem:[#allocation2 + $0x308] sm:$0xff]
    %v223 = vld [vmem:[#allocation2 + $0x310] sm:$0xff]
    %v224 = vld [vmem:[#allocation2 + $0x318] sm:$0xff]
    %v225 = vld [vmem:[#allocation2 + $0x320] sm:$0xff]
    %v226 = vld [vmem:[#allocation2 + $0x328] sm:$0xff]
    %v227 = vld [vmem:[#allocation2 + $0x330] sm:$0xff]
    %v228 = vld [vmem:[#allocation2 + $0x338] sm:$0xff]
    %v229 = vld [vmem:[#allocation2 + $0x340] sm:$0xff]
    %v230 = vld [vmem:[#allocation2 + $0x348] sm:$0xff]
    %v231 = vld [vmem:[#allocation2 + $0x350] sm:$0xff]
    %v232 = vld [vmem:[#allocation2 + $0x358] sm:$0xff]
    %v233 = vld [vmem:[#allocation2 + $0x360] sm:$0xff]
    %v234 = vld [vmem:[#allocation2 + $0x368] sm:$0xff]
    %v235 = vld [vmem:[#allocation2 + $0x370] sm:$0xff]
    %v236 = vld [vmem:[#allocation2 + $0x378] sm:$0xff]
    %v237 = vld [vmem:[#allocation2 + $0x380] sm:$0xff]
    %v238 = vld [vmem:[#allocation2 + $0x388] sm:$0xff]
    %v239 = vld [vmem:[#allocation2 + $0x390] sm:$0xff]
    %v240 = vld [vmem:[#allocation2 + $0x398] sm:$0xff]
    %v241 = vld [vmem:[#allocation2 + $0x3a0] sm:$0xff]
    %v242 = vld [vmem:[#allocation2 + $0x3a8] sm:$0xff]
    %v243 = vld [vmem:[#allocation2 + $0x3b0] sm:$0xff]
    %v244 = vld [vmem:[#allocation2 + $0x3b8] sm:$0xff]
    %v245 = vld [vmem:[#allocation2 + $0x3c0] sm:$0xff]
    %v246 = vld [vmem:[#allocation2 + $0x3c8] sm:$0xff]
    %v247 = vld [vmem:[#allocation2 + $0x3d0] sm:$0xff]
    %v248 = vld [vmem:[#allocation2 + $0x3d8] sm:$0xff]
    %v249 = vld [vmem:[#allocation2 + $0x3e0] sm:$0xff]
    %v250 = vld [vmem:[#allocation2 + $0x3e8] sm:$0xff]
    %v251 = vld [vmem:[#allocation2 + $0x3f0] sm:$0xff]
    %v252 = vld [vmem:[#allocation2 + $0x3f8] sm:$0xff]
    %v253 = vld [vmem:[#allocation2 + $0x400] sm:$0xff]
    %v254 = vld [vmem:[#allocation2 + $0x408] sm:$0xff]
    %v255 = vld [vmem:[#allocation2 + $0x410] sm:$0xff]
    %v256 = vld [vmem:[#allocation2 + $0x418] sm:$0xff]
    %v257 = vld [vmem:[#allocation2 + $0x420] sm:$0xff]
    %v258 = vld [vmem:[#allocation2 + $0x428] sm:$0xff]
    %v259 = vld [vmem:[#allocation2 + $0x430] sm:$0xff]
    %v260 = vld [vmem:[#allocation2 + $0x438] sm:$0xff]
    %v261 = vld [vmem:[#allocation2 + $0x440] sm:$0xff]
    %v262 = vld [vmem:[#allocation2 + $0x448] sm:$0xff]
    %v263 = vld [vmem:[#allocation2 + $0x450] sm:$0xff]
    %v264 = vld [vmem:[#allocation2 + $0x458] sm:$0xff]
    %v265 = vld [vmem:[#allocation2 + $0x460] sm:$0xff]
    %v266 = vld [vmem:[#allocation2 + $0x468] sm:$0xff]
    %v267 = vld [vmem:[#allocation2 + $0x470] sm:$0xff]
    %v268 = vld [vmem:[#allocation2 + $0x478] sm:$0xff]
    %v269 = vld [vmem:[#allocation2 + $0x480] sm:$0xff]
    %v270 = vld [vmem:[#allocation2 + $0x488] sm:$0xff]
    %v271 = vld [vmem:[#allocation2 + $0x490] sm:$0xff]
    %v272 = vld [vmem:[#allocation2 + $0x498] sm:$0xff]
    %v273 = vld [vmem:[#allocation2 + $0x4a0] sm:$0xff]
    %v274 = vld [vmem:[#allocation2 + $0x4a8] sm:$0xff]
    %v275 = vld [vmem:[#allocation2 + $0x4b0] sm:$0xff]
    %v276 = vld [vmem:[#allocation2 + $0x4b8] sm:$0xff]
    %v277 = vld [vmem:[#allocation2 + $0x4c0] sm:$0xff]
    %v278 = vld [vmem:[#allocation2 + $0x4c8] sm:$0xff]
    %v279 = vld [vmem:[#allocation2 + $0x4d0] sm:$0xff]
    %v280 = vld [vmem:[#allocation2 + $0x4d8] sm:$0xff]
    %v281 = vld [vmem:[#allocation2 + $0x4e0] sm:$0xff]
    %v282 = vld [vmem:[#allocation2 + $0x4e8] sm:$0xff]
    %v283 = vld [vmem:[#allocation2 + $0x4f0] sm:$0xff]
    %v284 = vld [vmem:[#allocation2 + $0x4f8] sm:$0xff]
    %v285 = vld [vmem:[#allocation2 + $0x500] sm:$0xff]
    %v286 = vld [vmem:[#allocation2 + $0x508] sm:$0xff]
    %v287 = vld [vmem:[#allocation2 + $0x510] sm:$0xff]
    %v288 = vld [vmem:[#allocation2 + $0x518] sm:$0xff]
    %v289 = vld [vmem:[#allocation2 + $0x520] sm:$0xff]
    %v290 = vld [vmem:[#allocation2 + $0x528] sm:$0xff]
    %v291 = vld [vmem:[#allocation2 + $0x530] sm:$0xff]
    %v292 = vld [vmem:[#allocation2 + $0x538] sm:$0xff]
    %v293 = vld [vmem:[#allocation2 + $0x540] sm:$0xff]
    %v294 = vld [vmem:[#allocation2 + $0x548] sm:$0xff]
    %v295 = vld [vmem:[#allocation2 + $0x550] sm:$0xff]
    %v296 = vld [vmem:[#allocation2 + $0x558] sm:$0xff]
    %v297 = vld [vmem:[#allocation2 + $0x560] sm:$0xff]
    %v298 = vld [vmem:[#allocation2 + $0x568] sm:$0xff]
    %v299 = vld [vmem:[#allocation2 + $0x570] sm:$0xff]
    %v300 = vld [vmem:[#allocation2 + $0x578] sm:$0xff]
    %v301 = vld [vmem:[#allocation2 + $0x580] sm:$0xff]
    %v302 = vld [vmem:[#allocation2 + $0x588] sm:$0xff]
    %v303 = vld [vmem:[#allocation2 + $0x590] sm:$0xff]
    %v304 = vld [vmem:[#allocation2 + $0x598] sm:$0xff]
    %v305 = vld [vmem:[#allocation2 + $0x5a0] sm:$0xff]
    %v306 = vld [vmem:[#allocation2 + $0x5a8] sm:$0xff]
    %v307 = vld [vmem:[#allocation2 + $0x5b0] sm:$0xff]
    %v308 = vld [vmem:[#allocation2 + $0x5b8] sm:$0xff]
    %v309 = vld [vmem:[#allocation2 + $0x5c0] sm:$0xff]
    %v310 = vld [vmem:[#allocation2 + $0x5c8] sm:$0xff]
    %v311 = vld [vmem:[#allocation2 + $0x5d0] sm:$0xff]
    %v312 = vld [vmem:[#allocation2 + $0x5d8] sm:$0xff]
    %v313 = vld [vmem:[#allocation2 + $0x5e0] sm:$0xff]
    %v314 = vld [vmem:[#allocation2 + $0x5e8] sm:$0xff]
    %v315 = vld [vmem:[#allocation2 + $0x5f0] sm:$0xff]
    %v316 = vld [vmem:[#allocation2 + $0x5f8] sm:$0xff]
    %v317 = vld [vmem:[%s3] sm:$0x3f]
    %v319 = vlaneseq
    %v320 = vshrl.u32 %v319, 7
    %v321 = vsub.s32 0, %v320
    %v322 = vrot.slane %v317, %v321
    %v323 = vlaneseq
    %v324 = vshrl.u32 %v323, 7
    %v325 = vsub.s32 1, %v324
    %v326 = vrot.slane %v317, %v325
    %v327 = vlaneseq
    %v328 = vshrl.u32 %v327, 7
    %v329 = vsub.s32 2, %v328
    %v330 = vrot.slane %v317, %v329
    %v331 = vlaneseq
    %v332 = vshrl.u32 %v331, 7
    %v333 = vsub.s32 3, %v332
    %v334 = vrot.slane %v317, %v333
    %v335 = vlaneseq
    %v336 = vshrl.u32 %v335, 7
    %v337 = vsub.s32 4, %v336
    %v338 = vrot.slane %v317, %v337
    %v339 = vlaneseq
    %v340 = vshrl.u32 %v339, 7
    %v341 = vsub.s32 5, %v340
    %v342 = vrot.slane %v317, %v341
    %349 = vmatprep.subr.mxu0 %v126
    %350 = vmatpush1.msra.mxu0 %v125
    %351 = vmatprep.subr.mxu0 %v132
    %352 = vmatpush1.msra.mxu0 %v131
    %353 = vmatprep.subr.mxu0 %v138
    %354 = vmatpush1.msra.mxu0 %v137
    %355 = vmatprep.subr.mxu0 %v144
    %356 = vmatpush1.msra.mxu0 %v143
    %357 = vmatprep.subr.mxu0 %v150
    %358 = vmatpush1.msra.mxu0 %v149
    %359 = vmatprep.subr.mxu0 %v156
    %360 = vmatpush1.msra.mxu0 %v155
    %361 = vmatprep.subr.mxu0 %v162
    %362 = vmatpush1.msra.mxu0 %v161
    %363 = vmatprep.subr.mxu0 %v168
    %364 = vmatpush1.msra.mxu0 %v167
    %365 = vmatprep.subr.mxu0 %v174
    %366 = vmatpush1.msra.mxu0 %v173
    %367 = vmatprep.subr.mxu0 %v180
    %368 = vmatpush1.msra.mxu0 %v179
    %369 = vmatprep.subr.mxu0 %v186
    %370 = vmatpush1.msra.mxu0 %v185
    %371 = vmatprep.subr.mxu0 %v192
    %372 = vmatpush1.msra.mxu0 %v191
    %373 = vmatprep.subr.mxu0 %v198
    %374 = vmatpush1.msra.mxu0 %v197
    %375 = vmatprep.subr.mxu0 %v204
    %376 = vmatpush1.msra.mxu0 %v203
    %377 = vmatprep.subr.mxu0 %v210
    %378 = vmatpush1.msra.mxu0 %v209
    %379 = vmatprep.subr.mxu0 %v216
    %380 = vmatpush1.msra.mxu0 %v215
    %381 = vmatprep.subr.mxu0 %v222
    %382 = vmatpush1.msra.mxu0 %v221
    %383 = vmatprep.subr.mxu0 %v228
    %384 = vmatpush1.msra.mxu0 %v227
    %385 = vmatprep.subr.mxu0 %v234
    %386 = vmatpush1.msra.mxu0 %v233
    %387 = vmatprep.subr.mxu0 %v240
    %388 = vmatpush1.msra.mxu0 %v239
    %389 = vmatprep.subr.mxu0 %v246
    %390 = vmatpush1.msra.mxu0 %v245
    %391 = vmatprep.subr.mxu0 %v252
    %392 = vmatpush1.msra.mxu0 %v251
    %393 = vmatprep.subr.mxu0 %v258
    %394 = vmatpush1.msra.mxu0 %v257
    %395 = vmatprep.subr.mxu0 %v264
    %396 = vmatpush1.msra.mxu0 %v263
    %397 = vmatprep.subr.mxu0 %v270
    %398 = vmatpush1.msra.mxu0 %v269
    %399 = vmatprep.subr.mxu0 %v276
    %400 = vmatpush1.msra.mxu0 %v275
    %401 = vmatprep.subr.mxu0 %v282
    %402 = vmatpush1.msra.mxu0 %v281
    %403 = vmatprep.subr.mxu0 %v288
    %404 = vmatpush1.msra.mxu0 %v287
    %405 = vmatprep.subr.mxu0 %v294
    %406 = vmatpush1.msra.mxu0 %v293
    %407 = vmatprep.subr.mxu0 %v300
    %408 = vmatpush1.msra.mxu0 %v299
    %409 = vmatprep.subr.mxu0 %v306
    %410 = vmatpush1.msra.mxu0 %v305
    %411 = vmatprep.subr.mxu0 %v312
    %412 = vmatpush1.msra.mxu0 %v311
    %413 = vmatprep.mubr.f32.mxu0 %v110
    %414 = vmatmul.mubr.f32.gmra.mrb[0].mxu0 %v109
    %v415 = vpop.f32.mrb[0].mxu0
    %v416 = vadd.f32 %v322, %v415
    %v417 = vpop.f32.mrb[0].mxu0
    %v418 = vadd.f32 %v326, %v417
    %419 = vmatprep.mubr.f32.mxu0 %v112
    %420 = vmatmul.mubr.f32.gmra.mrb[0].mxu0 %v111
    %v421 = vpop.f32.mrb[0].mxu0
    %v422 = vadd.f32 %v322, %v421
    %v423 = vpop.f32.mrb[0].mxu0
    %v424 = vadd.f32 %v326, %v423
    %425 = vmatprep.mubr.f32.mxu0 %v114
    %426 = vmatmul.mubr.f32.gmra.mrb[0].mxu0 %v113
    %v427 = vpop.f32.mrb[0].mxu0
    %v428 = vadd.f32 %v322, %v427
    %v429 = vpop.f32.mrb[0].mxu0
    %v430 = vadd.f32 %v326, %v429
    %431 = vmatprep.mubr.f32.mxu0 %v116
    %432 = vmatmul.mubr.f32.gmra.mrb[0].mxu0 %v115
    %v433 = vpop.f32.mrb[0].mxu0
    %v434 = vadd.f32 %v322, %v433
    %v435 = vpop.f32.mrb[0].mxu0
    %v436 = vadd.f32 %v326, %v435
    %437 = vmatprep.mubr.f32.mxu0 %v118
    %438 = vmatmul.mubr.f32.gmra.mrb[0].mxu0 %v117
    %v439 = vpop.f32.mrb[0].mxu0
    %v440 = vadd.f32 %v322, %v439
    %v441 = vpop.f32.mrb[0].mxu0
    %v442 = vadd.f32 %v326, %v441
    %443 = vmatprep.mubr.f32.mxu0 %v120
    %444 = vmatmul.mubr.f32.gmra.mrb[0].mxu0 %v119
    %v445 = vpop.f32.mrb[0].mxu0
    %v446 = vadd.f32 %v322, %v445
    %v447 = vpop.f32.mrb[0].mxu0
    %v448 = vadd.f32 %v326, %v447
    %449 = vmatprep.mubr.f32.mxu0 %v122
    %450 = vmatmul.mubr.f32.gmra.mrb[0].mxu0 %v121
    %v451 = vpop.f32.mrb[0].mxu0
    %v452 = vadd.f32 %v322, %v451
    %v453 = vpop.f32.mrb[0].mxu0
    %v454 = vadd.f32 %v326, %v453
    %455 = vmatprep.mubr.f32.mxu0 %v124
    %456 = vmatmul.mubr.f32.gmra.mrb[0].mxu0 %v123
    %v457 = vpop.f32.mrb[0].mxu0
    %v458 = vadd.f32 %v322, %v457
    %v459 = vpop.f32.mrb[0].mxu0
    %v460 = vadd.f32 %v326, %v459
    %461 = vdwg.mxu0
    %462 = vmatprep.subr.mxu0 %v128
    %463 = vmatpush1.msra.mxu0 %v127
    %464 = vmatprep.subr.mxu0 %v134
    %465 = vmatpush1.msra.mxu0 %v133
    %466 = vmatprep.subr.mxu0 %v140
    %467 = vmatpush1.msra.mxu0 %v139
    %468 = vmatprep.subr.mxu0 %v146
    %469 = vmatpush1.msra.mxu0 %v145
    %470 = vmatprep.subr.mxu0 %v152
    %471 = vmatpush1.msra.mxu0 %v151
    %472 = vmatprep.subr.mxu0 %v158
    %473 = vmatpush1.msra.mxu0 %v157
    %474 = vmatprep.subr.mxu0 %v164
    %475 = vmatpush1.msra.mxu0 %v163
    %476 = vmatprep.subr.mxu0 %v170
    %477 = vmatpush1.msra.mxu0 %v169
    %478 = vmatprep.subr.mxu0 %v176
    %479 = vmatpush1.msra.mxu0 %v175
    %480 = vmatprep.subr.mxu0 %v182
    %481 = vmatpush1.msra.mxu0 %v181
    %482 = vmatprep.subr.mxu0 %v188
    %483 = vmatpush1.msra.mxu0 %v187
    %484 = vmatprep.subr.mxu0 %v194
    %485 = vmatpush1.msra.mxu0 %v193
    %486 = vmatprep.subr.mxu0 %v200
    %487 = vmatpush1.msra.mxu0 %v199
    %488 = vmatprep.subr.mxu0 %v206
    %489 = vmatpush1.msra.mxu0 %v205
    %490 = vmatprep.subr.mxu0 %v212
    %491 = vmatpush1.msra.mxu0 %v211
    %492 = vmatprep.subr.mxu0 %v218
    %493 = vmatpush1.msra.mxu0 %v217
    %494 = vmatprep.subr.mxu0 %v224
    %495 = vmatpush1.msra.mxu0 %v223
    %496 = vmatprep.subr.mxu0 %v230
    %497 = vmatpush1.msra.mxu0 %v229
    %498 = vmatprep.subr.mxu0 %v236
    %499 = vmatpush1.msra.mxu0 %v235
    %500 = vmatprep.subr.mxu0 %v242
    %501 = vmatpush1.msra.mxu0 %v241
    %502 = vmatprep.subr.mxu0 %v248
    %503 = vmatpush1.msra.mxu0 %v247
    %504 = vmatprep.subr.mxu0 %v254
    %505 = vmatpush1.msra.mxu0 %v253
    %506 = vmatprep.subr.mxu0 %v260
    %507 = vmatpush1.msra.mxu0 %v259
    %508 = vmatprep.subr.mxu0 %v266
    %509 = vmatpush1.msra.mxu0 %v265
    %510 = vmatprep.subr.mxu0 %v272
    %511 = vmatpush1.msra.mxu0 %v271
    %512 = vmatprep.subr.mxu0 %v278
    %513 = vmatpush1.msra.mxu0 %v277
    %514 = vmatprep.subr.mxu0 %v284
    %515 = vmatpush1.msra.mxu0 %v283
    %516 = vmatprep.subr.mxu0 %v290
    %517 = vmatpush1.msra.mxu0 %v289
    %518 = vmatprep.subr.mxu0 %v296
    %519 = vmatpush1.msra.mxu0 %v295
    %520 = vmatprep.subr.mxu0 %v302
    %521 = vmatpush1.msra.mxu0 %v301
    %522 = vmatprep.subr.mxu0 %v308
    %523 = vmatpush1.msra.mxu0 %v307
    %524 = vmatprep.subr.mxu0 %v314
    %525 = vmatpush1.msra.mxu0 %v313
    %526 = vmatprep.mubr.f32.mxu0 %v110
    %527 = vmatmul.mubr.f32.gmra.mrb[0].mxu0 %v109
    %v528 = vpop.f32.mrb[0].mxu0
    %v529 = vadd.f32 %v330, %v528
    %v530 = vpop.f32.mrb[0].mxu0
    %v531 = vadd.f32 %v334, %v530
    %532 = vmatprep.mubr.f32.mxu0 %v112
    %533 = vmatmul.mubr.f32.gmra.mrb[0].mxu0 %v111
    %v534 = vpop.f32.mrb[0].mxu0
    %v535 = vadd.f32 %v330, %v534
    %v536 = vpop.f32.mrb[0].mxu0
    %v537 = vadd.f32 %v334, %v536
    %538 = vmatprep.mubr.f32.mxu0 %v114
    %539 = vmatmul.mubr.f32.gmra.mrb[0].mxu0 %v113
    %v540 = vpop.f32.mrb[0].mxu0
    %v541 = vadd.f32 %v330, %v540
    %v542 = vpop.f32.mrb[0].mxu0
    %v543 = vadd.f32 %v334, %v542
    %544 = vmatprep.mubr.f32.mxu0 %v116
    %545 = vmatmul.mubr.f32.gmra.mrb[0].mxu0 %v115
    %v546 = vpop.f32.mrb[0].mxu0
    %v547 = vadd.f32 %v330, %v546
    %v548 = vpop.f32.mrb[0].mxu0
    %v549 = vadd.f32 %v334, %v548
    %550 = vmatprep.mubr.f32.mxu0 %v118
    %551 = vmatmul.mubr.f32.gmra.mrb[0].mxu0 %v117
    %v552 = vpop.f32.mrb[0].mxu0
    %v553 = vadd.f32 %v330, %v552
    %v554 = vpop.f32.mrb[0].mxu0
    %v555 = vadd.f32 %v334, %v554
    %556 = vmatprep.mubr.f32.mxu0 %v120
    %557 = vmatmul.mubr.f32.gmra.mrb[0].mxu0 %v119
    %v558 = vpop.f32.mrb[0].mxu0
    %v559 = vadd.f32 %v330, %v558
    %v560 = vpop.f32.mrb[0].mxu0
    %v561 = vadd.f32 %v334, %v560
    %562 = vmatprep.mubr.f32.mxu0 %v122
    %563 = vmatmul.mubr.f32.gmra.mrb[0].mxu0 %v121
    %v564 = vpop.f32.mrb[0].mxu0
    %v565 = vadd.f32 %v330, %v564
    %v566 = vpop.f32.mrb[0].mxu0
    %v567 = vadd.f32 %v334, %v566
    %568 = vmatprep.mubr.f32.mxu0 %v124
    %569 = vmatmul.mubr.f32.gmra.mrb[0].mxu0 %v123
    %v570 = vpop.f32.mrb[0].mxu0
    %v571 = vadd.f32 %v330, %v570
    %v572 = vpop.f32.mrb[0].mxu0
    %v573 = vadd.f32 %v334, %v572
    %574 = vdwg.mxu0
    %575 = vmatprep.subr.mxu0 %v130
    %576 = vmatpush1.msra.mxu0 %v129
    %577 = vmatprep.subr.mxu0 %v136
    %578 = vmatpush1.msra.mxu0 %v135
    %579 = vmatprep.subr.mxu0 %v142
    %580 = vmatpush1.msra.mxu0 %v141
    %581 = vmatprep.subr.mxu0 %v148
    %582 = vmatpush1.msra.mxu0 %v147
    %583 = vmatprep.subr.mxu0 %v154
    %584 = vmatpush1.msra.mxu0 %v153
    %585 = vmatprep.subr.mxu0 %v160
    %586 = vmatpush1.msra.mxu0 %v159
    %587 = vmatprep.subr.mxu0 %v166
    %588 = vmatpush1.msra.mxu0 %v165
    %589 = vmatprep.subr.mxu0 %v172
    %590 = vmatpush1.msra.mxu0 %v171
    %591 = vmatprep.subr.mxu0 %v178
    %592 = vmatpush1.msra.mxu0 %v177
    %593 = vmatprep.subr.mxu0 %v184
    %594 = vmatpush1.msra.mxu0 %v183
    %595 = vmatprep.subr.mxu0 %v190
    %596 = vmatpush1.msra.mxu0 %v189
    %597 = vmatprep.subr.mxu0 %v196
    %598 = vmatpush1.msra.mxu0 %v195
    %599 = vmatprep.subr.mxu0 %v202
    %600 = vmatpush1.msra.mxu0 %v201
    %601 = vmatprep.subr.mxu0 %v208
    %602 = vmatpush1.msra.mxu0 %v207
    %603 = vmatprep.subr.mxu0 %v214
    %604 = vmatpush1.msra.mxu0 %v213
    %605 = vmatprep.subr.mxu0 %v220
    %606 = vmatpush1.msra.mxu0 %v219
    %607 = vmatprep.subr.mxu0 %v226
    %608 = vmatpush1.msra.mxu0 %v225
    %609 = vmatprep.subr.mxu0 %v232
    %610 = vmatpush1.msra.mxu0 %v231
    %611 = vmatprep.subr.mxu0 %v238
    %612 = vmatpush1.msra.mxu0 %v237
    %613 = vmatprep.subr.mxu0 %v244
    %614 = vmatpush1.msra.mxu0 %v243
    %615 = vmatprep.subr.mxu0 %v250
    %616 = vmatpush1.msra.mxu0 %v249
    %617 = vmatprep.subr.mxu0 %v256
    %618 = vmatpush1.msra.mxu0 %v255
    %619 = vmatprep.subr.mxu0 %v262
    %620 = vmatpush1.msra.mxu0 %v261
    %621 = vmatprep.subr.mxu0 %v268
    %622 = vmatpush1.msra.mxu0 %v267
    %623 = vmatprep.subr.mxu0 %v274
    %624 = vmatpush1.msra.mxu0 %v273
    %625 = vmatprep.subr.mxu0 %v280
    %626 = vmatpush1.msra.mxu0 %v279
    %627 = vmatprep.subr.mxu0 %v286
    %628 = vmatpush1.msra.mxu0 %v285
    %629 = vmatprep.subr.mxu0 %v292
    %630 = vmatpush1.msra.mxu0 %v291
    %631 = vmatprep.subr.mxu0 %v298
    %632 = vmatpush1.msra.mxu0 %v297
    %633 = vmatprep.subr.mxu0 %v304
    %634 = vmatpush1.msra.mxu0 %v303
    %635 = vmatprep.subr.mxu0 %v310
    %636 = vmatpush1.msra.mxu0 %v309
    %637 = vmatprep.subr.mxu0 %v316
    %638 = vmatpush1.msra.mxu0 %v315
    %639 = vmatprep.mubr.f32.mxu0 %v110
    %640 = vmatmul.mubr.f32.gmra.mrb[0].mxu0 %v109
    %v641 = vpop.f32.mrb[0].mxu0
    %v642 = vadd.f32 %v338, %v641
    %v643 = vpop.f32.mrb[0].mxu0
    %v644 = vadd.f32 %v342, %v643
    %645 = vmatprep.mubr.f32.mxu0 %v112
    %646 = vmatmul.mubr.f32.gmra.mrb[0].mxu0 %v111
    %v647 = vpop.f32.mrb[0].mxu0
    %v648 = vadd.f32 %v338, %v647
    %v649 = vpop.f32.mrb[0].mxu0
    %v650 = vadd.f32 %v342, %v649
    %651 = vmatprep.mubr.f32.mxu0 %v114
    %652 = vmatmul.mubr.f32.gmra.mrb[0].mxu0 %v113
    %v653 = vpop.f32.mrb[0].mxu0
    %v654 = vadd.f32 %v338, %v653
    %v655 = vpop.f32.mrb[0].mxu0
    %v656 = vadd.f32 %v342, %v655
    %657 = vmatprep.mubr.f32.mxu0 %v116
    %658 = vmatmul.mubr.f32.gmra.mrb[0].mxu0 %v115
    %v659 = vpop.f32.mrb[0].mxu0
    %v660 = vadd.f32 %v338, %v659
    %v661 = vpop.f32.mrb[0].mxu0
    %v662 = vadd.f32 %v342, %v661
    %663 = vmatprep.mubr.f32.mxu0 %v118
    %664 = vmatmul.mubr.f32.gmra.mrb[0].mxu0 %v117
    %v665 = vpop.f32.mrb[0].mxu0
    %v666 = vadd.f32 %v338, %v665
    %v667 = vpop.f32.mrb[0].mxu0
    %v668 = vadd.f32 %v342, %v667
    %669 = vmatprep.mubr.f32.mxu0 %v120
    %670 = vmatmul.mubr.f32.gmra.mrb[0].mxu0 %v119
    %v671 = vpop.f32.mrb[0].mxu0
    %v672 = vadd.f32 %v338, %v671
    %v673 = vpop.f32.mrb[0].mxu0
    %v674 = vadd.f32 %v342, %v673
    %675 = vmatprep.mubr.f32.mxu0 %v122
    %676 = vmatmul.mubr.f32.gmra.mrb[0].mxu0 %v121
    %v677 = vpop.f32.mrb[0].mxu0
    %v678 = vadd.f32 %v338, %v677
    %v679 = vpop.f32.mrb[0].mxu0
    %v680 = vadd.f32 %v342, %v679
    %681 = vmatprep.mubr.f32.mxu0 %v124
    %682 = vmatmul.mubr.f32.gmra.mrb[0].mxu0 %v123
    %v683 = vpop.f32.mrb[0].mxu0
    %v684 = vadd.f32 %v338, %v683
    %v685 = vpop.f32.mrb[0].mxu0
    %v686 = vadd.f32 %v342, %v685
    %687 = vdwg.mxu0
    %v688 = vld [vmem:[#allocation4] sm:$0xff]
    %v689 = vld [vmem:[#allocation4 + $0x8] sm:$0xff]
    %v690 = vld [vmem:[#allocation4 + $0x10] sm:$0xff]
    %v691 = vld [vmem:[#allocation4 + $0x18] sm:$0xff]
    %v692 = vld [vmem:[#allocation4 + $0x20] sm:$0xff]
    %v693 = vld [vmem:[#allocation4 + $0x28] sm:$0xff]
    %v694 = vld [vmem:[#allocation4 + $0x30] sm:$0xff]
    %v695 = vld [vmem:[#allocation4 + $0x38] sm:$0xff]
    %v696 = vld [vmem:[#allocation4 + $0x40] sm:$0xff]
    %v697 = vld [vmem:[#allocation4 + $0x48] sm:$0xff]
    %v698 = vld [vmem:[#allocation4 + $0x50] sm:$0xff]
    %v699 = vld [vmem:[#allocation4 + $0x58] sm:$0xff]
    %v700 = vld [vmem:[#allocation4 + $0x60] sm:$0xff]
    %v701 = vld [vmem:[#allocation4 + $0x68] sm:$0xff]
    %v702 = vld [vmem:[#allocation4 + $0x70] sm:$0xff]
    %v703 = vld [vmem:[#allocation4 + $0x78] sm:$0xff]
    %v704 = vld [vmem:[#allocation4 + $0x80] sm:$0xff]
    %v705 = vld [vmem:[#allocation4 + $0x88] sm:$0xff]
    %v706 = vld [vmem:[#allocation4 + $0x90] sm:$0xff]
    %v707 = vld [vmem:[#allocation4 + $0x98] sm:$0xff]
    %v708 = vld [vmem:[#allocation4 + $0xa0] sm:$0xff]
    %v709 = vld [vmem:[#allocation4 + $0xa8] sm:$0xff]
    %v710 = vld [vmem:[#allocation4 + $0xb0] sm:$0xff]
    %v711 = vld [vmem:[#allocation4 + $0xb8] sm:$0xff]
    %v712 = vld [vmem:[#allocation4 + $0xc0] sm:$0xff]
    %v713 = vld [vmem:[#allocation4 + $0xc8] sm:$0xff]
    %v714 = vld [vmem:[#allocation4 + $0xd0] sm:$0xff]
    %v715 = vld [vmem:[#allocation4 + $0xd8] sm:$0xff]
    %v716 = vld [vmem:[#allocation4 + $0xe0] sm:$0xff]
    %v717 = vld [vmem:[#allocation4 + $0xe8] sm:$0xff]
    %v718 = vld [vmem:[#allocation4 + $0xf0] sm:$0xff]
    %v719 = vld [vmem:[#allocation4 + $0xf8] sm:$0xff]
    %v720 = vld [vmem:[#allocation4 + $0x100] sm:$0xff]
    %v721 = vld [vmem:[#allocation4 + $0x108] sm:$0xff]
    %v722 = vld [vmem:[#allocation4 + $0x110] sm:$0xff]
    %v723 = vld [vmem:[#allocation4 + $0x118] sm:$0xff]
    %v724 = vld [vmem:[#allocation4 + $0x120] sm:$0xff]
    %v725 = vld [vmem:[#allocation4 + $0x128] sm:$0xff]
    %v726 = vld [vmem:[#allocation4 + $0x130] sm:$0xff]
    %v727 = vld [vmem:[#allocation4 + $0x138] sm:$0xff]
    %v728 = vld [vmem:[#allocation4 + $0x140] sm:$0xff]
    %v729 = vld [vmem:[#allocation4 + $0x148] sm:$0xff]
    %v730 = vld [vmem:[#allocation4 + $0x150] sm:$0xff]
    %v731 = vld [vmem:[#allocation4 + $0x158] sm:$0xff]
    %v732 = vld [vmem:[#allocation4 + $0x160] sm:$0xff]
    %v733 = vld [vmem:[#allocation4 + $0x168] sm:$0xff]
    %v734 = vld [vmem:[#allocation4 + $0x170] sm:$0xff]
    %v735 = vld [vmem:[#allocation4 + $0x178] sm:$0xff]
    %v736 = vld [vmem:[#allocation4 + $0x180] sm:$0xff]
    %v737 = vld [vmem:[#allocation4 + $0x188] sm:$0xff]
    %v738 = vld [vmem:[#allocation4 + $0x190] sm:$0xff]
    %v739 = vld [vmem:[#allocation4 + $0x198] sm:$0xff]
    %v740 = vld [vmem:[#allocation4 + $0x1a0] sm:$0xff]
    %v741 = vld [vmem:[#allocation4 + $0x1a8] sm:$0xff]
    %v742 = vld [vmem:[#allocation4 + $0x1b0] sm:$0xff]
    %v743 = vld [vmem:[#allocation4 + $0x1b8] sm:$0xff]
    %v744 = vld [vmem:[#allocation4 + $0x1c0] sm:$0xff]
    %v745 = vld [vmem:[#allocation4 + $0x1c8] sm:$0xff]
    %v746 = vld [vmem:[#allocation4 + $0x1d0] sm:$0xff]
    %v747 = vld [vmem:[#allocation4 + $0x1d8] sm:$0xff]
    %v748 = vld [vmem:[#allocation4 + $0x1e0] sm:$0xff]
    %v749 = vld [vmem:[#allocation4 + $0x1e8] sm:$0xff]
    %v750 = vld [vmem:[#allocation4 + $0x1f0] sm:$0xff]
    %v751 = vld [vmem:[#allocation4 + $0x1f8] sm:$0xff]
    %v752 = vld [vmem:[#allocation4 + $0x200] sm:$0xff]
    %v753 = vld [vmem:[#allocation4 + $0x208] sm:$0xff]
    %v754 = vld [vmem:[#allocation4 + $0x210] sm:$0xff]
    %v755 = vld [vmem:[#allocation4 + $0x218] sm:$0xff]
    %v756 = vld [vmem:[#allocation4 + $0x220] sm:$0xff]
    %v757 = vld [vmem:[#allocation4 + $0x228] sm:$0xff]
    %v758 = vld [vmem:[#allocation4 + $0x230] sm:$0xff]
    %v759 = vld [vmem:[#allocation4 + $0x238] sm:$0xff]
    %v760 = vld [vmem:[#allocation4 + $0x240] sm:$0xff]
    %v761 = vld [vmem:[#allocation4 + $0x248] sm:$0xff]
    %v762 = vld [vmem:[#allocation4 + $0x250] sm:$0xff]
    %v763 = vld [vmem:[#allocation4 + $0x258] sm:$0xff]
    %v764 = vld [vmem:[#allocation4 + $0x260] sm:$0xff]
    %v765 = vld [vmem:[#allocation4 + $0x268] sm:$0xff]
    %v766 = vld [vmem:[#allocation4 + $0x270] sm:$0xff]
    %v767 = vld [vmem:[#allocation4 + $0x278] sm:$0xff]
    %v768 = vld [vmem:[#allocation4 + $0x280] sm:$0xff]
    %v769 = vld [vmem:[#allocation4 + $0x288] sm:$0xff]
    %v770 = vld [vmem:[#allocation4 + $0x290] sm:$0xff]
    %v771 = vld [vmem:[#allocation4 + $0x298] sm:$0xff]
    %v772 = vld [vmem:[#allocation4 + $0x2a0] sm:$0xff]
    %v773 = vld [vmem:[#allocation4 + $0x2a8] sm:$0xff]
    %v774 = vld [vmem:[#allocation4 + $0x2b0] sm:$0xff]
    %v775 = vld [vmem:[#allocation4 + $0x2b8] sm:$0xff]
    %v776 = vld [vmem:[#allocation4 + $0x2c0] sm:$0xff]
    %v777 = vld [vmem:[#allocation4 + $0x2c8] sm:$0xff]
    %v778 = vld [vmem:[#allocation4 + $0x2d0] sm:$0xff]
    %v779 = vld [vmem:[#allocation4 + $0x2d8] sm:$0xff]
    %v780 = vld [vmem:[#allocation4 + $0x2e0] sm:$0xff]
    %v781 = vld [vmem:[#allocation4 + $0x2e8] sm:$0xff]
    %v782 = vld [vmem:[#allocation4 + $0x2f0] sm:$0xff]
    %v783 = vld [vmem:[#allocation4 + $0x2f8] sm:$0xff]
    %v784 = vld [vmem:[#allocation4 + $0x300] sm:$0xff]
    %v785 = vld [vmem:[#allocation4 + $0x308] sm:$0xff]
    %v786 = vld [vmem:[#allocation4 + $0x310] sm:$0xff]
    %v787 = vld [vmem:[#allocation4 + $0x318] sm:$0xff]
    %v788 = vld [vmem:[#allocation4 + $0x320] sm:$0xff]
    %v789 = vld [vmem:[#allocation4 + $0x328] sm:$0xff]
    %v790 = vld [vmem:[#allocation4 + $0x330] sm:$0xff]
    %v791 = vld [vmem:[#allocation4 + $0x338] sm:$0xff]
    %v792 = vld [vmem:[#allocation4 + $0x340] sm:$0xff]
    %v793 = vld [vmem:[#allocation4 + $0x348] sm:$0xff]
    %v794 = vld [vmem:[#allocation4 + $0x350] sm:$0xff]
    %v795 = vld [vmem:[#allocation4 + $0x358] sm:$0xff]
    %v796 = vld [vmem:[#allocation4 + $0x360] sm:$0xff]
    %v797 = vld [vmem:[#allocation4 + $0x368] sm:$0xff]
    %v798 = vld [vmem:[#allocation4 + $0x370] sm:$0xff]
    %v799 = vld [vmem:[#allocation4 + $0x378] sm:$0xff]
    %v800 = vld [vmem:[#allocation4 + $0x380] sm:$0xff]
    %v801 = vld [vmem:[#allocation4 + $0x388] sm:$0xff]
    %v802 = vld [vmem:[#allocation4 + $0x390] sm:$0xff]
    %v803 = vld [vmem:[#allocation4 + $0x398] sm:$0xff]
    %v804 = vld [vmem:[#allocation4 + $0x3a0] sm:$0xff]
    %v805 = vld [vmem:[#allocation4 + $0x3a8] sm:$0xff]
    %v806 = vld [vmem:[#allocation4 + $0x3b0] sm:$0xff]
    %v807 = vld [vmem:[#allocation4 + $0x3b8] sm:$0xff]
    %v808 = vld [vmem:[#allocation4 + $0x3c0] sm:$0xff]
    %v809 = vld [vmem:[#allocation4 + $0x3c8] sm:$0xff]
    %v810 = vld [vmem:[#allocation4 + $0x3d0] sm:$0xff]
    %v811 = vld [vmem:[#allocation4 + $0x3d8] sm:$0xff]
    %v812 = vld [vmem:[#allocation4 + $0x3e0] sm:$0xff]
    %v813 = vld [vmem:[#allocation4 + $0x3e8] sm:$0xff]
    %v814 = vld [vmem:[#allocation4 + $0x3f0] sm:$0xff]
    %v815 = vld [vmem:[#allocation4 + $0x3f8] sm:$0xff]
    %v816 = vld [vmem:[#allocation4 + $0x400] sm:$0xff]
    %v817 = vld [vmem:[#allocation4 + $0x408] sm:$0xff]
    %v818 = vld [vmem:[#allocation4 + $0x410] sm:$0xff]
    %v819 = vld [vmem:[#allocation4 + $0x418] sm:$0xff]
    %v820 = vld [vmem:[#allocation4 + $0x420] sm:$0xff]
    %v821 = vld [vmem:[#allocation4 + $0x428] sm:$0xff]
    %v822 = vld [vmem:[#allocation4 + $0x430] sm:$0xff]
    %v823 = vld [vmem:[#allocation4 + $0x438] sm:$0xff]
    %v824 = vld [vmem:[#allocation4 + $0x440] sm:$0xff]
    %v825 = vld [vmem:[#allocation4 + $0x448] sm:$0xff]
    %v826 = vld [vmem:[#allocation4 + $0x450] sm:$0xff]
    %v827 = vld [vmem:[#allocation4 + $0x458] sm:$0xff]
    %v828 = vld [vmem:[#allocation4 + $0x460] sm:$0xff]
    %v829 = vld [vmem:[#allocation4 + $0x468] sm:$0xff]
    %v830 = vld [vmem:[#allocation4 + $0x470] sm:$0xff]
    %v831 = vld [vmem:[#allocation4 + $0x478] sm:$0xff]
    %v832 = vld [vmem:[#allocation4 + $0x480] sm:$0xff]
    %v833 = vld [vmem:[#allocation4 + $0x488] sm:$0xff]
    %v834 = vld [vmem:[#allocation4 + $0x490] sm:$0xff]
    %v835 = vld [vmem:[#allocation4 + $0x498] sm:$0xff]
    %v836 = vld [vmem:[#allocation4 + $0x4a0] sm:$0xff]
    %v837 = vld [vmem:[#allocation4 + $0x4a8] sm:$0xff]
    %v838 = vld [vmem:[#allocation4 + $0x4b0] sm:$0xff]
    %v839 = vld [vmem:[#allocation4 + $0x4b8] sm:$0xff]
    %v840 = vld [vmem:[#allocation4 + $0x4c0] sm:$0xff]
    %v841 = vld [vmem:[#allocation4 + $0x4c8] sm:$0xff]
    %v842 = vld [vmem:[#allocation4 + $0x4d0] sm:$0xff]
    %v843 = vld [vmem:[#allocation4 + $0x4d8] sm:$0xff]
    %v844 = vld [vmem:[#allocation4 + $0x4e0] sm:$0xff]
    %v845 = vld [vmem:[#allocation4 + $0x4e8] sm:$0xff]
    %v846 = vld [vmem:[#allocation4 + $0x4f0] sm:$0xff]
    %v847 = vld [vmem:[#allocation4 + $0x4f8] sm:$0xff]
    %v848 = vld [vmem:[#allocation4 + $0x500] sm:$0xff]
    %v849 = vld [vmem:[#allocation4 + $0x508] sm:$0xff]
    %v850 = vld [vmem:[#allocation4 + $0x510] sm:$0xff]
    %v851 = vld [vmem:[#allocation4 + $0x518] sm:$0xff]
    %v852 = vld [vmem:[#allocation4 + $0x520] sm:$0xff]
    %v853 = vld [vmem:[#allocation4 + $0x528] sm:$0xff]
    %v854 = vld [vmem:[#allocation4 + $0x530] sm:$0xff]
    %v855 = vld [vmem:[#allocation4 + $0x538] sm:$0xff]
    %v856 = vld [vmem:[#allocation4 + $0x540] sm:$0xff]
    %v857 = vld [vmem:[#allocation4 + $0x548] sm:$0xff]
    %v858 = vld [vmem:[#allocation4 + $0x550] sm:$0xff]
    %v859 = vld [vmem:[#allocation4 + $0x558] sm:$0xff]
    %v860 = vld [vmem:[#allocation4 + $0x560] sm:$0xff]
    %v861 = vld [vmem:[#allocation4 + $0x568] sm:$0xff]
    %v862 = vld [vmem:[#allocation4 + $0x570] sm:$0xff]
    %v863 = vld [vmem:[#allocation4 + $0x578] sm:$0xff]
    %v864 = vld [vmem:[#allocation4 + $0x580] sm:$0xff]
    %v865 = vld [vmem:[#allocation4 + $0x588] sm:$0xff]
    %v866 = vld [vmem:[#allocation4 + $0x590] sm:$0xff]
    %v867 = vld [vmem:[#allocation4 + $0x598] sm:$0xff]
    %v868 = vld [vmem:[#allocation4 + $0x5a0] sm:$0xff]
    %v869 = vld [vmem:[#allocation4 + $0x5a8] sm:$0xff]
    %v870 = vld [vmem:[#allocation4 + $0x5b0] sm:$0xff]
    %v871 = vld [vmem:[#allocation4 + $0x5b8] sm:$0xff]
    %v872 = vld [vmem:[#allocation4 + $0x5c0] sm:$0xff]
    %v873 = vld [vmem:[#allocation4 + $0x5c8] sm:$0xff]
    %v874 = vld [vmem:[#allocation4 + $0x5d0] sm:$0xff]
    %v875 = vld [vmem:[#allocation4 + $0x5d8] sm:$0xff]
    %v876 = vld [vmem:[#allocation4 + $0x5e0] sm:$0xff]
    %v877 = vld [vmem:[#allocation4 + $0x5e8] sm:$0xff]
    %v878 = vld [vmem:[#allocation4 + $0x5f0] sm:$0xff]
    %v879 = vld [vmem:[#allocation4 + $0x5f8] sm:$0xff]
    %v880 = vld [vmem:[%s4] sm:$0x3]
    %v882 = vlaneseq
    %v883 = vshrl.u32 %v882, 7
    %v884 = vsub.s32 0, %v883
    %v885 = vrot.slane %v880, %v884
    %v886 = vlaneseq
    %v887 = vshrl.u32 %v886, 7
    %v888 = vsub.s32 1, %v887
    %v889 = vrot.slane %v880, %v888
    %892 = vmatprep.subr.mxu0 %v689
    %893 = vmatpush1.msra.mxu0 %v688
    %894 = vmatprep.subr.mxu0 %v695
    %895 = vmatpush1.msra.mxu0 %v694
    %896 = vmatprep.subr.mxu0 %v701
    %897 = vmatpush1.msra.mxu0 %v700
    %898 = vmatprep.subr.mxu0 %v707
    %899 = vmatpush1.msra.mxu0 %v706
    %900 = vmatprep.subr.mxu0 %v713
    %901 = vmatpush1.msra.mxu0 %v712
    %902 = vmatprep.subr.mxu0 %v719
    %903 = vmatpush1.msra.mxu0 %v718
    %904 = vmatprep.subr.mxu0 %v725
    %905 = vmatpush1.msra.mxu0 %v724
    %906 = vmatprep.subr.mxu0 %v731
    %907 = vmatpush1.msra.mxu0 %v730
    %908 = vmatprep.subr.mxu0 %v737
    %909 = vmatpush1.msra.mxu0 %v736
    %910 = vmatprep.subr.mxu0 %v743
    %911 = vmatpush1.msra.mxu0 %v742
    %912 = vmatprep.subr.mxu0 %v749
    %913 = vmatpush1.msra.mxu0 %v748
    %914 = vmatprep.subr.mxu0 %v755
    %915 = vmatpush1.msra.mxu0 %v754
    %916 = vmatprep.subr.mxu0 %v761
    %917 = vmatpush1.msra.mxu0 %v760
    %918 = vmatprep.subr.mxu0 %v767
    %919 = vmatpush1.msra.mxu0 %v766
    %920 = vmatprep.subr.mxu0 %v773
    %921 = vmatpush1.msra.mxu0 %v772
    %922 = vmatprep.subr.mxu0 %v779
    %923 = vmatpush1.msra.mxu0 %v778
    %924 = vmatprep.subr.mxu0 %v785
    %925 = vmatpush1.msra.mxu0 %v784
    %926 = vmatprep.subr.mxu0 %v791
    %927 = vmatpush1.msra.mxu0 %v790
    %928 = vmatprep.subr.mxu0 %v797
    %929 = vmatpush1.msra.mxu0 %v796
    %930 = vmatprep.subr.mxu0 %v803
    %931 = vmatpush1.msra.mxu0 %v802
    %932 = vmatprep.subr.mxu0 %v809
    %933 = vmatpush1.msra.mxu0 %v808
    %934 = vmatprep.subr.mxu0 %v815
    %935 = vmatpush1.msra.mxu0 %v814
    %936 = vmatprep.subr.mxu0 %v821
    %937 = vmatpush1.msra.mxu0 %v820
    %938 = vmatprep.subr.mxu0 %v827
    %939 = vmatpush1.msra.mxu0 %v826
    %940 = vmatprep.subr.mxu0 %v833
    %941 = vmatpush1.msra.mxu0 %v832
    %942 = vmatprep.subr.mxu0 %v839
    %943 = vmatpush1.msra.mxu0 %v838
    %944 = vmatprep.subr.mxu0 %v845
    %945 = vmatpush1.msra.mxu0 %v844
    %946 = vmatprep.subr.mxu0 %v851
    %947 = vmatpush1.msra.mxu0 %v850
    %948 = vmatprep.subr.mxu0 %v857
    %949 = vmatpush1.msra.mxu0 %v856
    %950 = vmatprep.subr.mxu0 %v863
    %951 = vmatpush1.msra.mxu0 %v862
    %952 = vmatprep.subr.mxu0 %v869
    %953 = vmatpush1.msra.mxu0 %v868
    %954 = vmatprep.subr.mxu0 %v875
    %955 = vmatpush1.msra.mxu0 %v874
    %956 = vmatprep.mubr.f32.mxu0 0.0
    %957 = vmatmul.mubr.f32.gmra.mrb[0].mxu0 0.0
    %v958 = vpop.f32.mrb[0].mxu0
    %v959 = vadd.f32 0.0, %v958
    %v960 = vpop.f32.mrb[0].mxu0
    %v961 = vadd.f32 0.0, %v960
    %962 = vdwg.mxu0
    %963 = vmatprep.subr.mxu0 %v691
    %964 = vmatpush1.msra.mxu0 %v690
    %965 = vmatprep.subr.mxu0 %v697
    %966 = vmatpush1.msra.mxu0 %v696
    %967 = vmatprep.subr.mxu0 %v703
    %968 = vmatpush1.msra.mxu0 %v702
    %969 = vmatprep.subr.mxu0 %v709
    %970 = vmatpush1.msra.mxu0 %v708
    %971 = vmatprep.subr.mxu0 %v715
    %972 = vmatpush1.msra.mxu0 %v714
    %973 = vmatprep.subr.mxu0 %v721
    %974 = vmatpush1.msra.mxu0 %v720
    %975 = vmatprep.subr.mxu0 %v727
    %976 = vmatpush1.msra.mxu0 %v726
    %977 = vmatprep.subr.mxu0 %v733
    %978 = vmatpush1.msra.mxu0 %v732
    %979 = vmatprep.subr.mxu0 %v739
    %980 = vmatpush1.msra.mxu0 %v738
    %981 = vmatprep.subr.mxu0 %v745
    %982 = vmatpush1.msra.mxu0 %v744
    %983 = vmatprep.subr.mxu0 %v751
    %984 = vmatpush1.msra.mxu0 %v750
    %985 = vmatprep.subr.mxu0 %v757
    %986 = vmatpush1.msra.mxu0 %v756
    %987 = vmatprep.subr.mxu0 %v763
    %988 = vmatpush1.msra.mxu0 %v762
    %989 = vmatprep.subr.mxu0 %v769
    %990 = vmatpush1.msra.mxu0 %v768
    %991 = vmatprep.subr.mxu0 %v775
    %992 = vmatpush1.msra.mxu0 %v774
    %993 = vmatprep.subr.mxu0 %v781
    %994 = vmatpush1.msra.mxu0 %v780
    %995 = vmatprep.subr.mxu0 %v787
    %996 = vmatpush1.msra.mxu0 %v786
    %997 = vmatprep.subr.mxu0 %v793
    %998 = vmatpush1.msra.mxu0 %v792
    %999 = vmatprep.subr.mxu0 %v799
    %1000 = vmatpush1.msra.mxu0 %v798
    %1001 = vmatprep.subr.mxu0 %v805
    %1002 = vmatpush1.msra.mxu0 %v804
    %1003 = vmatprep.subr.mxu0 %v811
    %1004 = vmatpush1.msra.mxu0 %v810
    %1005 = vmatprep.subr.mxu0 %v817
    %1006 = vmatpush1.msra.mxu0 %v816
    %1007 = vmatprep.subr.mxu0 %v823
    %1008 = vmatpush1.msra.mxu0 %v822
    %1009 = vmatprep.subr.mxu0 %v829
    %1010 = vmatpush1.msra.mxu0 %v828
    %1011 = vmatprep.subr.mxu0 %v835
    %1012 = vmatpush1.msra.mxu0 %v834
    %1013 = vmatprep.subr.mxu0 %v841
    %1014 = vmatpush1.msra.mxu0 %v840
    %1015 = vmatprep.subr.mxu0 %v847
    %1016 = vmatpush1.msra.mxu0 %v846
    %1017 = vmatprep.subr.mxu0 %v853
    %1018 = vmatpush1.msra.mxu0 %v852
    %1019 = vmatprep.subr.mxu0 %v859
    %1020 = vmatpush1.msra.mxu0 %v858
    %1021 = vmatprep.subr.mxu0 %v865
    %1022 = vmatpush1.msra.mxu0 %v864
    %1023 = vmatprep.subr.mxu0 %v871
    %1024 = vmatpush1.msra.mxu0 %v870
    %1025 = vmatprep.subr.mxu0 %v877
    %1026 = vmatpush1.msra.mxu0 %v876
    %1027 = vmatprep.mubr.f32.mxu0 0.0
    %1028 = vmatmul.mubr.f32.gmra.mrb[0].mxu0 0.0
    %v1029 = vpop.f32.mrb[0].mxu0
    %v1030 = vadd.f32 0.0, %v1029
    %v1031 = vpop.f32.mrb[0].mxu0
    %v1032 = vadd.f32 0.0, %v1031
    %1033 = vdwg.mxu0
    %1034 = vmatprep.subr.mxu0 %v693
    %1035 = vmatpush1.msra.mxu0 %v692
    %1036 = vmatprep.subr.mxu0 %v699
    %1037 = vmatpush1.msra.mxu0 %v698
    %1038 = vmatprep.subr.mxu0 %v705
    %1039 = vmatpush1.msra.mxu0 %v704
    %1040 = vmatprep.subr.mxu0 %v711
    %1041 = vmatpush1.msra.mxu0 %v710
    %1042 = vmatprep.subr.mxu0 %v717
    %1043 = vmatpush1.msra.mxu0 %v716
    %1044 = vmatprep.subr.mxu0 %v723
    %1045 = vmatpush1.msra.mxu0 %v722
    %1046 = vmatprep.subr.mxu0 %v729
    %1047 = vmatpush1.msra.mxu0 %v728
    %1048 = vmatprep.subr.mxu0 %v735
    %1049 = vmatpush1.msra.mxu0 %v734
    %1050 = vmatprep.subr.mxu0 %v741
    %1051 = vmatpush1.msra.mxu0 %v740
    %1052 = vmatprep.subr.mxu0 %v747
    %1053 = vmatpush1.msra.mxu0 %v746
    %1054 = vmatprep.subr.mxu0 %v753
    %1055 = vmatpush1.msra.mxu0 %v752
    %1056 = vmatprep.subr.mxu0 %v759
    %1057 = vmatpush1.msra.mxu0 %v758
    %1058 = vmatprep.subr.mxu0 %v765
    %1059 = vmatpush1.msra.mxu0 %v764
    %1060 = vmatprep.subr.mxu0 %v771
    %1061 = vmatpush1.msra.mxu0 %v770
    %1062 = vmatprep.subr.mxu0 %v777
    %1063 = vmatpush1.msra.mxu0 %v776
    %1064 = vmatprep.subr.mxu0 %v783
    %1065 = vmatpush1.msra.mxu0 %v782
    %1066 = vmatprep.subr.mxu0 %v789
    %1067 = vmatpush1.msra.mxu0 %v788
    %1068 = vmatprep.subr.mxu0 %v795
    %1069 = vmatpush1.msra.mxu0 %v794
    %1070 = vmatprep.subr.mxu0 %v801
    %1071 = vmatpush1.msra.mxu0 %v800
    %1072 = vmatprep.subr.mxu0 %v807
    %1073 = vmatpush1.msra.mxu0 %v806
    %1074 = vmatprep.subr.mxu0 %v813
    %1075 = vmatpush1.msra.mxu0 %v812
    %1076 = vmatprep.subr.mxu0 %v819
    %1077 = vmatpush1.msra.mxu0 %v818
    %1078 = vmatprep.subr.mxu0 %v825
    %1079 = vmatpush1.msra.mxu0 %v824
    %1080 = vmatprep.subr.mxu0 %v831
    %1081 = vmatpush1.msra.mxu0 %v830
    %1082 = vmatprep.subr.mxu0 %v837
    %1083 = vmatpush1.msra.mxu0 %v836
    %1084 = vmatprep.subr.mxu0 %v843
    %1085 = vmatpush1.msra.mxu0 %v842
    %1086 = vmatprep.subr.mxu0 %v849
    %1087 = vmatpush1.msra.mxu0 %v848
    %1088 = vmatprep.subr.mxu0 %v855
    %1089 = vmatpush1.msra.mxu0 %v854
    %1090 = vmatprep.subr.mxu0 %v861
    %1091 = vmatpush1.msra.mxu0 %v860
    %1092 = vmatprep.subr.mxu0 %v867
    %1093 = vmatpush1.msra.mxu0 %v866
    %1094 = vmatprep.subr.mxu0 %v873
    %1095 = vmatpush1.msra.mxu0 %v872
    %1096 = vmatprep.subr.mxu0 %v879
    %1097 = vmatpush1.msra.mxu0 %v878
    %1098 = vmatprep.mubr.f32.mxu0 0.0
    %1099 = vmatmul.mubr.f32.gmra.mrb[0].mxu0 0.0
    %v1100 = vpop.f32.mrb[0].mxu0
    %v1101 = vadd.f32 0.0, %v1100
    %v1102 = vpop.f32.mrb[0].mxu0
    %v1103 = vadd.f32 0.0, %v1102
    %1104 = vdwg.mxu0
    %v1105 = vadd.f32 %v416, %v959
    %v1106 = vadd.f32 %v418, %v961
    %v1107 = vadd.f32 %v529, %v1030
    %v1108 = vadd.f32 %v531, %v1032
    %v1109 = vxor.u32 %v1105, 2147483648
    %v1110 = vxor.u32 %v1106, 2147483648
    %v1111 = vxor.u32 %v1107, 2147483648
    %v1112 = vxor.u32 %v1108, 2147483648
    %v1113 = vmul.f32 %v1109, 1.442695
    %v1114 = vpow.pop %v1113
    %v1115 = vmul.f32 %v1110, 1.442695
    %v1116 = vpow.pop %v1115
    %v1117 = vmul.f32 %v1111, 1.442695
    %v1118 = vpow.pop %v1117
    %v1119 = vmul.f32 %v1112, 1.442695
    %v1120 = vpow.pop %v1119
    %v1121 = vadd.f32 %v1114, 1.0
    %v1122 = vadd.f32 %v1116, 1.0
    %v1123 = vadd.f32 %v1118, 1.0
    %v1124 = vadd.f32 %v1120, 1.0
    %v1125 = vrcp.pop %v1121
    %v1126 = vmul.f32 1.0, %v1125
    %v1127 = vrcp.pop %v1122
    %v1128 = vmul.f32 1.0, %v1127
    %v1129 = vrcp.pop %v1123
    %v1130 = vmul.f32 1.0, %v1129
    %v1131 = vrcp.pop %v1124
    %v1132 = vmul.f32 1.0, %v1131
    %v1133 = vadd.f32 %v1101, %v885
    %v1134 = vadd.f32 %v1103, %v889
    %v1135 = vmul.f32 %v1126, %v1133
    %v1136 = vmul.f32 %v1128, %v1134
    %v1137 = vadd.f32 %v642, %v1135
    %v1138 = vadd.f32 %v644, %v1136
    %v1139 = vtanh.pop %v1137
    %v1140 = vtanh.pop %v1138
    %v1141 = vsub.f32 0.0, %v1139
    %v1142 = vsub.f32 0.0, %v1140
    %v1143 = vmul.f32 %v1130, %v1141
    %v1144 = vmul.f32 %v1132, %v1142
    %v1145 = vadd.f32 %v1139, %v1143
    %v1146 = vadd.f32 %v1140, %v1144
    %1147 = vmatprep.subr.mxu0 %v689
    %1148 = vmatpush1.msra.mxu0 %v688
    %1149 = vmatprep.subr.mxu0 %v695
    %1150 = vmatpush1.msra.mxu0 %v694
    %1151 = vmatprep.subr.mxu0 %v701
    %1152 = vmatpush1.msra.mxu0 %v700
    %1153 = vmatprep.subr.mxu0 %v707
    %1154 = vmatpush1.msra.mxu0 %v706
    %1155 = vmatprep.subr.mxu0 %v713
    %1156 = vmatpush1.msra.mxu0 %v712
    %1157 = vmatprep.subr.mxu0 %v719
    %1158 = vmatpush1.msra.mxu0 %v718
    %1159 = vmatprep.subr.mxu0 %v725
    %1160 = vmatpush1.msra.mxu0 %v724
    %1161 = vmatprep.subr.mxu0 %v731
    %1162 = vmatpush1.msra.mxu0 %v730
    %1163 = vmatprep.subr.mxu0 %v737
    %1164 = vmatpush1.msra.mxu0 %v736
    %1165 = vmatprep.subr.mxu0 %v743
    %1166 = vmatpush1.msra.mxu0 %v742
    %1167 = vmatprep.subr.mxu0 %v749
    %1168 = vmatpush1.msra.mxu0 %v748
    %1169 = vmatprep.subr.mxu0 %v755
    %1170 = vmatpush1.msra.mxu0 %v754
    %1171 = vmatprep.subr.mxu0 %v761
    %1172 = vmatpush1.msra.mxu0 %v760
    %1173 = vmatprep.subr.mxu0 %v767
    %1174 = vmatpush1.msra.mxu0 %v766
    %1175 = vmatprep.subr.mxu0 %v773
    %1176 = vmatpush1.msra.mxu0 %v772
    %1177 = vmatprep.subr.mxu0 %v779
    %1178 = vmatpush1.msra.mxu0 %v778
    %1179 = vmatprep.subr.mxu0 %v785
    %1180 = vmatpush1.msra.mxu0 %v784
    %1181 = vmatprep.subr.mxu0 %v791
    %1182 = vmatpush1.msra.mxu0 %v790
    %1183 = vmatprep.subr.mxu0 %v797
    %1184 = vmatpush1.msra.mxu0 %v796
    %1185 = vmatprep.subr.mxu0 %v803
    %1186 = vmatpush1.msra.mxu0 %v802
    %1187 = vmatprep.subr.mxu0 %v809
    %1188 = vmatpush1.msra.mxu0 %v808
    %1189 = vmatprep.subr.mxu0 %v815
    %1190 = vmatpush1.msra.mxu0 %v814
    %1191 = vmatprep.subr.mxu0 %v821
    %1192 = vmatpush1.msra.mxu0 %v820
    %1193 = vmatprep.subr.mxu0 %v827
    %1194 = vmatpush1.msra.mxu0 %v826
    %1195 = vmatprep.subr.mxu0 %v833
    %1196 = vmatpush1.msra.mxu0 %v832
    %1197 = vmatprep.subr.mxu0 %v839
    %1198 = vmatpush1.msra.mxu0 %v838
    %1199 = vmatprep.subr.mxu0 %v845
    %1200 = vmatpush1.msra.mxu0 %v844
    %1201 = vmatprep.subr.mxu0 %v851
    %1202 = vmatpush1.msra.mxu0 %v850
    %1203 = vmatprep.subr.mxu0 %v857
    %1204 = vmatpush1.msra.mxu0 %v856
    %1205 = vmatprep.subr.mxu0 %v863
    %1206 = vmatpush1.msra.mxu0 %v862
    %1207 = vmatprep.subr.mxu0 %v869
    %1208 = vmatpush1.msra.mxu0 %v868
    %1209 = vmatprep.subr.mxu0 %v875
    %1210 = vmatpush1.msra.mxu0 %v874
    %1211 = vmatprep.mubr.f32.mxu0 %v1146
    %1212 = vmatmul.mubr.f32.gmra.mrb[0].mxu0 %v1145
    %v1213 = vpop.f32.mrb[0].mxu0
    %v1214 = vadd.f32 0.0, %v1213
    %v1215 = vpop.f32.mrb[0].mxu0
    %v1216 = vadd.f32 0.0, %v1215
    %1217 = vdwg.mxu0
    %1218 = vmatprep.subr.mxu0 %v691
    %1219 = vmatpush1.msra.mxu0 %v690
    %1220 = vmatprep.subr.mxu0 %v697
    %1221 = vmatpush1.msra.mxu0 %v696
    %1222 = vmatprep.subr.mxu0 %v703
    %1223 = vmatpush1.msra.mxu0 %v702
    %1224 = vmatprep.subr.mxu0 %v709
    %1225 = vmatpush1.msra.mxu0 %v708
    %1226 = vmatprep.subr.mxu0 %v715
    %1227 = vmatpush1.msra.mxu0 %v714
    %1228 = vmatprep.subr.mxu0 %v721
    %1229 = vmatpush1.msra.mxu0 %v720
    %1230 = vmatprep.subr.mxu0 %v727
    %1231 = vmatpush1.msra.mxu0 %v726
    %1232 = vmatprep.subr.mxu0 %v733
    %1233 = vmatpush1.msra.mxu0 %v732
    %1234 = vmatprep.subr.mxu0 %v739
    %1235 = vmatpush1.msra.mxu0 %v738
    %1236 = vmatprep.subr.mxu0 %v745
    %1237 = vmatpush1.msra.mxu0 %v744
    %1238 = vmatprep.subr.mxu0 %v751
    %1239 = vmatpush1.msra.mxu0 %v750
    %1240 = vmatprep.subr.mxu0 %v757
    %1241 = vmatpush1.msra.mxu0 %v756
    %1242 = vmatprep.subr.mxu0 %v763
    %1243 = vmatpush1.msra.mxu0 %v762
    %1244 = vmatprep.subr.mxu0 %v769
    %1245 = vmatpush1.msra.mxu0 %v768
    %1246 = vmatprep.subr.mxu0 %v775
    %1247 = vmatpush1.msra.mxu0 %v774
    %1248 = vmatprep.subr.mxu0 %v781
    %1249 = vmatpush1.msra.mxu0 %v780
    %1250 = vmatprep.subr.mxu0 %v787
    %1251 = vmatpush1.msra.mxu0 %v786
    %1252 = vmatprep.subr.mxu0 %v793
    %1253 = vmatpush1.msra.mxu0 %v792
    %1254 = vmatprep.subr.mxu0 %v799
    %1255 = vmatpush1.msra.mxu0 %v798
    %1256 = vmatprep.subr.mxu0 %v805
    %1257 = vmatpush1.msra.mxu0 %v804
    %1258 = vmatprep.subr.mxu0 %v811
    %1259 = vmatpush1.msra.mxu0 %v810
    %1260 = vmatprep.subr.mxu0 %v817
    %1261 = vmatpush1.msra.mxu0 %v816
    %1262 = vmatprep.subr.mxu0 %v823
    %1263 = vmatpush1.msra.mxu0 %v822
    %1264 = vmatprep.subr.mxu0 %v829
    %1265 = vmatpush1.msra.mxu0 %v828
    %1266 = vmatprep.subr.mxu0 %v835
    %1267 = vmatpush1.msra.mxu0 %v834
    %1268 = vmatprep.subr.mxu0 %v841
    %1269 = vmatpush1.msra.mxu0 %v840
    %1270 = vmatprep.subr.mxu0 %v847
    %1271 = vmatpush1.msra.mxu0 %v846
    %1272 = vmatprep.subr.mxu0 %v853
    %1273 = vmatpush1.msra.mxu0 %v852
    %1274 = vmatprep.subr.mxu0 %v859
    %1275 = vmatpush1.msra.mxu0 %v858
    %1276 = vmatprep.subr.mxu0 %v865
    %1277 = vmatpush1.msra.mxu0 %v864
    %1278 = vmatprep.subr.mxu0 %v871
    %1279 = vmatpush1.msra.mxu0 %v870
    %1280 = vmatprep.subr.mxu0 %v877
    %1281 = vmatpush1.msra.mxu0 %v876
    %1282 = vmatprep.mubr.f32.mxu0 %v1146
    %1283 = vmatmul.mubr.f32.gmra.mrb[0].mxu0 %v1145
    %v1284 = vpop.f32.mrb[0].mxu0
    %v1285 = vadd.f32 0.0, %v1284
    %v1286 = vpop.f32.mrb[0].mxu0
    %v1287 = vadd.f32 0.0, %v1286
    %1288 = vdwg.mxu0
    %1289 = vmatprep.subr.mxu0 %v693
    %1290 = vmatpush1.msra.mxu0 %v692
    %1291 = vmatprep.subr.mxu0 %v699
    %1292 = vmatpush1.msra.mxu0 %v698
    %1293 = vmatprep.subr.mxu0 %v705
    %1294 = vmatpush1.msra.mxu0 %v704
    %1295 = vmatprep.subr.mxu0 %v711
    %1296 = vmatpush1.msra.mxu0 %v710
    %1297 = vmatprep.subr.mxu0 %v717
    %1298 = vmatpush1.msra.mxu0 %v716
    %1299 = vmatprep.subr.mxu0 %v723
    %1300 = vmatpush1.msra.mxu0 %v722
    %1301 = vmatprep.subr.mxu0 %v729
    %1302 = vmatpush1.msra.mxu0 %v728
    %1303 = vmatprep.subr.mxu0 %v735
    %1304 = vmatpush1.msra.mxu0 %v734
    %1305 = vmatprep.subr.mxu0 %v741
    %1306 = vmatpush1.msra.mxu0 %v740
    %1307 = vmatprep.subr.mxu0 %v747
    %1308 = vmatpush1.msra.mxu0 %v746
    %1309 = vmatprep.subr.mxu0 %v753
    %1310 = vmatpush1.msra.mxu0 %v752
    %1311 = vmatprep.subr.mxu0 %v759
    %1312 = vmatpush1.msra.mxu0 %v758
    %1313 = vmatprep.subr.mxu0 %v765
    %1314 = vmatpush1.msra.mxu0 %v764
    %1315 = vmatprep.subr.mxu0 %v771
    %1316 = vmatpush1.msra.mxu0 %v770
    %1317 = vmatprep.subr.mxu0 %v777
    %1318 = vmatpush1.msra.mxu0 %v776
    %1319 = vmatprep.subr.mxu0 %v783
    %1320 = vmatpush1.msra.mxu0 %v782
    %1321 = vmatprep.subr.mxu0 %v789
    %1322 = vmatpush1.msra.mxu0 %v788
    %1323 = vmatprep.subr.mxu0 %v795
    %1324 = vmatpush1.msra.mxu0 %v794
    %1325 = vmatprep.subr.mxu0 %v801
    %1326 = vmatpush1.msra.mxu0 %v800
    %1327 = vmatprep.subr.mxu0 %v807
    %1328 = vmatpush1.msra.mxu0 %v806
    %1329 = vmatprep.subr.mxu0 %v813
    %1330 = vmatpush1.msra.mxu0 %v812
    %1331 = vmatprep.subr.mxu0 %v819
    %1332 = vmatpush1.msra.mxu0 %v818
    %1333 = vmatprep.subr.mxu0 %v825
    %1334 = vmatpush1.msra.mxu0 %v824
    %1335 = vmatprep.subr.mxu0 %v831
    %1336 = vmatpush1.msra.mxu0 %v830
    %1337 = vmatprep.subr.mxu0 %v837
    %1338 = vmatpush1.msra.mxu0 %v836
    %1339 = vmatprep.subr.mxu0 %v843
    %1340 = vmatpush1.msra.mxu0 %v842
    %1341 = vmatprep.subr.mxu0 %v849
    %1342 = vmatpush1.msra.mxu0 %v848
    %1343 = vmatprep.subr.mxu0 %v855
    %1344 = vmatpush1.msra.mxu0 %v854
    %1345 = vmatprep.subr.mxu0 %v861
    %1346 = vmatpush1.msra.mxu0 %v860
    %1347 = vmatprep.subr.mxu0 %v867
    %1348 = vmatpush1.msra.mxu0 %v866
    %1349 = vmatprep.subr.mxu0 %v873
    %1350 = vmatpush1.msra.mxu0 %v872
    %1351 = vmatprep.subr.mxu0 %v879
    %1352 = vmatpush1.msra.mxu0 %v878
    %1353 = vmatprep.mubr.f32.mxu0 %v1146
    %1354 = vmatmul.mubr.f32.gmra.mrb[0].mxu0 %v1145
    %v1355 = vpop.f32.mrb[0].mxu0
    %v1356 = vadd.f32 0.0, %v1355
    %v1357 = vpop.f32.mrb[0].mxu0
    %v1358 = vadd.f32 0.0, %v1357
    %1359 = vdwg.mxu0
    %v1360 = vadd.f32 %v422, %v1214
    %v1361 = vadd.f32 %v424, %v1216
    %v1362 = vadd.f32 %v535, %v1285
    %v1363 = vadd.f32 %v537, %v1287
    %v1364 = vxor.u32 %v1360, 2147483648
    %v1365 = vxor.u32 %v1361, 2147483648
    %v1366 = vxor.u32 %v1362, 2147483648
    %v1367 = vxor.u32 %v1363, 2147483648
    %v1368 = vmul.f32 %v1364, 1.442695
    %v1369 = vpow.pop %v1368
    %v1370 = vmul.f32 %v1365, 1.442695
    %v1371 = vpow.pop %v1370
    %v1372 = vmul.f32 %v1366, 1.442695
    %v1373 = vpow.pop %v1372
    %v1374 = vmul.f32 %v1367, 1.442695
    %v1375 = vpow.pop %v1374
    %v1376 = vadd.f32 %v1369, 1.0
    %v1377 = vadd.f32 %v1371, 1.0
    %v1378 = vadd.f32 %v1373, 1.0
    %v1379 = vadd.f32 %v1375, 1.0
    %v1380 = vrcp.pop %v1376
    %v1381 = vmul.f32 1.0, %v1380
    %v1382 = vrcp.pop %v1377
    %v1383 = vmul.f32 1.0, %v1382
    %v1384 = vrcp.pop %v1378
    %v1385 = vmul.f32 1.0, %v1384
    %v1386 = vrcp.pop %v1379
    %v1387 = vmul.f32 1.0, %v1386
    %v1388 = vadd.f32 %v1356, %v885
    %v1389 = vadd.f32 %v1358, %v889
    %v1390 = vmul.f32 %v1381, %v1388
    %v1391 = vmul.f32 %v1383, %v1389
    %v1392 = vadd.f32 %v648, %v1390
    %v1393 = vadd.f32 %v650, %v1391
    %v1394 = vtanh.pop %v1392
    %v1395 = vtanh.pop %v1393
    %v1396 = vsub.f32 %v1145, %v1394
    %v1397 = vsub.f32 %v1146, %v1395
    %v1398 = vmul.f32 %v1385, %v1396
    %v1399 = vmul.f32 %v1387, %v1397
    %v1400 = vadd.f32 %v1394, %v1398
    %v1401 = vadd.f32 %v1395, %v1399
    %1402 = vmatprep.subr.mxu0 %v689
    %1403 = vmatpush1.msra.mxu0 %v688
    %1404 = vmatprep.subr.mxu0 %v695
    %1405 = vmatpush1.msra.mxu0 %v694
    %1406 = vmatprep.subr.mxu0 %v701
    %1407 = vmatpush1.msra.mxu0 %v700
    %1408 = vmatprep.subr.mxu0 %v707
    %1409 = vmatpush1.msra.mxu0 %v706
    %1410 = vmatprep.subr.mxu0 %v713
    %1411 = vmatpush1.msra.mxu0 %v712
    %1412 = vmatprep.subr.mxu0 %v719
    %1413 = vmatpush1.msra.mxu0 %v718
    %1414 = vmatprep.subr.mxu0 %v725
    %1415 = vmatpush1.msra.mxu0 %v724
    %1416 = vmatprep.subr.mxu0 %v731
    %1417 = vmatpush1.msra.mxu0 %v730
    %1418 = vmatprep.subr.mxu0 %v737
    %1419 = vmatpush1.msra.mxu0 %v736
    %1420 = vmatprep.subr.mxu0 %v743
    %1421 = vmatpush1.msra.mxu0 %v742
    %1422 = vmatprep.subr.mxu0 %v749
    %1423 = vmatpush1.msra.mxu0 %v748
    %1424 = vmatprep.subr.mxu0 %v755
    %1425 = vmatpush1.msra.mxu0 %v754
    %1426 = vmatprep.subr.mxu0 %v761
    %1427 = vmatpush1.msra.mxu0 %v760
    %1428 = vmatprep.subr.mxu0 %v767
    %1429 = vmatpush1.msra.mxu0 %v766
    %1430 = vmatprep.subr.mxu0 %v773
    %1431 = vmatpush1.msra.mxu0 %v772
    %1432 = vmatprep.subr.mxu0 %v779
    %1433 = vmatpush1.msra.mxu0 %v778
    %1434 = vmatprep.subr.mxu0 %v785
    %1435 = vmatpush1.msra.mxu0 %v784
    %1436 = vmatprep.subr.mxu0 %v791
    %1437 = vmatpush1.msra.mxu0 %v790
    %1438 = vmatprep.subr.mxu0 %v797
    %1439 = vmatpush1.msra.mxu0 %v796
    %1440 = vmatprep.subr.mxu0 %v803
    %1441 = vmatpush1.msra.mxu0 %v802
    %1442 = vmatprep.subr.mxu0 %v809
    %1443 = vmatpush1.msra.mxu0 %v808
    %1444 = vmatprep.subr.mxu0 %v815
    %1445 = vmatpush1.msra.mxu0 %v814
    %1446 = vmatprep.subr.mxu0 %v821
    %1447 = vmatpush1.msra.mxu0 %v820
    %1448 = vmatprep.subr.mxu0 %v827
    %1449 = vmatpush1.msra.mxu0 %v826
    %1450 = vmatprep.subr.mxu0 %v833
    %1451 = vmatpush1.msra.mxu0 %v832
    %1452 = vmatprep.subr.mxu0 %v839
    %1453 = vmatpush1.msra.mxu0 %v838
    %1454 = vmatprep.subr.mxu0 %v845
    %1455 = vmatpush1.msra.mxu0 %v844
    %1456 = vmatprep.subr.mxu0 %v851
    %1457 = vmatpush1.msra.mxu0 %v850
    %1458 = vmatprep.subr.mxu0 %v857
    %1459 = vmatpush1.msra.mxu0 %v856
    %1460 = vmatprep.subr.mxu0 %v863
    %1461 = vmatpush1.msra.mxu0 %v862
    %1462 = vmatprep.subr.mxu0 %v869
    %1463 = vmatpush1.msra.mxu0 %v868
    %1464 = vmatprep.subr.mxu0 %v875
    %1465 = vmatpush1.msra.mxu0 %v874
    %1466 = vmatprep.mubr.f32.mxu0 %v1401
    %1467 = vmatmul.mubr.f32.gmra.mrb[0].mxu0 %v1400
    %v1468 = vpop.f32.mrb[0].mxu0
    %v1469 = vadd.f32 0.0, %v1468
    %v1470 = vpop.f32.mrb[0].mxu0
    %v1471 = vadd.f32 0.0, %v1470
    %1472 = vdwg.mxu0
    %1473 = vmatprep.subr.mxu0 %v691
    %1474 = vmatpush1.msra.mxu0 %v690
    %1475 = vmatprep.subr.mxu0 %v697
    %1476 = vmatpush1.msra.mxu0 %v696
    %1477 = vmatprep.subr.mxu0 %v703
    %1478 = vmatpush1.msra.mxu0 %v702
    %1479 = vmatprep.subr.mxu0 %v709
    %1480 = vmatpush1.msra.mxu0 %v708
    %1481 = vmatprep.subr.mxu0 %v715
    %1482 = vmatpush1.msra.mxu0 %v714
    %1483 = vmatprep.subr.mxu0 %v721
    %1484 = vmatpush1.msra.mxu0 %v720
    %1485 = vmatprep.subr.mxu0 %v727
    %1486 = vmatpush1.msra.mxu0 %v726
    %1487 = vmatprep.subr.mxu0 %v733
    %1488 = vmatpush1.msra.mxu0 %v732
    %1489 = vmatprep.subr.mxu0 %v739
    %1490 = vmatpush1.msra.mxu0 %v738
    %1491 = vmatprep.subr.mxu0 %v745
    %1492 = vmatpush1.msra.mxu0 %v744
    %1493 = vmatprep.subr.mxu0 %v751
    %1494 = vmatpush1.msra.mxu0 %v750
    %1495 = vmatprep.subr.mxu0 %v757
    %1496 = vmatpush1.msra.mxu0 %v756
    %1497 = vmatprep.subr.mxu0 %v763
    %1498 = vmatpush1.msra.mxu0 %v762
    %1499 = vmatprep.subr.mxu0 %v769
    %1500 = vmatpush1.msra.mxu0 %v768
    %1501 = vmatprep.subr.mxu0 %v775
    %1502 = vmatpush1.msra.mxu0 %v774
    %1503 = vmatprep.subr.mxu0 %v781
    %1504 = vmatpush1.msra.mxu0 %v780
    %1505 = vmatprep.subr.mxu0 %v787
    %1506 = vmatpush1.msra.mxu0 %v786
    %1507 = vmatprep.subr.mxu0 %v793
    %1508 = vmatpush1.msra.mxu0 %v792
    %1509 = vmatprep.subr.mxu0 %v799
    %1510 = vmatpush1.msra.mxu0 %v798
    %1511 = vmatprep.subr.mxu0 %v805
    %1512 = vmatpush1.msra.mxu0 %v804
    %1513 = vmatprep.subr.mxu0 %v811
    %1514 = vmatpush1.msra.mxu0 %v810
    %1515 = vmatprep.subr.mxu0 %v817
    %1516 = vmatpush1.msra.mxu0 %v816
    %1517 = vmatprep.subr.mxu0 %v823
    %1518 = vmatpush1.msra.mxu0 %v822
    %1519 = vmatprep.subr.mxu0 %v829
    %1520 = vmatpush1.msra.mxu0 %v828
    %1521 = vmatprep.subr.mxu0 %v835
    %1522 = vmatpush1.msra.mxu0 %v834
    %1523 = vmatprep.subr.mxu0 %v841
    %1524 = vmatpush1.msra.mxu0 %v840
    %1525 = vmatprep.subr.mxu0 %v847
    %1526 = vmatpush1.msra.mxu0 %v846
    %1527 = vmatprep.subr.mxu0 %v853
    %1528 = vmatpush1.msra.mxu0 %v852
    %1529 = vmatprep.subr.mxu0 %v859
    %1530 = vmatpush1.msra.mxu0 %v858
    %1531 = vmatprep.subr.mxu0 %v865
    %1532 = vmatpush1.msra.mxu0 %v864
    %1533 = vmatprep.subr.mxu0 %v871
    %1534 = vmatpush1.msra.mxu0 %v870
    %1535 = vmatprep.subr.mxu0 %v877
    %1536 = vmatpush1.msra.mxu0 %v876
    %1537 = vmatprep.mubr.f32.mxu0 %v1401
    %1538 = vmatmul.mubr.f32.gmra.mrb[0].mxu0 %v1400
    %v1539 = vpop.f32.mrb[0].mxu0
    %v1540 = vadd.f32 0.0, %v1539
    %v1541 = vpop.f32.mrb[0].mxu0
    %v1542 = vadd.f32 0.0, %v1541
    %1543 = vdwg.mxu0
    %1544 = vmatprep.subr.mxu0 %v693
    %1545 = vmatpush1.msra.mxu0 %v692
    %1546 = vmatprep.subr.mxu0 %v699
    %1547 = vmatpush1.msra.mxu0 %v698
    %1548 = vmatprep.subr.mxu0 %v705
    %1549 = vmatpush1.msra.mxu0 %v704
    %1550 = vmatprep.subr.mxu0 %v711
    %1551 = vmatpush1.msra.mxu0 %v710
    %1552 = vmatprep.subr.mxu0 %v717
    %1553 = vmatpush1.msra.mxu0 %v716
    %1554 = vmatprep.subr.mxu0 %v723
    %1555 = vmatpush1.msra.mxu0 %v722
    %1556 = vmatprep.subr.mxu0 %v729
    %1557 = vmatpush1.msra.mxu0 %v728
    %1558 = vmatprep.subr.mxu0 %v735
    %1559 = vmatpush1.msra.mxu0 %v734
    %1560 = vmatprep.subr.mxu0 %v741
    %1561 = vmatpush1.msra.mxu0 %v740
    %1562 = vmatprep.subr.mxu0 %v747
    %1563 = vmatpush1.msra.mxu0 %v746
    %1564 = vmatprep.subr.mxu0 %v753
    %1565 = vmatpush1.msra.mxu0 %v752
    %1566 = vmatprep.subr.mxu0 %v759
    %1567 = vmatpush1.msra.mxu0 %v758
    %1568 = vmatprep.subr.mxu0 %v765
    %1569 = vmatpush1.msra.mxu0 %v764
    %1570 = vmatprep.subr.mxu0 %v771
    %1571 = vmatpush1.msra.mxu0 %v770
    %1572 = vmatprep.subr.mxu0 %v777
    %1573 = vmatpush1.msra.mxu0 %v776
    %1574 = vmatprep.subr.mxu0 %v783
    %1575 = vmatpush1.msra.mxu0 %v782
    %1576 = vmatprep.subr.mxu0 %v789
    %1577 = vmatpush1.msra.mxu0 %v788
    %1578 = vmatprep.subr.mxu0 %v795
    %1579 = vmatpush1.msra.mxu0 %v794
    %1580 = vmatprep.subr.mxu0 %v801
    %1581 = vmatpush1.msra.mxu0 %v800
    %1582 = vmatprep.subr.mxu0 %v807
    %1583 = vmatpush1.msra.mxu0 %v806
    %1584 = vmatprep.subr.mxu0 %v813
    %1585 = vmatpush1.msra.mxu0 %v812
    %1586 = vmatprep.subr.mxu0 %v819
    %1587 = vmatpush1.msra.mxu0 %v818
    %1588 = vmatprep.subr.mxu0 %v825
    %1589 = vmatpush1.msra.mxu0 %v824
    %1590 = vmatprep.subr.mxu0 %v831
    %1591 = vmatpush1.msra.mxu0 %v830
    %1592 = vmatprep.subr.mxu0 %v837
    %1593 = vmatpush1.msra.mxu0 %v836
    %1594 = vmatprep.subr.mxu0 %v843
    %1595 = vmatpush1.msra.mxu0 %v842
    %1596 = vmatprep.subr.mxu0 %v849
    %1597 = vmatpush1.msra.mxu0 %v848
    %1598 = vmatprep.subr.mxu0 %v855
    %1599 = vmatpush1.msra.mxu0 %v854
    %1600 = vmatprep.subr.mxu0 %v861
    %1601 = vmatpush1.msra.mxu0 %v860
    %1602 = vmatprep.subr.mxu0 %v867
    %1603 = vmatpush1.msra.mxu0 %v866
    %1604 = vmatprep.subr.mxu0 %v873
    %1605 = vmatpush1.msra.mxu0 %v872
    %1606 = vmatprep.subr.mxu0 %v879
    %1607 = vmatpush1.msra.mxu0 %v878
    %1608 = vmatprep.mubr.f32.mxu0 %v1401
    %1609 = vmatmul.mubr.f32.gmra.mrb[0].mxu0 %v1400
    %v1610 = vpop.f32.mrb[0].mxu0
    %v1611 = vadd.f32 0.0, %v1610
    %v1612 = vpop.f32.mrb[0].mxu0
    %v1613 = vadd.f32 0.0, %v1612
    %1614 = vdwg.mxu0
    %v1615 = vadd.f32 %v428, %v1469
    %v1616 = vadd.f32 %v430, %v1471
    %v1617 = vadd.f32 %v541, %v1540
    %v1618 = vadd.f32 %v543, %v1542
    %v1619 = vxor.u32 %v1615, 2147483648
    %v1620 = vxor.u32 %v1616, 2147483648
    %v1621 = vxor.u32 %v1617, 2147483648
    %v1622 = vxor.u32 %v1618, 2147483648
    %v1623 = vmul.f32 %v1619, 1.442695
    %v1624 = vpow.pop %v1623
    %v1625 = vmul.f32 %v1620, 1.442695
    %v1626 = vpow.pop %v1625
    %v1627 = vmul.f32 %v1621, 1.442695
    %v1628 = vpow.pop %v1627
    %v1629 = vmul.f32 %v1622, 1.442695
    %v1630 = vpow.pop %v1629
    %v1631 = vadd.f32 %v1624, 1.0
    %v1632 = vadd.f32 %v1626, 1.0
    %v1633 = vadd.f32 %v1628, 1.0
    %v1634 = vadd.f32 %v1630, 1.0
    %v1635 = vrcp.pop %v1631
    %v1636 = vmul.f32 1.0, %v1635
    %v1637 = vrcp.pop %v1632
    %v1638 = vmul.f32 1.0, %v1637
    %v1639 = vrcp.pop %v1633
    %v1640 = vmul.f32 1.0, %v1639
    %v1641 = vrcp.pop %v1634
    %v1642 = vmul.f32 1.0, %v1641
    %v1643 = vadd.f32 %v1611, %v885
    %v1644 = vadd.f32 %v1613, %v889
    %v1645 = vmul.f32 %v1636, %v1643
    %v1646 = vmul.f32 %v1638, %v1644
    %v1647 = vadd.f32 %v654, %v1645
    %v1648 = vadd.f32 %v656, %v1646
    %v1649 = vtanh.pop %v1647
    %v1650 = vtanh.pop %v1648
    %v1651 = vsub.f32 %v1400, %v1649
    %v1652 = vsub.f32 %v1401, %v1650
    %v1653 = vmul.f32 %v1640, %v1651
    %v1654 = vmul.f32 %v1642, %v1652
    %v1655 = vadd.f32 %v1649, %v1653
    %v1656 = vadd.f32 %v1650, %v1654
    %1657 = vmatprep.subr.mxu0 %v689
    %1658 = vmatpush1.msra.mxu0 %v688
    %1659 = vmatprep.subr.mxu0 %v695
    %1660 = vmatpush1.msra.mxu0 %v694
    %1661 = vmatprep.subr.mxu0 %v701
    %1662 = vmatpush1.msra.mxu0 %v700
    %1663 = vmatprep.subr.mxu0 %v707
    %1664 = vmatpush1.msra.mxu0 %v706
    %1665 = vmatprep.subr.mxu0 %v713
    %1666 = vmatpush1.msra.mxu0 %v712
    %1667 = vmatprep.subr.mxu0 %v719
    %1668 = vmatpush1.msra.mxu0 %v718
    %1669 = vmatprep.subr.mxu0 %v725
    %1670 = vmatpush1.msra.mxu0 %v724
    %1671 = vmatprep.subr.mxu0 %v731
    %1672 = vmatpush1.msra.mxu0 %v730
    %1673 = vmatprep.subr.mxu0 %v737
    %1674 = vmatpush1.msra.mxu0 %v736
    %1675 = vmatprep.subr.mxu0 %v743
    %1676 = vmatpush1.msra.mxu0 %v742
    %1677 = vmatprep.subr.mxu0 %v749
    %1678 = vmatpush1.msra.mxu0 %v748
    %1679 = vmatprep.subr.mxu0 %v755
    %1680 = vmatpush1.msra.mxu0 %v754
    %1681 = vmatprep.subr.mxu0 %v761
    %1682 = vmatpush1.msra.mxu0 %v760
    %1683 = vmatprep.subr.mxu0 %v767
    %1684 = vmatpush1.msra.mxu0 %v766
    %1685 = vmatprep.subr.mxu0 %v773
    %1686 = vmatpush1.msra.mxu0 %v772
    %1687 = vmatprep.subr.mxu0 %v779
    %1688 = vmatpush1.msra.mxu0 %v778
    %1689 = vmatprep.subr.mxu0 %v785
    %1690 = vmatpush1.msra.mxu0 %v784
    %1691 = vmatprep.subr.mxu0 %v791
    %1692 = vmatpush1.msra.mxu0 %v790
    %1693 = vmatprep.subr.mxu0 %v797
    %1694 = vmatpush1.msra.mxu0 %v796
    %1695 = vmatprep.subr.mxu0 %v803
    %1696 = vmatpush1.msra.mxu0 %v802
    %1697 = vmatprep.subr.mxu0 %v809
    %1698 = vmatpush1.msra.mxu0 %v808
    %1699 = vmatprep.subr.mxu0 %v815
    %1700 = vmatpush1.msra.mxu0 %v814
    %1701 = vmatprep.subr.mxu0 %v821
    %1702 = vmatpush1.msra.mxu0 %v820
    %1703 = vmatprep.subr.mxu0 %v827
    %1704 = vmatpush1.msra.mxu0 %v826
    %1705 = vmatprep.subr.mxu0 %v833
    %1706 = vmatpush1.msra.mxu0 %v832
    %1707 = vmatprep.subr.mxu0 %v839
    %1708 = vmatpush1.msra.mxu0 %v838
    %1709 = vmatprep.subr.mxu0 %v845
    %1710 = vmatpush1.msra.mxu0 %v844
    %1711 = vmatprep.subr.mxu0 %v851
    %1712 = vmatpush1.msra.mxu0 %v850
    %1713 = vmatprep.subr.mxu0 %v857
    %1714 = vmatpush1.msra.mxu0 %v856
    %1715 = vmatprep.subr.mxu0 %v863
    %1716 = vmatpush1.msra.mxu0 %v862
    %1717 = vmatprep.subr.mxu0 %v869
    %1718 = vmatpush1.msra.mxu0 %v868
    %1719 = vmatprep.subr.mxu0 %v875
    %1720 = vmatpush1.msra.mxu0 %v874
    %1721 = vmatprep.mubr.f32.mxu0 %v1656
    %1722 = vmatmul.mubr.f32.gmra.mrb[0].mxu0 %v1655
    %v1723 = vpop.f32.mrb[0].mxu0
    %v1724 = vadd.f32 0.0, %v1723
    %v1725 = vpop.f32.mrb[0].mxu0
    %v1726 = vadd.f32 0.0, %v1725
    %1727 = vdwg.mxu0
    %1728 = vmatprep.subr.mxu0 %v691
    %1729 = vmatpush1.msra.mxu0 %v690
    %1730 = vmatprep.subr.mxu0 %v697
    %1731 = vmatpush1.msra.mxu0 %v696
    %1732 = vmatprep.subr.mxu0 %v703
    %1733 = vmatpush1.msra.mxu0 %v702
    %1734 = vmatprep.subr.mxu0 %v709
    %1735 = vmatpush1.msra.mxu0 %v708
    %1736 = vmatprep.subr.mxu0 %v715
    %1737 = vmatpush1.msra.mxu0 %v714
    %1738 = vmatprep.subr.mxu0 %v721
    %1739 = vmatpush1.msra.mxu0 %v720
    %1740 = vmatprep.subr.mxu0 %v727
    %1741 = vmatpush1.msra.mxu0 %v726
    %1742 = vmatprep.subr.mxu0 %v733
    %1743 = vmatpush1.msra.mxu0 %v732
    %1744 = vmatprep.subr.mxu0 %v739
    %1745 = vmatpush1.msra.mxu0 %v738
    %1746 = vmatprep.subr.mxu0 %v745
    %1747 = vmatpush1.msra.mxu0 %v744
    %1748 = vmatprep.subr.mxu0 %v751
    %1749 = vmatpush1.msra.mxu0 %v750
    %1750 = vmatprep.subr.mxu0 %v757
    %1751 = vmatpush1.msra.mxu0 %v756
    %1752 = vmatprep.subr.mxu0 %v763
    %1753 = vmatpush1.msra.mxu0 %v762
    %1754 = vmatprep.subr.mxu0 %v769
    %1755 = vmatpush1.msra.mxu0 %v768
    %1756 = vmatprep.subr.mxu0 %v775
    %1757 = vmatpush1.msra.mxu0 %v774
    %1758 = vmatprep.subr.mxu0 %v781
    %1759 = vmatpush1.msra.mxu0 %v780
    %1760 = vmatprep.subr.mxu0 %v787
    %1761 = vmatpush1.msra.mxu0 %v786
    %1762 = vmatprep.subr.mxu0 %v793
    %1763 = vmatpush1.msra.mxu0 %v792
    %1764 = vmatprep.subr.mxu0 %v799
    %1765 = vmatpush1.msra.mxu0 %v798
    %1766 = vmatprep.subr.mxu0 %v805
    %1767 = vmatpush1.msra.mxu0 %v804
    %1768 = vmatprep.subr.mxu0 %v811
    %1769 = vmatpush1.msra.mxu0 %v810
    %1770 = vmatprep.subr.mxu0 %v817
    %1771 = vmatpush1.msra.mxu0 %v816
    %1772 = vmatprep.subr.mxu0 %v823
    %1773 = vmatpush1.msra.mxu0 %v822
    %1774 = vmatprep.subr.mxu0 %v829
    %1775 = vmatpush1.msra.mxu0 %v828
    %1776 = vmatprep.subr.mxu0 %v835
    %1777 = vmatpush1.msra.mxu0 %v834
    %1778 = vmatprep.subr.mxu0 %v841
    %1779 = vmatpush1.msra.mxu0 %v840
    %1780 = vmatprep.subr.mxu0 %v847
    %1781 = vmatpush1.msra.mxu0 %v846
    %1782 = vmatprep.subr.mxu0 %v853
    %1783 = vmatpush1.msra.mxu0 %v852
    %1784 = vmatprep.subr.mxu0 %v859
    %1785 = vmatpush1.msra.mxu0 %v858
    %1786 = vmatprep.subr.mxu0 %v865
    %1787 = vmatpush1.msra.mxu0 %v864
    %1788 = vmatprep.subr.mxu0 %v871
    %1789 = vmatpush1.msra.mxu0 %v870
    %1790 = vmatprep.subr.mxu0 %v877
    %1791 = vmatpush1.msra.mxu0 %v876
    %1792 = vmatprep.mubr.f32.mxu0 %v1656
    %1793 = vmatmul.mubr.f32.gmra.mrb[0].mxu0 %v1655
    %v1794 = vpop.f32.mrb[0].mxu0
    %v1795 = vadd.f32 0.0, %v1794
    %v1796 = vpop.f32.mrb[0].mxu0
    %v1797 = vadd.f32 0.0, %v1796
    %1798 = vdwg.mxu0
    %1799 = vmatprep.subr.mxu0 %v693
    %1800 = vmatpush1.msra.mxu0 %v692
    %1801 = vmatprep.subr.mxu0 %v699
    %1802 = vmatpush1.msra.mxu0 %v698
    %1803 = vmatprep.subr.mxu0 %v705
    %1804 = vmatpush1.msra.mxu0 %v704
    %1805 = vmatprep.subr.mxu0 %v711
    %1806 = vmatpush1.msra.mxu0 %v710
    %1807 = vmatprep.subr.mxu0 %v717
    %1808 = vmatpush1.msra.mxu0 %v716
    %1809 = vmatprep.subr.mxu0 %v723
    %1810 = vmatpush1.msra.mxu0 %v722
    %1811 = vmatprep.subr.mxu0 %v729
    %1812 = vmatpush1.msra.mxu0 %v728
    %1813 = vmatprep.subr.mxu0 %v735
    %1814 = vmatpush1.msra.mxu0 %v734
    %1815 = vmatprep.subr.mxu0 %v741
    %1816 = vmatpush1.msra.mxu0 %v740
    %1817 = vmatprep.subr.mxu0 %v747
    %1818 = vmatpush1.msra.mxu0 %v746
    %1819 = vmatprep.subr.mxu0 %v753
    %1820 = vmatpush1.msra.mxu0 %v752
    %1821 = vmatprep.subr.mxu0 %v759
    %1822 = vmatpush1.msra.mxu0 %v758
    %1823 = vmatprep.subr.mxu0 %v765
    %1824 = vmatpush1.msra.mxu0 %v764
    %1825 = vmatprep.subr.mxu0 %v771
    %1826 = vmatpush1.msra.mxu0 %v770
    %1827 = vmatprep.subr.mxu0 %v777
    %1828 = vmatpush1.msra.mxu0 %v776
    %1829 = vmatprep.subr.mxu0 %v783
    %1830 = vmatpush1.msra.mxu0 %v782
    %1831 = vmatprep.subr.mxu0 %v789
    %1832 = vmatpush1.msra.mxu0 %v788
    %1833 = vmatprep.subr.mxu0 %v795
    %1834 = vmatpush1.msra.mxu0 %v794
    %1835 = vmatprep.subr.mxu0 %v801
    %1836 = vmatpush1.msra.mxu0 %v800
    %1837 = vmatprep.subr.mxu0 %v807
    %1838 = vmatpush1.msra.mxu0 %v806
    %1839 = vmatprep.subr.mxu0 %v813
    %1840 = vmatpush1.msra.mxu0 %v812
    %1841 = vmatprep.subr.mxu0 %v819
    %1842 = vmatpush1.msra.mxu0 %v818
    %1843 = vmatprep.subr.mxu0 %v825
    %1844 = vmatpush1.msra.mxu0 %v824
    %1845 = vmatprep.subr.mxu0 %v831
    %1846 = vmatpush1.msra.mxu0 %v830
    %1847 = vmatprep.subr.mxu0 %v837
    %1848 = vmatpush1.msra.mxu0 %v836
    %1849 = vmatprep.subr.mxu0 %v843
    %1850 = vmatpush1.msra.mxu0 %v842
    %1851 = vmatprep.subr.mxu0 %v849
    %1852 = vmatpush1.msra.mxu0 %v848
    %1853 = vmatprep.subr.mxu0 %v855
    %1854 = vmatpush1.msra.mxu0 %v854
    %1855 = vmatprep.subr.mxu0 %v861
    %1856 = vmatpush1.msra.mxu0 %v860
    %1857 = vmatprep.subr.mxu0 %v867
    %1858 = vmatpush1.msra.mxu0 %v866
    %1859 = vmatprep.subr.mxu0 %v873
    %1860 = vmatpush1.msra.mxu0 %v872
    %1861 = vmatprep.subr.mxu0 %v879
    %1862 = vmatpush1.msra.mxu0 %v878
    %1863 = vmatprep.mubr.f32.mxu0 %v1656
    %1864 = vmatmul.mubr.f32.gmra.mrb[0].mxu0 %v1655
    %v1865 = vpop.f32.mrb[0].mxu0
    %v1866 = vadd.f32 0.0, %v1865
    %v1867 = vpop.f32.mrb[0].mxu0
    %v1868 = vadd.f32 0.0, %v1867
    %1869 = vdwg.mxu0
    %v1870 = vadd.f32 %v434, %v1724
    %v1871 = vadd.f32 %v436, %v1726
    %v1872 = vadd.f32 %v547, %v1795
    %v1873 = vadd.f32 %v549, %v1797
    %v1874 = vxor.u32 %v1870, 2147483648
    %v1875 = vxor.u32 %v1871, 2147483648
    %v1876 = vxor.u32 %v1872, 2147483648
    %v1877 = vxor.u32 %v1873, 2147483648
    %v1878 = vmul.f32 %v1874, 1.442695
    %v1879 = vpow.pop %v1878
    %v1880 = vmul.f32 %v1875, 1.442695
    %v1881 = vpow.pop %v1880
    %v1882 = vmul.f32 %v1876, 1.442695
    %v1883 = vpow.pop %v1882
    %v1884 = vmul.f32 %v1877, 1.442695
    %v1885 = vpow.pop %v1884
    %v1886 = vadd.f32 %v1879, 1.0
    %v1887 = vadd.f32 %v1881, 1.0
    %v1888 = vadd.f32 %v1883, 1.0
    %v1889 = vadd.f32 %v1885, 1.0
    %v1890 = vrcp.pop %v1886
    %v1891 = vmul.f32 1.0, %v1890
    %v1892 = vrcp.pop %v1887
    %v1893 = vmul.f32 1.0, %v1892
    %v1894 = vrcp.pop %v1888
    %v1895 = vmul.f32 1.0, %v1894
    %v1896 = vrcp.pop %v1889
    %v1897 = vmul.f32 1.0, %v1896
    %v1898 = vadd.f32 %v1866, %v885
    %v1899 = vadd.f32 %v1868, %v889
    %v1900 = vmul.f32 %v1891, %v1898
    %v1901 = vmul.f32 %v1893, %v1899
    %v1902 = vadd.f32 %v660, %v1900
    %v1903 = vadd.f32 %v662, %v1901
    %v1904 = vtanh.pop %v1902
    %v1905 = vtanh.pop %v1903
    %v1906 = vsub.f32 %v1655, %v1904
    %v1907 = vsub.f32 %v1656, %v1905
    %v1908 = vmul.f32 %v1895, %v1906
    %v1909 = vmul.f32 %v1897, %v1907
    %v1910 = vadd.f32 %v1904, %v1908
    %v1911 = vadd.f32 %v1905, %v1909
    %1912 = vmatprep.subr.mxu0 %v689
    %1913 = vmatpush1.msra.mxu0 %v688
    %1914 = vmatprep.subr.mxu0 %v695
    %1915 = vmatpush1.msra.mxu0 %v694
    %1916 = vmatprep.subr.mxu0 %v701
    %1917 = vmatpush1.msra.mxu0 %v700
    %1918 = vmatprep.subr.mxu0 %v707
    %1919 = vmatpush1.msra.mxu0 %v706
    %1920 = vmatprep.subr.mxu0 %v713
    %1921 = vmatpush1.msra.mxu0 %v712
    %1922 = vmatprep.subr.mxu0 %v719
    %1923 = vmatpush1.msra.mxu0 %v718
    %1924 = vmatprep.subr.mxu0 %v725
    %1925 = vmatpush1.msra.mxu0 %v724
    %1926 = vmatprep.subr.mxu0 %v731
    %1927 = vmatpush1.msra.mxu0 %v730
    %1928 = vmatprep.subr.mxu0 %v737
    %1929 = vmatpush1.msra.mxu0 %v736
    %1930 = vmatprep.subr.mxu0 %v743
    %1931 = vmatpush1.msra.mxu0 %v742
    %1932 = vmatprep.subr.mxu0 %v749
    %1933 = vmatpush1.msra.mxu0 %v748
    %1934 = vmatprep.subr.mxu0 %v755
    %1935 = vmatpush1.msra.mxu0 %v754
    %1936 = vmatprep.subr.mxu0 %v761
    %1937 = vmatpush1.msra.mxu0 %v760
    %1938 = vmatprep.subr.mxu0 %v767
    %1939 = vmatpush1.msra.mxu0 %v766
    %1940 = vmatprep.subr.mxu0 %v773
    %1941 = vmatpush1.msra.mxu0 %v772
    %1942 = vmatprep.subr.mxu0 %v779
    %1943 = vmatpush1.msra.mxu0 %v778
    %1944 = vmatprep.subr.mxu0 %v785
    %1945 = vmatpush1.msra.mxu0 %v784
    %1946 = vmatprep.subr.mxu0 %v791
    %1947 = vmatpush1.msra.mxu0 %v790
    %1948 = vmatprep.subr.mxu0 %v797
    %1949 = vmatpush1.msra.mxu0 %v796
    %1950 = vmatprep.subr.mxu0 %v803
    %1951 = vmatpush1.msra.mxu0 %v802
    %1952 = vmatprep.subr.mxu0 %v809
    %1953 = vmatpush1.msra.mxu0 %v808
    %1954 = vmatprep.subr.mxu0 %v815
    %1955 = vmatpush1.msra.mxu0 %v814
    %1956 = vmatprep.subr.mxu0 %v821
    %1957 = vmatpush1.msra.mxu0 %v820
    %1958 = vmatprep.subr.mxu0 %v827
    %1959 = vmatpush1.msra.mxu0 %v826
    %1960 = vmatprep.subr.mxu0 %v833
    %1961 = vmatpush1.msra.mxu0 %v832
    %1962 = vmatprep.subr.mxu0 %v839
    %1963 = vmatpush1.msra.mxu0 %v838
    %1964 = vmatprep.subr.mxu0 %v845
    %1965 = vmatpush1.msra.mxu0 %v844
    %1966 = vmatprep.subr.mxu0 %v851
    %1967 = vmatpush1.msra.mxu0 %v850
    %1968 = vmatprep.subr.mxu0 %v857
    %1969 = vmatpush1.msra.mxu0 %v856
    %1970 = vmatprep.subr.mxu0 %v863
    %1971 = vmatpush1.msra.mxu0 %v862
    %1972 = vmatprep.subr.mxu0 %v869
    %1973 = vmatpush1.msra.mxu0 %v868
    %1974 = vmatprep.subr.mxu0 %v875
    %1975 = vmatpush1.msra.mxu0 %v874
    %1976 = vmatprep.mubr.f32.mxu0 %v1911
    %1977 = vmatmul.mubr.f32.gmra.mrb[0].mxu0 %v1910
    %v1978 = vpop.f32.mrb[0].mxu0
    %v1979 = vadd.f32 0.0, %v1978
    %v1980 = vpop.f32.mrb[0].mxu0
    %v1981 = vadd.f32 0.0, %v1980
    %1982 = vdwg.mxu0
    %1983 = vmatprep.subr.mxu0 %v691
    %1984 = vmatpush1.msra.mxu0 %v690
    %1985 = vmatprep.subr.mxu0 %v697
    %1986 = vmatpush1.msra.mxu0 %v696
    %1987 = vmatprep.subr.mxu0 %v703
    %1988 = vmatpush1.msra.mxu0 %v702
    %1989 = vmatprep.subr.mxu0 %v709
    %1990 = vmatpush1.msra.mxu0 %v708
    %1991 = vmatprep.subr.mxu0 %v715
    %1992 = vmatpush1.msra.mxu0 %v714
    %1993 = vmatprep.subr.mxu0 %v721
    %1994 = vmatpush1.msra.mxu0 %v720
    %1995 = vmatprep.subr.mxu0 %v727
    %1996 = vmatpush1.msra.mxu0 %v726
    %1997 = vmatprep.subr.mxu0 %v733
    %1998 = vmatpush1.msra.mxu0 %v732
    %1999 = vmatprep.subr.mxu0 %v739
    %2000 = vmatpush1.msra.mxu0 %v738
    %2001 = vmatprep.subr.mxu0 %v745
    %2002 = vmatpush1.msra.mxu0 %v744
    %2003 = vmatprep.subr.mxu0 %v751
    %2004 = vmatpush1.msra.mxu0 %v750
    %2005 = vmatprep.subr.mxu0 %v757
    %2006 = vmatpush1.msra.mxu0 %v756
    %2007 = vmatprep.subr.mxu0 %v763
    %2008 = vmatpush1.msra.mxu0 %v762
    %2009 = vmatprep.subr.mxu0 %v769
    %2010 = vmatpush1.msra.mxu0 %v768
    %2011 = vmatprep.subr.mxu0 %v775
    %2012 = vmatpush1.msra.mxu0 %v774
    %2013 = vmatprep.subr.mxu0 %v781
    %2014 = vmatpush1.msra.mxu0 %v780
    %2015 = vmatprep.subr.mxu0 %v787
    %2016 = vmatpush1.msra.mxu0 %v786
    %2017 = vmatprep.subr.mxu0 %v793
    %2018 = vmatpush1.msra.mxu0 %v792
    %2019 = vmatprep.subr.mxu0 %v799
    %2020 = vmatpush1.msra.mxu0 %v798
    %2021 = vmatprep.subr.mxu0 %v805
    %2022 = vmatpush1.msra.mxu0 %v804
    %2023 = vmatprep.subr.mxu0 %v811
    %2024 = vmatpush1.msra.mxu0 %v810
    %2025 = vmatprep.subr.mxu0 %v817
    %2026 = vmatpush1.msra.mxu0 %v816
    %2027 = vmatprep.subr.mxu0 %v823
    %2028 = vmatpush1.msra.mxu0 %v822
    %2029 = vmatprep.subr.mxu0 %v829
    %2030 = vmatpush1.msra.mxu0 %v828
    %2031 = vmatprep.subr.mxu0 %v835
    %2032 = vmatpush1.msra.mxu0 %v834
    %2033 = vmatprep.subr.mxu0 %v841
    %2034 = vmatpush1.msra.mxu0 %v840
    %2035 = vmatprep.subr.mxu0 %v847
    %2036 = vmatpush1.msra.mxu0 %v846
    %2037 = vmatprep.subr.mxu0 %v853
    %2038 = vmatpush1.msra.mxu0 %v852
    %2039 = vmatprep.subr.mxu0 %v859
    %2040 = vmatpush1.msra.mxu0 %v858
    %2041 = vmatprep.subr.mxu0 %v865
    %2042 = vmatpush1.msra.mxu0 %v864
    %2043 = vmatprep.subr.mxu0 %v871
    %2044 = vmatpush1.msra.mxu0 %v870
    %2045 = vmatprep.subr.mxu0 %v877
    %2046 = vmatpush1.msra.mxu0 %v876
    %2047 = vmatprep.mubr.f32.mxu0 %v1911
    %2048 = vmatmul.mubr.f32.gmra.mrb[0].mxu0 %v1910
    %v2049 = vpop.f32.mrb[0].mxu0
    %v2050 = vadd.f32 0.0, %v2049
    %v2051 = vpop.f32.mrb[0].mxu0
    %v2052 = vadd.f32 0.0, %v2051
    %2053 = vdwg.mxu0
    %2054 = vmatprep.subr.mxu0 %v693
    %2055 = vmatpush1.msra.mxu0 %v692
    %2056 = vmatprep.subr.mxu0 %v699
    %2057 = vmatpush1.msra.mxu0 %v698
    %2058 = vmatprep.subr.mxu0 %v705
    %2059 = vmatpush1.msra.mxu0 %v704
    %2060 = vmatprep.subr.mxu0 %v711
    %2061 = vmatpush1.msra.mxu0 %v710
    %2062 = vmatprep.subr.mxu0 %v717
    %2063 = vmatpush1.msra.mxu0 %v716
    %2064 = vmatprep.subr.mxu0 %v723
    %2065 = vmatpush1.msra.mxu0 %v722
    %2066 = vmatprep.subr.mxu0 %v729
    %2067 = vmatpush1.msra.mxu0 %v728
    %2068 = vmatprep.subr.mxu0 %v735
    %2069 = vmatpush1.msra.mxu0 %v734
    %2070 = vmatprep.subr.mxu0 %v741
    %2071 = vmatpush1.msra.mxu0 %v740
    %2072 = vmatprep.subr.mxu0 %v747
    %2073 = vmatpush1.msra.mxu0 %v746
    %2074 = vmatprep.subr.mxu0 %v753
    %2075 = vmatpush1.msra.mxu0 %v752
    %2076 = vmatprep.subr.mxu0 %v759
    %2077 = vmatpush1.msra.mxu0 %v758
    %2078 = vmatprep.subr.mxu0 %v765
    %2079 = vmatpush1.msra.mxu0 %v764
    %2080 = vmatprep.subr.mxu0 %v771
    %2081 = vmatpush1.msra.mxu0 %v770
    %2082 = vmatprep.subr.mxu0 %v777
    %2083 = vmatpush1.msra.mxu0 %v776
    %2084 = vmatprep.subr.mxu0 %v783
    %2085 = vmatpush1.msra.mxu0 %v782
    %2086 = vmatprep.subr.mxu0 %v789
    %2087 = vmatpush1.msra.mxu0 %v788
    %2088 = vmatprep.subr.mxu0 %v795
    %2089 = vmatpush1.msra.mxu0 %v794
    %2090 = vmatprep.subr.mxu0 %v801
    %2091 = vmatpush1.msra.mxu0 %v800
    %2092 = vmatprep.subr.mxu0 %v807
    %2093 = vmatpush1.msra.mxu0 %v806
    %2094 = vmatprep.subr.mxu0 %v813
    %2095 = vmatpush1.msra.mxu0 %v812
    %2096 = vmatprep.subr.mxu0 %v819
    %2097 = vmatpush1.msra.mxu0 %v818
    %2098 = vmatprep.subr.mxu0 %v825
    %2099 = vmatpush1.msra.mxu0 %v824
    %2100 = vmatprep.subr.mxu0 %v831
    %2101 = vmatpush1.msra.mxu0 %v830
    %2102 = vmatprep.subr.mxu0 %v837
    %2103 = vmatpush1.msra.mxu0 %v836
    %2104 = vmatprep.subr.mxu0 %v843
    %2105 = vmatpush1.msra.mxu0 %v842
    %2106 = vmatprep.subr.mxu0 %v849
    %2107 = vmatpush1.msra.mxu0 %v848
    %2108 = vmatprep.subr.mxu0 %v855
    %2109 = vmatpush1.msra.mxu0 %v854
    %2110 = vmatprep.subr.mxu0 %v861
    %2111 = vmatpush1.msra.mxu0 %v860
    %2112 = vmatprep.subr.mxu0 %v867
    %2113 = vmatpush1.msra.mxu0 %v866
    %2114 = vmatprep.subr.mxu0 %v873
    %2115 = vmatpush1.msra.mxu0 %v872
    %2116 = vmatprep.subr.mxu0 %v879
    %2117 = vmatpush1.msra.mxu0 %v878
    %2118 = vmatprep.mubr.f32.mxu0 %v1911
    %2119 = vmatmul.mubr.f32.gmra.mrb[0].mxu0 %v1910
    %v2120 = vpop.f32.mrb[0].mxu0
    %v2121 = vadd.f32 0.0, %v2120
    %v2122 = vpop.f32.mrb[0].mxu0
    %v2123 = vadd.f32 0.0, %v2122
    %2124 = vdwg.mxu0
    %v2125 = vadd.f32 %v440, %v1979
    %v2126 = vadd.f32 %v442, %v1981
    %v2127 = vadd.f32 %v553, %v2050
    %v2128 = vadd.f32 %v555, %v2052
    %v2129 = vxor.u32 %v2125, 2147483648
    %v2130 = vxor.u32 %v2126, 2147483648
    %v2131 = vxor.u32 %v2127, 2147483648
    %v2132 = vxor.u32 %v2128, 2147483648
    %v2133 = vmul.f32 %v2129, 1.442695
    %v2134 = vpow.pop %v2133
    %v2135 = vmul.f32 %v2130, 1.442695
    %v2136 = vpow.pop %v2135
    %v2137 = vmul.f32 %v2131, 1.442695
    %v2138 = vpow.pop %v2137
    %v2139 = vmul.f32 %v2132, 1.442695
    %v2140 = vpow.pop %v2139
    %v2141 = vadd.f32 %v2134, 1.0
    %v2142 = vadd.f32 %v2136, 1.0
    %v2143 = vadd.f32 %v2138, 1.0
    %v2144 = vadd.f32 %v2140, 1.0
    %v2145 = vrcp.pop %v2141
    %v2146 = vmul.f32 1.0, %v2145
    %v2147 = vrcp.pop %v2142
    %v2148 = vmul.f32 1.0, %v2147
    %v2149 = vrcp.pop %v2143
    %v2150 = vmul.f32 1.0, %v2149
    %v2151 = vrcp.pop %v2144
    %v2152 = vmul.f32 1.0, %v2151
    %v2153 = vadd.f32 %v2121, %v885
    %v2154 = vadd.f32 %v2123, %v889
    %v2155 = vmul.f32 %v2146, %v2153
    %v2156 = vmul.f32 %v2148, %v2154
    %v2157 = vadd.f32 %v666, %v2155
    %v2158 = vadd.f32 %v668, %v2156
    %v2159 = vtanh.pop %v2157
    %v2160 = vtanh.pop %v2158
    %v2161 = vsub.f32 %v1910, %v2159
    %v2162 = vsub.f32 %v1911, %v2160
    %v2163 = vmul.f32 %v2150, %v2161
    %v2164 = vmul.f32 %v2152, %v2162
    %v2165 = vadd.f32 %v2159, %v2163
    %v2166 = vadd.f32 %v2160, %v2164
    %2167 = vmatprep.subr.mxu0 %v689
    %2168 = vmatpush1.msra.mxu0 %v688
    %2169 = vmatprep.subr.mxu0 %v695
    %2170 = vmatpush1.msra.mxu0 %v694
    %2171 = vmatprep.subr.mxu0 %v701
    %2172 = vmatpush1.msra.mxu0 %v700
    %2173 = vmatprep.subr.mxu0 %v707
    %2174 = vmatpush1.msra.mxu0 %v706
    %2175 = vmatprep.subr.mxu0 %v713
    %2176 = vmatpush1.msra.mxu0 %v712
    %2177 = vmatprep.subr.mxu0 %v719
    %2178 = vmatpush1.msra.mxu0 %v718
    %2179 = vmatprep.subr.mxu0 %v725
    %2180 = vmatpush1.msra.mxu0 %v724
    %2181 = vmatprep.subr.mxu0 %v731
    %2182 = vmatpush1.msra.mxu0 %v730
    %2183 = vmatprep.subr.mxu0 %v737
    %2184 = vmatpush1.msra.mxu0 %v736
    %2185 = vmatprep.subr.mxu0 %v743
    %2186 = vmatpush1.msra.mxu0 %v742
    %2187 = vmatprep.subr.mxu0 %v749
    %2188 = vmatpush1.msra.mxu0 %v748
    %2189 = vmatprep.subr.mxu0 %v755
    %2190 = vmatpush1.msra.mxu0 %v754
    %2191 = vmatprep.subr.mxu0 %v761
    %2192 = vmatpush1.msra.mxu0 %v760
    %2193 = vmatprep.subr.mxu0 %v767
    %2194 = vmatpush1.msra.mxu0 %v766
    %2195 = vmatprep.subr.mxu0 %v773
    %2196 = vmatpush1.msra.mxu0 %v772
    %2197 = vmatprep.subr.mxu0 %v779
    %2198 = vmatpush1.msra.mxu0 %v778
    %2199 = vmatprep.subr.mxu0 %v785
    %2200 = vmatpush1.msra.mxu0 %v784
    %2201 = vmatprep.subr.mxu0 %v791
    %2202 = vmatpush1.msra.mxu0 %v790
    %2203 = vmatprep.subr.mxu0 %v797
    %2204 = vmatpush1.msra.mxu0 %v796
    %2205 = vmatprep.subr.mxu0 %v803
    %2206 = vmatpush1.msra.mxu0 %v802
    %2207 = vmatprep.subr.mxu0 %v809
    %2208 = vmatpush1.msra.mxu0 %v808
    %2209 = vmatprep.subr.mxu0 %v815
    %2210 = vmatpush1.msra.mxu0 %v814
    %2211 = vmatprep.subr.mxu0 %v821
    %2212 = vmatpush1.msra.mxu0 %v820
    %2213 = vmatprep.subr.mxu0 %v827
    %2214 = vmatpush1.msra.mxu0 %v826
    %2215 = vmatprep.subr.mxu0 %v833
    %2216 = vmatpush1.msra.mxu0 %v832
    %2217 = vmatprep.subr.mxu0 %v839
    %2218 = vmatpush1.msra.mxu0 %v838
    %2219 = vmatprep.subr.mxu0 %v845
    %2220 = vmatpush1.msra.mxu0 %v844
    %2221 = vmatprep.subr.mxu0 %v851
    %2222 = vmatpush1.msra.mxu0 %v850
    %2223 = vmatprep.subr.mxu0 %v857
    %2224 = vmatpush1.msra.mxu0 %v856
    %2225 = vmatprep.subr.mxu0 %v863
    %2226 = vmatpush1.msra.mxu0 %v862
    %2227 = vmatprep.subr.mxu0 %v869
    %2228 = vmatpush1.msra.mxu0 %v868
    %2229 = vmatprep.subr.mxu0 %v875
    %2230 = vmatpush1.msra.mxu0 %v874
    %2231 = vmatprep.mubr.f32.mxu0 %v2166
    %2232 = vmatmul.mubr.f32.gmra.mrb[0].mxu0 %v2165
    %v2233 = vpop.f32.mrb[0].mxu0
    %v2234 = vadd.f32 0.0, %v2233
    %v2235 = vpop.f32.mrb[0].mxu0
    %v2236 = vadd.f32 0.0, %v2235
    %2237 = vdwg.mxu0
    %2238 = vmatprep.subr.mxu0 %v691
    %2239 = vmatpush1.msra.mxu0 %v690
    %2240 = vmatprep.subr.mxu0 %v697
    %2241 = vmatpush1.msra.mxu0 %v696
    %2242 = vmatprep.subr.mxu0 %v703
    %2243 = vmatpush1.msra.mxu0 %v702
    %2244 = vmatprep.subr.mxu0 %v709
    %2245 = vmatpush1.msra.mxu0 %v708
    %2246 = vmatprep.subr.mxu0 %v715
    %2247 = vmatpush1.msra.mxu0 %v714
    %2248 = vmatprep.subr.mxu0 %v721
    %2249 = vmatpush1.msra.mxu0 %v720
    %2250 = vmatprep.subr.mxu0 %v727
    %2251 = vmatpush1.msra.mxu0 %v726
    %2252 = vmatprep.subr.mxu0 %v733
    %2253 = vmatpush1.msra.mxu0 %v732
    %2254 = vmatprep.subr.mxu0 %v739
    %2255 = vmatpush1.msra.mxu0 %v738
    %2256 = vmatprep.subr.mxu0 %v745
    %2257 = vmatpush1.msra.mxu0 %v744
    %2258 = vmatprep.subr.mxu0 %v751
    %2259 = vmatpush1.msra.mxu0 %v750
    %2260 = vmatprep.subr.mxu0 %v757
    %2261 = vmatpush1.msra.mxu0 %v756
    %2262 = vmatprep.subr.mxu0 %v763
    %2263 = vmatpush1.msra.mxu0 %v762
    %2264 = vmatprep.subr.mxu0 %v769
    %2265 = vmatpush1.msra.mxu0 %v768
    %2266 = vmatprep.subr.mxu0 %v775
    %2267 = vmatpush1.msra.mxu0 %v774
    %2268 = vmatprep.subr.mxu0 %v781
    %2269 = vmatpush1.msra.mxu0 %v780
    %2270 = vmatprep.subr.mxu0 %v787
    %2271 = vmatpush1.msra.mxu0 %v786
    %2272 = vmatprep.subr.mxu0 %v793
    %2273 = vmatpush1.msra.mxu0 %v792
    %2274 = vmatprep.subr.mxu0 %v799
    %2275 = vmatpush1.msra.mxu0 %v798
    %2276 = vmatprep.subr.mxu0 %v805
    %2277 = vmatpush1.msra.mxu0 %v804
    %2278 = vmatprep.subr.mxu0 %v811
    %2279 = vmatpush1.msra.mxu0 %v810
    %2280 = vmatprep.subr.mxu0 %v817
    %2281 = vmatpush1.msra.mxu0 %v816
    %2282 = vmatprep.subr.mxu0 %v823
    %2283 = vmatpush1.msra.mxu0 %v822
    %2284 = vmatprep.subr.mxu0 %v829
    %2285 = vmatpush1.msra.mxu0 %v828
    %2286 = vmatprep.subr.mxu0 %v835
    %2287 = vmatpush1.msra.mxu0 %v834
    %2288 = vmatprep.subr.mxu0 %v841
    %2289 = vmatpush1.msra.mxu0 %v840
    %2290 = vmatprep.subr.mxu0 %v847
    %2291 = vmatpush1.msra.mxu0 %v846
    %2292 = vmatprep.subr.mxu0 %v853
    %2293 = vmatpush1.msra.mxu0 %v852
    %2294 = vmatprep.subr.mxu0 %v859
    %2295 = vmatpush1.msra.mxu0 %v858
    %2296 = vmatprep.subr.mxu0 %v865
    %2297 = vmatpush1.msra.mxu0 %v864
    %2298 = vmatprep.subr.mxu0 %v871
    %2299 = vmatpush1.msra.mxu0 %v870
    %2300 = vmatprep.subr.mxu0 %v877
    %2301 = vmatpush1.msra.mxu0 %v876
    %2302 = vmatprep.mubr.f32.mxu0 %v2166
    %2303 = vmatmul.mubr.f32.gmra.mrb[0].mxu0 %v2165
    %v2304 = vpop.f32.mrb[0].mxu0
    %v2305 = vadd.f32 0.0, %v2304
    %v2306 = vpop.f32.mrb[0].mxu0
    %v2307 = vadd.f32 0.0, %v2306
    %2308 = vdwg.mxu0
    %2309 = vmatprep.subr.mxu0 %v693
    %2310 = vmatpush1.msra.mxu0 %v692
    %2311 = vmatprep.subr.mxu0 %v699
    %2312 = vmatpush1.msra.mxu0 %v698
    %2313 = vmatprep.subr.mxu0 %v705
    %2314 = vmatpush1.msra.mxu0 %v704
    %2315 = vmatprep.subr.mxu0 %v711
    %2316 = vmatpush1.msra.mxu0 %v710
    %2317 = vmatprep.subr.mxu0 %v717
    %2318 = vmatpush1.msra.mxu0 %v716
    %2319 = vmatprep.subr.mxu0 %v723
    %2320 = vmatpush1.msra.mxu0 %v722
    %2321 = vmatprep.subr.mxu0 %v729
    %2322 = vmatpush1.msra.mxu0 %v728
    %2323 = vmatprep.subr.mxu0 %v735
    %2324 = vmatpush1.msra.mxu0 %v734
    %2325 = vmatprep.subr.mxu0 %v741
    %2326 = vmatpush1.msra.mxu0 %v740
    %2327 = vmatprep.subr.mxu0 %v747
    %2328 = vmatpush1.msra.mxu0 %v746
    %2329 = vmatprep.subr.mxu0 %v753
    %2330 = vmatpush1.msra.mxu0 %v752
    %2331 = vmatprep.subr.mxu0 %v759
    %2332 = vmatpush1.msra.mxu0 %v758
    %2333 = vmatprep.subr.mxu0 %v765
    %2334 = vmatpush1.msra.mxu0 %v764
    %2335 = vmatprep.subr.mxu0 %v771
    %2336 = vmatpush1.msra.mxu0 %v770
    %2337 = vmatprep.subr.mxu0 %v777
    %2338 = vmatpush1.msra.mxu0 %v776
    %2339 = vmatprep.subr.mxu0 %v783
    %2340 = vmatpush1.msra.mxu0 %v782
    %2341 = vmatprep.subr.mxu0 %v789
    %2342 = vmatpush1.msra.mxu0 %v788
    %2343 = vmatprep.subr.mxu0 %v795
    %2344 = vmatpush1.msra.mxu0 %v794
    %2345 = vmatprep.subr.mxu0 %v801
    %2346 = vmatpush1.msra.mxu0 %v800
    %2347 = vmatprep.subr.mxu0 %v807
    %2348 = vmatpush1.msra.mxu0 %v806
    %2349 = vmatprep.subr.mxu0 %v813
    %2350 = vmatpush1.msra.mxu0 %v812
    %2351 = vmatprep.subr.mxu0 %v819
    %2352 = vmatpush1.msra.mxu0 %v818
    %2353 = vmatprep.subr.mxu0 %v825
    %2354 = vmatpush1.msra.mxu0 %v824
    %2355 = vmatprep.subr.mxu0 %v831
    %2356 = vmatpush1.msra.mxu0 %v830
    %2357 = vmatprep.subr.mxu0 %v837
    %2358 = vmatpush1.msra.mxu0 %v836
    %2359 = vmatprep.subr.mxu0 %v843
    %2360 = vmatpush1.msra.mxu0 %v842
    %2361 = vmatprep.subr.mxu0 %v849
    %2362 = vmatpush1.msra.mxu0 %v848
    %2363 = vmatprep.subr.mxu0 %v855
    %2364 = vmatpush1.msra.mxu0 %v854
    %2365 = vmatprep.subr.mxu0 %v861
    %2366 = vmatpush1.msra.mxu0 %v860
    %2367 = vmatprep.subr.mxu0 %v867
    %2368 = vmatpush1.msra.mxu0 %v866
    %2369 = vmatprep.subr.mxu0 %v873
    %2370 = vmatpush1.msra.mxu0 %v872
    %2371 = vmatprep.subr.mxu0 %v879
    %2372 = vmatpush1.msra.mxu0 %v878
    %2373 = vmatprep.mubr.f32.mxu0 %v2166
    %2374 = vmatmul.mubr.f32.gmra.mrb[0].mxu0 %v2165
    %v2375 = vpop.f32.mrb[0].mxu0
    %v2376 = vadd.f32 0.0, %v2375
    %v2377 = vpop.f32.mrb[0].mxu0
    %v2378 = vadd.f32 0.0, %v2377
    %2379 = vdwg.mxu0
    %v2380 = vadd.f32 %v446, %v2234
    %v2381 = vadd.f32 %v448, %v2236
    %v2382 = vadd.f32 %v559, %v2305
    %v2383 = vadd.f32 %v561, %v2307
    %v2384 = vxor.u32 %v2380, 2147483648
    %v2385 = vxor.u32 %v2381, 2147483648
    %v2386 = vxor.u32 %v2382, 2147483648
    %v2387 = vxor.u32 %v2383, 2147483648
    %v2388 = vmul.f32 %v2384, 1.442695
    %v2389 = vpow.pop %v2388
    %v2390 = vmul.f32 %v2385, 1.442695
    %v2391 = vpow.pop %v2390
    %v2392 = vmul.f32 %v2386, 1.442695
    %v2393 = vpow.pop %v2392
    %v2394 = vmul.f32 %v2387, 1.442695
    %v2395 = vpow.pop %v2394
    %v2396 = vadd.f32 %v2389, 1.0
    %v2397 = vadd.f32 %v2391, 1.0
    %v2398 = vadd.f32 %v2393, 1.0
    %v2399 = vadd.f32 %v2395, 1.0
    %v2400 = vrcp.pop %v2396
    %v2401 = vmul.f32 1.0, %v2400
    %v2402 = vrcp.pop %v2397
    %v2403 = vmul.f32 1.0, %v2402
    %v2404 = vrcp.pop %v2398
    %v2405 = vmul.f32 1.0, %v2404
    %v2406 = vrcp.pop %v2399
    %v2407 = vmul.f32 1.0, %v2406
    %v2408 = vadd.f32 %v2376, %v885
    %v2409 = vadd.f32 %v2378, %v889
    %v2410 = vmul.f32 %v2401, %v2408
    %v2411 = vmul.f32 %v2403, %v2409
    %v2412 = vadd.f32 %v672, %v2410
    %v2413 = vadd.f32 %v674, %v2411
    %v2414 = vtanh.pop %v2412
    %v2415 = vtanh.pop %v2413
    %v2416 = vsub.f32 %v2165, %v2414
    %v2417 = vsub.f32 %v2166, %v2415
    %v2418 = vmul.f32 %v2405, %v2416
    %v2419 = vmul.f32 %v2407, %v2417
    %v2420 = vadd.f32 %v2414, %v2418
    %v2421 = vadd.f32 %v2415, %v2419
    %2422 = vmatprep.subr.mxu0 %v689
    %2423 = vmatpush1.msra.mxu0 %v688
    %2424 = vmatprep.subr.mxu0 %v695
    %2425 = vmatpush1.msra.mxu0 %v694
    %2426 = vmatprep.subr.mxu0 %v701
    %2427 = vmatpush1.msra.mxu0 %v700
    %2428 = vmatprep.subr.mxu0 %v707
    %2429 = vmatpush1.msra.mxu0 %v706
    %2430 = vmatprep.subr.mxu0 %v713
    %2431 = vmatpush1.msra.mxu0 %v712
    %2432 = vmatprep.subr.mxu0 %v719
    %2433 = vmatpush1.msra.mxu0 %v718
    %2434 = vmatprep.subr.mxu0 %v725
    %2435 = vmatpush1.msra.mxu0 %v724
    %2436 = vmatprep.subr.mxu0 %v731
    %2437 = vmatpush1.msra.mxu0 %v730
    %2438 = vmatprep.subr.mxu0 %v737
    %2439 = vmatpush1.msra.mxu0 %v736
    %2440 = vmatprep.subr.mxu0 %v743
    %2441 = vmatpush1.msra.mxu0 %v742
    %2442 = vmatprep.subr.mxu0 %v749
    %2443 = vmatpush1.msra.mxu0 %v748
    %2444 = vmatprep.subr.mxu0 %v755
    %2445 = vmatpush1.msra.mxu0 %v754
    %2446 = vmatprep.subr.mxu0 %v761
    %2447 = vmatpush1.msra.mxu0 %v760
    %2448 = vmatprep.subr.mxu0 %v767
    %2449 = vmatpush1.msra.mxu0 %v766
    %2450 = vmatprep.subr.mxu0 %v773
    %2451 = vmatpush1.msra.mxu0 %v772
    %2452 = vmatprep.subr.mxu0 %v779
    %2453 = vmatpush1.msra.mxu0 %v778
    %2454 = vmatprep.subr.mxu0 %v785
    %2455 = vmatpush1.msra.mxu0 %v784
    %2456 = vmatprep.subr.mxu0 %v791
    %2457 = vmatpush1.msra.mxu0 %v790
    %2458 = vmatprep.subr.mxu0 %v797
    %2459 = vmatpush1.msra.mxu0 %v796
    %2460 = vmatprep.subr.mxu0 %v803
    %2461 = vmatpush1.msra.mxu0 %v802
    %2462 = vmatprep.subr.mxu0 %v809
    %2463 = vmatpush1.msra.mxu0 %v808
    %2464 = vmatprep.subr.mxu0 %v815
    %2465 = vmatpush1.msra.mxu0 %v814
    %2466 = vmatprep.subr.mxu0 %v821
    %2467 = vmatpush1.msra.mxu0 %v820
    %2468 = vmatprep.subr.mxu0 %v827
    %2469 = vmatpush1.msra.mxu0 %v826
    %2470 = vmatprep.subr.mxu0 %v833
    %2471 = vmatpush1.msra.mxu0 %v832
    %2472 = vmatprep.subr.mxu0 %v839
    %2473 = vmatpush1.msra.mxu0 %v838
    %2474 = vmatprep.subr.mxu0 %v845
    %2475 = vmatpush1.msra.mxu0 %v844
    %2476 = vmatprep.subr.mxu0 %v851
    %2477 = vmatpush1.msra.mxu0 %v850
    %2478 = vmatprep.subr.mxu0 %v857
    %2479 = vmatpush1.msra.mxu0 %v856
    %2480 = vmatprep.subr.mxu0 %v863
    %2481 = vmatpush1.msra.mxu0 %v862
    %2482 = vmatprep.subr.mxu0 %v869
    %2483 = vmatpush1.msra.mxu0 %v868
    %2484 = vmatprep.subr.mxu0 %v875
    %2485 = vmatpush1.msra.mxu0 %v874
    %2486 = vmatprep.mubr.f32.mxu0 %v2421
    %2487 = vmatmul.mubr.f32.gmra.mrb[0].mxu0 %v2420
    %v2488 = vpop.f32.mrb[0].mxu0
    %v2489 = vadd.f32 0.0, %v2488
    %v2490 = vpop.f32.mrb[0].mxu0
    %v2491 = vadd.f32 0.0, %v2490
    %2492 = vdwg.mxu0
    %2493 = vmatprep.subr.mxu0 %v691
    %2494 = vmatpush1.msra.mxu0 %v690
    %2495 = vmatprep.subr.mxu0 %v697
    %2496 = vmatpush1.msra.mxu0 %v696
    %2497 = vmatprep.subr.mxu0 %v703
    %2498 = vmatpush1.msra.mxu0 %v702
    %2499 = vmatprep.subr.mxu0 %v709
    %2500 = vmatpush1.msra.mxu0 %v708
    %2501 = vmatprep.subr.mxu0 %v715
    %2502 = vmatpush1.msra.mxu0 %v714
    %2503 = vmatprep.subr.mxu0 %v721
    %2504 = vmatpush1.msra.mxu0 %v720
    %2505 = vmatprep.subr.mxu0 %v727
    %2506 = vmatpush1.msra.mxu0 %v726
    %2507 = vmatprep.subr.mxu0 %v733
    %2508 = vmatpush1.msra.mxu0 %v732
    %2509 = vmatprep.subr.mxu0 %v739
    %2510 = vmatpush1.msra.mxu0 %v738
    %2511 = vmatprep.subr.mxu0 %v745
    %2512 = vmatpush1.msra.mxu0 %v744
    %2513 = vmatprep.subr.mxu0 %v751
    %2514 = vmatpush1.msra.mxu0 %v750
    %2515 = vmatprep.subr.mxu0 %v757
    %2516 = vmatpush1.msra.mxu0 %v756
    %2517 = vmatprep.subr.mxu0 %v763
    %2518 = vmatpush1.msra.mxu0 %v762
    %2519 = vmatprep.subr.mxu0 %v769
    %2520 = vmatpush1.msra.mxu0 %v768
    %2521 = vmatprep.subr.mxu0 %v775
    %2522 = vmatpush1.msra.mxu0 %v774
    %2523 = vmatprep.subr.mxu0 %v781
    %2524 = vmatpush1.msra.mxu0 %v780
    %2525 = vmatprep.subr.mxu0 %v787
    %2526 = vmatpush1.msra.mxu0 %v786
    %2527 = vmatprep.subr.mxu0 %v793
    %2528 = vmatpush1.msra.mxu0 %v792
    %2529 = vmatprep.subr.mxu0 %v799
    %2530 = vmatpush1.msra.mxu0 %v798
    %2531 = vmatprep.subr.mxu0 %v805
    %2532 = vmatpush1.msra.mxu0 %v804
    %2533 = vmatprep.subr.mxu0 %v811
    %2534 = vmatpush1.msra.mxu0 %v810
    %2535 = vmatprep.subr.mxu0 %v817
    %2536 = vmatpush1.msra.mxu0 %v816
    %2537 = vmatprep.subr.mxu0 %v823
    %2538 = vmatpush1.msra.mxu0 %v822
    %2539 = vmatprep.subr.mxu0 %v829
    %2540 = vmatpush1.msra.mxu0 %v828
    %2541 = vmatprep.subr.mxu0 %v835
    %2542 = vmatpush1.msra.mxu0 %v834
    %2543 = vmatprep.subr.mxu0 %v841
    %2544 = vmatpush1.msra.mxu0 %v840
    %2545 = vmatprep.subr.mxu0 %v847
    %2546 = vmatpush1.msra.mxu0 %v846
    %2547 = vmatprep.subr.mxu0 %v853
    %2548 = vmatpush1.msra.mxu0 %v852
    %2549 = vmatprep.subr.mxu0 %v859
    %2550 = vmatpush1.msra.mxu0 %v858
    %2551 = vmatprep.subr.mxu0 %v865
    %2552 = vmatpush1.msra.mxu0 %v864
    %2553 = vmatprep.subr.mxu0 %v871
    %2554 = vmatpush1.msra.mxu0 %v870
    %2555 = vmatprep.subr.mxu0 %v877
    %2556 = vmatpush1.msra.mxu0 %v876
    %2557 = vmatprep.mubr.f32.mxu0 %v2421
    %2558 = vmatmul.mubr.f32.gmra.mrb[0].mxu0 %v2420
    %v2559 = vpop.f32.mrb[0].mxu0
    %v2560 = vadd.f32 0.0, %v2559
    %v2561 = vpop.f32.mrb[0].mxu0
    %v2562 = vadd.f32 0.0, %v2561
    %2563 = vdwg.mxu0
    %2564 = vmatprep.subr.mxu0 %v693
    %2565 = vmatpush1.msra.mxu0 %v692
    %2566 = vmatprep.subr.mxu0 %v699
    %2567 = vmatpush1.msra.mxu0 %v698
    %2568 = vmatprep.subr.mxu0 %v705
    %2569 = vmatpush1.msra.mxu0 %v704
    %2570 = vmatprep.subr.mxu0 %v711
    %2571 = vmatpush1.msra.mxu0 %v710
    %2572 = vmatprep.subr.mxu0 %v717
    %2573 = vmatpush1.msra.mxu0 %v716
    %2574 = vmatprep.subr.mxu0 %v723
    %2575 = vmatpush1.msra.mxu0 %v722
    %2576 = vmatprep.subr.mxu0 %v729
    %2577 = vmatpush1.msra.mxu0 %v728
    %2578 = vmatprep.subr.mxu0 %v735
    %2579 = vmatpush1.msra.mxu0 %v734
    %2580 = vmatprep.subr.mxu0 %v741
    %2581 = vmatpush1.msra.mxu0 %v740
    %2582 = vmatprep.subr.mxu0 %v747
    %2583 = vmatpush1.msra.mxu0 %v746
    %2584 = vmatprep.subr.mxu0 %v753
    %2585 = vmatpush1.msra.mxu0 %v752
    %2586 = vmatprep.subr.mxu0 %v759
    %2587 = vmatpush1.msra.mxu0 %v758
    %2588 = vmatprep.subr.mxu0 %v765
    %2589 = vmatpush1.msra.mxu0 %v764
    %2590 = vmatprep.subr.mxu0 %v771
    %2591 = vmatpush1.msra.mxu0 %v770
    %2592 = vmatprep.subr.mxu0 %v777
    %2593 = vmatpush1.msra.mxu0 %v776
    %2594 = vmatprep.subr.mxu0 %v783
    %2595 = vmatpush1.msra.mxu0 %v782
    %2596 = vmatprep.subr.mxu0 %v789
    %2597 = vmatpush1.msra.mxu0 %v788
    %2598 = vmatprep.subr.mxu0 %v795
    %2599 = vmatpush1.msra.mxu0 %v794
    %2600 = vmatprep.subr.mxu0 %v801
    %2601 = vmatpush1.msra.mxu0 %v800
    %2602 = vmatprep.subr.mxu0 %v807
    %2603 = vmatpush1.msra.mxu0 %v806
    %2604 = vmatprep.subr.mxu0 %v813
    %2605 = vmatpush1.msra.mxu0 %v812
    %2606 = vmatprep.subr.mxu0 %v819
    %2607 = vmatpush1.msra.mxu0 %v818
    %2608 = vmatprep.subr.mxu0 %v825
    %2609 = vmatpush1.msra.mxu0 %v824
    %2610 = vmatprep.subr.mxu0 %v831
    %2611 = vmatpush1.msra.mxu0 %v830
    %2612 = vmatprep.subr.mxu0 %v837
    %2613 = vmatpush1.msra.mxu0 %v836
    %2614 = vmatprep.subr.mxu0 %v843
    %2615 = vmatpush1.msra.mxu0 %v842
    %2616 = vmatprep.subr.mxu0 %v849
    %2617 = vmatpush1.msra.mxu0 %v848
    %2618 = vmatprep.subr.mxu0 %v855
    %2619 = vmatpush1.msra.mxu0 %v854
    %2620 = vmatprep.subr.mxu0 %v861
    %2621 = vmatpush1.msra.mxu0 %v860
    %2622 = vmatprep.subr.mxu0 %v867
    %2623 = vmatpush1.msra.mxu0 %v866
    %2624 = vmatprep.subr.mxu0 %v873
    %2625 = vmatpush1.msra.mxu0 %v872
    %2626 = vmatprep.subr.mxu0 %v879
    %2627 = vmatpush1.msra.mxu0 %v878
    %2628 = vmatprep.mubr.f32.mxu0 %v2421
    %2629 = vmatmul.mubr.f32.gmra.mrb[0].mxu0 %v2420
    %v2630 = vpop.f32.mrb[0].mxu0
    %v2631 = vadd.f32 0.0, %v2630
    %v2632 = vpop.f32.mrb[0].mxu0
    %v2633 = vadd.f32 0.0, %v2632
    %2634 = vdwg.mxu0
    %v2635 = vadd.f32 %v452, %v2489
    %v2636 = vadd.f32 %v454, %v2491
    %v2637 = vadd.f32 %v565, %v2560
    %v2638 = vadd.f32 %v567, %v2562
    %v2639 = vxor.u32 %v2635, 2147483648
    %v2640 = vxor.u32 %v2636, 2147483648
    %v2641 = vxor.u32 %v2637, 2147483648
    %v2642 = vxor.u32 %v2638, 2147483648
    %v2643 = vmul.f32 %v2639, 1.442695
    %v2644 = vpow.pop %v2643
    %v2645 = vmul.f32 %v2640, 1.442695
    %v2646 = vpow.pop %v2645
    %v2647 = vmul.f32 %v2641, 1.442695
    %v2648 = vpow.pop %v2647
    %v2649 = vmul.f32 %v2642, 1.442695
    %v2650 = vpow.pop %v2649
    %v2651 = vadd.f32 %v2644, 1.0
    %v2652 = vadd.f32 %v2646, 1.0
    %v2653 = vadd.f32 %v2648, 1.0
    %v2654 = vadd.f32 %v2650, 1.0
    %v2655 = vrcp.pop %v2651
    %v2656 = vmul.f32 1.0, %v2655
    %v2657 = vrcp.pop %v2652
    %v2658 = vmul.f32 1.0, %v2657
    %v2659 = vrcp.pop %v2653
    %v2660 = vmul.f32 1.0, %v2659
    %v2661 = vrcp.pop %v2654
    %v2662 = vmul.f32 1.0, %v2661
    %v2663 = vadd.f32 %v2631, %v885
    %v2664 = vadd.f32 %v2633, %v889
    %v2665 = vmul.f32 %v2656, %v2663
    %v2666 = vmul.f32 %v2658, %v2664
    %v2667 = vadd.f32 %v678, %v2665
    %v2668 = vadd.f32 %v680, %v2666
    %v2669 = vtanh.pop %v2667
    %v2670 = vtanh.pop %v2668
    %v2671 = vsub.f32 %v2420, %v2669
    %v2672 = vsub.f32 %v2421, %v2670
    %v2673 = vmul.f32 %v2660, %v2671
    %v2674 = vmul.f32 %v2662, %v2672
    %v2675 = vadd.f32 %v2669, %v2673
    %v2676 = vadd.f32 %v2670, %v2674
    %2677 = vmatprep.subr.mxu0 %v689
    %2678 = vmatpush1.msra.mxu0 %v688
    %2679 = vmatprep.subr.mxu0 %v695
    %2680 = vmatpush1.msra.mxu0 %v694
    %2681 = vmatprep.subr.mxu0 %v701
    %2682 = vmatpush1.msra.mxu0 %v700
    %2683 = vmatprep.subr.mxu0 %v707
    %2684 = vmatpush1.msra.mxu0 %v706
    %2685 = vmatprep.subr.mxu0 %v713
    %2686 = vmatpush1.msra.mxu0 %v712
    %2687 = vmatprep.subr.mxu0 %v719
    %2688 = vmatpush1.msra.mxu0 %v718
    %2689 = vmatprep.subr.mxu0 %v725
    %2690 = vmatpush1.msra.mxu0 %v724
    %2691 = vmatprep.subr.mxu0 %v731
    %2692 = vmatpush1.msra.mxu0 %v730
    %2693 = vmatprep.subr.mxu0 %v737
    %2694 = vmatpush1.msra.mxu0 %v736
    %2695 = vmatprep.subr.mxu0 %v743
    %2696 = vmatpush1.msra.mxu0 %v742
    %2697 = vmatprep.subr.mxu0 %v749
    %2698 = vmatpush1.msra.mxu0 %v748
    %2699 = vmatprep.subr.mxu0 %v755
    %2700 = vmatpush1.msra.mxu0 %v754
    %2701 = vmatprep.subr.mxu0 %v761
    %2702 = vmatpush1.msra.mxu0 %v760
    %2703 = vmatprep.subr.mxu0 %v767
    %2704 = vmatpush1.msra.mxu0 %v766
    %2705 = vmatprep.subr.mxu0 %v773
    %2706 = vmatpush1.msra.mxu0 %v772
    %2707 = vmatprep.subr.mxu0 %v779
    %2708 = vmatpush1.msra.mxu0 %v778
    %2709 = vmatprep.subr.mxu0 %v785
    %2710 = vmatpush1.msra.mxu0 %v784
    %2711 = vmatprep.subr.mxu0 %v791
    %2712 = vmatpush1.msra.mxu0 %v790
    %2713 = vmatprep.subr.mxu0 %v797
    %2714 = vmatpush1.msra.mxu0 %v796
    %2715 = vmatprep.subr.mxu0 %v803
    %2716 = vmatpush1.msra.mxu0 %v802
    %2717 = vmatprep.subr.mxu0 %v809
    %2718 = vmatpush1.msra.mxu0 %v808
    %2719 = vmatprep.subr.mxu0 %v815
    %2720 = vmatpush1.msra.mxu0 %v814
    %2721 = vmatprep.subr.mxu0 %v821
    %2722 = vmatpush1.msra.mxu0 %v820
    %2723 = vmatprep.subr.mxu0 %v827
    %2724 = vmatpush1.msra.mxu0 %v826
    %2725 = vmatprep.subr.mxu0 %v833
    %2726 = vmatpush1.msra.mxu0 %v832
    %2727 = vmatprep.subr.mxu0 %v839
    %2728 = vmatpush1.msra.mxu0 %v838
    %2729 = vmatprep.subr.mxu0 %v845
    %2730 = vmatpush1.msra.mxu0 %v844
    %2731 = vmatprep.subr.mxu0 %v851
    %2732 = vmatpush1.msra.mxu0 %v850
    %2733 = vmatprep.subr.mxu0 %v857
    %2734 = vmatpush1.msra.mxu0 %v856
    %2735 = vmatprep.subr.mxu0 %v863
    %2736 = vmatpush1.msra.mxu0 %v862
    %2737 = vmatprep.subr.mxu0 %v869
    %2738 = vmatpush1.msra.mxu0 %v868
    %2739 = vmatprep.subr.mxu0 %v875
    %2740 = vmatpush1.msra.mxu0 %v874
    %2741 = vmatprep.mubr.f32.mxu0 %v2676
    %2742 = vmatmul.mubr.f32.gmra.mrb[0].mxu0 %v2675
    %v2743 = vpop.f32.mrb[0].mxu0
    %v2744 = vadd.f32 0.0, %v2743
    %v2745 = vpop.f32.mrb[0].mxu0
    %v2746 = vadd.f32 0.0, %v2745
    %2747 = vdwg.mxu0
    %2748 = vmatprep.subr.mxu0 %v691
    %2749 = vmatpush1.msra.mxu0 %v690
    %2750 = vmatprep.subr.mxu0 %v697
    %2751 = vmatpush1.msra.mxu0 %v696
    %2752 = vmatprep.subr.mxu0 %v703
    %2753 = vmatpush1.msra.mxu0 %v702
    %2754 = vmatprep.subr.mxu0 %v709
    %2755 = vmatpush1.msra.mxu0 %v708
    %2756 = vmatprep.subr.mxu0 %v715
    %2757 = vmatpush1.msra.mxu0 %v714
    %2758 = vmatprep.subr.mxu0 %v721
    %2759 = vmatpush1.msra.mxu0 %v720
    %2760 = vmatprep.subr.mxu0 %v727
    %2761 = vmatpush1.msra.mxu0 %v726
    %2762 = vmatprep.subr.mxu0 %v733
    %2763 = vmatpush1.msra.mxu0 %v732
    %2764 = vmatprep.subr.mxu0 %v739
    %2765 = vmatpush1.msra.mxu0 %v738
    %2766 = vmatprep.subr.mxu0 %v745
    %2767 = vmatpush1.msra.mxu0 %v744
    %2768 = vmatprep.subr.mxu0 %v751
    %2769 = vmatpush1.msra.mxu0 %v750
    %2770 = vmatprep.subr.mxu0 %v757
    %2771 = vmatpush1.msra.mxu0 %v756
    %2772 = vmatprep.subr.mxu0 %v763
    %2773 = vmatpush1.msra.mxu0 %v762
    %2774 = vmatprep.subr.mxu0 %v769
    %2775 = vmatpush1.msra.mxu0 %v768
    %2776 = vmatprep.subr.mxu0 %v775
    %2777 = vmatpush1.msra.mxu0 %v774
    %2778 = vmatprep.subr.mxu0 %v781
    %2779 = vmatpush1.msra.mxu0 %v780
    %2780 = vmatprep.subr.mxu0 %v787
    %2781 = vmatpush1.msra.mxu0 %v786
    %2782 = vmatprep.subr.mxu0 %v793
    %2783 = vmatpush1.msra.mxu0 %v792
    %2784 = vmatprep.subr.mxu0 %v799
    %2785 = vmatpush1.msra.mxu0 %v798
    %2786 = vmatprep.subr.mxu0 %v805
    %2787 = vmatpush1.msra.mxu0 %v804
    %2788 = vmatprep.subr.mxu0 %v811
    %2789 = vmatpush1.msra.mxu0 %v810
    %2790 = vmatprep.subr.mxu0 %v817
    %2791 = vmatpush1.msra.mxu0 %v816
    %2792 = vmatprep.subr.mxu0 %v823
    %2793 = vmatpush1.msra.mxu0 %v822
    %2794 = vmatprep.subr.mxu0 %v829
    %2795 = vmatpush1.msra.mxu0 %v828
    %2796 = vmatprep.subr.mxu0 %v835
    %2797 = vmatpush1.msra.mxu0 %v834
    %2798 = vmatprep.subr.mxu0 %v841
    %2799 = vmatpush1.msra.mxu0 %v840
    %2800 = vmatprep.subr.mxu0 %v847
    %2801 = vmatpush1.msra.mxu0 %v846
    %2802 = vmatprep.subr.mxu0 %v853
    %2803 = vmatpush1.msra.mxu0 %v852
    %2804 = vmatprep.subr.mxu0 %v859
    %2805 = vmatpush1.msra.mxu0 %v858
    %2806 = vmatprep.subr.mxu0 %v865
    %2807 = vmatpush1.msra.mxu0 %v864
    %2808 = vmatprep.subr.mxu0 %v871
    %2809 = vmatpush1.msra.mxu0 %v870
    %2810 = vmatprep.subr.mxu0 %v877
    %2811 = vmatpush1.msra.mxu0 %v876
    %2812 = vmatprep.mubr.f32.mxu0 %v2676
    %2813 = vmatmul.mubr.f32.gmra.mrb[0].mxu0 %v2675
    %v2814 = vpop.f32.mrb[0].mxu0
    %v2815 = vadd.f32 0.0, %v2814
    %v2816 = vpop.f32.mrb[0].mxu0
    %v2817 = vadd.f32 0.0, %v2816
    %2818 = vdwg.mxu0
    %2819 = vmatprep.subr.mxu0 %v693
    %2820 = vmatpush1.msra.mxu0 %v692
    %2821 = vmatprep.subr.mxu0 %v699
    %2822 = vmatpush1.msra.mxu0 %v698
    %2823 = vmatprep.subr.mxu0 %v705
    %2824 = vmatpush1.msra.mxu0 %v704
    %2825 = vmatprep.subr.mxu0 %v711
    %2826 = vmatpush1.msra.mxu0 %v710
    %2827 = vmatprep.subr.mxu0 %v717
    %2828 = vmatpush1.msra.mxu0 %v716
    %2829 = vmatprep.subr.mxu0 %v723
    %2830 = vmatpush1.msra.mxu0 %v722
    %2831 = vmatprep.subr.mxu0 %v729
    %2832 = vmatpush1.msra.mxu0 %v728
    %2833 = vmatprep.subr.mxu0 %v735
    %2834 = vmatpush1.msra.mxu0 %v734
    %2835 = vmatprep.subr.mxu0 %v741
    %2836 = vmatpush1.msra.mxu0 %v740
    %2837 = vmatprep.subr.mxu0 %v747
    %2838 = vmatpush1.msra.mxu0 %v746
    %2839 = vmatprep.subr.mxu0 %v753
    %2840 = vmatpush1.msra.mxu0 %v752
    %2841 = vmatprep.subr.mxu0 %v759
    %2842 = vmatpush1.msra.mxu0 %v758
    %2843 = vmatprep.subr.mxu0 %v765
    %2844 = vmatpush1.msra.mxu0 %v764
    %2845 = vmatprep.subr.mxu0 %v771
    %2846 = vmatpush1.msra.mxu0 %v770
    %2847 = vmatprep.subr.mxu0 %v777
    %2848 = vmatpush1.msra.mxu0 %v776
    %2849 = vmatprep.subr.mxu0 %v783
    %2850 = vmatpush1.msra.mxu0 %v782
    %2851 = vmatprep.subr.mxu0 %v789
    %2852 = vmatpush1.msra.mxu0 %v788
    %2853 = vmatprep.subr.mxu0 %v795
    %2854 = vmatpush1.msra.mxu0 %v794
    %2855 = vmatprep.subr.mxu0 %v801
    %2856 = vmatpush1.msra.mxu0 %v800
    %2857 = vmatprep.subr.mxu0 %v807
    %2858 = vmatpush1.msra.mxu0 %v806
    %2859 = vmatprep.subr.mxu0 %v813
    %2860 = vmatpush1.msra.mxu0 %v812
    %2861 = vmatprep.subr.mxu0 %v819
    %2862 = vmatpush1.msra.mxu0 %v818
    %2863 = vmatprep.subr.mxu0 %v825
    %2864 = vmatpush1.msra.mxu0 %v824
    %2865 = vmatprep.subr.mxu0 %v831
    %2866 = vmatpush1.msra.mxu0 %v830
    %2867 = vmatprep.subr.mxu0 %v837
    %2868 = vmatpush1.msra.mxu0 %v836
    %2869 = vmatprep.subr.mxu0 %v843
    %2870 = vmatpush1.msra.mxu0 %v842
    %2871 = vmatprep.subr.mxu0 %v849
    %2872 = vmatpush1.msra.mxu0 %v848
    %2873 = vmatprep.subr.mxu0 %v855
    %2874 = vmatpush1.msra.mxu0 %v854
    %2875 = vmatprep.subr.mxu0 %v861
    %2876 = vmatpush1.msra.mxu0 %v860
    %2877 = vmatprep.subr.mxu0 %v867
    %2878 = vmatpush1.msra.mxu0 %v866
    %2879 = vmatprep.subr.mxu0 %v873
    %2880 = vmatpush1.msra.mxu0 %v872
    %2881 = vmatprep.subr.mxu0 %v879
    %2882 = vmatpush1.msra.mxu0 %v878
    %2883 = vmatprep.mubr.f32.mxu0 %v2676
    %2884 = vmatmul.mubr.f32.gmra.mrb[0].mxu0 %v2675
    %v2885 = vpop.f32.mrb[0].mxu0
    %v2886 = vadd.f32 0.0, %v2885
    %v2887 = vpop.f32.mrb[0].mxu0
    %v2888 = vadd.f32 0.0, %v2887
    %2889 = vdwg.mxu0
    %v2890 = vadd.f32 %v458, %v2744
    %v2891 = vadd.f32 %v460, %v2746
    %v2892 = vadd.f32 %v571, %v2815
    %v2893 = vadd.f32 %v573, %v2817
    %v2894 = vxor.u32 %v2890, 2147483648
    %v2895 = vxor.u32 %v2891, 2147483648
    %v2896 = vxor.u32 %v2892, 2147483648
    %v2897 = vxor.u32 %v2893, 2147483648
    %v2898 = vmul.f32 %v2894, 1.442695
    %v2899 = vpow.pop %v2898
    %v2900 = vmul.f32 %v2895, 1.442695
    %v2901 = vpow.pop %v2900
    %v2902 = vmul.f32 %v2896, 1.442695
    %v2903 = vpow.pop %v2902
    %v2904 = vmul.f32 %v2897, 1.442695
    %v2905 = vpow.pop %v2904
    %v2906 = vadd.f32 %v2899, 1.0
    %v2907 = vadd.f32 %v2901, 1.0
    %v2908 = vadd.f32 %v2903, 1.0
    %v2909 = vadd.f32 %v2905, 1.0
    %v2910 = vrcp.pop %v2906
    %v2911 = vmul.f32 1.0, %v2910
    %v2912 = vrcp.pop %v2907
    %v2913 = vmul.f32 1.0, %v2912
    %v2914 = vrcp.pop %v2908
    %v2915 = vmul.f32 1.0, %v2914
    %v2916 = vrcp.pop %v2909
    %v2917 = vmul.f32 1.0, %v2916
    %v2918 = vadd.f32 %v2886, %v885
    %v2919 = vadd.f32 %v2888, %v889
    %v2920 = vmul.f32 %v2911, %v2918
    %v2921 = vmul.f32 %v2913, %v2919
    %v2922 = vadd.f32 %v684, %v2920
    %v2923 = vadd.f32 %v686, %v2921
    %v2924 = vtanh.pop %v2922
    %v2925 = vtanh.pop %v2923
    %v2926 = vsub.f32 %v2675, %v2924
    %v2927 = vsub.f32 %v2676, %v2925
    %v2928 = vmul.f32 %v2915, %v2926
    %v2929 = vmul.f32 %v2917, %v2927
    %v2930 = vadd.f32 %v2924, %v2928
    %v2931 = vadd.f32 %v2925, %v2929
    %v2932 = vld [vmem:[#allocation6] sm:$0xff]
    %v2933 = vld [vmem:[#allocation6 + $0x8] sm:$0xff]
    %v2934 = vld [vmem:[#allocation6 + $0x10] sm:$0xff]
    %v2935 = vld [vmem:[#allocation6 + $0x18] sm:$0xff]
    %v2936 = vld [vmem:[#allocation6 + $0x20] sm:$0xff]
    %v2937 = vld [vmem:[#allocation6 + $0x28] sm:$0xff]
    %v2938 = vld [vmem:[#allocation6 + $0x30] sm:$0xff]
    %v2939 = vld [vmem:[#allocation6 + $0x38] sm:$0xff]
    %v2940 = vld [vmem:[#allocation6 + $0x40] sm:$0xff]
    %v2941 = vld [vmem:[#allocation6 + $0x48] sm:$0xff]
    %v2942 = vld [vmem:[#allocation6 + $0x50] sm:$0xff]
    %v2943 = vld [vmem:[#allocation6 + $0x58] sm:$0xff]
    %v2944 = vld [vmem:[#allocation6 + $0x60] sm:$0xff]
    %v2945 = vld [vmem:[#allocation6 + $0x68] sm:$0xff]
    %v2946 = vld [vmem:[#allocation6 + $0x70] sm:$0xff]
    %v2947 = vld [vmem:[#allocation6 + $0x78] sm:$0xff]
    %v2948 = vld [vmem:[#allocation6 + $0x80] sm:$0xff]
    %v2949 = vld [vmem:[#allocation6 + $0x88] sm:$0xff]
    %v2950 = vld [vmem:[#allocation6 + $0x90] sm:$0xff]
    %v2951 = vld [vmem:[#allocation6 + $0x98] sm:$0xff]
    %v2952 = vld [vmem:[#allocation6 + $0xa0] sm:$0xff]
    %v2953 = vld [vmem:[#allocation6 + $0xa8] sm:$0xff]
    %v2954 = vld [vmem:[#allocation6 + $0xb0] sm:$0xff]
    %v2955 = vld [vmem:[#allocation6 + $0xb8] sm:$0xff]
    %v2956 = vld [vmem:[#allocation6 + $0xc0] sm:$0xff]
    %v2957 = vld [vmem:[#allocation6 + $0xc8] sm:$0xff]
    %v2958 = vld [vmem:[#allocation6 + $0xd0] sm:$0xff]
    %v2959 = vld [vmem:[#allocation6 + $0xd8] sm:$0xff]
    %v2960 = vld [vmem:[#allocation6 + $0xe0] sm:$0xff]
    %v2961 = vld [vmem:[#allocation6 + $0xe8] sm:$0xff]
    %v2962 = vld [vmem:[#allocation6 + $0xf0] sm:$0xff]
    %v2963 = vld [vmem:[#allocation6 + $0xf8] sm:$0xff]
    %v2964 = vld [vmem:[#allocation6 + $0x100] sm:$0xff]
    %v2965 = vld [vmem:[#allocation6 + $0x108] sm:$0xff]
    %v2966 = vld [vmem:[#allocation6 + $0x110] sm:$0xff]
    %v2967 = vld [vmem:[#allocation6 + $0x118] sm:$0xff]
    %v2968 = vld [vmem:[#allocation6 + $0x120] sm:$0xff]
    %v2969 = vld [vmem:[#allocation6 + $0x128] sm:$0xff]
    %v2970 = vld [vmem:[#allocation6 + $0x130] sm:$0xff]
    %v2971 = vld [vmem:[#allocation6 + $0x138] sm:$0xff]
    %v2972 = vld [vmem:[#allocation6 + $0x140] sm:$0xff]
    %v2973 = vld [vmem:[#allocation6 + $0x148] sm:$0xff]
    %v2974 = vld [vmem:[#allocation6 + $0x150] sm:$0xff]
    %v2975 = vld [vmem:[#allocation6 + $0x158] sm:$0xff]
    %v2976 = vld [vmem:[#allocation6 + $0x160] sm:$0xff]
    %v2977 = vld [vmem:[#allocation6 + $0x168] sm:$0xff]
    %v2978 = vld [vmem:[#allocation6 + $0x170] sm:$0xff]
    %v2979 = vld [vmem:[#allocation6 + $0x178] sm:$0xff]
    %v2980 = vld [vmem:[#allocation6 + $0x180] sm:$0xff]
    %v2981 = vld [vmem:[#allocation6 + $0x188] sm:$0xff]
    %v2982 = vld [vmem:[#allocation6 + $0x190] sm:$0xff]
    %v2983 = vld [vmem:[#allocation6 + $0x198] sm:$0xff]
    %v2984 = vld [vmem:[#allocation6 + $0x1a0] sm:$0xff]
    %v2985 = vld [vmem:[#allocation6 + $0x1a8] sm:$0xff]
    %v2986 = vld [vmem:[#allocation6 + $0x1b0] sm:$0xff]
    %v2987 = vld [vmem:[#allocation6 + $0x1b8] sm:$0xff]
    %v2988 = vld [vmem:[#allocation6 + $0x1c0] sm:$0xff]
    %v2989 = vld [vmem:[#allocation6 + $0x1c8] sm:$0xff]
    %v2990 = vld [vmem:[#allocation6 + $0x1d0] sm:$0xff]
    %v2991 = vld [vmem:[#allocation6 + $0x1d8] sm:$0xff]
    %v2992 = vld [vmem:[#allocation6 + $0x1e0] sm:$0xff]
    %v2993 = vld [vmem:[#allocation6 + $0x1e8] sm:$0xff]
    %v2994 = vld [vmem:[#allocation6 + $0x1f0] sm:$0xff]
    %v2995 = vld [vmem:[#allocation6 + $0x1f8] sm:$0xff]
    %v2996 = vld [vmem:[#allocation6 + $0x200] sm:$0xff]
    %v2997 = vld [vmem:[#allocation6 + $0x208] sm:$0xff]
    %v2998 = vld [vmem:[#allocation6 + $0x210] sm:$0xff]
    %v2999 = vld [vmem:[#allocation6 + $0x218] sm:$0xff]
    %v3000 = vld [vmem:[#allocation6 + $0x220] sm:$0xff]
    %v3001 = vld [vmem:[#allocation6 + $0x228] sm:$0xff]
    %v3002 = vld [vmem:[#allocation6 + $0x230] sm:$0xff]
    %v3003 = vld [vmem:[#allocation6 + $0x238] sm:$0xff]
    %v3004 = vld [vmem:[#allocation6 + $0x240] sm:$0xff]
    %v3005 = vld [vmem:[#allocation6 + $0x248] sm:$0xff]
    %v3006 = vld [vmem:[#allocation6 + $0x250] sm:$0xff]
    %v3007 = vld [vmem:[#allocation6 + $0x258] sm:$0xff]
    %v3008 = vld [vmem:[#allocation6 + $0x260] sm:$0xff]
    %v3009 = vld [vmem:[#allocation6 + $0x268] sm:$0xff]
    %v3010 = vld [vmem:[#allocation6 + $0x270] sm:$0xff]
    %v3011 = vld [vmem:[#allocation6 + $0x278] sm:$0xff]
    %v3012 = vld [vmem:[#allocation6 + $0x280] sm:$0xff]
    %v3013 = vld [vmem:[#allocation6 + $0x288] sm:$0xff]
    %v3014 = vld [vmem:[#allocation6 + $0x290] sm:$0xff]
    %v3015 = vld [vmem:[#allocation6 + $0x298] sm:$0xff]
    %v3016 = vld [vmem:[#allocation6 + $0x2a0] sm:$0xff]
    %v3017 = vld [vmem:[#allocation6 + $0x2a8] sm:$0xff]
    %v3018 = vld [vmem:[#allocation6 + $0x2b0] sm:$0xff]
    %v3019 = vld [vmem:[#allocation6 + $0x2b8] sm:$0xff]
    %v3020 = vld [vmem:[#allocation6 + $0x2c0] sm:$0xff]
    %v3021 = vld [vmem:[#allocation6 + $0x2c8] sm:$0xff]
    %v3022 = vld [vmem:[#allocation6 + $0x2d0] sm:$0xff]
    %v3023 = vld [vmem:[#allocation6 + $0x2d8] sm:$0xff]
    %v3024 = vld [vmem:[#allocation6 + $0x2e0] sm:$0xff]
    %v3025 = vld [vmem:[#allocation6 + $0x2e8] sm:$0xff]
    %v3026 = vld [vmem:[#allocation6 + $0x2f0] sm:$0xff]
    %v3027 = vld [vmem:[#allocation6 + $0x2f8] sm:$0xff]
    %v3028 = vld [vmem:[#allocation6 + $0x300] sm:$0xff]
    %v3029 = vld [vmem:[#allocation6 + $0x308] sm:$0xff]
    %v3030 = vld [vmem:[#allocation6 + $0x310] sm:$0xff]
    %v3031 = vld [vmem:[#allocation6 + $0x318] sm:$0xff]
    %v3032 = vld [vmem:[#allocation6 + $0x320] sm:$0xff]
    %v3033 = vld [vmem:[#allocation6 + $0x328] sm:$0xff]
    %v3034 = vld [vmem:[#allocation6 + $0x330] sm:$0xff]
    %v3035 = vld [vmem:[#allocation6 + $0x338] sm:$0xff]
    %v3036 = vld [vmem:[#allocation6 + $0x340] sm:$0xff]
    %v3037 = vld [vmem:[#allocation6 + $0x348] sm:$0xff]
    %v3038 = vld [vmem:[#allocation6 + $0x350] sm:$0xff]
    %v3039 = vld [vmem:[#allocation6 + $0x358] sm:$0xff]
    %v3040 = vld [vmem:[#allocation6 + $0x360] sm:$0xff]
    %v3041 = vld [vmem:[#allocation6 + $0x368] sm:$0xff]
    %v3042 = vld [vmem:[#allocation6 + $0x370] sm:$0xff]
    %v3043 = vld [vmem:[#allocation6 + $0x378] sm:$0xff]
    %v3044 = vld [vmem:[#allocation6 + $0x380] sm:$0xff]
    %v3045 = vld [vmem:[#allocation6 + $0x388] sm:$0xff]
    %v3046 = vld [vmem:[#allocation6 + $0x390] sm:$0xff]
    %v3047 = vld [vmem:[#allocation6 + $0x398] sm:$0xff]
    %v3048 = vld [vmem:[#allocation6 + $0x3a0] sm:$0xff]
    %v3049 = vld [vmem:[#allocation6 + $0x3a8] sm:$0xff]
    %v3050 = vld [vmem:[#allocation6 + $0x3b0] sm:$0xff]
    %v3051 = vld [vmem:[#allocation6 + $0x3b8] sm:$0xff]
    %v3052 = vld [vmem:[#allocation6 + $0x3c0] sm:$0xff]
    %v3053 = vld [vmem:[#allocation6 + $0x3c8] sm:$0xff]
    %v3054 = vld [vmem:[#allocation6 + $0x3d0] sm:$0xff]
    %v3055 = vld [vmem:[#allocation6 + $0x3d8] sm:$0xff]
    %v3056 = vld [vmem:[#allocation6 + $0x3e0] sm:$0xff]
    %v3057 = vld [vmem:[#allocation6 + $0x3e8] sm:$0xff]
    %v3058 = vld [vmem:[#allocation6 + $0x3f0] sm:$0xff]
    %v3059 = vld [vmem:[#allocation6 + $0x3f8] sm:$0xff]
    %v3060 = vld [vmem:[#allocation6 + $0x400] sm:$0xff]
    %v3061 = vld [vmem:[#allocation6 + $0x408] sm:$0xff]
    %v3062 = vld [vmem:[#allocation6 + $0x410] sm:$0xff]
    %v3063 = vld [vmem:[#allocation6 + $0x418] sm:$0xff]
    %v3064 = vld [vmem:[#allocation6 + $0x420] sm:$0xff]
    %v3065 = vld [vmem:[#allocation6 + $0x428] sm:$0xff]
    %v3066 = vld [vmem:[#allocation6 + $0x430] sm:$0xff]
    %v3067 = vld [vmem:[#allocation6 + $0x438] sm:$0xff]
    %v3068 = vld [vmem:[#allocation6 + $0x440] sm:$0xff]
    %v3069 = vld [vmem:[#allocation6 + $0x448] sm:$0xff]
    %v3070 = vld [vmem:[#allocation6 + $0x450] sm:$0xff]
    %v3071 = vld [vmem:[#allocation6 + $0x458] sm:$0xff]
    %v3072 = vld [vmem:[#allocation6 + $0x460] sm:$0xff]
    %v3073 = vld [vmem:[#allocation6 + $0x468] sm:$0xff]
    %v3074 = vld [vmem:[#allocation6 + $0x470] sm:$0xff]
    %v3075 = vld [vmem:[#allocation6 + $0x478] sm:$0xff]
    %v3076 = vld [vmem:[#allocation6 + $0x480] sm:$0xff]
    %v3077 = vld [vmem:[#allocation6 + $0x488] sm:$0xff]
    %v3078 = vld [vmem:[#allocation6 + $0x490] sm:$0xff]
    %v3079 = vld [vmem:[#allocation6 + $0x498] sm:$0xff]
    %v3080 = vld [vmem:[#allocation6 + $0x4a0] sm:$0xff]
    %v3081 = vld [vmem:[#allocation6 + $0x4a8] sm:$0xff]
    %v3082 = vld [vmem:[#allocation6 + $0x4b0] sm:$0xff]
    %v3083 = vld [vmem:[#allocation6 + $0x4b8] sm:$0xff]
    %v3084 = vld [vmem:[#allocation6 + $0x4c0] sm:$0xff]
    %v3085 = vld [vmem:[#allocation6 + $0x4c8] sm:$0xff]
    %v3086 = vld [vmem:[#allocation6 + $0x4d0] sm:$0xff]
    %v3087 = vld [vmem:[#allocation6 + $0x4d8] sm:$0xff]
    %v3088 = vld [vmem:[#allocation6 + $0x4e0] sm:$0xff]
    %v3089 = vld [vmem:[#allocation6 + $0x4e8] sm:$0xff]
    %v3090 = vld [vmem:[#allocation6 + $0x4f0] sm:$0xff]
    %v3091 = vld [vmem:[#allocation6 + $0x4f8] sm:$0xff]
    %v3092 = vld [vmem:[#allocation6 + $0x500] sm:$0xff]
    %v3093 = vld [vmem:[#allocation6 + $0x508] sm:$0xff]
    %v3094 = vld [vmem:[#allocation6 + $0x510] sm:$0xff]
    %v3095 = vld [vmem:[#allocation6 + $0x518] sm:$0xff]
    %v3096 = vld [vmem:[#allocation6 + $0x520] sm:$0xff]
    %v3097 = vld [vmem:[#allocation6 + $0x528] sm:$0xff]
    %v3098 = vld [vmem:[#allocation6 + $0x530] sm:$0xff]
    %v3099 = vld [vmem:[#allocation6 + $0x538] sm:$0xff]
    %v3100 = vld [vmem:[#allocation6 + $0x540] sm:$0xff]
    %v3101 = vld [vmem:[#allocation6 + $0x548] sm:$0xff]
    %v3102 = vld [vmem:[#allocation6 + $0x550] sm:$0xff]
    %v3103 = vld [vmem:[#allocation6 + $0x558] sm:$0xff]
    %v3104 = vld [vmem:[#allocation6 + $0x560] sm:$0xff]
    %v3105 = vld [vmem:[#allocation6 + $0x568] sm:$0xff]
    %v3106 = vld [vmem:[#allocation6 + $0x570] sm:$0xff]
    %v3107 = vld [vmem:[#allocation6 + $0x578] sm:$0xff]
    %v3108 = vld [vmem:[#allocation6 + $0x580] sm:$0xff]
    %v3109 = vld [vmem:[#allocation6 + $0x588] sm:$0xff]
    %v3110 = vld [vmem:[#allocation6 + $0x590] sm:$0xff]
    %v3111 = vld [vmem:[#allocation6 + $0x598] sm:$0xff]
    %v3112 = vld [vmem:[#allocation6 + $0x5a0] sm:$0xff]
    %v3113 = vld [vmem:[#allocation6 + $0x5a8] sm:$0xff]
    %v3114 = vld [vmem:[#allocation6 + $0x5b0] sm:$0xff]
    %v3115 = vld [vmem:[#allocation6 + $0x5b8] sm:$0xff]
    %v3116 = vld [vmem:[#allocation6 + $0x5c0] sm:$0xff]
    %v3117 = vld [vmem:[#allocation6 + $0x5c8] sm:$0xff]
    %v3118 = vld [vmem:[#allocation6 + $0x5d0] sm:$0xff]
    %v3119 = vld [vmem:[#allocation6 + $0x5d8] sm:$0xff]
    %v3120 = vld [vmem:[#allocation6 + $0x5e0] sm:$0xff]
    %v3121 = vld [vmem:[#allocation6 + $0x5e8] sm:$0xff]
    %v3122 = vld [vmem:[#allocation6 + $0x5f0] sm:$0xff]
    %v3123 = vld [vmem:[#allocation6 + $0x5f8] sm:$0xff]
    %v3124 = vld [vmem:[#allocation7] sm:$0xff]
    %v3125 = vld [vmem:[#allocation7 + $0x8] sm:$0xff]
    %v3126 = vld [vmem:[#allocation7 + $0x10] sm:$0xff]
    %v3127 = vld [vmem:[#allocation7 + $0x18] sm:$0xff]
    %v3128 = vld [vmem:[#allocation7 + $0x20] sm:$0xff]
    %v3129 = vld [vmem:[#allocation7 + $0x28] sm:$0xff]
    %v3130 = vld [vmem:[#allocation7 + $0x30] sm:$0xff]
    %v3131 = vld [vmem:[#allocation7 + $0x38] sm:$0xff]
    %v3132 = vld [vmem:[#allocation7 + $0x40] sm:$0xff]
    %v3133 = vld [vmem:[#allocation7 + $0x48] sm:$0xff]
    %v3134 = vld [vmem:[#allocation7 + $0x50] sm:$0xff]
    %v3135 = vld [vmem:[#allocation7 + $0x58] sm:$0xff]
    %v3136 = vld [vmem:[#allocation7 + $0x60] sm:$0xff]
    %v3137 = vld [vmem:[#allocation7 + $0x68] sm:$0xff]
    %v3138 = vld [vmem:[#allocation7 + $0x70] sm:$0xff]
    %v3139 = vld [vmem:[#allocation7 + $0x78] sm:$0xff]
    %v3140 = vld [vmem:[#allocation7 + $0x80] sm:$0xff]
    %v3141 = vld [vmem:[#allocation7 + $0x88] sm:$0xff]
    %v3142 = vld [vmem:[#allocation7 + $0x90] sm:$0xff]
    %v3143 = vld [vmem:[#allocation7 + $0x98] sm:$0xff]
    %v3144 = vld [vmem:[#allocation7 + $0xa0] sm:$0xff]
    %v3145 = vld [vmem:[#allocation7 + $0xa8] sm:$0xff]
    %v3146 = vld [vmem:[#allocation7 + $0xb0] sm:$0xff]
    %v3147 = vld [vmem:[#allocation7 + $0xb8] sm:$0xff]
    %v3148 = vld [vmem:[#allocation7 + $0xc0] sm:$0xff]
    %v3149 = vld [vmem:[#allocation7 + $0xc8] sm:$0xff]
    %v3150 = vld [vmem:[#allocation7 + $0xd0] sm:$0xff]
    %v3151 = vld [vmem:[#allocation7 + $0xd8] sm:$0xff]
    %v3152 = vld [vmem:[#allocation7 + $0xe0] sm:$0xff]
    %v3153 = vld [vmem:[#allocation7 + $0xe8] sm:$0xff]
    %v3154 = vld [vmem:[#allocation7 + $0xf0] sm:$0xff]
    %v3155 = vld [vmem:[#allocation7 + $0xf8] sm:$0xff]
    %v3156 = vld [vmem:[#allocation7 + $0x100] sm:$0xff]
    %v3157 = vld [vmem:[#allocation7 + $0x108] sm:$0xff]
    %v3158 = vld [vmem:[#allocation7 + $0x110] sm:$0xff]
    %v3159 = vld [vmem:[#allocation7 + $0x118] sm:$0xff]
    %v3160 = vld [vmem:[#allocation7 + $0x120] sm:$0xff]
    %v3161 = vld [vmem:[#allocation7 + $0x128] sm:$0xff]
    %v3162 = vld [vmem:[#allocation7 + $0x130] sm:$0xff]
    %v3163 = vld [vmem:[#allocation7 + $0x138] sm:$0xff]
    %v3164 = vld [vmem:[#allocation7 + $0x140] sm:$0xff]
    %v3165 = vld [vmem:[#allocation7 + $0x148] sm:$0xff]
    %v3166 = vld [vmem:[#allocation7 + $0x150] sm:$0xff]
    %v3167 = vld [vmem:[#allocation7 + $0x158] sm:$0xff]
    %v3168 = vld [vmem:[#allocation7 + $0x160] sm:$0xff]
    %v3169 = vld [vmem:[#allocation7 + $0x168] sm:$0xff]
    %v3170 = vld [vmem:[#allocation7 + $0x170] sm:$0xff]
    %v3171 = vld [vmem:[#allocation7 + $0x178] sm:$0xff]
    %v3172 = vld [vmem:[#allocation7 + $0x180] sm:$0xff]
    %v3173 = vld [vmem:[#allocation7 + $0x188] sm:$0xff]
    %v3174 = vld [vmem:[#allocation7 + $0x190] sm:$0xff]
    %v3175 = vld [vmem:[#allocation7 + $0x198] sm:$0xff]
    %v3176 = vld [vmem:[#allocation7 + $0x1a0] sm:$0xff]
    %v3177 = vld [vmem:[#allocation7 + $0x1a8] sm:$0xff]
    %v3178 = vld [vmem:[#allocation7 + $0x1b0] sm:$0xff]
    %v3179 = vld [vmem:[#allocation7 + $0x1b8] sm:$0xff]
    %v3180 = vld [vmem:[#allocation7 + $0x1c0] sm:$0xff]
    %v3181 = vld [vmem:[#allocation7 + $0x1c8] sm:$0xff]
    %v3182 = vld [vmem:[#allocation7 + $0x1d0] sm:$0xff]
    %v3183 = vld [vmem:[#allocation7 + $0x1d8] sm:$0xff]
    %v3184 = vld [vmem:[#allocation7 + $0x1e0] sm:$0xff]
    %v3185 = vld [vmem:[#allocation7 + $0x1e8] sm:$0xff]
    %v3186 = vld [vmem:[#allocation7 + $0x1f0] sm:$0xff]
    %v3187 = vld [vmem:[#allocation7 + $0x1f8] sm:$0xff]
    %v3188 = vld [vmem:[#allocation7 + $0x200] sm:$0xff]
    %v3189 = vld [vmem:[#allocation7 + $0x208] sm:$0xff]
    %v3190 = vld [vmem:[#allocation7 + $0x210] sm:$0xff]
    %v3191 = vld [vmem:[#allocation7 + $0x218] sm:$0xff]
    %v3192 = vld [vmem:[#allocation7 + $0x220] sm:$0xff]
    %v3193 = vld [vmem:[#allocation7 + $0x228] sm:$0xff]
    %v3194 = vld [vmem:[#allocation7 + $0x230] sm:$0xff]
    %v3195 = vld [vmem:[#allocation7 + $0x238] sm:$0xff]
    %v3196 = vld [vmem:[#allocation7 + $0x240] sm:$0xff]
    %v3197 = vld [vmem:[#allocation7 + $0x248] sm:$0xff]
    %v3198 = vld [vmem:[#allocation7 + $0x250] sm:$0xff]
    %v3199 = vld [vmem:[#allocation7 + $0x258] sm:$0xff]
    %v3200 = vld [vmem:[#allocation7 + $0x260] sm:$0xff]
    %v3201 = vld [vmem:[#allocation7 + $0x268] sm:$0xff]
    %v3202 = vld [vmem:[#allocation7 + $0x270] sm:$0xff]
    %v3203 = vld [vmem:[#allocation7 + $0x278] sm:$0xff]
    %v3204 = vld [vmem:[#allocation7 + $0x280] sm:$0xff]
    %v3205 = vld [vmem:[#allocation7 + $0x288] sm:$0xff]
    %v3206 = vld [vmem:[#allocation7 + $0x290] sm:$0xff]
    %v3207 = vld [vmem:[#allocation7 + $0x298] sm:$0xff]
    %v3208 = vld [vmem:[#allocation7 + $0x2a0] sm:$0xff]
    %v3209 = vld [vmem:[#allocation7 + $0x2a8] sm:$0xff]
    %v3210 = vld [vmem:[#allocation7 + $0x2b0] sm:$0xff]
    %v3211 = vld [vmem:[#allocation7 + $0x2b8] sm:$0xff]
    %v3212 = vld [vmem:[#allocation7 + $0x2c0] sm:$0xff]
    %v3213 = vld [vmem:[#allocation7 + $0x2c8] sm:$0xff]
    %v3214 = vld [vmem:[#allocation7 + $0x2d0] sm:$0xff]
    %v3215 = vld [vmem:[#allocation7 + $0x2d8] sm:$0xff]
    %v3216 = vld [vmem:[#allocation7 + $0x2e0] sm:$0xff]
    %v3217 = vld [vmem:[#allocation7 + $0x2e8] sm:$0xff]
    %v3218 = vld [vmem:[#allocation7 + $0x2f0] sm:$0xff]
    %v3219 = vld [vmem:[#allocation7 + $0x2f8] sm:$0xff]
    %v3220 = vld [vmem:[#allocation7 + $0x300] sm:$0xff]
    %v3221 = vld [vmem:[#allocation7 + $0x308] sm:$0xff]
    %v3222 = vld [vmem:[#allocation7 + $0x310] sm:$0xff]
    %v3223 = vld [vmem:[#allocation7 + $0x318] sm:$0xff]
    %v3224 = vld [vmem:[#allocation7 + $0x320] sm:$0xff]
    %v3225 = vld [vmem:[#allocation7 + $0x328] sm:$0xff]
    %v3226 = vld [vmem:[#allocation7 + $0x330] sm:$0xff]
    %v3227 = vld [vmem:[#allocation7 + $0x338] sm:$0xff]
    %v3228 = vld [vmem:[#allocation7 + $0x340] sm:$0xff]
    %v3229 = vld [vmem:[#allocation7 + $0x348] sm:$0xff]
    %v3230 = vld [vmem:[#allocation7 + $0x350] sm:$0xff]
    %v3231 = vld [vmem:[#allocation7 + $0x358] sm:$0xff]
    %v3232 = vld [vmem:[#allocation7 + $0x360] sm:$0xff]
    %v3233 = vld [vmem:[#allocation7 + $0x368] sm:$0xff]
    %v3234 = vld [vmem:[#allocation7 + $0x370] sm:$0xff]
    %v3235 = vld [vmem:[#allocation7 + $0x378] sm:$0xff]
    %v3236 = vld [vmem:[#allocation7 + $0x380] sm:$0xff]
    %v3237 = vld [vmem:[#allocation7 + $0x388] sm:$0xff]
    %v3238 = vld [vmem:[#allocation7 + $0x390] sm:$0xff]
    %v3239 = vld [vmem:[#allocation7 + $0x398] sm:$0xff]
    %v3240 = vld [vmem:[#allocation7 + $0x3a0] sm:$0xff]
    %v3241 = vld [vmem:[#allocation7 + $0x3a8] sm:$0xff]
    %v3242 = vld [vmem:[#allocation7 + $0x3b0] sm:$0xff]
    %v3243 = vld [vmem:[#allocation7 + $0x3b8] sm:$0xff]
    %v3244 = vld [vmem:[#allocation7 + $0x3c0] sm:$0xff]
    %v3245 = vld [vmem:[#allocation7 + $0x3c8] sm:$0xff]
    %v3246 = vld [vmem:[#allocation7 + $0x3d0] sm:$0xff]
    %v3247 = vld [vmem:[#allocation7 + $0x3d8] sm:$0xff]
    %v3248 = vld [vmem:[#allocation7 + $0x3e0] sm:$0xff]
    %v3249 = vld [vmem:[#allocation7 + $0x3e8] sm:$0xff]
    %v3250 = vld [vmem:[#allocation7 + $0x3f0] sm:$0xff]
    %v3251 = vld [vmem:[#allocation7 + $0x3f8] sm:$0xff]
    %v3252 = vld [vmem:[#allocation7 + $0x400] sm:$0xff]
    %v3253 = vld [vmem:[#allocation7 + $0x408] sm:$0xff]
    %v3254 = vld [vmem:[#allocation7 + $0x410] sm:$0xff]
    %v3255 = vld [vmem:[#allocation7 + $0x418] sm:$0xff]
    %v3256 = vld [vmem:[#allocation7 + $0x420] sm:$0xff]
    %v3257 = vld [vmem:[#allocation7 + $0x428] sm:$0xff]
    %v3258 = vld [vmem:[#allocation7 + $0x430] sm:$0xff]
    %v3259 = vld [vmem:[#allocation7 + $0x438] sm:$0xff]
    %v3260 = vld [vmem:[#allocation7 + $0x440] sm:$0xff]
    %v3261 = vld [vmem:[#allocation7 + $0x448] sm:$0xff]
    %v3262 = vld [vmem:[#allocation7 + $0x450] sm:$0xff]
    %v3263 = vld [vmem:[#allocation7 + $0x458] sm:$0xff]
    %v3264 = vld [vmem:[#allocation7 + $0x460] sm:$0xff]
    %v3265 = vld [vmem:[#allocation7 + $0x468] sm:$0xff]
    %v3266 = vld [vmem:[#allocation7 + $0x470] sm:$0xff]
    %v3267 = vld [vmem:[#allocation7 + $0x478] sm:$0xff]
    %v3268 = vld [vmem:[#allocation7 + $0x480] sm:$0xff]
    %v3269 = vld [vmem:[#allocation7 + $0x488] sm:$0xff]
    %v3270 = vld [vmem:[#allocation7 + $0x490] sm:$0xff]
    %v3271 = vld [vmem:[#allocation7 + $0x498] sm:$0xff]
    %v3272 = vld [vmem:[#allocation7 + $0x4a0] sm:$0xff]
    %v3273 = vld [vmem:[#allocation7 + $0x4a8] sm:$0xff]
    %v3274 = vld [vmem:[#allocation7 + $0x4b0] sm:$0xff]
    %v3275 = vld [vmem:[#allocation7 + $0x4b8] sm:$0xff]
    %v3276 = vld [vmem:[#allocation7 + $0x4c0] sm:$0xff]
    %v3277 = vld [vmem:[#allocation7 + $0x4c8] sm:$0xff]
    %v3278 = vld [vmem:[#allocation7 + $0x4d0] sm:$0xff]
    %v3279 = vld [vmem:[#allocation7 + $0x4d8] sm:$0xff]
    %v3280 = vld [vmem:[#allocation7 + $0x4e0] sm:$0xff]
    %v3281 = vld [vmem:[#allocation7 + $0x4e8] sm:$0xff]
    %v3282 = vld [vmem:[#allocation7 + $0x4f0] sm:$0xff]
    %v3283 = vld [vmem:[#allocation7 + $0x4f8] sm:$0xff]
    %v3284 = vld [vmem:[#allocation7 + $0x500] sm:$0xff]
    %v3285 = vld [vmem:[#allocation7 + $0x508] sm:$0xff]
    %v3286 = vld [vmem:[#allocation7 + $0x510] sm:$0xff]
    %v3287 = vld [vmem:[#allocation7 + $0x518] sm:$0xff]
    %v3288 = vld [vmem:[#allocation7 + $0x520] sm:$0xff]
    %v3289 = vld [vmem:[#allocation7 + $0x528] sm:$0xff]
    %v3290 = vld [vmem:[#allocation7 + $0x530] sm:$0xff]
    %v3291 = vld [vmem:[#allocation7 + $0x538] sm:$0xff]
    %v3292 = vld [vmem:[#allocation7 + $0x540] sm:$0xff]
    %v3293 = vld [vmem:[#allocation7 + $0x548] sm:$0xff]
    %v3294 = vld [vmem:[#allocation7 + $0x550] sm:$0xff]
    %v3295 = vld [vmem:[#allocation7 + $0x558] sm:$0xff]
    %v3296 = vld [vmem:[#allocation7 + $0x560] sm:$0xff]
    %v3297 = vld [vmem:[#allocation7 + $0x568] sm:$0xff]
    %v3298 = vld [vmem:[#allocation7 + $0x570] sm:$0xff]
    %v3299 = vld [vmem:[#allocation7 + $0x578] sm:$0xff]
    %v3300 = vld [vmem:[#allocation7 + $0x580] sm:$0xff]
    %v3301 = vld [vmem:[#allocation7 + $0x588] sm:$0xff]
    %v3302 = vld [vmem:[#allocation7 + $0x590] sm:$0xff]
    %v3303 = vld [vmem:[#allocation7 + $0x598] sm:$0xff]
    %v3304 = vld [vmem:[#allocation7 + $0x5a0] sm:$0xff]
    %v3305 = vld [vmem:[#allocation7 + $0x5a8] sm:$0xff]
    %v3306 = vld [vmem:[#allocation7 + $0x5b0] sm:$0xff]
    %v3307 = vld [vmem:[#allocation7 + $0x5b8] sm:$0xff]
    %v3308 = vld [vmem:[#allocation7 + $0x5c0] sm:$0xff]
    %v3309 = vld [vmem:[#allocation7 + $0x5c8] sm:$0xff]
    %v3310 = vld [vmem:[#allocation7 + $0x5d0] sm:$0xff]
    %v3311 = vld [vmem:[#allocation7 + $0x5d8] sm:$0xff]
    %v3312 = vld [vmem:[#allocation7 + $0x5e0] sm:$0xff]
    %v3313 = vld [vmem:[#allocation7 + $0x5e8] sm:$0xff]
    %v3314 = vld [vmem:[#allocation7 + $0x5f0] sm:$0xff]
    %v3315 = vld [vmem:[#allocation7 + $0x5f8] sm:$0xff]
    %3316 = vmatprep.subr.mxu0 %v3125
    %3317 = vmatpush1.msra.mxu0 %v3124
    %3318 = vmatprep.subr.mxu0 %v3131
    %3319 = vmatpush1.msra.mxu0 %v3130
    %3320 = vmatprep.subr.mxu0 %v3137
    %3321 = vmatpush1.msra.mxu0 %v3136
    %3322 = vmatprep.subr.mxu0 %v3143
    %3323 = vmatpush1.msra.mxu0 %v3142
    %3324 = vmatprep.subr.mxu0 %v3149
    %3325 = vmatpush1.msra.mxu0 %v3148
    %3326 = vmatprep.subr.mxu0 %v3155
    %3327 = vmatpush1.msra.mxu0 %v3154
    %3328 = vmatprep.subr.mxu0 %v3161
    %3329 = vmatpush1.msra.mxu0 %v3160
    %3330 = vmatprep.subr.mxu0 %v3167
    %3331 = vmatpush1.msra.mxu0 %v3166
    %3332 = vmatprep.subr.mxu0 %v3173
    %3333 = vmatpush1.msra.mxu0 %v3172
    %3334 = vmatprep.subr.mxu0 %v3179
    %3335 = vmatpush1.msra.mxu0 %v3178
    %3336 = vmatprep.subr.mxu0 %v3185
    %3337 = vmatpush1.msra.mxu0 %v3184
    %3338 = vmatprep.subr.mxu0 %v3191
    %3339 = vmatpush1.msra.mxu0 %v3190
    %3340 = vmatprep.subr.mxu0 %v3197
    %3341 = vmatpush1.msra.mxu0 %v3196
    %3342 = vmatprep.subr.mxu0 %v3203
    %3343 = vmatpush1.msra.mxu0 %v3202
    %3344 = vmatprep.subr.mxu0 %v3209
    %3345 = vmatpush1.msra.mxu0 %v3208
    %3346 = vmatprep.subr.mxu0 %v3215
    %3347 = vmatpush1.msra.mxu0 %v3214
    %3348 = vmatprep.subr.mxu0 %v3221
    %3349 = vmatpush1.msra.mxu0 %v3220
    %3350 = vmatprep.subr.mxu0 %v3227
    %3351 = vmatpush1.msra.mxu0 %v3226
    %3352 = vmatprep.subr.mxu0 %v3233
    %3353 = vmatpush1.msra.mxu0 %v3232
    %3354 = vmatprep.subr.mxu0 %v3239
    %3355 = vmatpush1.msra.mxu0 %v3238
    %3356 = vmatprep.subr.mxu0 %v3245
    %3357 = vmatpush1.msra.mxu0 %v3244
    %3358 = vmatprep.subr.mxu0 %v3251
    %3359 = vmatpush1.msra.mxu0 %v3250
    %3360 = vmatprep.subr.mxu0 %v3257
    %3361 = vmatpush1.msra.mxu0 %v3256
    %3362 = vmatprep.subr.mxu0 %v3263
    %3363 = vmatpush1.msra.mxu0 %v3262
    %3364 = vmatprep.subr.mxu0 %v3269
    %3365 = vmatpush1.msra.mxu0 %v3268
    %3366 = vmatprep.subr.mxu0 %v3275
    %3367 = vmatpush1.msra.mxu0 %v3274
    %3368 = vmatprep.subr.mxu0 %v3281
    %3369 = vmatpush1.msra.mxu0 %v3280
    %3370 = vmatprep.subr.mxu0 %v3287
    %3371 = vmatpush1.msra.mxu0 %v3286
    %3372 = vmatprep.subr.mxu0 %v3293
    %3373 = vmatpush1.msra.mxu0 %v3292
    %3374 = vmatprep.subr.mxu0 %v3299
    %3375 = vmatpush1.msra.mxu0 %v3298
    %3376 = vmatprep.subr.mxu0 %v3305
    %3377 = vmatpush1.msra.mxu0 %v3304
    %3378 = vmatprep.subr.mxu0 %v3311
    %3379 = vmatpush1.msra.mxu0 %v3310
    %3380 = vmatprep.mubr.f32.mxu0 %v2931
    %3381 = vmatmul.mubr.f32.gmra.mrb[0].mxu0 %v2930
    %v3382 = vpop.f32.mrb[0].mxu0
    %v3383 = vadd.f32 0.0, %v3382
    %v3384 = vpop.f32.mrb[0].mxu0
    %v3385 = vadd.f32 0.0, %v3384
    %3386 = vmatprep.mubr.f32.mxu0 %v2676
    %3387 = vmatmul.mubr.f32.gmra.mrb[0].mxu0 %v2675
    %v3388 = vpop.f32.mrb[0].mxu0
    %v3389 = vadd.f32 0.0, %v3388
    %v3390 = vpop.f32.mrb[0].mxu0
    %v3391 = vadd.f32 0.0, %v3390
    %3392 = vmatprep.mubr.f32.mxu0 %v2421
    %3393 = vmatmul.mubr.f32.gmra.mrb[0].mxu0 %v2420
    %v3394 = vpop.f32.mrb[0].mxu0
    %v3395 = vadd.f32 0.0, %v3394
    %v3396 = vpop.f32.mrb[0].mxu0
    %v3397 = vadd.f32 0.0, %v3396
    %3398 = vmatprep.mubr.f32.mxu0 %v2166
    %3399 = vmatmul.mubr.f32.gmra.mrb[0].mxu0 %v2165
    %v3400 = vpop.f32.mrb[0].mxu0
    %v3401 = vadd.f32 0.0, %v3400
    %v3402 = vpop.f32.mrb[0].mxu0
    %v3403 = vadd.f32 0.0, %v3402
    %3404 = vmatprep.mubr.f32.mxu0 %v1911
    %3405 = vmatmul.mubr.f32.gmra.mrb[0].mxu0 %v1910
    %v3406 = vpop.f32.mrb[0].mxu0
    %v3407 = vadd.f32 0.0, %v3406
    %v3408 = vpop.f32.mrb[0].mxu0
    %v3409 = vadd.f32 0.0, %v3408
    %3410 = vmatprep.mubr.f32.mxu0 %v1656
    %3411 = vmatmul.mubr.f32.gmra.mrb[0].mxu0 %v1655
    %v3412 = vpop.f32.mrb[0].mxu0
    %v3413 = vadd.f32 0.0, %v3412
    %v3414 = vpop.f32.mrb[0].mxu0
    %v3415 = vadd.f32 0.0, %v3414
    %3416 = vmatprep.mubr.f32.mxu0 %v1401
    %3417 = vmatmul.mubr.f32.gmra.mrb[0].mxu0 %v1400
    %v3418 = vpop.f32.mrb[0].mxu0
    %v3419 = vadd.f32 0.0, %v3418
    %v3420 = vpop.f32.mrb[0].mxu0
    %v3421 = vadd.f32 0.0, %v3420
    %3422 = vmatprep.mubr.f32.mxu0 %v1146
    %3423 = vmatmul.mubr.f32.gmra.mrb[0].mxu0 %v1145
    %v3424 = vpop.f32.mrb[0].mxu0
    %v3425 = vadd.f32 0.0, %v3424
    %v3426 = vpop.f32.mrb[0].mxu0
    %v3427 = vadd.f32 0.0, %v3426
    %3428 = vdwg.mxu0
    %3429 = vmatprep.subr.mxu0 %v3127
    %3430 = vmatpush1.msra.mxu0 %v3126
    %3431 = vmatprep.subr.mxu0 %v3133
    %3432 = vmatpush1.msra.mxu0 %v3132
    %3433 = vmatprep.subr.mxu0 %v3139
    %3434 = vmatpush1.msra.mxu0 %v3138
    %3435 = vmatprep.subr.mxu0 %v3145
    %3436 = vmatpush1.msra.mxu0 %v3144
    %3437 = vmatprep.subr.mxu0 %v3151
    %3438 = vmatpush1.msra.mxu0 %v3150
    %3439 = vmatprep.subr.mxu0 %v3157
    %3440 = vmatpush1.msra.mxu0 %v3156
    %3441 = vmatprep.subr.mxu0 %v3163
    %3442 = vmatpush1.msra.mxu0 %v3162
    %3443 = vmatprep.subr.mxu0 %v3169
    %3444 = vmatpush1.msra.mxu0 %v3168
    %3445 = vmatprep.subr.mxu0 %v3175
    %3446 = vmatpush1.msra.mxu0 %v3174
    %3447 = vmatprep.subr.mxu0 %v3181
    %3448 = vmatpush1.msra.mxu0 %v3180
    %3449 = vmatprep.subr.mxu0 %v3187
    %3450 = vmatpush1.msra.mxu0 %v3186
    %3451 = vmatprep.subr.mxu0 %v3193
    %3452 = vmatpush1.msra.mxu0 %v3192
    %3453 = vmatprep.subr.mxu0 %v3199
    %3454 = vmatpush1.msra.mxu0 %v3198
    %3455 = vmatprep.subr.mxu0 %v3205
    %3456 = vmatpush1.msra.mxu0 %v3204
    %3457 = vmatprep.subr.mxu0 %v3211
    %3458 = vmatpush1.msra.mxu0 %v3210
    %3459 = vmatprep.subr.mxu0 %v3217
    %3460 = vmatpush1.msra.mxu0 %v3216
    %3461 = vmatprep.subr.mxu0 %v3223
    %3462 = vmatpush1.msra.mxu0 %v3222
    %3463 = vmatprep.subr.mxu0 %v3229
    %3464 = vmatpush1.msra.mxu0 %v3228
    %3465 = vmatprep.subr.mxu0 %v3235
    %3466 = vmatpush1.msra.mxu0 %v3234
    %3467 = vmatprep.subr.mxu0 %v3241
    %3468 = vmatpush1.msra.mxu0 %v3240
    %3469 = vmatprep.subr.mxu0 %v3247
    %3470 = vmatpush1.msra.mxu0 %v3246
    %3471 = vmatprep.subr.mxu0 %v3253
    %3472 = vmatpush1.msra.mxu0 %v3252
    %3473 = vmatprep.subr.mxu0 %v3259
    %3474 = vmatpush1.msra.mxu0 %v3258
    %3475 = vmatprep.subr.mxu0 %v3265
    %3476 = vmatpush1.msra.mxu0 %v3264
    %3477 = vmatprep.subr.mxu0 %v3271
    %3478 = vmatpush1.msra.mxu0 %v3270
    %3479 = vmatprep.subr.mxu0 %v3277
    %3480 = vmatpush1.msra.mxu0 %v3276
    %3481 = vmatprep.subr.mxu0 %v3283
    %3482 = vmatpush1.msra.mxu0 %v3282
    %3483 = vmatprep.subr.mxu0 %v3289
    %3484 = vmatpush1.msra.mxu0 %v3288
    %3485 = vmatprep.subr.mxu0 %v3295
    %3486 = vmatpush1.msra.mxu0 %v3294
    %3487 = vmatprep.subr.mxu0 %v3301
    %3488 = vmatpush1.msra.mxu0 %v3300
    %3489 = vmatprep.subr.mxu0 %v3307
    %3490 = vmatpush1.msra.mxu0 %v3306
    %3491 = vmatprep.subr.mxu0 %v3313
    %3492 = vmatpush1.msra.mxu0 %v3312
    %3493 = vmatprep.mubr.f32.mxu0 %v2931
    %3494 = vmatmul.mubr.f32.gmra.mrb[0].mxu0 %v2930
    %v3495 = vpop.f32.mrb[0].mxu0
    %v3496 = vadd.f32 0.0, %v3495
    %v3497 = vpop.f32.mrb[0].mxu0
    %v3498 = vadd.f32 0.0, %v3497
    %3499 = vmatprep.mubr.f32.mxu0 %v2676
    %3500 = vmatmul.mubr.f32.gmra.mrb[0].mxu0 %v2675
    %v3501 = vpop.f32.mrb[0].mxu0
    %v3502 = vadd.f32 0.0, %v3501
    %v3503 = vpop.f32.mrb[0].mxu0
    %v3504 = vadd.f32 0.0, %v3503
    %3505 = vmatprep.mubr.f32.mxu0 %v2421
    %3506 = vmatmul.mubr.f32.gmra.mrb[0].mxu0 %v2420
    %v3507 = vpop.f32.mrb[0].mxu0
    %v3508 = vadd.f32 0.0, %v3507
    %v3509 = vpop.f32.mrb[0].mxu0
    %v3510 = vadd.f32 0.0, %v3509
    %3511 = vmatprep.mubr.f32.mxu0 %v2166
    %3512 = vmatmul.mubr.f32.gmra.mrb[0].mxu0 %v2165
    %v3513 = vpop.f32.mrb[0].mxu0
    %v3514 = vadd.f32 0.0, %v3513
    %v3515 = vpop.f32.mrb[0].mxu0
    %v3516 = vadd.f32 0.0, %v3515
    %3517 = vmatprep.mubr.f32.mxu0 %v1911
    %3518 = vmatmul.mubr.f32.gmra.mrb[0].mxu0 %v1910
    %v3519 = vpop.f32.mrb[0].mxu0
    %v3520 = vadd.f32 0.0, %v3519
    %v3521 = vpop.f32.mrb[0].mxu0
    %v3522 = vadd.f32 0.0, %v3521
    %3523 = vmatprep.mubr.f32.mxu0 %v1656
    %3524 = vmatmul.mubr.f32.gmra.mrb[0].mxu0 %v1655
    %v3525 = vpop.f32.mrb[0].mxu0
    %v3526 = vadd.f32 0.0, %v3525
    %v3527 = vpop.f32.mrb[0].mxu0
    %v3528 = vadd.f32 0.0, %v3527
    %3529 = vmatprep.mubr.f32.mxu0 %v1401
    %3530 = vmatmul.mubr.f32.gmra.mrb[0].mxu0 %v1400
    %v3531 = vpop.f32.mrb[0].mxu0
    %v3532 = vadd.f32 0.0, %v3531
    %v3533 = vpop.f32.mrb[0].mxu0
    %v3534 = vadd.f32 0.0, %v3533
    %3535 = vmatprep.mubr.f32.mxu0 %v1146
    %3536 = vmatmul.mubr.f32.gmra.mrb[0].mxu0 %v1145
    %v3537 = vpop.f32.mrb[0].mxu0
    %v3538 = vadd.f32 0.0, %v3537
    %v3539 = vpop.f32.mrb[0].mxu0
    %v3540 = vadd.f32 0.0, %v3539
    %3541 = vdwg.mxu0
    %3542 = vmatprep.subr.mxu0 %v3129
    %3543 = vmatpush1.msra.mxu0 %v3128
    %3544 = vmatprep.subr.mxu0 %v3135
    %3545 = vmatpush1.msra.mxu0 %v3134
    %3546 = vmatprep.subr.mxu0 %v3141
    %3547 = vmatpush1.msra.mxu0 %v3140
    %3548 = vmatprep.subr.mxu0 %v3147
    %3549 = vmatpush1.msra.mxu0 %v3146
    %3550 = vmatprep.subr.mxu0 %v3153
    %3551 = vmatpush1.msra.mxu0 %v3152
    %3552 = vmatprep.subr.mxu0 %v3159
    %3553 = vmatpush1.msra.mxu0 %v3158
    %3554 = vmatprep.subr.mxu0 %v3165
    %3555 = vmatpush1.msra.mxu0 %v3164
    %3556 = vmatprep.subr.mxu0 %v3171
    %3557 = vmatpush1.msra.mxu0 %v3170
    %3558 = vmatprep.subr.mxu0 %v3177
    %3559 = vmatpush1.msra.mxu0 %v3176
    %3560 = vmatprep.subr.mxu0 %v3183
    %3561 = vmatpush1.msra.mxu0 %v3182
    %3562 = vmatprep.subr.mxu0 %v3189
    %3563 = vmatpush1.msra.mxu0 %v3188
    %3564 = vmatprep.subr.mxu0 %v3195
    %3565 = vmatpush1.msra.mxu0 %v3194
    %3566 = vmatprep.subr.mxu0 %v3201
    %3567 = vmatpush1.msra.mxu0 %v3200
    %3568 = vmatprep.subr.mxu0 %v3207
    %3569 = vmatpush1.msra.mxu0 %v3206
    %3570 = vmatprep.subr.mxu0 %v3213
    %3571 = vmatpush1.msra.mxu0 %v3212
    %3572 = vmatprep.subr.mxu0 %v3219
    %3573 = vmatpush1.msra.mxu0 %v3218
    %3574 = vmatprep.subr.mxu0 %v3225
    %3575 = vmatpush1.msra.mxu0 %v3224
    %3576 = vmatprep.subr.mxu0 %v3231
    %3577 = vmatpush1.msra.mxu0 %v3230
    %3578 = vmatprep.subr.mxu0 %v3237
    %3579 = vmatpush1.msra.mxu0 %v3236
    %3580 = vmatprep.subr.mxu0 %v3243
    %3581 = vmatpush1.msra.mxu0 %v3242
    %3582 = vmatprep.subr.mxu0 %v3249
    %3583 = vmatpush1.msra.mxu0 %v3248
    %3584 = vmatprep.subr.mxu0 %v3255
    %3585 = vmatpush1.msra.mxu0 %v3254
    %3586 = vmatprep.subr.mxu0 %v3261
    %3587 = vmatpush1.msra.mxu0 %v3260
    %3588 = vmatprep.subr.mxu0 %v3267
    %3589 = vmatpush1.msra.mxu0 %v3266
    %3590 = vmatprep.subr.mxu0 %v3273
    %3591 = vmatpush1.msra.mxu0 %v3272
    %3592 = vmatprep.subr.mxu0 %v3279
    %3593 = vmatpush1.msra.mxu0 %v3278
    %3594 = vmatprep.subr.mxu0 %v3285
    %3595 = vmatpush1.msra.mxu0 %v3284
    %3596 = vmatprep.subr.mxu0 %v3291
    %3597 = vmatpush1.msra.mxu0 %v3290
    %3598 = vmatprep.subr.mxu0 %v3297
    %3599 = vmatpush1.msra.mxu0 %v3296
    %3600 = vmatprep.subr.mxu0 %v3303
    %3601 = vmatpush1.msra.mxu0 %v3302
    %3602 = vmatprep.subr.mxu0 %v3309
    %3603 = vmatpush1.msra.mxu0 %v3308
    %3604 = vmatprep.subr.mxu0 %v3315
    %3605 = vmatpush1.msra.mxu0 %v3314
    %3606 = vmatprep.mubr.f32.mxu0 %v2931
    %3607 = vmatmul.mubr.f32.gmra.mrb[0].mxu0 %v2930
    %v3608 = vpop.f32.mrb[0].mxu0
    %v3609 = vadd.f32 0.0, %v3608
    %v3610 = vpop.f32.mrb[0].mxu0
    %v3611 = vadd.f32 0.0, %v3610
    %3612 = vmatprep.mubr.f32.mxu0 %v2676
    %3613 = vmatmul.mubr.f32.gmra.mrb[0].mxu0 %v2675
    %v3614 = vpop.f32.mrb[0].mxu0
    %v3615 = vadd.f32 0.0, %v3614
    %v3616 = vpop.f32.mrb[0].mxu0
    %v3617 = vadd.f32 0.0, %v3616
    %3618 = vmatprep.mubr.f32.mxu0 %v2421
    %3619 = vmatmul.mubr.f32.gmra.mrb[0].mxu0 %v2420
    %v3620 = vpop.f32.mrb[0].mxu0
    %v3621 = vadd.f32 0.0, %v3620
    %v3622 = vpop.f32.mrb[0].mxu0
    %v3623 = vadd.f32 0.0, %v3622
    %3624 = vmatprep.mubr.f32.mxu0 %v2166
    %3625 = vmatmul.mubr.f32.gmra.mrb[0].mxu0 %v2165
    %v3626 = vpop.f32.mrb[0].mxu0
    %v3627 = vadd.f32 0.0, %v3626
    %v3628 = vpop.f32.mrb[0].mxu0
    %v3629 = vadd.f32 0.0, %v3628
    %3630 = vmatprep.mubr.f32.mxu0 %v1911
    %3631 = vmatmul.mubr.f32.gmra.mrb[0].mxu0 %v1910
    %v3632 = vpop.f32.mrb[0].mxu0
    %v3633 = vadd.f32 0.0, %v3632
    %v3634 = vpop.f32.mrb[0].mxu0
    %v3635 = vadd.f32 0.0, %v3634
    %3636 = vmatprep.mubr.f32.mxu0 %v1656
    %3637 = vmatmul.mubr.f32.gmra.mrb[0].mxu0 %v1655
    %v3638 = vpop.f32.mrb[0].mxu0
    %v3639 = vadd.f32 0.0, %v3638
    %v3640 = vpop.f32.mrb[0].mxu0
    %v3641 = vadd.f32 0.0, %v3640
    %3642 = vmatprep.mubr.f32.mxu0 %v1401
    %3643 = vmatmul.mubr.f32.gmra.mrb[0].mxu0 %v1400
    %v3644 = vpop.f32.mrb[0].mxu0
    %v3645 = vadd.f32 0.0, %v3644
    %v3646 = vpop.f32.mrb[0].mxu0
    %v3647 = vadd.f32 0.0, %v3646
    %3648 = vmatprep.mubr.f32.mxu0 %v1146
    %3649 = vmatmul.mubr.f32.gmra.mrb[0].mxu0 %v1145
    %v3650 = vpop.f32.mrb[0].mxu0
    %v3651 = vadd.f32 0.0, %v3650
    %v3652 = vpop.f32.mrb[0].mxu0
    %v3653 = vadd.f32 0.0, %v3652
    %3654 = vdwg.mxu0
    %3655 = vmatprep.subr.mxu0 %v2933
    %3656 = vmatpush1.msra.mxu0 %v2932
    %3657 = vmatprep.subr.mxu0 %v2939
    %3658 = vmatpush1.msra.mxu0 %v2938
    %3659 = vmatprep.subr.mxu0 %v2945
    %3660 = vmatpush1.msra.mxu0 %v2944
    %3661 = vmatprep.subr.mxu0 %v2951
    %3662 = vmatpush1.msra.mxu0 %v2950
    %3663 = vmatprep.subr.mxu0 %v2957
    %3664 = vmatpush1.msra.mxu0 %v2956
    %3665 = vmatprep.subr.mxu0 %v2963
    %3666 = vmatpush1.msra.mxu0 %v2962
    %3667 = vmatprep.subr.mxu0 %v2969
    %3668 = vmatpush1.msra.mxu0 %v2968
    %3669 = vmatprep.subr.mxu0 %v2975
    %3670 = vmatpush1.msra.mxu0 %v2974
    %3671 = vmatprep.subr.mxu0 %v2981
    %3672 = vmatpush1.msra.mxu0 %v2980
    %3673 = vmatprep.subr.mxu0 %v2987
    %3674 = vmatpush1.msra.mxu0 %v2986
    %3675 = vmatprep.subr.mxu0 %v2993
    %3676 = vmatpush1.msra.mxu0 %v2992
    %3677 = vmatprep.subr.mxu0 %v2999
    %3678 = vmatpush1.msra.mxu0 %v2998
    %3679 = vmatprep.subr.mxu0 %v3005
    %3680 = vmatpush1.msra.mxu0 %v3004
    %3681 = vmatprep.subr.mxu0 %v3011
    %3682 = vmatpush1.msra.mxu0 %v3010
    %3683 = vmatprep.subr.mxu0 %v3017
    %3684 = vmatpush1.msra.mxu0 %v3016
    %3685 = vmatprep.subr.mxu0 %v3023
    %3686 = vmatpush1.msra.mxu0 %v3022
    %3687 = vmatprep.subr.mxu0 %v3029
    %3688 = vmatpush1.msra.mxu0 %v3028
    %3689 = vmatprep.subr.mxu0 %v3035
    %3690 = vmatpush1.msra.mxu0 %v3034
    %3691 = vmatprep.subr.mxu0 %v3041
    %3692 = vmatpush1.msra.mxu0 %v3040
    %3693 = vmatprep.subr.mxu0 %v3047
    %3694 = vmatpush1.msra.mxu0 %v3046
    %3695 = vmatprep.subr.mxu0 %v3053
    %3696 = vmatpush1.msra.mxu0 %v3052
    %3697 = vmatprep.subr.mxu0 %v3059
    %3698 = vmatpush1.msra.mxu0 %v3058
    %3699 = vmatprep.subr.mxu0 %v3065
    %3700 = vmatpush1.msra.mxu0 %v3064
    %3701 = vmatprep.subr.mxu0 %v3071
    %3702 = vmatpush1.msra.mxu0 %v3070
    %3703 = vmatprep.subr.mxu0 %v3077
    %3704 = vmatpush1.msra.mxu0 %v3076
    %3705 = vmatprep.subr.mxu0 %v3083
    %3706 = vmatpush1.msra.mxu0 %v3082
    %3707 = vmatprep.subr.mxu0 %v3089
    %3708 = vmatpush1.msra.mxu0 %v3088
    %3709 = vmatprep.subr.mxu0 %v3095
    %3710 = vmatpush1.msra.mxu0 %v3094
    %3711 = vmatprep.subr.mxu0 %v3101
    %3712 = vmatpush1.msra.mxu0 %v3100
    %3713 = vmatprep.subr.mxu0 %v3107
    %3714 = vmatpush1.msra.mxu0 %v3106
    %3715 = vmatprep.subr.mxu0 %v3113
    %3716 = vmatpush1.msra.mxu0 %v3112
    %3717 = vmatprep.subr.mxu0 %v3119
    %3718 = vmatpush1.msra.mxu0 %v3118
    %3719 = vmatprep.mubr.f32.mxu0 %v1146
    %3720 = vmatmul.mubr.f32.gmra.mrb[0].mxu0 %v1145
    %v3721 = vpop.f32.mrb[0].mxu0
    %v3722 = vadd.f32 %v3383, %v3721
    %v3723 = vpop.f32.mrb[0].mxu0
    %v3724 = vadd.f32 %v3385, %v3723
    %3725 = vmatprep.mubr.f32.mxu0 %v1401
    %3726 = vmatmul.mubr.f32.gmra.mrb[0].mxu0 %v1400
    %v3727 = vpop.f32.mrb[0].mxu0
    %v3728 = vadd.f32 %v3389, %v3727
    %v3729 = vpop.f32.mrb[0].mxu0
    %v3730 = vadd.f32 %v3391, %v3729
    %3731 = vmatprep.mubr.f32.mxu0 %v1656
    %3732 = vmatmul.mubr.f32.gmra.mrb[0].mxu0 %v1655
    %v3733 = vpop.f32.mrb[0].mxu0
    %v3734 = vadd.f32 %v3395, %v3733
    %v3735 = vpop.f32.mrb[0].mxu0
    %v3736 = vadd.f32 %v3397, %v3735
    %3737 = vmatprep.mubr.f32.mxu0 %v1911
    %3738 = vmatmul.mubr.f32.gmra.mrb[0].mxu0 %v1910
    %v3739 = vpop.f32.mrb[0].mxu0
    %v3740 = vadd.f32 %v3401, %v3739
    %v3741 = vpop.f32.mrb[0].mxu0
    %v3742 = vadd.f32 %v3403, %v3741
    %3743 = vmatprep.mubr.f32.mxu0 %v2166
    %3744 = vmatmul.mubr.f32.gmra.mrb[0].mxu0 %v2165
    %v3745 = vpop.f32.mrb[0].mxu0
    %v3746 = vadd.f32 %v3407, %v3745
    %v3747 = vpop.f32.mrb[0].mxu0
    %v3748 = vadd.f32 %v3409, %v3747
    %3749 = vmatprep.mubr.f32.mxu0 %v2421
    %3750 = vmatmul.mubr.f32.gmra.mrb[0].mxu0 %v2420
    %v3751 = vpop.f32.mrb[0].mxu0
    %v3752 = vadd.f32 %v3413, %v3751
    %v3753 = vpop.f32.mrb[0].mxu0
    %v3754 = vadd.f32 %v3415, %v3753
    %3755 = vmatprep.mubr.f32.mxu0 %v2676
    %3756 = vmatmul.mubr.f32.gmra.mrb[0].mxu0 %v2675
    %v3757 = vpop.f32.mrb[0].mxu0
    %v3758 = vadd.f32 %v3419, %v3757
    %v3759 = vpop.f32.mrb[0].mxu0
    %v3760 = vadd.f32 %v3421, %v3759
    %3761 = vmatprep.mubr.f32.mxu0 %v2931
    %3762 = vmatmul.mubr.f32.gmra.mrb[0].mxu0 %v2930
    %v3763 = vpop.f32.mrb[0].mxu0
    %v3764 = vadd.f32 %v3425, %v3763
    %v3765 = vpop.f32.mrb[0].mxu0
    %v3766 = vadd.f32 %v3427, %v3765
    %3767 = vdwg.mxu0
    %3768 = vmatprep.subr.mxu0 %v2935
    %3769 = vmatpush1.msra.mxu0 %v2934
    %3770 = vmatprep.subr.mxu0 %v2941
    %3771 = vmatpush1.msra.mxu0 %v2940
    %3772 = vmatprep.subr.mxu0 %v2947
    %3773 = vmatpush1.msra.mxu0 %v2946
    %3774 = vmatprep.subr.mxu0 %v2953
    %3775 = vmatpush1.msra.mxu0 %v2952
    %3776 = vmatprep.subr.mxu0 %v2959
    %3777 = vmatpush1.msra.mxu0 %v2958
    %3778 = vmatprep.subr.mxu0 %v2965
    %3779 = vmatpush1.msra.mxu0 %v2964
    %3780 = vmatprep.subr.mxu0 %v2971
    %3781 = vmatpush1.msra.mxu0 %v2970
    %3782 = vmatprep.subr.mxu0 %v2977
    %3783 = vmatpush1.msra.mxu0 %v2976
    %3784 = vmatprep.subr.mxu0 %v2983
    %3785 = vmatpush1.msra.mxu0 %v2982
    %3786 = vmatprep.subr.mxu0 %v2989
    %3787 = vmatpush1.msra.mxu0 %v2988
    %3788 = vmatprep.subr.mxu0 %v2995
    %3789 = vmatpush1.msra.mxu0 %v2994
    %3790 = vmatprep.subr.mxu0 %v3001
    %3791 = vmatpush1.msra.mxu0 %v3000
    %3792 = vmatprep.subr.mxu0 %v3007
    %3793 = vmatpush1.msra.mxu0 %v3006
    %3794 = vmatprep.subr.mxu0 %v3013
    %3795 = vmatpush1.msra.mxu0 %v3012
    %3796 = vmatprep.subr.mxu0 %v3019
    %3797 = vmatpush1.msra.mxu0 %v3018
    %3798 = vmatprep.subr.mxu0 %v3025
    %3799 = vmatpush1.msra.mxu0 %v3024
    %3800 = vmatprep.subr.mxu0 %v3031
    %3801 = vmatpush1.msra.mxu0 %v3030
    %3802 = vmatprep.subr.mxu0 %v3037
    %3803 = vmatpush1.msra.mxu0 %v3036
    %3804 = vmatprep.subr.mxu0 %v3043
    %3805 = vmatpush1.msra.mxu0 %v3042
    %3806 = vmatprep.subr.mxu0 %v3049
    %3807 = vmatpush1.msra.mxu0 %v3048
    %3808 = vmatprep.subr.mxu0 %v3055
    %3809 = vmatpush1.msra.mxu0 %v3054
    %3810 = vmatprep.subr.mxu0 %v3061
    %3811 = vmatpush1.msra.mxu0 %v3060
    %3812 = vmatprep.subr.mxu0 %v3067
    %3813 = vmatpush1.msra.mxu0 %v3066
    %3814 = vmatprep.subr.mxu0 %v3073
    %3815 = vmatpush1.msra.mxu0 %v3072
    %3816 = vmatprep.subr.mxu0 %v3079
    %3817 = vmatpush1.msra.mxu0 %v3078
    %3818 = vmatprep.subr.mxu0 %v3085
    %3819 = vmatpush1.msra.mxu0 %v3084
    %3820 = vmatprep.subr.mxu0 %v3091
    %3821 = vmatpush1.msra.mxu0 %v3090
    %3822 = vmatprep.subr.mxu0 %v3097
    %3823 = vmatpush1.msra.mxu0 %v3096
    %3824 = vmatprep.subr.mxu0 %v3103
    %3825 = vmatpush1.msra.mxu0 %v3102
    %3826 = vmatprep.subr.mxu0 %v3109
    %3827 = vmatpush1.msra.mxu0 %v3108
    %3828 = vmatprep.subr.mxu0 %v3115
    %3829 = vmatpush1.msra.mxu0 %v3114
    %3830 = vmatprep.subr.mxu0 %v3121
    %3831 = vmatpush1.msra.mxu0 %v3120
    %3832 = vmatprep.mubr.f32.mxu0 %v1146
    %3833 = vmatmul.mubr.f32.gmra.mrb[0].mxu0 %v1145
    %v3834 = vpop.f32.mrb[0].mxu0
    %v3835 = vadd.f32 %v3496, %v3834
    %v3836 = vpop.f32.mrb[0].mxu0
    %v3837 = vadd.f32 %v3498, %v3836
    %3838 = vmatprep.mubr.f32.mxu0 %v1401
    %3839 = vmatmul.mubr.f32.gmra.mrb[0].mxu0 %v1400
    %v3840 = vpop.f32.mrb[0].mxu0
    %v3841 = vadd.f32 %v3502, %v3840
    %v3842 = vpop.f32.mrb[0].mxu0
    %v3843 = vadd.f32 %v3504, %v3842
    %3844 = vmatprep.mubr.f32.mxu0 %v1656
    %3845 = vmatmul.mubr.f32.gmra.mrb[0].mxu0 %v1655
    %v3846 = vpop.f32.mrb[0].mxu0
    %v3847 = vadd.f32 %v3508, %v3846
    %v3848 = vpop.f32.mrb[0].mxu0
    %v3849 = vadd.f32 %v3510, %v3848
    %3850 = vmatprep.mubr.f32.mxu0 %v1911
    %3851 = vmatmul.mubr.f32.gmra.mrb[0].mxu0 %v1910
    %v3852 = vpop.f32.mrb[0].mxu0
    %v3853 = vadd.f32 %v3514, %v3852
    %v3854 = vpop.f32.mrb[0].mxu0
    %v3855 = vadd.f32 %v3516, %v3854
    %3856 = vmatprep.mubr.f32.mxu0 %v2166
    %3857 = vmatmul.mubr.f32.gmra.mrb[0].mxu0 %v2165
    %v3858 = vpop.f32.mrb[0].mxu0
    %v3859 = vadd.f32 %v3520, %v3858
    %v3860 = vpop.f32.mrb[0].mxu0
    %v3861 = vadd.f32 %v3522, %v3860
    %3862 = vmatprep.mubr.f32.mxu0 %v2421
    %3863 = vmatmul.mubr.f32.gmra.mrb[0].mxu0 %v2420
    %v3864 = vpop.f32.mrb[0].mxu0
    %v3865 = vadd.f32 %v3526, %v3864
    %v3866 = vpop.f32.mrb[0].mxu0
    %v3867 = vadd.f32 %v3528, %v3866
    %3868 = vmatprep.mubr.f32.mxu0 %v2676
    %3869 = vmatmul.mubr.f32.gmra.mrb[0].mxu0 %v2675
    %v3870 = vpop.f32.mrb[0].mxu0
    %v3871 = vadd.f32 %v3532, %v3870
    %v3872 = vpop.f32.mrb[0].mxu0
    %v3873 = vadd.f32 %v3534, %v3872
    %3874 = vmatprep.mubr.f32.mxu0 %v2931
    %3875 = vmatmul.mubr.f32.gmra.mrb[0].mxu0 %v2930
    %v3876 = vpop.f32.mrb[0].mxu0
    %v3877 = vadd.f32 %v3538, %v3876
    %v3878 = vpop.f32.mrb[0].mxu0
    %v3879 = vadd.f32 %v3540, %v3878
    %3880 = vdwg.mxu0
    %3881 = vmatprep.subr.mxu0 %v2937
    %3882 = vmatpush1.msra.mxu0 %v2936
    %3883 = vmatprep.subr.mxu0 %v2943
    %3884 = vmatpush1.msra.mxu0 %v2942
    %3885 = vmatprep.subr.mxu0 %v2949
    %3886 = vmatpush1.msra.mxu0 %v2948
    %3887 = vmatprep.subr.mxu0 %v2955
    %3888 = vmatpush1.msra.mxu0 %v2954
    %3889 = vmatprep.subr.mxu0 %v2961
    %3890 = vmatpush1.msra.mxu0 %v2960
    %3891 = vmatprep.subr.mxu0 %v2967
    %3892 = vmatpush1.msra.mxu0 %v2966
    %3893 = vmatprep.subr.mxu0 %v2973
    %3894 = vmatpush1.msra.mxu0 %v2972
    %3895 = vmatprep.subr.mxu0 %v2979
    %3896 = vmatpush1.msra.mxu0 %v2978
    %3897 = vmatprep.subr.mxu0 %v2985
    %3898 = vmatpush1.msra.mxu0 %v2984
    %3899 = vmatprep.subr.mxu0 %v2991
    %3900 = vmatpush1.msra.mxu0 %v2990
    %3901 = vmatprep.subr.mxu0 %v2997
    %3902 = vmatpush1.msra.mxu0 %v2996
    %3903 = vmatprep.subr.mxu0 %v3003
    %3904 = vmatpush1.msra.mxu0 %v3002
    %3905 = vmatprep.subr.mxu0 %v3009
    %3906 = vmatpush1.msra.mxu0 %v3008
    %3907 = vmatprep.subr.mxu0 %v3015
    %3908 = vmatpush1.msra.mxu0 %v3014
    %3909 = vmatprep.subr.mxu0 %v3021
    %3910 = vmatpush1.msra.mxu0 %v3020
    %3911 = vmatprep.subr.mxu0 %v3027
    %3912 = vmatpush1.msra.mxu0 %v3026
    %3913 = vmatprep.subr.mxu0 %v3033
    %3914 = vmatpush1.msra.mxu0 %v3032
    %3915 = vmatprep.subr.mxu0 %v3039
    %3916 = vmatpush1.msra.mxu0 %v3038
    %3917 = vmatprep.subr.mxu0 %v3045
    %3918 = vmatpush1.msra.mxu0 %v3044
    %3919 = vmatprep.subr.mxu0 %v3051
    %3920 = vmatpush1.msra.mxu0 %v3050
    %3921 = vmatprep.subr.mxu0 %v3057
    %3922 = vmatpush1.msra.mxu0 %v3056
    %3923 = vmatprep.subr.mxu0 %v3063
    %3924 = vmatpush1.msra.mxu0 %v3062
    %3925 = vmatprep.subr.mxu0 %v3069
    %3926 = vmatpush1.msra.mxu0 %v3068
    %3927 = vmatprep.subr.mxu0 %v3075
    %3928 = vmatpush1.msra.mxu0 %v3074
    %3929 = vmatprep.subr.mxu0 %v3081
    %3930 = vmatpush1.msra.mxu0 %v3080
    %3931 = vmatprep.subr.mxu0 %v3087
    %3932 = vmatpush1.msra.mxu0 %v3086
    %3933 = vmatprep.subr.mxu0 %v3093
    %3934 = vmatpush1.msra.mxu0 %v3092
    %3935 = vmatprep.subr.mxu0 %v3099
    %3936 = vmatpush1.msra.mxu0 %v3098
    %3937 = vmatprep.subr.mxu0 %v3105
    %3938 = vmatpush1.msra.mxu0 %v3104
    %3939 = vmatprep.subr.mxu0 %v3111
    %3940 = vmatpush1.msra.mxu0 %v3110
    %3941 = vmatprep.subr.mxu0 %v3117
    %3942 = vmatpush1.msra.mxu0 %v3116
    %3943 = vmatprep.subr.mxu0 %v3123
    %3944 = vmatpush1.msra.mxu0 %v3122
    %3945 = vmatprep.mubr.f32.mxu0 %v1146
    %3946 = vmatmul.mubr.f32.gmra.mrb[0].mxu0 %v1145
    %v3947 = vpop.f32.mrb[0].mxu0
    %v3948 = vadd.f32 %v3609, %v3947
    %v3949 = vpop.f32.mrb[0].mxu0
    %v3950 = vadd.f32 %v3611, %v3949
    %3951 = vmatprep.mubr.f32.mxu0 %v1401
    %3952 = vmatmul.mubr.f32.gmra.mrb[0].mxu0 %v1400
    %v3953 = vpop.f32.mrb[0].mxu0
    %v3954 = vadd.f32 %v3615, %v3953
    %v3955 = vpop.f32.mrb[0].mxu0
    %v3956 = vadd.f32 %v3617, %v3955
    %3957 = vmatprep.mubr.f32.mxu0 %v1656
    %3958 = vmatmul.mubr.f32.gmra.mrb[0].mxu0 %v1655
    %v3959 = vpop.f32.mrb[0].mxu0
    %v3960 = vadd.f32 %v3621, %v3959
    %v3961 = vpop.f32.mrb[0].mxu0
    %v3962 = vadd.f32 %v3623, %v3961
    %3963 = vmatprep.mubr.f32.mxu0 %v1911
    %3964 = vmatmul.mubr.f32.gmra.mrb[0].mxu0 %v1910
    %v3965 = vpop.f32.mrb[0].mxu0
    %v3966 = vadd.f32 %v3627, %v3965
    %v3967 = vpop.f32.mrb[0].mxu0
    %v3968 = vadd.f32 %v3629, %v3967
    %3969 = vmatprep.mubr.f32.mxu0 %v2166
    %3970 = vmatmul.mubr.f32.gmra.mrb[0].mxu0 %v2165
    %v3971 = vpop.f32.mrb[0].mxu0
    %v3972 = vadd.f32 %v3633, %v3971
    %v3973 = vpop.f32.mrb[0].mxu0
    %v3974 = vadd.f32 %v3635, %v3973
    %3975 = vmatprep.mubr.f32.mxu0 %v2421
    %3976 = vmatmul.mubr.f32.gmra.mrb[0].mxu0 %v2420
    %v3977 = vpop.f32.mrb[0].mxu0
    %v3978 = vadd.f32 %v3639, %v3977
    %v3979 = vpop.f32.mrb[0].mxu0
    %v3980 = vadd.f32 %v3641, %v3979
    %3981 = vmatprep.mubr.f32.mxu0 %v2676
    %3982 = vmatmul.mubr.f32.gmra.mrb[0].mxu0 %v2675
    %v3983 = vpop.f32.mrb[0].mxu0
    %v3984 = vadd.f32 %v3645, %v3983
    %v3985 = vpop.f32.mrb[0].mxu0
    %v3986 = vadd.f32 %v3647, %v3985
    %3987 = vmatprep.mubr.f32.mxu0 %v2931
    %3988 = vmatmul.mubr.f32.gmra.mrb[0].mxu0 %v2930
    %v3989 = vpop.f32.mrb[0].mxu0
    %v3990 = vadd.f32 %v3651, %v3989
    %v3991 = vpop.f32.mrb[0].mxu0
    %v3992 = vadd.f32 %v3653, %v3991
    %3993 = vdwg.mxu0
    %v3994 = vld [vmem:[%s8] sm:$0x3f]
    %v3996 = vlaneseq
    %v3997 = vshrl.u32 %v3996, 7
    %v3998 = vsub.s32 0, %v3997
    %v3999 = vrot.slane %v3994, %v3998
    %v4000 = vlaneseq
    %v4001 = vshrl.u32 %v4000, 7
    %v4002 = vsub.s32 1, %v4001
    %v4003 = vrot.slane %v3994, %v4002
    %v4004 = vlaneseq
    %v4005 = vshrl.u32 %v4004, 7
    %v4006 = vsub.s32 2, %v4005
    %v4007 = vrot.slane %v3994, %v4006
    %v4008 = vlaneseq
    %v4009 = vshrl.u32 %v4008, 7
    %v4010 = vsub.s32 3, %v4009
    %v4011 = vrot.slane %v3994, %v4010
    %v4012 = vlaneseq
    %v4013 = vshrl.u32 %v4012, 7
    %v4014 = vsub.s32 4, %v4013
    %v4015 = vrot.slane %v3994, %v4014
    %v4016 = vlaneseq
    %v4017 = vshrl.u32 %v4016, 7
    %v4018 = vsub.s32 5, %v4017
    %v4019 = vrot.slane %v3994, %v4018
    %v4026 = vadd.f32 %v3722, %v3999
    %v4027 = vadd.f32 %v3724, %v4003
    %v4028 = vadd.f32 %v3835, %v4007
    %v4029 = vadd.f32 %v3837, %v4011
    %v4030 = vadd.f32 %v3948, %v4015
    %v4031 = vadd.f32 %v3950, %v4019
    %v4032 = vadd.f32 %v3728, %v3999
    %v4033 = vadd.f32 %v3730, %v4003
    %v4034 = vadd.f32 %v3841, %v4007
    %v4035 = vadd.f32 %v3843, %v4011
    %v4036 = vadd.f32 %v3954, %v4015
    %v4037 = vadd.f32 %v3956, %v4019
    %v4038 = vadd.f32 %v3734, %v3999
    %v4039 = vadd.f32 %v3736, %v4003
    %v4040 = vadd.f32 %v3847, %v4007
    %v4041 = vadd.f32 %v3849, %v4011
    %v4042 = vadd.f32 %v3960, %v4015
    %v4043 = vadd.f32 %v3962, %v4019
    %v4044 = vadd.f32 %v3740, %v3999
    %v4045 = vadd.f32 %v3742, %v4003
    %v4046 = vadd.f32 %v3853, %v4007
    %v4047 = vadd.f32 %v3855, %v4011
    %v4048 = vadd.f32 %v3966, %v4015
    %v4049 = vadd.f32 %v3968, %v4019
    %v4050 = vadd.f32 %v3746, %v3999
    %v4051 = vadd.f32 %v3748, %v4003
    %v4052 = vadd.f32 %v3859, %v4007
    %v4053 = vadd.f32 %v3861, %v4011
    %v4054 = vadd.f32 %v3972, %v4015
    %v4055 = vadd.f32 %v3974, %v4019
    %v4056 = vadd.f32 %v3752, %v3999
    %v4057 = vadd.f32 %v3754, %v4003
    %v4058 = vadd.f32 %v3865, %v4007
    %v4059 = vadd.f32 %v3867, %v4011
    %v4060 = vadd.f32 %v3978, %v4015
    %v4061 = vadd.f32 %v3980, %v4019
    %v4062 = vadd.f32 %v3758, %v3999
    %v4063 = vadd.f32 %v3760, %v4003
    %v4064 = vadd.f32 %v3871, %v4007
    %v4065 = vadd.f32 %v3873, %v4011
    %v4066 = vadd.f32 %v3984, %v4015
    %v4067 = vadd.f32 %v3986, %v4019
    %v4068 = vadd.f32 %v3764, %v3999
    %v4069 = vadd.f32 %v3766, %v4003
    %v4070 = vadd.f32 %v3877, %v4007
    %v4071 = vadd.f32 %v3879, %v4011
    %v4072 = vadd.f32 %v3990, %v4015
    %v4073 = vadd.f32 %v3992, %v4019
    %v4074 = vld [vmem:[#allocation9] sm:$0xff]
    %v4075 = vld [vmem:[#allocation9 + $0x8] sm:$0xff]
    %v4076 = vld [vmem:[#allocation9 + $0x10] sm:$0xff]
    %v4077 = vld [vmem:[#allocation9 + $0x18] sm:$0xff]
    %v4078 = vld [vmem:[#allocation9 + $0x20] sm:$0xff]
    %v4079 = vld [vmem:[#allocation9 + $0x28] sm:$0xff]
    %v4080 = vld [vmem:[#allocation9 + $0x30] sm:$0xff]
    %v4081 = vld [vmem:[#allocation9 + $0x38] sm:$0xff]
    %v4082 = vld [vmem:[#allocation9 + $0x40] sm:$0xff]
    %v4083 = vld [vmem:[#allocation9 + $0x48] sm:$0xff]
    %v4084 = vld [vmem:[#allocation9 + $0x50] sm:$0xff]
    %v4085 = vld [vmem:[#allocation9 + $0x58] sm:$0xff]
    %v4086 = vld [vmem:[#allocation9 + $0x60] sm:$0xff]
    %v4087 = vld [vmem:[#allocation9 + $0x68] sm:$0xff]
    %v4088 = vld [vmem:[#allocation9 + $0x70] sm:$0xff]
    %v4089 = vld [vmem:[#allocation9 + $0x78] sm:$0xff]
    %v4090 = vld [vmem:[#allocation9 + $0x80] sm:$0xff]
    %v4091 = vld [vmem:[#allocation9 + $0x88] sm:$0xff]
    %v4092 = vld [vmem:[#allocation9 + $0x90] sm:$0xff]
    %v4093 = vld [vmem:[#allocation9 + $0x98] sm:$0xff]
    %v4094 = vld [vmem:[#allocation9 + $0xa0] sm:$0xff]
    %v4095 = vld [vmem:[#allocation9 + $0xa8] sm:$0xff]
    %v4096 = vld [vmem:[#allocation9 + $0xb0] sm:$0xff]
    %v4097 = vld [vmem:[#allocation9 + $0xb8] sm:$0xff]
    %v4098 = vld [vmem:[#allocation9 + $0xc0] sm:$0xff]
    %v4099 = vld [vmem:[#allocation9 + $0xc8] sm:$0xff]
    %v4100 = vld [vmem:[#allocation9 + $0xd0] sm:$0xff]
    %v4101 = vld [vmem:[#allocation9 + $0xd8] sm:$0xff]
    %v4102 = vld [vmem:[#allocation9 + $0xe0] sm:$0xff]
    %v4103 = vld [vmem:[#allocation9 + $0xe8] sm:$0xff]
    %v4104 = vld [vmem:[#allocation9 + $0xf0] sm:$0xff]
    %v4105 = vld [vmem:[#allocation9 + $0xf8] sm:$0xff]
    %v4106 = vld [vmem:[#allocation9 + $0x100] sm:$0xff]
    %v4107 = vld [vmem:[#allocation9 + $0x108] sm:$0xff]
    %v4108 = vld [vmem:[#allocation9 + $0x110] sm:$0xff]
    %v4109 = vld [vmem:[#allocation9 + $0x118] sm:$0xff]
    %v4110 = vld [vmem:[#allocation9 + $0x120] sm:$0xff]
    %v4111 = vld [vmem:[#allocation9 + $0x128] sm:$0xff]
    %v4112 = vld [vmem:[#allocation9 + $0x130] sm:$0xff]
    %v4113 = vld [vmem:[#allocation9 + $0x138] sm:$0xff]
    %v4114 = vld [vmem:[#allocation9 + $0x140] sm:$0xff]
    %v4115 = vld [vmem:[#allocation9 + $0x148] sm:$0xff]
    %v4116 = vld [vmem:[#allocation9 + $0x150] sm:$0xff]
    %v4117 = vld [vmem:[#allocation9 + $0x158] sm:$0xff]
    %v4118 = vld [vmem:[#allocation9 + $0x160] sm:$0xff]
    %v4119 = vld [vmem:[#allocation9 + $0x168] sm:$0xff]
    %v4120 = vld [vmem:[#allocation9 + $0x170] sm:$0xff]
    %v4121 = vld [vmem:[#allocation9 + $0x178] sm:$0xff]
    %v4122 = vld [vmem:[#allocation9 + $0x180] sm:$0xff]
    %v4123 = vld [vmem:[#allocation9 + $0x188] sm:$0xff]
    %v4124 = vld [vmem:[#allocation9 + $0x190] sm:$0xff]
    %v4125 = vld [vmem:[#allocation9 + $0x198] sm:$0xff]
    %v4126 = vld [vmem:[#allocation9 + $0x1a0] sm:$0xff]
    %v4127 = vld [vmem:[#allocation9 + $0x1a8] sm:$0xff]
    %v4128 = vld [vmem:[#allocation9 + $0x1b0] sm:$0xff]
    %v4129 = vld [vmem:[#allocation9 + $0x1b8] sm:$0xff]
    %v4130 = vld [vmem:[#allocation9 + $0x1c0] sm:$0xff]
    %v4131 = vld [vmem:[#allocation9 + $0x1c8] sm:$0xff]
    %v4132 = vld [vmem:[#allocation9 + $0x1d0] sm:$0xff]
    %v4133 = vld [vmem:[#allocation9 + $0x1d8] sm:$0xff]
    %v4134 = vld [vmem:[#allocation9 + $0x1e0] sm:$0xff]
    %v4135 = vld [vmem:[#allocation9 + $0x1e8] sm:$0xff]
    %v4136 = vld [vmem:[#allocation9 + $0x1f0] sm:$0xff]
    %v4137 = vld [vmem:[#allocation9 + $0x1f8] sm:$0xff]
    %v4138 = vld [vmem:[#allocation9 + $0x200] sm:$0xff]
    %v4139 = vld [vmem:[#allocation9 + $0x208] sm:$0xff]
    %v4140 = vld [vmem:[#allocation9 + $0x210] sm:$0xff]
    %v4141 = vld [vmem:[#allocation9 + $0x218] sm:$0xff]
    %v4142 = vld [vmem:[#allocation9 + $0x220] sm:$0xff]
    %v4143 = vld [vmem:[#allocation9 + $0x228] sm:$0xff]
    %v4144 = vld [vmem:[#allocation9 + $0x230] sm:$0xff]
    %v4145 = vld [vmem:[#allocation9 + $0x238] sm:$0xff]
    %v4146 = vld [vmem:[#allocation9 + $0x240] sm:$0xff]
    %v4147 = vld [vmem:[#allocation9 + $0x248] sm:$0xff]
    %v4148 = vld [vmem:[#allocation9 + $0x250] sm:$0xff]
    %v4149 = vld [vmem:[#allocation9 + $0x258] sm:$0xff]
    %v4150 = vld [vmem:[#allocation9 + $0x260] sm:$0xff]
    %v4151 = vld [vmem:[#allocation9 + $0x268] sm:$0xff]
    %v4152 = vld [vmem:[#allocation9 + $0x270] sm:$0xff]
    %v4153 = vld [vmem:[#allocation9 + $0x278] sm:$0xff]
    %v4154 = vld [vmem:[#allocation9 + $0x280] sm:$0xff]
    %v4155 = vld [vmem:[#allocation9 + $0x288] sm:$0xff]
    %v4156 = vld [vmem:[#allocation9 + $0x290] sm:$0xff]
    %v4157 = vld [vmem:[#allocation9 + $0x298] sm:$0xff]
    %v4158 = vld [vmem:[#allocation9 + $0x2a0] sm:$0xff]
    %v4159 = vld [vmem:[#allocation9 + $0x2a8] sm:$0xff]
    %v4160 = vld [vmem:[#allocation9 + $0x2b0] sm:$0xff]
    %v4161 = vld [vmem:[#allocation9 + $0x2b8] sm:$0xff]
    %v4162 = vld [vmem:[#allocation9 + $0x2c0] sm:$0xff]
    %v4163 = vld [vmem:[#allocation9 + $0x2c8] sm:$0xff]
    %v4164 = vld [vmem:[#allocation9 + $0x2d0] sm:$0xff]
    %v4165 = vld [vmem:[#allocation9 + $0x2d8] sm:$0xff]
    %v4166 = vld [vmem:[#allocation9 + $0x2e0] sm:$0xff]
    %v4167 = vld [vmem:[#allocation9 + $0x2e8] sm:$0xff]
    %v4168 = vld [vmem:[#allocation9 + $0x2f0] sm:$0xff]
    %v4169 = vld [vmem:[#allocation9 + $0x2f8] sm:$0xff]
    %v4170 = vld [vmem:[#allocation9 + $0x300] sm:$0xff]
    %v4171 = vld [vmem:[#allocation9 + $0x308] sm:$0xff]
    %v4172 = vld [vmem:[#allocation9 + $0x310] sm:$0xff]
    %v4173 = vld [vmem:[#allocation9 + $0x318] sm:$0xff]
    %v4174 = vld [vmem:[#allocation9 + $0x320] sm:$0xff]
    %v4175 = vld [vmem:[#allocation9 + $0x328] sm:$0xff]
    %v4176 = vld [vmem:[#allocation9 + $0x330] sm:$0xff]
    %v4177 = vld [vmem:[#allocation9 + $0x338] sm:$0xff]
    %v4178 = vld [vmem:[#allocation9 + $0x340] sm:$0xff]
    %v4179 = vld [vmem:[#allocation9 + $0x348] sm:$0xff]
    %v4180 = vld [vmem:[#allocation9 + $0x350] sm:$0xff]
    %v4181 = vld [vmem:[#allocation9 + $0x358] sm:$0xff]
    %v4182 = vld [vmem:[#allocation9 + $0x360] sm:$0xff]
    %v4183 = vld [vmem:[#allocation9 + $0x368] sm:$0xff]
    %v4184 = vld [vmem:[#allocation9 + $0x370] sm:$0xff]
    %v4185 = vld [vmem:[#allocation9 + $0x378] sm:$0xff]
    %v4186 = vld [vmem:[#allocation9 + $0x380] sm:$0xff]
    %v4187 = vld [vmem:[#allocation9 + $0x388] sm:$0xff]
    %v4188 = vld [vmem:[#allocation9 + $0x390] sm:$0xff]
    %v4189 = vld [vmem:[#allocation9 + $0x398] sm:$0xff]
    %v4190 = vld [vmem:[#allocation9 + $0x3a0] sm:$0xff]
    %v4191 = vld [vmem:[#allocation9 + $0x3a8] sm:$0xff]
    %v4192 = vld [vmem:[#allocation9 + $0x3b0] sm:$0xff]
    %v4193 = vld [vmem:[#allocation9 + $0x3b8] sm:$0xff]
    %v4194 = vld [vmem:[#allocation9 + $0x3c0] sm:$0xff]
    %v4195 = vld [vmem:[#allocation9 + $0x3c8] sm:$0xff]
    %v4196 = vld [vmem:[#allocation9 + $0x3d0] sm:$0xff]
    %v4197 = vld [vmem:[#allocation9 + $0x3d8] sm:$0xff]
    %v4198 = vld [vmem:[#allocation9 + $0x3e0] sm:$0xff]
    %v4199 = vld [vmem:[#allocation9 + $0x3e8] sm:$0xff]
    %v4200 = vld [vmem:[#allocation9 + $0x3f0] sm:$0xff]
    %v4201 = vld [vmem:[#allocation9 + $0x3f8] sm:$0xff]
    %v4202 = vld [vmem:[#allocation9 + $0x400] sm:$0xff]
    %v4203 = vld [vmem:[#allocation9 + $0x408] sm:$0xff]
    %v4204 = vld [vmem:[#allocation9 + $0x410] sm:$0xff]
    %v4205 = vld [vmem:[#allocation9 + $0x418] sm:$0xff]
    %v4206 = vld [vmem:[#allocation9 + $0x420] sm:$0xff]
    %v4207 = vld [vmem:[#allocation9 + $0x428] sm:$0xff]
    %v4208 = vld [vmem:[#allocation9 + $0x430] sm:$0xff]
    %v4209 = vld [vmem:[#allocation9 + $0x438] sm:$0xff]
    %v4210 = vld [vmem:[#allocation9 + $0x440] sm:$0xff]
    %v4211 = vld [vmem:[#allocation9 + $0x448] sm:$0xff]
    %v4212 = vld [vmem:[#allocation9 + $0x450] sm:$0xff]
    %v4213 = vld [vmem:[#allocation9 + $0x458] sm:$0xff]
    %v4214 = vld [vmem:[#allocation9 + $0x460] sm:$0xff]
    %v4215 = vld [vmem:[#allocation9 + $0x468] sm:$0xff]
    %v4216 = vld [vmem:[#allocation9 + $0x470] sm:$0xff]
    %v4217 = vld [vmem:[#allocation9 + $0x478] sm:$0xff]
    %v4218 = vld [vmem:[#allocation9 + $0x480] sm:$0xff]
    %v4219 = vld [vmem:[#allocation9 + $0x488] sm:$0xff]
    %v4220 = vld [vmem:[#allocation9 + $0x490] sm:$0xff]
    %v4221 = vld [vmem:[#allocation9 + $0x498] sm:$0xff]
    %v4222 = vld [vmem:[#allocation9 + $0x4a0] sm:$0xff]
    %v4223 = vld [vmem:[#allocation9 + $0x4a8] sm:$0xff]
    %v4224 = vld [vmem:[#allocation9 + $0x4b0] sm:$0xff]
    %v4225 = vld [vmem:[#allocation9 + $0x4b8] sm:$0xff]
    %v4226 = vld [vmem:[#allocation9 + $0x4c0] sm:$0xff]
    %v4227 = vld [vmem:[#allocation9 + $0x4c8] sm:$0xff]
    %v4228 = vld [vmem:[#allocation9 + $0x4d0] sm:$0xff]
    %v4229 = vld [vmem:[#allocation9 + $0x4d8] sm:$0xff]
    %v4230 = vld [vmem:[#allocation9 + $0x4e0] sm:$0xff]
    %v4231 = vld [vmem:[#allocation9 + $0x4e8] sm:$0xff]
    %v4232 = vld [vmem:[#allocation9 + $0x4f0] sm:$0xff]
    %v4233 = vld [vmem:[#allocation9 + $0x4f8] sm:$0xff]
    %v4234 = vld [vmem:[#allocation9 + $0x500] sm:$0xff]
    %v4235 = vld [vmem:[#allocation9 + $0x508] sm:$0xff]
    %v4236 = vld [vmem:[#allocation9 + $0x510] sm:$0xff]
    %v4237 = vld [vmem:[#allocation9 + $0x518] sm:$0xff]
    %v4238 = vld [vmem:[#allocation9 + $0x520] sm:$0xff]
    %v4239 = vld [vmem:[#allocation9 + $0x528] sm:$0xff]
    %v4240 = vld [vmem:[#allocation9 + $0x530] sm:$0xff]
    %v4241 = vld [vmem:[#allocation9 + $0x538] sm:$0xff]
    %v4242 = vld [vmem:[#allocation9 + $0x540] sm:$0xff]
    %v4243 = vld [vmem:[#allocation9 + $0x548] sm:$0xff]
    %v4244 = vld [vmem:[#allocation9 + $0x550] sm:$0xff]
    %v4245 = vld [vmem:[#allocation9 + $0x558] sm:$0xff]
    %v4246 = vld [vmem:[#allocation9 + $0x560] sm:$0xff]
    %v4247 = vld [vmem:[#allocation9 + $0x568] sm:$0xff]
    %v4248 = vld [vmem:[#allocation9 + $0x570] sm:$0xff]
    %v4249 = vld [vmem:[#allocation9 + $0x578] sm:$0xff]
    %v4250 = vld [vmem:[#allocation9 + $0x580] sm:$0xff]
    %v4251 = vld [vmem:[#allocation9 + $0x588] sm:$0xff]
    %v4252 = vld [vmem:[#allocation9 + $0x590] sm:$0xff]
    %v4253 = vld [vmem:[#allocation9 + $0x598] sm:$0xff]
    %v4254 = vld [vmem:[#allocation9 + $0x5a0] sm:$0xff]
    %v4255 = vld [vmem:[#allocation9 + $0x5a8] sm:$0xff]
    %v4256 = vld [vmem:[#allocation9 + $0x5b0] sm:$0xff]
    %v4257 = vld [vmem:[#allocation9 + $0x5b8] sm:$0xff]
    %v4258 = vld [vmem:[#allocation9 + $0x5c0] sm:$0xff]
    %v4259 = vld [vmem:[#allocation9 + $0x5c8] sm:$0xff]
    %v4260 = vld [vmem:[#allocation9 + $0x5d0] sm:$0xff]
    %v4261 = vld [vmem:[#allocation9 + $0x5d8] sm:$0xff]
    %v4262 = vld [vmem:[#allocation9 + $0x5e0] sm:$0xff]
    %v4263 = vld [vmem:[#allocation9 + $0x5e8] sm:$0xff]
    %v4264 = vld [vmem:[#allocation9 + $0x5f0] sm:$0xff]
    %v4265 = vld [vmem:[#allocation9 + $0x5f8] sm:$0xff]
    %v4266 = vld [vmem:[%s9] sm:$0x3]
    %v4268 = vlaneseq
    %v4269 = vshrl.u32 %v4268, 7
    %v4270 = vsub.s32 0, %v4269
    %v4271 = vrot.slane %v4266, %v4270
    %v4272 = vlaneseq
    %v4273 = vshrl.u32 %v4272, 7
    %v4274 = vsub.s32 1, %v4273
    %v4275 = vrot.slane %v4266, %v4274
    %4278 = vmatprep.subr.mxu0 %v4075
    %4279 = vmatpush1.msra.mxu0 %v4074
    %4280 = vmatprep.subr.mxu0 %v4081
    %4281 = vmatpush1.msra.mxu0 %v4080
    %4282 = vmatprep.subr.mxu0 %v4087
    %4283 = vmatpush1.msra.mxu0 %v4086
    %4284 = vmatprep.subr.mxu0 %v4093
    %4285 = vmatpush1.msra.mxu0 %v4092
    %4286 = vmatprep.subr.mxu0 %v4099
    %4287 = vmatpush1.msra.mxu0 %v4098
    %4288 = vmatprep.subr.mxu0 %v4105
    %4289 = vmatpush1.msra.mxu0 %v4104
    %4290 = vmatprep.subr.mxu0 %v4111
    %4291 = vmatpush1.msra.mxu0 %v4110
    %4292 = vmatprep.subr.mxu0 %v4117
    %4293 = vmatpush1.msra.mxu0 %v4116
    %4294 = vmatprep.subr.mxu0 %v4123
    %4295 = vmatpush1.msra.mxu0 %v4122
    %4296 = vmatprep.subr.mxu0 %v4129
    %4297 = vmatpush1.msra.mxu0 %v4128
    %4298 = vmatprep.subr.mxu0 %v4135
    %4299 = vmatpush1.msra.mxu0 %v4134
    %4300 = vmatprep.subr.mxu0 %v4141
    %4301 = vmatpush1.msra.mxu0 %v4140
    %4302 = vmatprep.subr.mxu0 %v4147
    %4303 = vmatpush1.msra.mxu0 %v4146
    %4304 = vmatprep.subr.mxu0 %v4153
    %4305 = vmatpush1.msra.mxu0 %v4152
    %4306 = vmatprep.subr.mxu0 %v4159
    %4307 = vmatpush1.msra.mxu0 %v4158
    %4308 = vmatprep.subr.mxu0 %v4165
    %4309 = vmatpush1.msra.mxu0 %v4164
    %4310 = vmatprep.subr.mxu0 %v4171
    %4311 = vmatpush1.msra.mxu0 %v4170
    %4312 = vmatprep.subr.mxu0 %v4177
    %4313 = vmatpush1.msra.mxu0 %v4176
    %4314 = vmatprep.subr.mxu0 %v4183
    %4315 = vmatpush1.msra.mxu0 %v4182
    %4316 = vmatprep.subr.mxu0 %v4189
    %4317 = vmatpush1.msra.mxu0 %v4188
    %4318 = vmatprep.subr.mxu0 %v4195
    %4319 = vmatpush1.msra.mxu0 %v4194
    %4320 = vmatprep.subr.mxu0 %v4201
    %4321 = vmatpush1.msra.mxu0 %v4200
    %4322 = vmatprep.subr.mxu0 %v4207
    %4323 = vmatpush1.msra.mxu0 %v4206
    %4324 = vmatprep.subr.mxu0 %v4213
    %4325 = vmatpush1.msra.mxu0 %v4212
    %4326 = vmatprep.subr.mxu0 %v4219
    %4327 = vmatpush1.msra.mxu0 %v4218
    %4328 = vmatprep.subr.mxu0 %v4225
    %4329 = vmatpush1.msra.mxu0 %v4224
    %4330 = vmatprep.subr.mxu0 %v4231
    %4331 = vmatpush1.msra.mxu0 %v4230
    %4332 = vmatprep.subr.mxu0 %v4237
    %4333 = vmatpush1.msra.mxu0 %v4236
    %4334 = vmatprep.subr.mxu0 %v4243
    %4335 = vmatpush1.msra.mxu0 %v4242
    %4336 = vmatprep.subr.mxu0 %v4249
    %4337 = vmatpush1.msra.mxu0 %v4248
    %4338 = vmatprep.subr.mxu0 %v4255
    %4339 = vmatpush1.msra.mxu0 %v4254
    %4340 = vmatprep.subr.mxu0 %v4261
    %4341 = vmatpush1.msra.mxu0 %v4260
    %4342 = vmatprep.mubr.f32.mxu0 0.0
    %4343 = vmatmul.mubr.f32.gmra.mrb[0].mxu0 0.0
    %v4344 = vpop.f32.mrb[0].mxu0
    %v4345 = vadd.f32 0.0, %v4344
    %v4346 = vpop.f32.mrb[0].mxu0
    %v4347 = vadd.f32 0.0, %v4346
    %4348 = vdwg.mxu0
    %4349 = vmatprep.subr.mxu0 %v4077
    %4350 = vmatpush1.msra.mxu0 %v4076
    %4351 = vmatprep.subr.mxu0 %v4083
    %4352 = vmatpush1.msra.mxu0 %v4082
    %4353 = vmatprep.subr.mxu0 %v4089
    %4354 = vmatpush1.msra.mxu0 %v4088
    %4355 = vmatprep.subr.mxu0 %v4095
    %4356 = vmatpush1.msra.mxu0 %v4094
    %4357 = vmatprep.subr.mxu0 %v4101
    %4358 = vmatpush1.msra.mxu0 %v4100
    %4359 = vmatprep.subr.mxu0 %v4107
    %4360 = vmatpush1.msra.mxu0 %v4106
    %4361 = vmatprep.subr.mxu0 %v4113
    %4362 = vmatpush1.msra.mxu0 %v4112
    %4363 = vmatprep.subr.mxu0 %v4119
    %4364 = vmatpush1.msra.mxu0 %v4118
    %4365 = vmatprep.subr.mxu0 %v4125
    %4366 = vmatpush1.msra.mxu0 %v4124
    %4367 = vmatprep.subr.mxu0 %v4131
    %4368 = vmatpush1.msra.mxu0 %v4130
    %4369 = vmatprep.subr.mxu0 %v4137
    %4370 = vmatpush1.msra.mxu0 %v4136
    %4371 = vmatprep.subr.mxu0 %v4143
    %4372 = vmatpush1.msra.mxu0 %v4142
    %4373 = vmatprep.subr.mxu0 %v4149
    %4374 = vmatpush1.msra.mxu0 %v4148
    %4375 = vmatprep.subr.mxu0 %v4155
    %4376 = vmatpush1.msra.mxu0 %v4154
    %4377 = vmatprep.subr.mxu0 %v4161
    %4378 = vmatpush1.msra.mxu0 %v4160
    %4379 = vmatprep.subr.mxu0 %v4167
    %4380 = vmatpush1.msra.mxu0 %v4166
    %4381 = vmatprep.subr.mxu0 %v4173
    %4382 = vmatpush1.msra.mxu0 %v4172
    %4383 = vmatprep.subr.mxu0 %v4179
    %4384 = vmatpush1.msra.mxu0 %v4178
    %4385 = vmatprep.subr.mxu0 %v4185
    %4386 = vmatpush1.msra.mxu0 %v4184
    %4387 = vmatprep.subr.mxu0 %v4191
    %4388 = vmatpush1.msra.mxu0 %v4190
    %4389 = vmatprep.subr.mxu0 %v4197
    %4390 = vmatpush1.msra.mxu0 %v4196
    %4391 = vmatprep.subr.mxu0 %v4203
    %4392 = vmatpush1.msra.mxu0 %v4202
    %4393 = vmatprep.subr.mxu0 %v4209
    %4394 = vmatpush1.msra.mxu0 %v4208
    %4395 = vmatprep.subr.mxu0 %v4215
    %4396 = vmatpush1.msra.mxu0 %v4214
    %4397 = vmatprep.subr.mxu0 %v4221
    %4398 = vmatpush1.msra.mxu0 %v4220
    %4399 = vmatprep.subr.mxu0 %v4227
    %4400 = vmatpush1.msra.mxu0 %v4226
    %4401 = vmatprep.subr.mxu0 %v4233
    %4402 = vmatpush1.msra.mxu0 %v4232
    %4403 = vmatprep.subr.mxu0 %v4239
    %4404 = vmatpush1.msra.mxu0 %v4238
    %4405 = vmatprep.subr.mxu0 %v4245
    %4406 = vmatpush1.msra.mxu0 %v4244
    %4407 = vmatprep.subr.mxu0 %v4251
    %4408 = vmatpush1.msra.mxu0 %v4250
    %4409 = vmatprep.subr.mxu0 %v4257
    %4410 = vmatpush1.msra.mxu0 %v4256
    %4411 = vmatprep.subr.mxu0 %v4263
    %4412 = vmatpush1.msra.mxu0 %v4262
    %4413 = vmatprep.mubr.f32.mxu0 0.0
    %4414 = vmatmul.mubr.f32.gmra.mrb[0].mxu0 0.0
    %v4415 = vpop.f32.mrb[0].mxu0
    %v4416 = vadd.f32 0.0, %v4415
    %v4417 = vpop.f32.mrb[0].mxu0
    %v4418 = vadd.f32 0.0, %v4417
    %4419 = vdwg.mxu0
    %4420 = vmatprep.subr.mxu0 %v4079
    %4421 = vmatpush1.msra.mxu0 %v4078
    %4422 = vmatprep.subr.mxu0 %v4085
    %4423 = vmatpush1.msra.mxu0 %v4084
    %4424 = vmatprep.subr.mxu0 %v4091
    %4425 = vmatpush1.msra.mxu0 %v4090
    %4426 = vmatprep.subr.mxu0 %v4097
    %4427 = vmatpush1.msra.mxu0 %v4096
    %4428 = vmatprep.subr.mxu0 %v4103
    %4429 = vmatpush1.msra.mxu0 %v4102
    %4430 = vmatprep.subr.mxu0 %v4109
    %4431 = vmatpush1.msra.mxu0 %v4108
    %4432 = vmatprep.subr.mxu0 %v4115
    %4433 = vmatpush1.msra.mxu0 %v4114
    %4434 = vmatprep.subr.mxu0 %v4121
    %4435 = vmatpush1.msra.mxu0 %v4120
    %4436 = vmatprep.subr.mxu0 %v4127
    %4437 = vmatpush1.msra.mxu0 %v4126
    %4438 = vmatprep.subr.mxu0 %v4133
    %4439 = vmatpush1.msra.mxu0 %v4132
    %4440 = vmatprep.subr.mxu0 %v4139
    %4441 = vmatpush1.msra.mxu0 %v4138
    %4442 = vmatprep.subr.mxu0 %v4145
    %4443 = vmatpush1.msra.mxu0 %v4144
    %4444 = vmatprep.subr.mxu0 %v4151
    %4445 = vmatpush1.msra.mxu0 %v4150
    %4446 = vmatprep.subr.mxu0 %v4157
    %4447 = vmatpush1.msra.mxu0 %v4156
    %4448 = vmatprep.subr.mxu0 %v4163
    %4449 = vmatpush1.msra.mxu0 %v4162
    %4450 = vmatprep.subr.mxu0 %v4169
    %4451 = vmatpush1.msra.mxu0 %v4168
    %4452 = vmatprep.subr.mxu0 %v4175
    %4453 = vmatpush1.msra.mxu0 %v4174
    %4454 = vmatprep.subr.mxu0 %v4181
    %4455 = vmatpush1.msra.mxu0 %v4180
    %4456 = vmatprep.subr.mxu0 %v4187
    %4457 = vmatpush1.msra.mxu0 %v4186
    %4458 = vmatprep.subr.mxu0 %v4193
    %4459 = vmatpush1.msra.mxu0 %v4192
    %4460 = vmatprep.subr.mxu0 %v4199
    %4461 = vmatpush1.msra.mxu0 %v4198
    %4462 = vmatprep.subr.mxu0 %v4205
    %4463 = vmatpush1.msra.mxu0 %v4204
    %4464 = vmatprep.subr.mxu0 %v4211
    %4465 = vmatpush1.msra.mxu0 %v4210
    %4466 = vmatprep.subr.mxu0 %v4217
    %4467 = vmatpush1.msra.mxu0 %v4216
    %4468 = vmatprep.subr.mxu0 %v4223
    %4469 = vmatpush1.msra.mxu0 %v4222
    %4470 = vmatprep.subr.mxu0 %v4229
    %4471 = vmatpush1.msra.mxu0 %v4228
    %4472 = vmatprep.subr.mxu0 %v4235
    %4473 = vmatpush1.msra.mxu0 %v4234
    %4474 = vmatprep.subr.mxu0 %v4241
    %4475 = vmatpush1.msra.mxu0 %v4240
    %4476 = vmatprep.subr.mxu0 %v4247
    %4477 = vmatpush1.msra.mxu0 %v4246
    %4478 = vmatprep.subr.mxu0 %v4253
    %4479 = vmatpush1.msra.mxu0 %v4252
    %4480 = vmatprep.subr.mxu0 %v4259
    %4481 = vmatpush1.msra.mxu0 %v4258
    %4482 = vmatprep.subr.mxu0 %v4265
    %4483 = vmatpush1.msra.mxu0 %v4264
    %4484 = vmatprep.mubr.f32.mxu0 0.0
    %4485 = vmatmul.mubr.f32.gmra.mrb[0].mxu0 0.0
    %v4486 = vpop.f32.mrb[0].mxu0
    %v4487 = vadd.f32 0.0, %v4486
    %v4488 = vpop.f32.mrb[0].mxu0
    %v4489 = vadd.f32 0.0, %v4488
    %4490 = vdwg.mxu0
    %v4491 = vadd.f32 %v4026, %v4345
    %v4492 = vadd.f32 %v4027, %v4347
    %v4493 = vadd.f32 %v4028, %v4416
    %v4494 = vadd.f32 %v4029, %v4418
    %v4495 = vxor.u32 %v4491, 2147483648
    %v4496 = vxor.u32 %v4492, 2147483648
    %v4497 = vxor.u32 %v4493, 2147483648
    %v4498 = vxor.u32 %v4494, 2147483648
    %v4499 = vmul.f32 %v4495, 1.442695
    %v4500 = vpow.pop %v4499
    %v4501 = vmul.f32 %v4496, 1.442695
    %v4502 = vpow.pop %v4501
    %v4503 = vmul.f32 %v4497, 1.442695
    %v4504 = vpow.pop %v4503
    %v4505 = vmul.f32 %v4498, 1.442695
    %v4506 = vpow.pop %v4505
    %v4507 = vadd.f32 %v4500, 1.0
    %v4508 = vadd.f32 %v4502, 1.0
    %v4509 = vadd.f32 %v4504, 1.0
    %v4510 = vadd.f32 %v4506, 1.0
    %v4511 = vrcp.pop %v4507
    %v4512 = vmul.f32 1.0, %v4511
    %v4513 = vrcp.pop %v4508
    %v4514 = vmul.f32 1.0, %v4513
    %v4515 = vrcp.pop %v4509
    %v4516 = vmul.f32 1.0, %v4515
    %v4517 = vrcp.pop %v4510
    %v4518 = vmul.f32 1.0, %v4517
    %v4519 = vadd.f32 %v4487, %v4271
    %v4520 = vadd.f32 %v4489, %v4275
    %v4521 = vmul.f32 %v4512, %v4519
    %v4522 = vmul.f32 %v4514, %v4520
    %v4523 = vadd.f32 %v4030, %v4521
    %v4524 = vadd.f32 %v4031, %v4522
    %v4525 = vtanh.pop %v4523
    %v4526 = vtanh.pop %v4524
    %v4527 = vsub.f32 0.0, %v4525
    %v4528 = vsub.f32 0.0, %v4526
    %v4529 = vmul.f32 %v4516, %v4527
    %v4530 = vmul.f32 %v4518, %v4528
    %v4531 = vadd.f32 %v4525, %v4529
    %v4532 = vadd.f32 %v4526, %v4530
    %4533 = vmatprep.subr.mxu0 %v4075
    %4534 = vmatpush1.msra.mxu0 %v4074
    %4535 = vmatprep.subr.mxu0 %v4081
    %4536 = vmatpush1.msra.mxu0 %v4080
    %4537 = vmatprep.subr.mxu0 %v4087
    %4538 = vmatpush1.msra.mxu0 %v4086
    %4539 = vmatprep.subr.mxu0 %v4093
    %4540 = vmatpush1.msra.mxu0 %v4092
    %4541 = vmatprep.subr.mxu0 %v4099
    %4542 = vmatpush1.msra.mxu0 %v4098
    %4543 = vmatprep.subr.mxu0 %v4105
    %4544 = vmatpush1.msra.mxu0 %v4104
    %4545 = vmatprep.subr.mxu0 %v4111
    %4546 = vmatpush1.msra.mxu0 %v4110
    %4547 = vmatprep.subr.mxu0 %v4117
    %4548 = vmatpush1.msra.mxu0 %v4116
    %4549 = vmatprep.subr.mxu0 %v4123
    %4550 = vmatpush1.msra.mxu0 %v4122
    %4551 = vmatprep.subr.mxu0 %v4129
    %4552 = vmatpush1.msra.mxu0 %v4128
    %4553 = vmatprep.subr.mxu0 %v4135
    %4554 = vmatpush1.msra.mxu0 %v4134
    %4555 = vmatprep.subr.mxu0 %v4141
    %4556 = vmatpush1.msra.mxu0 %v4140
    %4557 = vmatprep.subr.mxu0 %v4147
    %4558 = vmatpush1.msra.mxu0 %v4146
    %4559 = vmatprep.subr.mxu0 %v4153
    %4560 = vmatpush1.msra.mxu0 %v4152
    %4561 = vmatprep.subr.mxu0 %v4159
    %4562 = vmatpush1.msra.mxu0 %v4158
    %4563 = vmatprep.subr.mxu0 %v4165
    %4564 = vmatpush1.msra.mxu0 %v4164
    %4565 = vmatprep.subr.mxu0 %v4171
    %4566 = vmatpush1.msra.mxu0 %v4170
    %4567 = vmatprep.subr.mxu0 %v4177
    %4568 = vmatpush1.msra.mxu0 %v4176
    %4569 = vmatprep.subr.mxu0 %v4183
    %4570 = vmatpush1.msra.mxu0 %v4182
    %4571 = vmatprep.subr.mxu0 %v4189
    %4572 = vmatpush1.msra.mxu0 %v4188
    %4573 = vmatprep.subr.mxu0 %v4195
    %4574 = vmatpush1.msra.mxu0 %v4194
    %4575 = vmatprep.subr.mxu0 %v4201
    %4576 = vmatpush1.msra.mxu0 %v4200
    %4577 = vmatprep.subr.mxu0 %v4207
    %4578 = vmatpush1.msra.mxu0 %v4206
    %4579 = vmatprep.subr.mxu0 %v4213
    %4580 = vmatpush1.msra.mxu0 %v4212
    %4581 = vmatprep.subr.mxu0 %v4219
    %4582 = vmatpush1.msra.mxu0 %v4218
    %4583 = vmatprep.subr.mxu0 %v4225
    %4584 = vmatpush1.msra.mxu0 %v4224
    %4585 = vmatprep.subr.mxu0 %v4231
    %4586 = vmatpush1.msra.mxu0 %v4230
    %4587 = vmatprep.subr.mxu0 %v4237
    %4588 = vmatpush1.msra.mxu0 %v4236
    %4589 = vmatprep.subr.mxu0 %v4243
    %4590 = vmatpush1.msra.mxu0 %v4242
    %4591 = vmatprep.subr.mxu0 %v4249
    %4592 = vmatpush1.msra.mxu0 %v4248
    %4593 = vmatprep.subr.mxu0 %v4255
    %4594 = vmatpush1.msra.mxu0 %v4254
    %4595 = vmatprep.subr.mxu0 %v4261
    %4596 = vmatpush1.msra.mxu0 %v4260
    %4597 = vmatprep.mubr.f32.mxu0 %v4532
    %4598 = vmatmul.mubr.f32.gmra.mrb[0].mxu0 %v4531
    %v4599 = vpop.f32.mrb[0].mxu0
    %v4600 = vadd.f32 0.0, %v4599
    %v4601 = vpop.f32.mrb[0].mxu0
    %v4602 = vadd.f32 0.0, %v4601
    %4603 = vdwg.mxu0
    %4604 = vmatprep.subr.mxu0 %v4077
    %4605 = vmatpush1.msra.mxu0 %v4076
    %4606 = vmatprep.subr.mxu0 %v4083
    %4607 = vmatpush1.msra.mxu0 %v4082
    %4608 = vmatprep.subr.mxu0 %v4089
    %4609 = vmatpush1.msra.mxu0 %v4088
    %4610 = vmatprep.subr.mxu0 %v4095
    %4611 = vmatpush1.msra.mxu0 %v4094
    %4612 = vmatprep.subr.mxu0 %v4101
    %4613 = vmatpush1.msra.mxu0 %v4100
    %4614 = vmatprep.subr.mxu0 %v4107
    %4615 = vmatpush1.msra.mxu0 %v4106
    %4616 = vmatprep.subr.mxu0 %v4113
    %4617 = vmatpush1.msra.mxu0 %v4112
    %4618 = vmatprep.subr.mxu0 %v4119
    %4619 = vmatpush1.msra.mxu0 %v4118
    %4620 = vmatprep.subr.mxu0 %v4125
    %4621 = vmatpush1.msra.mxu0 %v4124
    %4622 = vmatprep.subr.mxu0 %v4131
    %4623 = vmatpush1.msra.mxu0 %v4130
    %4624 = vmatprep.subr.mxu0 %v4137
    %4625 = vmatpush1.msra.mxu0 %v4136
    %4626 = vmatprep.subr.mxu0 %v4143
    %4627 = vmatpush1.msra.mxu0 %v4142
    %4628 = vmatprep.subr.mxu0 %v4149
    %4629 = vmatpush1.msra.mxu0 %v4148
    %4630 = vmatprep.subr.mxu0 %v4155
    %4631 = vmatpush1.msra.mxu0 %v4154
    %4632 = vmatprep.subr.mxu0 %v4161
    %4633 = vmatpush1.msra.mxu0 %v4160
    %4634 = vmatprep.subr.mxu0 %v4167
    %4635 = vmatpush1.msra.mxu0 %v4166
    %4636 = vmatprep.subr.mxu0 %v4173
    %4637 = vmatpush1.msra.mxu0 %v4172
    %4638 = vmatprep.subr.mxu0 %v4179
    %4639 = vmatpush1.msra.mxu0 %v4178
    %4640 = vmatprep.subr.mxu0 %v4185
    %4641 = vmatpush1.msra.mxu0 %v4184
    %4642 = vmatprep.subr.mxu0 %v4191
    %4643 = vmatpush1.msra.mxu0 %v4190
    %4644 = vmatprep.subr.mxu0 %v4197
    %4645 = vmatpush1.msra.mxu0 %v4196
    %4646 = vmatprep.subr.mxu0 %v4203
    %4647 = vmatpush1.msra.mxu0 %v4202
    %4648 = vmatprep.subr.mxu0 %v4209
    %4649 = vmatpush1.msra.mxu0 %v4208
    %4650 = vmatprep.subr.mxu0 %v4215
    %4651 = vmatpush1.msra.mxu0 %v4214
    %4652 = vmatprep.subr.mxu0 %v4221
    %4653 = vmatpush1.msra.mxu0 %v4220
    %4654 = vmatprep.subr.mxu0 %v4227
    %4655 = vmatpush1.msra.mxu0 %v4226
    %4656 = vmatprep.subr.mxu0 %v4233
    %4657 = vmatpush1.msra.mxu0 %v4232
    %4658 = vmatprep.subr.mxu0 %v4239
    %4659 = vmatpush1.msra.mxu0 %v4238
    %4660 = vmatprep.subr.mxu0 %v4245
    %4661 = vmatpush1.msra.mxu0 %v4244
    %4662 = vmatprep.subr.mxu0 %v4251
    %4663 = vmatpush1.msra.mxu0 %v4250
    %4664 = vmatprep.subr.mxu0 %v4257
    %4665 = vmatpush1.msra.mxu0 %v4256
    %4666 = vmatprep.subr.mxu0 %v4263
    %4667 = vmatpush1.msra.mxu0 %v4262
    %4668 = vmatprep.mubr.f32.mxu0 %v4532
    %4669 = vmatmul.mubr.f32.gmra.mrb[0].mxu0 %v4531
    %v4670 = vpop.f32.mrb[0].mxu0
    %v4671 = vadd.f32 0.0, %v4670
    %v4672 = vpop.f32.mrb[0].mxu0
    %v4673 = vadd.f32 0.0, %v4672
    %4674 = vdwg.mxu0
    %4675 = vmatprep.subr.mxu0 %v4079
    %4676 = vmatpush1.msra.mxu0 %v4078
    %4677 = vmatprep.subr.mxu0 %v4085
    %4678 = vmatpush1.msra.mxu0 %v4084
    %4679 = vmatprep.subr.mxu0 %v4091
    %4680 = vmatpush1.msra.mxu0 %v4090
    %4681 = vmatprep.subr.mxu0 %v4097
    %4682 = vmatpush1.msra.mxu0 %v4096
    %4683 = vmatprep.subr.mxu0 %v4103
    %4684 = vmatpush1.msra.mxu0 %v4102
    %4685 = vmatprep.subr.mxu0 %v4109
    %4686 = vmatpush1.msra.mxu0 %v4108
    %4687 = vmatprep.subr.mxu0 %v4115
    %4688 = vmatpush1.msra.mxu0 %v4114
    %4689 = vmatprep.subr.mxu0 %v4121
    %4690 = vmatpush1.msra.mxu0 %v4120
    %4691 = vmatprep.subr.mxu0 %v4127
    %4692 = vmatpush1.msra.mxu0 %v4126
    %4693 = vmatprep.subr.mxu0 %v4133
    %4694 = vmatpush1.msra.mxu0 %v4132
    %4695 = vmatprep.subr.mxu0 %v4139
    %4696 = vmatpush1.msra.mxu0 %v4138
    %4697 = vmatprep.subr.mxu0 %v4145
    %4698 = vmatpush1.msra.mxu0 %v4144
    %4699 = vmatprep.subr.mxu0 %v4151
    %4700 = vmatpush1.msra.mxu0 %v4150
    %4701 = vmatprep.subr.mxu0 %v4157
    %4702 = vmatpush1.msra.mxu0 %v4156
    %4703 = vmatprep.subr.mxu0 %v4163
    %4704 = vmatpush1.msra.mxu0 %v4162
    %4705 = vmatprep.subr.mxu0 %v4169
    %4706 = vmatpush1.msra.mxu0 %v4168
    %4707 = vmatprep.subr.mxu0 %v4175
    %4708 = vmatpush1.msra.mxu0 %v4174
    %4709 = vmatprep.subr.mxu0 %v4181
    %4710 = vmatpush1.msra.mxu0 %v4180
    %4711 = vmatprep.subr.mxu0 %v4187
    %4712 = vmatpush1.msra.mxu0 %v4186
    %4713 = vmatprep.subr.mxu0 %v4193
    %4714 = vmatpush1.msra.mxu0 %v4192
    %4715 = vmatprep.subr.mxu0 %v4199
    %4716 = vmatpush1.msra.mxu0 %v4198
    %4717 = vmatprep.subr.mxu0 %v4205
    %4718 = vmatpush1.msra.mxu0 %v4204
    %4719 = vmatprep.subr.mxu0 %v4211
    %4720 = vmatpush1.msra.mxu0 %v4210
    %4721 = vmatprep.subr.mxu0 %v4217
    %4722 = vmatpush1.msra.mxu0 %v4216
    %4723 = vmatprep.subr.mxu0 %v4223
    %4724 = vmatpush1.msra.mxu0 %v4222
    %4725 = vmatprep.subr.mxu0 %v4229
    %4726 = vmatpush1.msra.mxu0 %v4228
    %4727 = vmatprep.subr.mxu0 %v4235
    %4728 = vmatpush1.msra.mxu0 %v4234
    %4729 = vmatprep.subr.mxu0 %v4241
    %4730 = vmatpush1.msra.mxu0 %v4240
    %4731 = vmatprep.subr.mxu0 %v4247
    %4732 = vmatpush1.msra.mxu0 %v4246
    %4733 = vmatprep.subr.mxu0 %v4253
    %4734 = vmatpush1.msra.mxu0 %v4252
    %4735 = vmatprep.subr.mxu0 %v4259
    %4736 = vmatpush1.msra.mxu0 %v4258
    %4737 = vmatprep.subr.mxu0 %v4265
    %4738 = vmatpush1.msra.mxu0 %v4264
    %4739 = vmatprep.mubr.f32.mxu0 %v4532
    %4740 = vmatmul.mubr.f32.gmra.mrb[0].mxu0 %v4531
    %v4741 = vpop.f32.mrb[0].mxu0
    %v4742 = vadd.f32 0.0, %v4741
    %v4743 = vpop.f32.mrb[0].mxu0
    %v4744 = vadd.f32 0.0, %v4743
    %4745 = vdwg.mxu0
    %v4746 = vadd.f32 %v4032, %v4600
    %v4747 = vadd.f32 %v4033, %v4602
    %v4748 = vadd.f32 %v4034, %v4671
    %v4749 = vadd.f32 %v4035, %v4673
    %v4750 = vxor.u32 %v4746, 2147483648
    %v4751 = vxor.u32 %v4747, 2147483648
    %v4752 = vxor.u32 %v4748, 2147483648
    %v4753 = vxor.u32 %v4749, 2147483648
    %v4754 = vmul.f32 %v4750, 1.442695
    %v4755 = vpow.pop %v4754
    %v4756 = vmul.f32 %v4751, 1.442695
    %v4757 = vpow.pop %v4756
    %v4758 = vmul.f32 %v4752, 1.442695
    %v4759 = vpow.pop %v4758
    %v4760 = vmul.f32 %v4753, 1.442695
    %v4761 = vpow.pop %v4760
    %v4762 = vadd.f32 %v4755, 1.0
    %v4763 = vadd.f32 %v4757, 1.0
    %v4764 = vadd.f32 %v4759, 1.0
    %v4765 = vadd.f32 %v4761, 1.0
    %v4766 = vrcp.pop %v4762
    %v4767 = vmul.f32 1.0, %v4766
    %v4768 = vrcp.pop %v4763
    %v4769 = vmul.f32 1.0, %v4768
    %v4770 = vrcp.pop %v4764
    %v4771 = vmul.f32 1.0, %v4770
    %v4772 = vrcp.pop %v4765
    %v4773 = vmul.f32 1.0, %v4772
    %v4774 = vadd.f32 %v4742, %v4271
    %v4775 = vadd.f32 %v4744, %v4275
    %v4776 = vmul.f32 %v4767, %v4774
    %v4777 = vmul.f32 %v4769, %v4775
    %v4778 = vadd.f32 %v4036, %v4776
    %v4779 = vadd.f32 %v4037, %v4777
    %v4780 = vtanh.pop %v4778
    %v4781 = vtanh.pop %v4779
    %v4782 = vsub.f32 %v4531, %v4780
    %v4783 = vsub.f32 %v4532, %v4781
    %v4784 = vmul.f32 %v4771, %v4782
    %v4785 = vmul.f32 %v4773, %v4783
    %v4786 = vadd.f32 %v4780, %v4784
    %v4787 = vadd.f32 %v4781, %v4785
    %4788 = vmatprep.subr.mxu0 %v4075
    %4789 = vmatpush1.msra.mxu0 %v4074
    %4790 = vmatprep.subr.mxu0 %v4081
    %4791 = vmatpush1.msra.mxu0 %v4080
    %4792 = vmatprep.subr.mxu0 %v4087
    %4793 = vmatpush1.msra.mxu0 %v4086
    %4794 = vmatprep.subr.mxu0 %v4093
    %4795 = vmatpush1.msra.mxu0 %v4092
    %4796 = vmatprep.subr.mxu0 %v4099
    %4797 = vmatpush1.msra.mxu0 %v4098
    %4798 = vmatprep.subr.mxu0 %v4105
    %4799 = vmatpush1.msra.mxu0 %v4104
    %4800 = vmatprep.subr.mxu0 %v4111
    %4801 = vmatpush1.msra.mxu0 %v4110
    %4802 = vmatprep.subr.mxu0 %v4117
    %4803 = vmatpush1.msra.mxu0 %v4116
    %4804 = vmatprep.subr.mxu0 %v4123
    %4805 = vmatpush1.msra.mxu0 %v4122
    %4806 = vmatprep.subr.mxu0 %v4129
    %4807 = vmatpush1.msra.mxu0 %v4128
    %4808 = vmatprep.subr.mxu0 %v4135
    %4809 = vmatpush1.msra.mxu0 %v4134
    %4810 = vmatprep.subr.mxu0 %v4141
    %4811 = vmatpush1.msra.mxu0 %v4140
    %4812 = vmatprep.subr.mxu0 %v4147
    %4813 = vmatpush1.msra.mxu0 %v4146
    %4814 = vmatprep.subr.mxu0 %v4153
    %4815 = vmatpush1.msra.mxu0 %v4152
    %4816 = vmatprep.subr.mxu0 %v4159
    %4817 = vmatpush1.msra.mxu0 %v4158
    %4818 = vmatprep.subr.mxu0 %v4165
    %4819 = vmatpush1.msra.mxu0 %v4164
    %4820 = vmatprep.subr.mxu0 %v4171
    %4821 = vmatpush1.msra.mxu0 %v4170
    %4822 = vmatprep.subr.mxu0 %v4177
    %4823 = vmatpush1.msra.mxu0 %v4176
    %4824 = vmatprep.subr.mxu0 %v4183
    %4825 = vmatpush1.msra.mxu0 %v4182
    %4826 = vmatprep.subr.mxu0 %v4189
    %4827 = vmatpush1.msra.mxu0 %v4188
    %4828 = vmatprep.subr.mxu0 %v4195
    %4829 = vmatpush1.msra.mxu0 %v4194
    %4830 = vmatprep.subr.mxu0 %v4201
    %4831 = vmatpush1.msra.mxu0 %v4200
    %4832 = vmatprep.subr.mxu0 %v4207
    %4833 = vmatpush1.msra.mxu0 %v4206
    %4834 = vmatprep.subr.mxu0 %v4213
    %4835 = vmatpush1.msra.mxu0 %v4212
    %4836 = vmatprep.subr.mxu0 %v4219
    %4837 = vmatpush1.msra.mxu0 %v4218
    %4838 = vmatprep.subr.mxu0 %v4225
    %4839 = vmatpush1.msra.mxu0 %v4224
    %4840 = vmatprep.subr.mxu0 %v4231
    %4841 = vmatpush1.msra.mxu0 %v4230
    %4842 = vmatprep.subr.mxu0 %v4237
    %4843 = vmatpush1.msra.mxu0 %v4236
    %4844 = vmatprep.subr.mxu0 %v4243
    %4845 = vmatpush1.msra.mxu0 %v4242
    %4846 = vmatprep.subr.mxu0 %v4249
    %4847 = vmatpush1.msra.mxu0 %v4248
    %4848 = vmatprep.subr.mxu0 %v4255
    %4849 = vmatpush1.msra.mxu0 %v4254
    %4850 = vmatprep.subr.mxu0 %v4261
    %4851 = vmatpush1.msra.mxu0 %v4260
    %4852 = vmatprep.mubr.f32.mxu0 %v4787
    %4853 = vmatmul.mubr.f32.gmra.mrb[0].mxu0 %v4786
    %v4854 = vpop.f32.mrb[0].mxu0
    %v4855 = vadd.f32 0.0, %v4854
    %v4856 = vpop.f32.mrb[0].mxu0
    %v4857 = vadd.f32 0.0, %v4856
    %4858 = vdwg.mxu0
    %4859 = vmatprep.subr.mxu0 %v4077
    %4860 = vmatpush1.msra.mxu0 %v4076
    %4861 = vmatprep.subr.mxu0 %v4083
    %4862 = vmatpush1.msra.mxu0 %v4082
    %4863 = vmatprep.subr.mxu0 %v4089
    %4864 = vmatpush1.msra.mxu0 %v4088
    %4865 = vmatprep.subr.mxu0 %v4095
    %4866 = vmatpush1.msra.mxu0 %v4094
    %4867 = vmatprep.subr.mxu0 %v4101
    %4868 = vmatpush1.msra.mxu0 %v4100
    %4869 = vmatprep.subr.mxu0 %v4107
    %4870 = vmatpush1.msra.mxu0 %v4106
    %4871 = vmatprep.subr.mxu0 %v4113
    %4872 = vmatpush1.msra.mxu0 %v4112
    %4873 = vmatprep.subr.mxu0 %v4119
    %4874 = vmatpush1.msra.mxu0 %v4118
    %4875 = vmatprep.subr.mxu0 %v4125
    %4876 = vmatpush1.msra.mxu0 %v4124
    %4877 = vmatprep.subr.mxu0 %v4131
    %4878 = vmatpush1.msra.mxu0 %v4130
    %4879 = vmatprep.subr.mxu0 %v4137
    %4880 = vmatpush1.msra.mxu0 %v4136
    %4881 = vmatprep.subr.mxu0 %v4143
    %4882 = vmatpush1.msra.mxu0 %v4142
    %4883 = vmatprep.subr.mxu0 %v4149
    %4884 = vmatpush1.msra.mxu0 %v4148
    %4885 = vmatprep.subr.mxu0 %v4155
    %4886 = vmatpush1.msra.mxu0 %v4154
    %4887 = vmatprep.subr.mxu0 %v4161
    %4888 = vmatpush1.msra.mxu0 %v4160
    %4889 = vmatprep.subr.mxu0 %v4167
    %4890 = vmatpush1.msra.mxu0 %v4166
    %4891 = vmatprep.subr.mxu0 %v4173
    %4892 = vmatpush1.msra.mxu0 %v4172
    %4893 = vmatprep.subr.mxu0 %v4179
    %4894 = vmatpush1.msra.mxu0 %v4178
    %4895 = vmatprep.subr.mxu0 %v4185
    %4896 = vmatpush1.msra.mxu0 %v4184
    %4897 = vmatprep.subr.mxu0 %v4191
    %4898 = vmatpush1.msra.mxu0 %v4190
    %4899 = vmatprep.subr.mxu0 %v4197
    %4900 = vmatpush1.msra.mxu0 %v4196
    %4901 = vmatprep.subr.mxu0 %v4203
    %4902 = vmatpush1.msra.mxu0 %v4202
    %4903 = vmatprep.subr.mxu0 %v4209
    %4904 = vmatpush1.msra.mxu0 %v4208
    %4905 = vmatprep.subr.mxu0 %v4215
    %4906 = vmatpush1.msra.mxu0 %v4214
    %4907 = vmatprep.subr.mxu0 %v4221
    %4908 = vmatpush1.msra.mxu0 %v4220
    %4909 = vmatprep.subr.mxu0 %v4227
    %4910 = vmatpush1.msra.mxu0 %v4226
    %4911 = vmatprep.subr.mxu0 %v4233
    %4912 = vmatpush1.msra.mxu0 %v4232
    %4913 = vmatprep.subr.mxu0 %v4239
    %4914 = vmatpush1.msra.mxu0 %v4238
    %4915 = vmatprep.subr.mxu0 %v4245
    %4916 = vmatpush1.msra.mxu0 %v4244
    %4917 = vmatprep.subr.mxu0 %v4251
    %4918 = vmatpush1.msra.mxu0 %v4250
    %4919 = vmatprep.subr.mxu0 %v4257
    %4920 = vmatpush1.msra.mxu0 %v4256
    %4921 = vmatprep.subr.mxu0 %v4263
    %4922 = vmatpush1.msra.mxu0 %v4262
    %4923 = vmatprep.mubr.f32.mxu0 %v4787
    %4924 = vmatmul.mubr.f32.gmra.mrb[0].mxu0 %v4786
    %v4925 = vpop.f32.mrb[0].mxu0
    %v4926 = vadd.f32 0.0, %v4925
    %v4927 = vpop.f32.mrb[0].mxu0
    %v4928 = vadd.f32 0.0, %v4927
    %4929 = vdwg.mxu0
    %4930 = vmatprep.subr.mxu0 %v4079
    %4931 = vmatpush1.msra.mxu0 %v4078
    %4932 = vmatprep.subr.mxu0 %v4085
    %4933 = vmatpush1.msra.mxu0 %v4084
    %4934 = vmatprep.subr.mxu0 %v4091
    %4935 = vmatpush1.msra.mxu0 %v4090
    %4936 = vmatprep.subr.mxu0 %v4097
    %4937 = vmatpush1.msra.mxu0 %v4096
    %4938 = vmatprep.subr.mxu0 %v4103
    %4939 = vmatpush1.msra.mxu0 %v4102
    %4940 = vmatprep.subr.mxu0 %v4109
    %4941 = vmatpush1.msra.mxu0 %v4108
    %4942 = vmatprep.subr.mxu0 %v4115
    %4943 = vmatpush1.msra.mxu0 %v4114
    %4944 = vmatprep.subr.mxu0 %v4121
    %4945 = vmatpush1.msra.mxu0 %v4120
    %4946 = vmatprep.subr.mxu0 %v4127
    %4947 = vmatpush1.msra.mxu0 %v4126
    %4948 = vmatprep.subr.mxu0 %v4133
    %4949 = vmatpush1.msra.mxu0 %v4132
    %4950 = vmatprep.subr.mxu0 %v4139
    %4951 = vmatpush1.msra.mxu0 %v4138
    %4952 = vmatprep.subr.mxu0 %v4145
    %4953 = vmatpush1.msra.mxu0 %v4144
    %4954 = vmatprep.subr.mxu0 %v4151
    %4955 = vmatpush1.msra.mxu0 %v4150
    %4956 = vmatprep.subr.mxu0 %v4157
    %4957 = vmatpush1.msra.mxu0 %v4156
    %4958 = vmatprep.subr.mxu0 %v4163
    %4959 = vmatpush1.msra.mxu0 %v4162
    %4960 = vmatprep.subr.mxu0 %v4169
    %4961 = vmatpush1.msra.mxu0 %v4168
    %4962 = vmatprep.subr.mxu0 %v4175
    %4963 = vmatpush1.msra.mxu0 %v4174
    %4964 = vmatprep.subr.mxu0 %v4181
    %4965 = vmatpush1.msra.mxu0 %v4180
    %4966 = vmatprep.subr.mxu0 %v4187
    %4967 = vmatpush1.msra.mxu0 %v4186
    %4968 = vmatprep.subr.mxu0 %v4193
    %4969 = vmatpush1.msra.mxu0 %v4192
    %4970 = vmatprep.subr.mxu0 %v4199
    %4971 = vmatpush1.msra.mxu0 %v4198
    %4972 = vmatprep.subr.mxu0 %v4205
    %4973 = vmatpush1.msra.mxu0 %v4204
    %4974 = vmatprep.subr.mxu0 %v4211
    %4975 = vmatpush1.msra.mxu0 %v4210
    %4976 = vmatprep.subr.mxu0 %v4217
    %4977 = vmatpush1.msra.mxu0 %v4216
    %4978 = vmatprep.subr.mxu0 %v4223
    %4979 = vmatpush1.msra.mxu0 %v4222
    %4980 = vmatprep.subr.mxu0 %v4229
    %4981 = vmatpush1.msra.mxu0 %v4228
    %4982 = vmatprep.subr.mxu0 %v4235
    %4983 = vmatpush1.msra.mxu0 %v4234
    %4984 = vmatprep.subr.mxu0 %v4241
    %4985 = vmatpush1.msra.mxu0 %v4240
    %4986 = vmatprep.subr.mxu0 %v4247
    %4987 = vmatpush1.msra.mxu0 %v4246
    %4988 = vmatprep.subr.mxu0 %v4253
    %4989 = vmatpush1.msra.mxu0 %v4252
    %4990 = vmatprep.subr.mxu0 %v4259
    %4991 = vmatpush1.msra.mxu0 %v4258
    %4992 = vmatprep.subr.mxu0 %v4265
    %4993 = vmatpush1.msra.mxu0 %v4264
    %4994 = vmatprep.mubr.f32.mxu0 %v4787
    %4995 = vmatmul.mubr.f32.gmra.mrb[0].mxu0 %v4786
    %v4996 = vpop.f32.mrb[0].mxu0
    %v4997 = vadd.f32 0.0, %v4996
    %v4998 = vpop.f32.mrb[0].mxu0
    %v4999 = vadd.f32 0.0, %v4998
    %5000 = vdwg.mxu0
    %v5001 = vadd.f32 %v4038, %v4855
    %v5002 = vadd.f32 %v4039, %v4857
    %v5003 = vadd.f32 %v4040, %v4926
    %v5004 = vadd.f32 %v4041, %v4928
    %v5005 = vxor.u32 %v5001, 2147483648
    %v5006 = vxor.u32 %v5002, 2147483648
    %v5007 = vxor.u32 %v5003, 2147483648
    %v5008 = vxor.u32 %v5004, 2147483648
    %v5009 = vmul.f32 %v5005, 1.442695
    %v5010 = vpow.pop %v5009
    %v5011 = vmul.f32 %v5006, 1.442695
    %v5012 = vpow.pop %v5011
    %v5013 = vmul.f32 %v5007, 1.442695
    %v5014 = vpow.pop %v5013
    %v5015 = vmul.f32 %v5008, 1.442695
    %v5016 = vpow.pop %v5015
    %v5017 = vadd.f32 %v5010, 1.0
    %v5018 = vadd.f32 %v5012, 1.0
    %v5019 = vadd.f32 %v5014, 1.0
    %v5020 = vadd.f32 %v5016, 1.0
    %v5021 = vrcp.pop %v5017
    %v5022 = vmul.f32 1.0, %v5021
    %v5023 = vrcp.pop %v5018
    %v5024 = vmul.f32 1.0, %v5023
    %v5025 = vrcp.pop %v5019
    %v5026 = vmul.f32 1.0, %v5025
    %v5027 = vrcp.pop %v5020
    %v5028 = vmul.f32 1.0, %v5027
    %v5029 = vadd.f32 %v4997, %v4271
    %v5030 = vadd.f32 %v4999, %v4275
    %v5031 = vmul.f32 %v5022, %v5029
    %v5032 = vmul.f32 %v5024, %v5030
    %v5033 = vadd.f32 %v4042, %v5031
    %v5034 = vadd.f32 %v4043, %v5032
    %v5035 = vtanh.pop %v5033
    %v5036 = vtanh.pop %v5034
    %v5037 = vsub.f32 %v4786, %v5035
    %v5038 = vsub.f32 %v4787, %v5036
    %v5039 = vmul.f32 %v5026, %v5037
    %v5040 = vmul.f32 %v5028, %v5038
    %v5041 = vadd.f32 %v5035, %v5039
    %v5042 = vadd.f32 %v5036, %v5040
    %5043 = vmatprep.subr.mxu0 %v4075
    %5044 = vmatpush1.msra.mxu0 %v4074
    %5045 = vmatprep.subr.mxu0 %v4081
    %5046 = vmatpush1.msra.mxu0 %v4080
    %5047 = vmatprep.subr.mxu0 %v4087
    %5048 = vmatpush1.msra.mxu0 %v4086
    %5049 = vmatprep.subr.mxu0 %v4093
    %5050 = vmatpush1.msra.mxu0 %v4092
    %5051 = vmatprep.subr.mxu0 %v4099
    %5052 = vmatpush1.msra.mxu0 %v4098
    %5053 = vmatprep.subr.mxu0 %v4105
    %5054 = vmatpush1.msra.mxu0 %v4104
    %5055 = vmatprep.subr.mxu0 %v4111
    %5056 = vmatpush1.msra.mxu0 %v4110
    %5057 = vmatprep.subr.mxu0 %v4117
    %5058 = vmatpush1.msra.mxu0 %v4116
    %5059 = vmatprep.subr.mxu0 %v4123
    %5060 = vmatpush1.msra.mxu0 %v4122
    %5061 = vmatprep.subr.mxu0 %v4129
    %5062 = vmatpush1.msra.mxu0 %v4128
    %5063 = vmatprep.subr.mxu0 %v4135
    %5064 = vmatpush1.msra.mxu0 %v4134
    %5065 = vmatprep.subr.mxu0 %v4141
    %5066 = vmatpush1.msra.mxu0 %v4140
    %5067 = vmatprep.subr.mxu0 %v4147
    %5068 = vmatpush1.msra.mxu0 %v4146
    %5069 = vmatprep.subr.mxu0 %v4153
    %5070 = vmatpush1.msra.mxu0 %v4152
    %5071 = vmatprep.subr.mxu0 %v4159
    %5072 = vmatpush1.msra.mxu0 %v4158
    %5073 = vmatprep.subr.mxu0 %v4165
    %5074 = vmatpush1.msra.mxu0 %v4164
    %5075 = vmatprep.subr.mxu0 %v4171
    %5076 = vmatpush1.msra.mxu0 %v4170
    %5077 = vmatprep.subr.mxu0 %v4177
    %5078 = vmatpush1.msra.mxu0 %v4176
    %5079 = vmatprep.subr.mxu0 %v4183
    %5080 = vmatpush1.msra.mxu0 %v4182
    %5081 = vmatprep.subr.mxu0 %v4189
    %5082 = vmatpush1.msra.mxu0 %v4188
    %5083 = vmatprep.subr.mxu0 %v4195
    %5084 = vmatpush1.msra.mxu0 %v4194
    %5085 = vmatprep.subr.mxu0 %v4201
    %5086 = vmatpush1.msra.mxu0 %v4200
    %5087 = vmatprep.subr.mxu0 %v4207
    %5088 = vmatpush1.msra.mxu0 %v4206
    %5089 = vmatprep.subr.mxu0 %v4213
    %5090 = vmatpush1.msra.mxu0 %v4212
    %5091 = vmatprep.subr.mxu0 %v4219
    %5092 = vmatpush1.msra.mxu0 %v4218
    %5093 = vmatprep.subr.mxu0 %v4225
    %5094 = vmatpush1.msra.mxu0 %v4224
    %5095 = vmatprep.subr.mxu0 %v4231
    %5096 = vmatpush1.msra.mxu0 %v4230
    %5097 = vmatprep.subr.mxu0 %v4237
    %5098 = vmatpush1.msra.mxu0 %v4236
    %5099 = vmatprep.subr.mxu0 %v4243
    %5100 = vmatpush1.msra.mxu0 %v4242
    %5101 = vmatprep.subr.mxu0 %v4249
    %5102 = vmatpush1.msra.mxu0 %v4248
    %5103 = vmatprep.subr.mxu0 %v4255
    %5104 = vmatpush1.msra.mxu0 %v4254
    %5105 = vmatprep.subr.mxu0 %v4261
    %5106 = vmatpush1.msra.mxu0 %v4260
    %5107 = vmatprep.mubr.f32.mxu0 %v5042
    %5108 = vmatmul.mubr.f32.gmra.mrb[0].mxu0 %v5041
    %v5109 = vpop.f32.mrb[0].mxu0
    %v5110 = vadd.f32 0.0, %v5109
    %v5111 = vpop.f32.mrb[0].mxu0
    %v5112 = vadd.f32 0.0, %v5111
    %5113 = vdwg.mxu0
    %5114 = vmatprep.subr.mxu0 %v4077
    %5115 = vmatpush1.msra.mxu0 %v4076
    %5116 = vmatprep.subr.mxu0 %v4083
    %5117 = vmatpush1.msra.mxu0 %v4082
    %5118 = vmatprep.subr.mxu0 %v4089
    %5119 = vmatpush1.msra.mxu0 %v4088
    %5120 = vmatprep.subr.mxu0 %v4095
    %5121 = vmatpush1.msra.mxu0 %v4094
    %5122 = vmatprep.subr.mxu0 %v4101
    %5123 = vmatpush1.msra.mxu0 %v4100
    %5124 = vmatprep.subr.mxu0 %v4107
    %5125 = vmatpush1.msra.mxu0 %v4106
    %5126 = vmatprep.subr.mxu0 %v4113
    %5127 = vmatpush1.msra.mxu0 %v4112
    %5128 = vmatprep.subr.mxu0 %v4119
    %5129 = vmatpush1.msra.mxu0 %v4118
    %5130 = vmatprep.subr.mxu0 %v4125
    %5131 = vmatpush1.msra.mxu0 %v4124
    %5132 = vmatprep.subr.mxu0 %v4131
    %5133 = vmatpush1.msra.mxu0 %v4130
    %5134 = vmatprep.subr.mxu0 %v4137
    %5135 = vmatpush1.msra.mxu0 %v4136
    %5136 = vmatprep.subr.mxu0 %v4143
    %5137 = vmatpush1.msra.mxu0 %v4142
    %5138 = vmatprep.subr.mxu0 %v4149
    %5139 = vmatpush1.msra.mxu0 %v4148
    %5140 = vmatprep.subr.mxu0 %v4155
    %5141 = vmatpush1.msra.mxu0 %v4154
    %5142 = vmatprep.subr.mxu0 %v4161
    %5143 = vmatpush1.msra.mxu0 %v4160
    %5144 = vmatprep.subr.mxu0 %v4167
    %5145 = vmatpush1.msra.mxu0 %v4166
    %5146 = vmatprep.subr.mxu0 %v4173
    %5147 = vmatpush1.msra.mxu0 %v4172
    %5148 = vmatprep.subr.mxu0 %v4179
    %5149 = vmatpush1.msra.mxu0 %v4178
    %5150 = vmatprep.subr.mxu0 %v4185
    %5151 = vmatpush1.msra.mxu0 %v4184
    %5152 = vmatprep.subr.mxu0 %v4191
    %5153 = vmatpush1.msra.mxu0 %v4190
    %5154 = vmatprep.subr.mxu0 %v4197
    %5155 = vmatpush1.msra.mxu0 %v4196
    %5156 = vmatprep.subr.mxu0 %v4203
    %5157 = vmatpush1.msra.mxu0 %v4202
    %5158 = vmatprep.subr.mxu0 %v4209
    %5159 = vmatpush1.msra.mxu0 %v4208
    %5160 = vmatprep.subr.mxu0 %v4215
    %5161 = vmatpush1.msra.mxu0 %v4214
    %5162 = vmatprep.subr.mxu0 %v4221
    %5163 = vmatpush1.msra.mxu0 %v4220
    %5164 = vmatprep.subr.mxu0 %v4227
    %5165 = vmatpush1.msra.mxu0 %v4226
    %5166 = vmatprep.subr.mxu0 %v4233
    %5167 = vmatpush1.msra.mxu0 %v4232
    %5168 = vmatprep.subr.mxu0 %v4239
    %5169 = vmatpush1.msra.mxu0 %v4238
    %5170 = vmatprep.subr.mxu0 %v4245
    %5171 = vmatpush1.msra.mxu0 %v4244
    %5172 = vmatprep.subr.mxu0 %v4251
    %5173 = vmatpush1.msra.mxu0 %v4250
    %5174 = vmatprep.subr.mxu0 %v4257
    %5175 = vmatpush1.msra.mxu0 %v4256
    %5176 = vmatprep.subr.mxu0 %v4263
    %5177 = vmatpush1.msra.mxu0 %v4262
    %5178 = vmatprep.mubr.f32.mxu0 %v5042
    %5179 = vmatmul.mubr.f32.gmra.mrb[0].mxu0 %v5041
    %v5180 = vpop.f32.mrb[0].mxu0
    %v5181 = vadd.f32 0.0, %v5180
    %v5182 = vpop.f32.mrb[0].mxu0
    %v5183 = vadd.f32 0.0, %v5182
    %5184 = vdwg.mxu0
    %5185 = vmatprep.subr.mxu0 %v4079
    %5186 = vmatpush1.msra.mxu0 %v4078
    %5187 = vmatprep.subr.mxu0 %v4085
    %5188 = vmatpush1.msra.mxu0 %v4084
    %5189 = vmatprep.subr.mxu0 %v4091
    %5190 = vmatpush1.msra.mxu0 %v4090
    %5191 = vmatprep.subr.mxu0 %v4097
    %5192 = vmatpush1.msra.mxu0 %v4096
    %5193 = vmatprep.subr.mxu0 %v4103
    %5194 = vmatpush1.msra.mxu0 %v4102
    %5195 = vmatprep.subr.mxu0 %v4109
    %5196 = vmatpush1.msra.mxu0 %v4108
    %5197 = vmatprep.subr.mxu0 %v4115
    %5198 = vmatpush1.msra.mxu0 %v4114
    %5199 = vmatprep.subr.mxu0 %v4121
    %5200 = vmatpush1.msra.mxu0 %v4120
    %5201 = vmatprep.subr.mxu0 %v4127
    %5202 = vmatpush1.msra.mxu0 %v4126
    %5203 = vmatprep.subr.mxu0 %v4133
    %5204 = vmatpush1.msra.mxu0 %v4132
    %5205 = vmatprep.subr.mxu0 %v4139
    %5206 = vmatpush1.msra.mxu0 %v4138
    %5207 = vmatprep.subr.mxu0 %v4145
    %5208 = vmatpush1.msra.mxu0 %v4144
    %5209 = vmatprep.subr.mxu0 %v4151
    %5210 = vmatpush1.msra.mxu0 %v4150
    %5211 = vmatprep.subr.mxu0 %v4157
    %5212 = vmatpush1.msra.mxu0 %v4156
    %5213 = vmatprep.subr.mxu0 %v4163
    %5214 = vmatpush1.msra.mxu0 %v4162
    %5215 = vmatprep.subr.mxu0 %v4169
    %5216 = vmatpush1.msra.mxu0 %v4168
    %5217 = vmatprep.subr.mxu0 %v4175
    %5218 = vmatpush1.msra.mxu0 %v4174
    %5219 = vmatprep.subr.mxu0 %v4181
    %5220 = vmatpush1.msra.mxu0 %v4180
    %5221 = vmatprep.subr.mxu0 %v4187
    %5222 = vmatpush1.msra.mxu0 %v4186
    %5223 = vmatprep.subr.mxu0 %v4193
    %5224 = vmatpush1.msra.mxu0 %v4192
    %5225 = vmatprep.subr.mxu0 %v4199
    %5226 = vmatpush1.msra.mxu0 %v4198
    %5227 = vmatprep.subr.mxu0 %v4205
    %5228 = vmatpush1.msra.mxu0 %v4204
    %5229 = vmatprep.subr.mxu0 %v4211
    %5230 = vmatpush1.msra.mxu0 %v4210
    %5231 = vmatprep.subr.mxu0 %v4217
    %5232 = vmatpush1.msra.mxu0 %v4216
    %5233 = vmatprep.subr.mxu0 %v4223
    %5234 = vmatpush1.msra.mxu0 %v4222
    %5235 = vmatprep.subr.mxu0 %v4229
    %5236 = vmatpush1.msra.mxu0 %v4228
    %5237 = vmatprep.subr.mxu0 %v4235
    %5238 = vmatpush1.msra.mxu0 %v4234
    %5239 = vmatprep.subr.mxu0 %v4241
    %5240 = vmatpush1.msra.mxu0 %v4240
    %5241 = vmatprep.subr.mxu0 %v4247
    %5242 = vmatpush1.msra.mxu0 %v4246
    %5243 = vmatprep.subr.mxu0 %v4253
    %5244 = vmatpush1.msra.mxu0 %v4252
    %5245 = vmatprep.subr.mxu0 %v4259
    %5246 = vmatpush1.msra.mxu0 %v4258
    %5247 = vmatprep.subr.mxu0 %v4265
    %5248 = vmatpush1.msra.mxu0 %v4264
    %5249 = vmatprep.mubr.f32.mxu0 %v5042
    %5250 = vmatmul.mubr.f32.gmra.mrb[0].mxu0 %v5041
    %v5251 = vpop.f32.mrb[0].mxu0
    %v5252 = vadd.f32 0.0, %v5251
    %v5253 = vpop.f32.mrb[0].mxu0
    %v5254 = vadd.f32 0.0, %v5253
    %5255 = vdwg.mxu0
    %v5256 = vadd.f32 %v4044, %v5110
    %v5257 = vadd.f32 %v4045, %v5112
    %v5258 = vadd.f32 %v4046, %v5181
    %v5259 = vadd.f32 %v4047, %v5183
    %v5260 = vxor.u32 %v5256, 2147483648
    %v5261 = vxor.u32 %v5257, 2147483648
    %v5262 = vxor.u32 %v5258, 2147483648
    %v5263 = vxor.u32 %v5259, 2147483648
    %v5264 = vmul.f32 %v5260, 1.442695
    %v5265 = vpow.pop %v5264
    %v5266 = vmul.f32 %v5261, 1.442695
    %v5267 = vpow.pop %v5266
    %v5268 = vmul.f32 %v5262, 1.442695
    %v5269 = vpow.pop %v5268
    %v5270 = vmul.f32 %v5263, 1.442695
    %v5271 = vpow.pop %v5270
    %v5272 = vadd.f32 %v5265, 1.0
    %v5273 = vadd.f32 %v5267, 1.0
    %v5274 = vadd.f32 %v5269, 1.0
    %v5275 = vadd.f32 %v5271, 1.0
    %v5276 = vrcp.pop %v5272
    %v5277 = vmul.f32 1.0, %v5276
    %v5278 = vrcp.pop %v5273
    %v5279 = vmul.f32 1.0, %v5278
    %v5280 = vrcp.pop %v5274
    %v5281 = vmul.f32 1.0, %v5280
    %v5282 = vrcp.pop %v5275
    %v5283 = vmul.f32 1.0, %v5282
    %v5284 = vadd.f32 %v5252, %v4271
    %v5285 = vadd.f32 %v5254, %v4275
    %v5286 = vmul.f32 %v5277, %v5284
    %v5287 = vmul.f32 %v5279, %v5285
    %v5288 = vadd.f32 %v4048, %v5286
    %v5289 = vadd.f32 %v4049, %v5287
    %v5290 = vtanh.pop %v5288
    %v5291 = vtanh.pop %v5289
    %v5292 = vsub.f32 %v5041, %v5290
    %v5293 = vsub.f32 %v5042, %v5291
    %v5294 = vmul.f32 %v5281, %v5292
    %v5295 = vmul.f32 %v5283, %v5293
    %v5296 = vadd.f32 %v5290, %v5294
    %v5297 = vadd.f32 %v5291, %v5295
    %5298 = vmatprep.subr.mxu0 %v4075
    %5299 = vmatpush1.msra.mxu0 %v4074
    %5300 = vmatprep.subr.mxu0 %v4081
    %5301 = vmatpush1.msra.mxu0 %v4080
    %5302 = vmatprep.subr.mxu0 %v4087
    %5303 = vmatpush1.msra.mxu0 %v4086
    %5304 = vmatprep.subr.mxu0 %v4093
    %5305 = vmatpush1.msra.mxu0 %v4092
    %5306 = vmatprep.subr.mxu0 %v4099
    %5307 = vmatpush1.msra.mxu0 %v4098
    %5308 = vmatprep.subr.mxu0 %v4105
    %5309 = vmatpush1.msra.mxu0 %v4104
    %5310 = vmatprep.subr.mxu0 %v4111
    %5311 = vmatpush1.msra.mxu0 %v4110
    %5312 = vmatprep.subr.mxu0 %v4117
    %5313 = vmatpush1.msra.mxu0 %v4116
    %5314 = vmatprep.subr.mxu0 %v4123
    %5315 = vmatpush1.msra.mxu0 %v4122
    %5316 = vmatprep.subr.mxu0 %v4129
    %5317 = vmatpush1.msra.mxu0 %v4128
    %5318 = vmatprep.subr.mxu0 %v4135
    %5319 = vmatpush1.msra.mxu0 %v4134
    %5320 = vmatprep.subr.mxu0 %v4141
    %5321 = vmatpush1.msra.mxu0 %v4140
    %5322 = vmatprep.subr.mxu0 %v4147
    %5323 = vmatpush1.msra.mxu0 %v4146
    %5324 = vmatprep.subr.mxu0 %v4153
    %5325 = vmatpush1.msra.mxu0 %v4152
    %5326 = vmatprep.subr.mxu0 %v4159
    %5327 = vmatpush1.msra.mxu0 %v4158
    %5328 = vmatprep.subr.mxu0 %v4165
    %5329 = vmatpush1.msra.mxu0 %v4164
    %5330 = vmatprep.subr.mxu0 %v4171
    %5331 = vmatpush1.msra.mxu0 %v4170
    %5332 = vmatprep.subr.mxu0 %v4177
    %5333 = vmatpush1.msra.mxu0 %v4176
    %5334 = vmatprep.subr.mxu0 %v4183
    %5335 = vmatpush1.msra.mxu0 %v4182
    %5336 = vmatprep.subr.mxu0 %v4189
    %5337 = vmatpush1.msra.mxu0 %v4188
    %5338 = vmatprep.subr.mxu0 %v4195
    %5339 = vmatpush1.msra.mxu0 %v4194
    %5340 = vmatprep.subr.mxu0 %v4201
    %5341 = vmatpush1.msra.mxu0 %v4200
    %5342 = vmatprep.subr.mxu0 %v4207
    %5343 = vmatpush1.msra.mxu0 %v4206
    %5344 = vmatprep.subr.mxu0 %v4213
    %5345 = vmatpush1.msra.mxu0 %v4212
    %5346 = vmatprep.subr.mxu0 %v4219
    %5347 = vmatpush1.msra.mxu0 %v4218
    %5348 = vmatprep.subr.mxu0 %v4225
    %5349 = vmatpush1.msra.mxu0 %v4224
    %5350 = vmatprep.subr.mxu0 %v4231
    %5351 = vmatpush1.msra.mxu0 %v4230
    %5352 = vmatprep.subr.mxu0 %v4237
    %5353 = vmatpush1.msra.mxu0 %v4236
    %5354 = vmatprep.subr.mxu0 %v4243
    %5355 = vmatpush1.msra.mxu0 %v4242
    %5356 = vmatprep.subr.mxu0 %v4249
    %5357 = vmatpush1.msra.mxu0 %v4248
    %5358 = vmatprep.subr.mxu0 %v4255
    %5359 = vmatpush1.msra.mxu0 %v4254
    %5360 = vmatprep.subr.mxu0 %v4261
    %5361 = vmatpush1.msra.mxu0 %v4260
    %5362 = vmatprep.mubr.f32.mxu0 %v5297
    %5363 = vmatmul.mubr.f32.gmra.mrb[0].mxu0 %v5296
    %v5364 = vpop.f32.mrb[0].mxu0
    %v5365 = vadd.f32 0.0, %v5364
    %v5366 = vpop.f32.mrb[0].mxu0
    %v5367 = vadd.f32 0.0, %v5366
    %5368 = vdwg.mxu0
    %5369 = vmatprep.subr.mxu0 %v4077
    %5370 = vmatpush1.msra.mxu0 %v4076
    %5371 = vmatprep.subr.mxu0 %v4083
    %5372 = vmatpush1.msra.mxu0 %v4082
    %5373 = vmatprep.subr.mxu0 %v4089
    %5374 = vmatpush1.msra.mxu0 %v4088
    %5375 = vmatprep.subr.mxu0 %v4095
    %5376 = vmatpush1.msra.mxu0 %v4094
    %5377 = vmatprep.subr.mxu0 %v4101
    %5378 = vmatpush1.msra.mxu0 %v4100
    %5379 = vmatprep.subr.mxu0 %v4107
    %5380 = vmatpush1.msra.mxu0 %v4106
    %5381 = vmatprep.subr.mxu0 %v4113
    %5382 = vmatpush1.msra.mxu0 %v4112
    %5383 = vmatprep.subr.mxu0 %v4119
    %5384 = vmatpush1.msra.mxu0 %v4118
    %5385 = vmatprep.subr.mxu0 %v4125
    %5386 = vmatpush1.msra.mxu0 %v4124
    %5387 = vmatprep.subr.mxu0 %v4131
    %5388 = vmatpush1.msra.mxu0 %v4130
    %5389 = vmatprep.subr.mxu0 %v4137
    %5390 = vmatpush1.msra.mxu0 %v4136
    %5391 = vmatprep.subr.mxu0 %v4143
    %5392 = vmatpush1.msra.mxu0 %v4142
    %5393 = vmatprep.subr.mxu0 %v4149
    %5394 = vmatpush1.msra.mxu0 %v4148
    %5395 = vmatprep.subr.mxu0 %v4155
    %5396 = vmatpush1.msra.mxu0 %v4154
    %5397 = vmatprep.subr.mxu0 %v4161
    %5398 = vmatpush1.msra.mxu0 %v4160
    %5399 = vmatprep.subr.mxu0 %v4167
    %5400 = vmatpush1.msra.mxu0 %v4166
    %5401 = vmatprep.subr.mxu0 %v4173
    %5402 = vmatpush1.msra.mxu0 %v4172
    %5403 = vmatprep.subr.mxu0 %v4179
    %5404 = vmatpush1.msra.mxu0 %v4178
    %5405 = vmatprep.subr.mxu0 %v4185
    %5406 = vmatpush1.msra.mxu0 %v4184
    %5407 = vmatprep.subr.mxu0 %v4191
    %5408 = vmatpush1.msra.mxu0 %v4190
    %5409 = vmatprep.subr.mxu0 %v4197
    %5410 = vmatpush1.msra.mxu0 %v4196
    %5411 = vmatprep.subr.mxu0 %v4203
    %5412 = vmatpush1.msra.mxu0 %v4202
    %5413 = vmatprep.subr.mxu0 %v4209
    %5414 = vmatpush1.msra.mxu0 %v4208
    %5415 = vmatprep.subr.mxu0 %v4215
    %5416 = vmatpush1.msra.mxu0 %v4214
    %5417 = vmatprep.subr.mxu0 %v4221
    %5418 = vmatpush1.msra.mxu0 %v4220
    %5419 = vmatprep.subr.mxu0 %v4227
    %5420 = vmatpush1.msra.mxu0 %v4226
    %5421 = vmatprep.subr.mxu0 %v4233
    %5422 = vmatpush1.msra.mxu0 %v4232
    %5423 = vmatprep.subr.mxu0 %v4239
    %5424 = vmatpush1.msra.mxu0 %v4238
    %5425 = vmatprep.subr.mxu0 %v4245
    %5426 = vmatpush1.msra.mxu0 %v4244
    %5427 = vmatprep.subr.mxu0 %v4251
    %5428 = vmatpush1.msra.mxu0 %v4250
    %5429 = vmatprep.subr.mxu0 %v4257
    %5430 = vmatpush1.msra.mxu0 %v4256
    %5431 = vmatprep.subr.mxu0 %v4263
    %5432 = vmatpush1.msra.mxu0 %v4262
    %5433 = vmatprep.mubr.f32.mxu0 %v5297
    %5434 = vmatmul.mubr.f32.gmra.mrb[0].mxu0 %v5296
    %v5435 = vpop.f32.mrb[0].mxu0
    %v5436 = vadd.f32 0.0, %v5435
    %v5437 = vpop.f32.mrb[0].mxu0
    %v5438 = vadd.f32 0.0, %v5437
    %5439 = vdwg.mxu0
    %5440 = vmatprep.subr.mxu0 %v4079
    %5441 = vmatpush1.msra.mxu0 %v4078
    %5442 = vmatprep.subr.mxu0 %v4085
    %5443 = vmatpush1.msra.mxu0 %v4084
    %5444 = vmatprep.subr.mxu0 %v4091
    %5445 = vmatpush1.msra.mxu0 %v4090
    %5446 = vmatprep.subr.mxu0 %v4097
    %5447 = vmatpush1.msra.mxu0 %v4096
    %5448 = vmatprep.subr.mxu0 %v4103
    %5449 = vmatpush1.msra.mxu0 %v4102
    %5450 = vmatprep.subr.mxu0 %v4109
    %5451 = vmatpush1.msra.mxu0 %v4108
    %5452 = vmatprep.subr.mxu0 %v4115
    %5453 = vmatpush1.msra.mxu0 %v4114
    %5454 = vmatprep.subr.mxu0 %v4121
    %5455 = vmatpush1.msra.mxu0 %v4120
    %5456 = vmatprep.subr.mxu0 %v4127
    %5457 = vmatpush1.msra.mxu0 %v4126
    %5458 = vmatprep.subr.mxu0 %v4133
    %5459 = vmatpush1.msra.mxu0 %v4132
    %5460 = vmatprep.subr.mxu0 %v4139
    %5461 = vmatpush1.msra.mxu0 %v4138
    %5462 = vmatprep.subr.mxu0 %v4145
    %5463 = vmatpush1.msra.mxu0 %v4144
    %5464 = vmatprep.subr.mxu0 %v4151
    %5465 = vmatpush1.msra.mxu0 %v4150
    %5466 = vmatprep.subr.mxu0 %v4157
    %5467 = vmatpush1.msra.mxu0 %v4156
    %5468 = vmatprep.subr.mxu0 %v4163
    %5469 = vmatpush1.msra.mxu0 %v4162
    %5470 = vmatprep.subr.mxu0 %v4169
    %5471 = vmatpush1.msra.mxu0 %v4168
    %5472 = vmatprep.subr.mxu0 %v4175
    %5473 = vmatpush1.msra.mxu0 %v4174
    %5474 = vmatprep.subr.mxu0 %v4181
    %5475 = vmatpush1.msra.mxu0 %v4180
    %5476 = vmatprep.subr.mxu0 %v4187
    %5477 = vmatpush1.msra.mxu0 %v4186
    %5478 = vmatprep.subr.mxu0 %v4193
    %5479 = vmatpush1.msra.mxu0 %v4192
    %5480 = vmatprep.subr.mxu0 %v4199
    %5481 = vmatpush1.msra.mxu0 %v4198
    %5482 = vmatprep.subr.mxu0 %v4205
    %5483 = vmatpush1.msra.mxu0 %v4204
    %5484 = vmatprep.subr.mxu0 %v4211
    %5485 = vmatpush1.msra.mxu0 %v4210
    %5486 = vmatprep.subr.mxu0 %v4217
    %5487 = vmatpush1.msra.mxu0 %v4216
    %5488 = vmatprep.subr.mxu0 %v4223
    %5489 = vmatpush1.msra.mxu0 %v4222
    %5490 = vmatprep.subr.mxu0 %v4229
    %5491 = vmatpush1.msra.mxu0 %v4228
    %5492 = vmatprep.subr.mxu0 %v4235
    %5493 = vmatpush1.msra.mxu0 %v4234
    %5494 = vmatprep.subr.mxu0 %v4241
    %5495 = vmatpush1.msra.mxu0 %v4240
    %5496 = vmatprep.subr.mxu0 %v4247
    %5497 = vmatpush1.msra.mxu0 %v4246
    %5498 = vmatprep.subr.mxu0 %v4253
    %5499 = vmatpush1.msra.mxu0 %v4252
    %5500 = vmatprep.subr.mxu0 %v4259
    %5501 = vmatpush1.msra.mxu0 %v4258
    %5502 = vmatprep.subr.mxu0 %v4265
    %5503 = vmatpush1.msra.mxu0 %v4264
    %5504 = vmatprep.mubr.f32.mxu0 %v5297
    %5505 = vmatmul.mubr.f32.gmra.mrb[0].mxu0 %v5296
    %v5506 = vpop.f32.mrb[0].mxu0
    %v5507 = vadd.f32 0.0, %v5506
    %v5508 = vpop.f32.mrb[0].mxu0
    %v5509 = vadd.f32 0.0, %v5508
    %5510 = vdwg.mxu0
    %v5511 = vadd.f32 %v4050, %v5365
    %v5512 = vadd.f32 %v4051, %v5367
    %v5513 = vadd.f32 %v4052, %v5436
    %v5514 = vadd.f32 %v4053, %v5438
    %v5515 = vxor.u32 %v5511, 2147483648
    %v5516 = vxor.u32 %v5512, 2147483648
    %v5517 = vxor.u32 %v5513, 2147483648
    %v5518 = vxor.u32 %v5514, 2147483648
    %v5519 = vmul.f32 %v5515, 1.442695
    %v5520 = vpow.pop %v5519
    %v5521 = vmul.f32 %v5516, 1.442695
    %v5522 = vpow.pop %v5521
    %v5523 = vmul.f32 %v5517, 1.442695
    %v5524 = vpow.pop %v5523
    %v5525 = vmul.f32 %v5518, 1.442695
    %v5526 = vpow.pop %v5525
    %v5527 = vadd.f32 %v5520, 1.0
    %v5528 = vadd.f32 %v5522, 1.0
    %v5529 = vadd.f32 %v5524, 1.0
    %v5530 = vadd.f32 %v5526, 1.0
    %v5531 = vrcp.pop %v5527
    %v5532 = vmul.f32 1.0, %v5531
    %v5533 = vrcp.pop %v5528
    %v5534 = vmul.f32 1.0, %v5533
    %v5535 = vrcp.pop %v5529
    %v5536 = vmul.f32 1.0, %v5535
    %v5537 = vrcp.pop %v5530
    %v5538 = vmul.f32 1.0, %v5537
    %v5539 = vadd.f32 %v5507, %v4271
    %v5540 = vadd.f32 %v5509, %v4275
    %v5541 = vmul.f32 %v5532, %v5539
    %v5542 = vmul.f32 %v5534, %v5540
    %v5543 = vadd.f32 %v4054, %v5541
    %v5544 = vadd.f32 %v4055, %v5542
    %v5545 = vtanh.pop %v5543
    %v5546 = vtanh.pop %v5544
    %v5547 = vsub.f32 %v5296, %v5545
    %v5548 = vsub.f32 %v5297, %v5546
    %v5549 = vmul.f32 %v5536, %v5547
    %v5550 = vmul.f32 %v5538, %v5548
    %v5551 = vadd.f32 %v5545, %v5549
    %v5552 = vadd.f32 %v5546, %v5550
    %5553 = vmatprep.subr.mxu0 %v4075
    %5554 = vmatpush1.msra.mxu0 %v4074
    %5555 = vmatprep.subr.mxu0 %v4081
    %5556 = vmatpush1.msra.mxu0 %v4080
    %5557 = vmatprep.subr.mxu0 %v4087
    %5558 = vmatpush1.msra.mxu0 %v4086
    %5559 = vmatprep.subr.mxu0 %v4093
    %5560 = vmatpush1.msra.mxu0 %v4092
    %5561 = vmatprep.subr.mxu0 %v4099
    %5562 = vmatpush1.msra.mxu0 %v4098
    %5563 = vmatprep.subr.mxu0 %v4105
    %5564 = vmatpush1.msra.mxu0 %v4104
    %5565 = vmatprep.subr.mxu0 %v4111
    %5566 = vmatpush1.msra.mxu0 %v4110
    %5567 = vmatprep.subr.mxu0 %v4117
    %5568 = vmatpush1.msra.mxu0 %v4116
    %5569 = vmatprep.subr.mxu0 %v4123
    %5570 = vmatpush1.msra.mxu0 %v4122
    %5571 = vmatprep.subr.mxu0 %v4129
    %5572 = vmatpush1.msra.mxu0 %v4128
    %5573 = vmatprep.subr.mxu0 %v4135
    %5574 = vmatpush1.msra.mxu0 %v4134
    %5575 = vmatprep.subr.mxu0 %v4141
    %5576 = vmatpush1.msra.mxu0 %v4140
    %5577 = vmatprep.subr.mxu0 %v4147
    %5578 = vmatpush1.msra.mxu0 %v4146
    %5579 = vmatprep.subr.mxu0 %v4153
    %5580 = vmatpush1.msra.mxu0 %v4152
    %5581 = vmatprep.subr.mxu0 %v4159
    %5582 = vmatpush1.msra.mxu0 %v4158
    %5583 = vmatprep.subr.mxu0 %v4165
    %5584 = vmatpush1.msra.mxu0 %v4164
    %5585 = vmatprep.subr.mxu0 %v4171
    %5586 = vmatpush1.msra.mxu0 %v4170
    %5587 = vmatprep.subr.mxu0 %v4177
    %5588 = vmatpush1.msra.mxu0 %v4176
    %5589 = vmatprep.subr.mxu0 %v4183
    %5590 = vmatpush1.msra.mxu0 %v4182
    %5591 = vmatprep.subr.mxu0 %v4189
    %5592 = vmatpush1.msra.mxu0 %v4188
    %5593 = vmatprep.subr.mxu0 %v4195
    %5594 = vmatpush1.msra.mxu0 %v4194
    %5595 = vmatprep.subr.mxu0 %v4201
    %5596 = vmatpush1.msra.mxu0 %v4200
    %5597 = vmatprep.subr.mxu0 %v4207
    %5598 = vmatpush1.msra.mxu0 %v4206
    %5599 = vmatprep.subr.mxu0 %v4213
    %5600 = vmatpush1.msra.mxu0 %v4212
    %5601 = vmatprep.subr.mxu0 %v4219
    %5602 = vmatpush1.msra.mxu0 %v4218
    %5603 = vmatprep.subr.mxu0 %v4225
    %5604 = vmatpush1.msra.mxu0 %v4224
    %5605 = vmatprep.subr.mxu0 %v4231
    %5606 = vmatpush1.msra.mxu0 %v4230
    %5607 = vmatprep.subr.mxu0 %v4237
    %5608 = vmatpush1.msra.mxu0 %v4236
    %5609 = vmatprep.subr.mxu0 %v4243
    %5610 = vmatpush1.msra.mxu0 %v4242
    %5611 = vmatprep.subr.mxu0 %v4249
    %5612 = vmatpush1.msra.mxu0 %v4248
    %5613 = vmatprep.subr.mxu0 %v4255
    %5614 = vmatpush1.msra.mxu0 %v4254
    %5615 = vmatprep.subr.mxu0 %v4261
    %5616 = vmatpush1.msra.mxu0 %v4260
    %5617 = vmatprep.mubr.f32.mxu0 %v5552
    %5618 = vmatmul.mubr.f32.gmra.mrb[0].mxu0 %v5551
    %v5619 = vpop.f32.mrb[0].mxu0
    %v5620 = vadd.f32 0.0, %v5619
    %v5621 = vpop.f32.mrb[0].mxu0
    %v5622 = vadd.f32 0.0, %v5621
    %5623 = vdwg.mxu0
    %5624 = vmatprep.subr.mxu0 %v4077
    %5625 = vmatpush1.msra.mxu0 %v4076
    %5626 = vmatprep.subr.mxu0 %v4083
    %5627 = vmatpush1.msra.mxu0 %v4082
    %5628 = vmatprep.subr.mxu0 %v4089
    %5629 = vmatpush1.msra.mxu0 %v4088
    %5630 = vmatprep.subr.mxu0 %v4095
    %5631 = vmatpush1.msra.mxu0 %v4094
    %5632 = vmatprep.subr.mxu0 %v4101
    %5633 = vmatpush1.msra.mxu0 %v4100
    %5634 = vmatprep.subr.mxu0 %v4107
    %5635 = vmatpush1.msra.mxu0 %v4106
    %5636 = vmatprep.subr.mxu0 %v4113
    %5637 = vmatpush1.msra.mxu0 %v4112
    %5638 = vmatprep.subr.mxu0 %v4119
    %5639 = vmatpush1.msra.mxu0 %v4118
    %5640 = vmatprep.subr.mxu0 %v4125
    %5641 = vmatpush1.msra.mxu0 %v4124
    %5642 = vmatprep.subr.mxu0 %v4131
    %5643 = vmatpush1.msra.mxu0 %v4130
    %5644 = vmatprep.subr.mxu0 %v4137
    %5645 = vmatpush1.msra.mxu0 %v4136
    %5646 = vmatprep.subr.mxu0 %v4143
    %5647 = vmatpush1.msra.mxu0 %v4142
    %5648 = vmatprep.subr.mxu0 %v4149
    %5649 = vmatpush1.msra.mxu0 %v4148
    %5650 = vmatprep.subr.mxu0 %v4155
    %5651 = vmatpush1.msra.mxu0 %v4154
    %5652 = vmatprep.subr.mxu0 %v4161
    %5653 = vmatpush1.msra.mxu0 %v4160
    %5654 = vmatprep.subr.mxu0 %v4167
    %5655 = vmatpush1.msra.mxu0 %v4166
    %5656 = vmatprep.subr.mxu0 %v4173
    %5657 = vmatpush1.msra.mxu0 %v4172
    %5658 = vmatprep.subr.mxu0 %v4179
    %5659 = vmatpush1.msra.mxu0 %v4178
    %5660 = vmatprep.subr.mxu0 %v4185
    %5661 = vmatpush1.msra.mxu0 %v4184
    %5662 = vmatprep.subr.mxu0 %v4191
    %5663 = vmatpush1.msra.mxu0 %v4190
    %5664 = vmatprep.subr.mxu0 %v4197
    %5665 = vmatpush1.msra.mxu0 %v4196
    %5666 = vmatprep.subr.mxu0 %v4203
    %5667 = vmatpush1.msra.mxu0 %v4202
    %5668 = vmatprep.subr.mxu0 %v4209
    %5669 = vmatpush1.msra.mxu0 %v4208
    %5670 = vmatprep.subr.mxu0 %v4215
    %5671 = vmatpush1.msra.mxu0 %v4214
    %5672 = vmatprep.subr.mxu0 %v4221
    %5673 = vmatpush1.msra.mxu0 %v4220
    %5674 = vmatprep.subr.mxu0 %v4227
    %5675 = vmatpush1.msra.mxu0 %v4226
    %5676 = vmatprep.subr.mxu0 %v4233
    %5677 = vmatpush1.msra.mxu0 %v4232
    %5678 = vmatprep.subr.mxu0 %v4239
    %5679 = vmatpush1.msra.mxu0 %v4238
    %5680 = vmatprep.subr.mxu0 %v4245
    %5681 = vmatpush1.msra.mxu0 %v4244
    %5682 = vmatprep.subr.mxu0 %v4251
    %5683 = vmatpush1.msra.mxu0 %v4250
    %5684 = vmatprep.subr.mxu0 %v4257
    %5685 = vmatpush1.msra.mxu0 %v4256
    %5686 = vmatprep.subr.mxu0 %v4263
    %5687 = vmatpush1.msra.mxu0 %v4262
    %5688 = vmatprep.mubr.f32.mxu0 %v5552
    %5689 = vmatmul.mubr.f32.gmra.mrb[0].mxu0 %v5551
    %v5690 = vpop.f32.mrb[0].mxu0
    %v5691 = vadd.f32 0.0, %v5690
    %v5692 = vpop.f32.mrb[0].mxu0
    %v5693 = vadd.f32 0.0, %v5692
    %5694 = vdwg.mxu0
    %5695 = vmatprep.subr.mxu0 %v4079
    %5696 = vmatpush1.msra.mxu0 %v4078
    %5697 = vmatprep.subr.mxu0 %v4085
    %5698 = vmatpush1.msra.mxu0 %v4084
    %5699 = vmatprep.subr.mxu0 %v4091
    %5700 = vmatpush1.msra.mxu0 %v4090
    %5701 = vmatprep.subr.mxu0 %v4097
    %5702 = vmatpush1.msra.mxu0 %v4096
    %5703 = vmatprep.subr.mxu0 %v4103
    %5704 = vmatpush1.msra.mxu0 %v4102
    %5705 = vmatprep.subr.mxu0 %v4109
    %5706 = vmatpush1.msra.mxu0 %v4108
    %5707 = vmatprep.subr.mxu0 %v4115
    %5708 = vmatpush1.msra.mxu0 %v4114
    %5709 = vmatprep.subr.mxu0 %v4121
    %5710 = vmatpush1.msra.mxu0 %v4120
    %5711 = vmatprep.subr.mxu0 %v4127
    %5712 = vmatpush1.msra.mxu0 %v4126
    %5713 = vmatprep.subr.mxu0 %v4133
    %5714 = vmatpush1.msra.mxu0 %v4132
    %5715 = vmatprep.subr.mxu0 %v4139
    %5716 = vmatpush1.msra.mxu0 %v4138
    %5717 = vmatprep.subr.mxu0 %v4145
    %5718 = vmatpush1.msra.mxu0 %v4144
    %5719 = vmatprep.subr.mxu0 %v4151
    %5720 = vmatpush1.msra.mxu0 %v4150
    %5721 = vmatprep.subr.mxu0 %v4157
    %5722 = vmatpush1.msra.mxu0 %v4156
    %5723 = vmatprep.subr.mxu0 %v4163
    %5724 = vmatpush1.msra.mxu0 %v4162
    %5725 = vmatprep.subr.mxu0 %v4169
    %5726 = vmatpush1.msra.mxu0 %v4168
    %5727 = vmatprep.subr.mxu0 %v4175
    %5728 = vmatpush1.msra.mxu0 %v4174
    %5729 = vmatprep.subr.mxu0 %v4181
    %5730 = vmatpush1.msra.mxu0 %v4180
    %5731 = vmatprep.subr.mxu0 %v4187
    %5732 = vmatpush1.msra.mxu0 %v4186
    %5733 = vmatprep.subr.mxu0 %v4193
    %5734 = vmatpush1.msra.mxu0 %v4192
    %5735 = vmatprep.subr.mxu0 %v4199
    %5736 = vmatpush1.msra.mxu0 %v4198
    %5737 = vmatprep.subr.mxu0 %v4205
    %5738 = vmatpush1.msra.mxu0 %v4204
    %5739 = vmatprep.subr.mxu0 %v4211
    %5740 = vmatpush1.msra.mxu0 %v4210
    %5741 = vmatprep.subr.mxu0 %v4217
    %5742 = vmatpush1.msra.mxu0 %v4216
    %5743 = vmatprep.subr.mxu0 %v4223
    %5744 = vmatpush1.msra.mxu0 %v4222
    %5745 = vmatprep.subr.mxu0 %v4229
    %5746 = vmatpush1.msra.mxu0 %v4228
    %5747 = vmatprep.subr.mxu0 %v4235
    %5748 = vmatpush1.msra.mxu0 %v4234
    %5749 = vmatprep.subr.mxu0 %v4241
    %5750 = vmatpush1.msra.mxu0 %v4240
    %5751 = vmatprep.subr.mxu0 %v4247
    %5752 = vmatpush1.msra.mxu0 %v4246
    %5753 = vmatprep.subr.mxu0 %v4253
    %5754 = vmatpush1.msra.mxu0 %v4252
    %5755 = vmatprep.subr.mxu0 %v4259
    %5756 = vmatpush1.msra.mxu0 %v4258
    %5757 = vmatprep.subr.mxu0 %v4265
    %5758 = vmatpush1.msra.mxu0 %v4264
    %5759 = vmatprep.mubr.f32.mxu0 %v5552
    %5760 = vmatmul.mubr.f32.gmra.mrb[0].mxu0 %v5551
    %v5761 = vpop.f32.mrb[0].mxu0
    %v5762 = vadd.f32 0.0, %v5761
    %v5763 = vpop.f32.mrb[0].mxu0
    %v5764 = vadd.f32 0.0, %v5763
    %5765 = vdwg.mxu0
    %v5766 = vadd.f32 %v4056, %v5620
    %v5767 = vadd.f32 %v4057, %v5622
    %v5768 = vadd.f32 %v4058, %v5691
    %v5769 = vadd.f32 %v4059, %v5693
    %v5770 = vxor.u32 %v5766, 2147483648
    %v5771 = vxor.u32 %v5767, 2147483648
    %v5772 = vxor.u32 %v5768, 2147483648
    %v5773 = vxor.u32 %v5769, 2147483648
    %v5774 = vmul.f32 %v5770, 1.442695
    %v5775 = vpow.pop %v5774
    %v5776 = vmul.f32 %v5771, 1.442695
    %v5777 = vpow.pop %v5776
    %v5778 = vmul.f32 %v5772, 1.442695
    %v5779 = vpow.pop %v5778
    %v5780 = vmul.f32 %v5773, 1.442695
    %v5781 = vpow.pop %v5780
    %v5782 = vadd.f32 %v5775, 1.0
    %v5783 = vadd.f32 %v5777, 1.0
    %v5784 = vadd.f32 %v5779, 1.0
    %v5785 = vadd.f32 %v5781, 1.0
    %v5786 = vrcp.pop %v5782
    %v5787 = vmul.f32 1.0, %v5786
    %v5788 = vrcp.pop %v5783
    %v5789 = vmul.f32 1.0, %v5788
    %v5790 = vrcp.pop %v5784
    %v5791 = vmul.f32 1.0, %v5790
    %v5792 = vrcp.pop %v5785
    %v5793 = vmul.f32 1.0, %v5792
    %v5794 = vadd.f32 %v5762, %v4271
    %v5795 = vadd.f32 %v5764, %v4275
    %v5796 = vmul.f32 %v5787, %v5794
    %v5797 = vmul.f32 %v5789, %v5795
    %v5798 = vadd.f32 %v4060, %v5796
    %v5799 = vadd.f32 %v4061, %v5797
    %v5800 = vtanh.pop %v5798
    %v5801 = vtanh.pop %v5799
    %v5802 = vsub.f32 %v5551, %v5800
    %v5803 = vsub.f32 %v5552, %v5801
    %v5804 = vmul.f32 %v5791, %v5802
    %v5805 = vmul.f32 %v5793, %v5803
    %v5806 = vadd.f32 %v5800, %v5804
    %v5807 = vadd.f32 %v5801, %v5805
    %5808 = vmatprep.subr.mxu0 %v4075
    %5809 = vmatpush1.msra.mxu0 %v4074
    %5810 = vmatprep.subr.mxu0 %v4081
    %5811 = vmatpush1.msra.mxu0 %v4080
    %5812 = vmatprep.subr.mxu0 %v4087
    %5813 = vmatpush1.msra.mxu0 %v4086
    %5814 = vmatprep.subr.mxu0 %v4093
    %5815 = vmatpush1.msra.mxu0 %v4092
    %5816 = vmatprep.subr.mxu0 %v4099
    %5817 = vmatpush1.msra.mxu0 %v4098
    %5818 = vmatprep.subr.mxu0 %v4105
    %5819 = vmatpush1.msra.mxu0 %v4104
    %5820 = vmatprep.subr.mxu0 %v4111
    %5821 = vmatpush1.msra.mxu0 %v4110
    %5822 = vmatprep.subr.mxu0 %v4117
    %5823 = vmatpush1.msra.mxu0 %v4116
    %5824 = vmatprep.subr.mxu0 %v4123
    %5825 = vmatpush1.msra.mxu0 %v4122
    %5826 = vmatprep.subr.mxu0 %v4129
    %5827 = vmatpush1.msra.mxu0 %v4128
    %5828 = vmatprep.subr.mxu0 %v4135
    %5829 = vmatpush1.msra.mxu0 %v4134
    %5830 = vmatprep.subr.mxu0 %v4141
    %5831 = vmatpush1.msra.mxu0 %v4140
    %5832 = vmatprep.subr.mxu0 %v4147
    %5833 = vmatpush1.msra.mxu0 %v4146
    %5834 = vmatprep.subr.mxu0 %v4153
    %5835 = vmatpush1.msra.mxu0 %v4152
    %5836 = vmatprep.subr.mxu0 %v4159
    %5837 = vmatpush1.msra.mxu0 %v4158
    %5838 = vmatprep.subr.mxu0 %v4165
    %5839 = vmatpush1.msra.mxu0 %v4164
    %5840 = vmatprep.subr.mxu0 %v4171
    %5841 = vmatpush1.msra.mxu0 %v4170
    %5842 = vmatprep.subr.mxu0 %v4177
    %5843 = vmatpush1.msra.mxu0 %v4176
    %5844 = vmatprep.subr.mxu0 %v4183
    %5845 = vmatpush1.msra.mxu0 %v4182
    %5846 = vmatprep.subr.mxu0 %v4189
    %5847 = vmatpush1.msra.mxu0 %v4188
    %5848 = vmatprep.subr.mxu0 %v4195
    %5849 = vmatpush1.msra.mxu0 %v4194
    %5850 = vmatprep.subr.mxu0 %v4201
    %5851 = vmatpush1.msra.mxu0 %v4200
    %5852 = vmatprep.subr.mxu0 %v4207
    %5853 = vmatpush1.msra.mxu0 %v4206
    %5854 = vmatprep.subr.mxu0 %v4213
    %5855 = vmatpush1.msra.mxu0 %v4212
    %5856 = vmatprep.subr.mxu0 %v4219
    %5857 = vmatpush1.msra.mxu0 %v4218
    %5858 = vmatprep.subr.mxu0 %v4225
    %5859 = vmatpush1.msra.mxu0 %v4224
    %5860 = vmatprep.subr.mxu0 %v4231
    %5861 = vmatpush1.msra.mxu0 %v4230
    %5862 = vmatprep.subr.mxu0 %v4237
    %5863 = vmatpush1.msra.mxu0 %v4236
    %5864 = vmatprep.subr.mxu0 %v4243
    %5865 = vmatpush1.msra.mxu0 %v4242
    %5866 = vmatprep.subr.mxu0 %v4249
    %5867 = vmatpush1.msra.mxu0 %v4248
    %5868 = vmatprep.subr.mxu0 %v4255
    %5869 = vmatpush1.msra.mxu0 %v4254
    %5870 = vmatprep.subr.mxu0 %v4261
    %5871 = vmatpush1.msra.mxu0 %v4260
    %5872 = vmatprep.mubr.f32.mxu0 %v5807
    %5873 = vmatmul.mubr.f32.gmra.mrb[0].mxu0 %v5806
    %v5874 = vpop.f32.mrb[0].mxu0
    %v5875 = vadd.f32 0.0, %v5874
    %v5876 = vpop.f32.mrb[0].mxu0
    %v5877 = vadd.f32 0.0, %v5876
    %5878 = vdwg.mxu0
    %5879 = vmatprep.subr.mxu0 %v4077
    %5880 = vmatpush1.msra.mxu0 %v4076
    %5881 = vmatprep.subr.mxu0 %v4083
    %5882 = vmatpush1.msra.mxu0 %v4082
    %5883 = vmatprep.subr.mxu0 %v4089
    %5884 = vmatpush1.msra.mxu0 %v4088
    %5885 = vmatprep.subr.mxu0 %v4095
    %5886 = vmatpush1.msra.mxu0 %v4094
    %5887 = vmatprep.subr.mxu0 %v4101
    %5888 = vmatpush1.msra.mxu0 %v4100
    %5889 = vmatprep.subr.mxu0 %v4107
    %5890 = vmatpush1.msra.mxu0 %v4106
    %5891 = vmatprep.subr.mxu0 %v4113
    %5892 = vmatpush1.msra.mxu0 %v4112
    %5893 = vmatprep.subr.mxu0 %v4119
    %5894 = vmatpush1.msra.mxu0 %v4118
    %5895 = vmatprep.subr.mxu0 %v4125
    %5896 = vmatpush1.msra.mxu0 %v4124
    %5897 = vmatprep.subr.mxu0 %v4131
    %5898 = vmatpush1.msra.mxu0 %v4130
    %5899 = vmatprep.subr.mxu0 %v4137
    %5900 = vmatpush1.msra.mxu0 %v4136
    %5901 = vmatprep.subr.mxu0 %v4143
    %5902 = vmatpush1.msra.mxu0 %v4142
    %5903 = vmatprep.subr.mxu0 %v4149
    %5904 = vmatpush1.msra.mxu0 %v4148
    %5905 = vmatprep.subr.mxu0 %v4155
    %5906 = vmatpush1.msra.mxu0 %v4154
    %5907 = vmatprep.subr.mxu0 %v4161
    %5908 = vmatpush1.msra.mxu0 %v4160
    %5909 = vmatprep.subr.mxu0 %v4167
    %5910 = vmatpush1.msra.mxu0 %v4166
    %5911 = vmatprep.subr.mxu0 %v4173
    %5912 = vmatpush1.msra.mxu0 %v4172
    %5913 = vmatprep.subr.mxu0 %v4179
    %5914 = vmatpush1.msra.mxu0 %v4178
    %5915 = vmatprep.subr.mxu0 %v4185
    %5916 = vmatpush1.msra.mxu0 %v4184
    %5917 = vmatprep.subr.mxu0 %v4191
    %5918 = vmatpush1.msra.mxu0 %v4190
    %5919 = vmatprep.subr.mxu0 %v4197
    %5920 = vmatpush1.msra.mxu0 %v4196
    %5921 = vmatprep.subr.mxu0 %v4203
    %5922 = vmatpush1.msra.mxu0 %v4202
    %5923 = vmatprep.subr.mxu0 %v4209
    %5924 = vmatpush1.msra.mxu0 %v4208
    %5925 = vmatprep.subr.mxu0 %v4215
    %5926 = vmatpush1.msra.mxu0 %v4214
    %5927 = vmatprep.subr.mxu0 %v4221
    %5928 = vmatpush1.msra.mxu0 %v4220
    %5929 = vmatprep.subr.mxu0 %v4227
    %5930 = vmatpush1.msra.mxu0 %v4226
    %5931 = vmatprep.subr.mxu0 %v4233
    %5932 = vmatpush1.msra.mxu0 %v4232
    %5933 = vmatprep.subr.mxu0 %v4239
    %5934 = vmatpush1.msra.mxu0 %v4238
    %5935 = vmatprep.subr.mxu0 %v4245
    %5936 = vmatpush1.msra.mxu0 %v4244
    %5937 = vmatprep.subr.mxu0 %v4251
    %5938 = vmatpush1.msra.mxu0 %v4250
    %5939 = vmatprep.subr.mxu0 %v4257
    %5940 = vmatpush1.msra.mxu0 %v4256
    %5941 = vmatprep.subr.mxu0 %v4263
    %5942 = vmatpush1.msra.mxu0 %v4262
    %5943 = vmatprep.mubr.f32.mxu0 %v5807
    %5944 = vmatmul.mubr.f32.gmra.mrb[0].mxu0 %v5806
    %v5945 = vpop.f32.mrb[0].mxu0
    %v5946 = vadd.f32 0.0, %v5945
    %v5947 = vpop.f32.mrb[0].mxu0
    %v5948 = vadd.f32 0.0, %v5947
    %5949 = vdwg.mxu0
    %5950 = vmatprep.subr.mxu0 %v4079
    %5951 = vmatpush1.msra.mxu0 %v4078
    %5952 = vmatprep.subr.mxu0 %v4085
    %5953 = vmatpush1.msra.mxu0 %v4084
    %5954 = vmatprep.subr.mxu0 %v4091
    %5955 = vmatpush1.msra.mxu0 %v4090
    %5956 = vmatprep.subr.mxu0 %v4097
    %5957 = vmatpush1.msra.mxu0 %v4096
    %5958 = vmatprep.subr.mxu0 %v4103
    %5959 = vmatpush1.msra.mxu0 %v4102
    %5960 = vmatprep.subr.mxu0 %v4109
    %5961 = vmatpush1.msra.mxu0 %v4108
    %5962 = vmatprep.subr.mxu0 %v4115
    %5963 = vmatpush1.msra.mxu0 %v4114
    %5964 = vmatprep.subr.mxu0 %v4121
    %5965 = vmatpush1.msra.mxu0 %v4120
    %5966 = vmatprep.subr.mxu0 %v4127
    %5967 = vmatpush1.msra.mxu0 %v4126
    %5968 = vmatprep.subr.mxu0 %v4133
    %5969 = vmatpush1.msra.mxu0 %v4132
    %5970 = vmatprep.subr.mxu0 %v4139
    %5971 = vmatpush1.msra.mxu0 %v4138
    %5972 = vmatprep.subr.mxu0 %v4145
    %5973 = vmatpush1.msra.mxu0 %v4144
    %5974 = vmatprep.subr.mxu0 %v4151
    %5975 = vmatpush1.msra.mxu0 %v4150
    %5976 = vmatprep.subr.mxu0 %v4157
    %5977 = vmatpush1.msra.mxu0 %v4156
    %5978 = vmatprep.subr.mxu0 %v4163
    %5979 = vmatpush1.msra.mxu0 %v4162
    %5980 = vmatprep.subr.mxu0 %v4169
    %5981 = vmatpush1.msra.mxu0 %v4168
    %5982 = vmatprep.subr.mxu0 %v4175
    %5983 = vmatpush1.msra.mxu0 %v4174
    %5984 = vmatprep.subr.mxu0 %v4181
    %5985 = vmatpush1.msra.mxu0 %v4180
    %5986 = vmatprep.subr.mxu0 %v4187
    %5987 = vmatpush1.msra.mxu0 %v4186
    %5988 = vmatprep.subr.mxu0 %v4193
    %5989 = vmatpush1.msra.mxu0 %v4192
    %5990 = vmatprep.subr.mxu0 %v4199
    %5991 = vmatpush1.msra.mxu0 %v4198
    %5992 = vmatprep.subr.mxu0 %v4205
    %5993 = vmatpush1.msra.mxu0 %v4204
    %5994 = vmatprep.subr.mxu0 %v4211
    %5995 = vmatpush1.msra.mxu0 %v4210
    %5996 = vmatprep.subr.mxu0 %v4217
    %5997 = vmatpush1.msra.mxu0 %v4216
    %5998 = vmatprep.subr.mxu0 %v4223
    %5999 = vmatpush1.msra.mxu0 %v4222
    %6000 = vmatprep.subr.mxu0 %v4229
    %6001 = vmatpush1.msra.mxu0 %v4228
    %6002 = vmatprep.subr.mxu0 %v4235
    %6003 = vmatpush1.msra.mxu0 %v4234
    %6004 = vmatprep.subr.mxu0 %v4241
    %6005 = vmatpush1.msra.mxu0 %v4240
    %6006 = vmatprep.subr.mxu0 %v4247
    %6007 = vmatpush1.msra.mxu0 %v4246
    %6008 = vmatprep.subr.mxu0 %v4253
    %6009 = vmatpush1.msra.mxu0 %v4252
    %6010 = vmatprep.subr.mxu0 %v4259
    %6011 = vmatpush1.msra.mxu0 %v4258
    %6012 = vmatprep.subr.mxu0 %v4265
    %6013 = vmatpush1.msra.mxu0 %v4264
    %6014 = vmatprep.mubr.f32.mxu0 %v5807
    %6015 = vmatmul.mubr.f32.gmra.mrb[0].mxu0 %v5806
    %v6016 = vpop.f32.mrb[0].mxu0
    %v6017 = vadd.f32 0.0, %v6016
    %v6018 = vpop.f32.mrb[0].mxu0
    %v6019 = vadd.f32 0.0, %v6018
    %6020 = vdwg.mxu0
    %v6021 = vadd.f32 %v4062, %v5875
    %v6022 = vadd.f32 %v4063, %v5877
    %v6023 = vadd.f32 %v4064, %v5946
    %v6024 = vadd.f32 %v4065, %v5948
    %v6025 = vxor.u32 %v6021, 2147483648
    %v6026 = vxor.u32 %v6022, 2147483648
    %v6027 = vxor.u32 %v6023, 2147483648
    %v6028 = vxor.u32 %v6024, 2147483648
    %v6029 = vmul.f32 %v6025, 1.442695
    %v6030 = vpow.pop %v6029
    %v6031 = vmul.f32 %v6026, 1.442695
    %v6032 = vpow.pop %v6031
    %v6033 = vmul.f32 %v6027, 1.442695
    %v6034 = vpow.pop %v6033
    %v6035 = vmul.f32 %v6028, 1.442695
    %v6036 = vpow.pop %v6035
    %v6037 = vadd.f32 %v6030, 1.0
    %v6038 = vadd.f32 %v6032, 1.0
    %v6039 = vadd.f32 %v6034, 1.0
    %v6040 = vadd.f32 %v6036, 1.0
    %v6041 = vrcp.pop %v6037
    %v6042 = vmul.f32 1.0, %v6041
    %v6043 = vrcp.pop %v6038
    %v6044 = vmul.f32 1.0, %v6043
    %v6045 = vrcp.pop %v6039
    %v6046 = vmul.f32 1.0, %v6045
    %v6047 = vrcp.pop %v6040
    %v6048 = vmul.f32 1.0, %v6047
    %v6049 = vadd.f32 %v6017, %v4271
    %v6050 = vadd.f32 %v6019, %v4275
    %v6051 = vmul.f32 %v6042, %v6049
    %v6052 = vmul.f32 %v6044, %v6050
    %v6053 = vadd.f32 %v4066, %v6051
    %v6054 = vadd.f32 %v4067, %v6052
    %v6055 = vtanh.pop %v6053
    %v6056 = vtanh.pop %v6054
    %v6057 = vsub.f32 %v5806, %v6055
    %v6058 = vsub.f32 %v5807, %v6056
    %v6059 = vmul.f32 %v6046, %v6057
    %v6060 = vmul.f32 %v6048, %v6058
    %v6061 = vadd.f32 %v6055, %v6059
    %v6062 = vadd.f32 %v6056, %v6060
    %6063 = vmatprep.subr.mxu0 %v4075
    %6064 = vmatpush1.msra.mxu0 %v4074
    %6065 = vmatprep.subr.mxu0 %v4081
    %6066 = vmatpush1.msra.mxu0 %v4080
    %6067 = vmatprep.subr.mxu0 %v4087
    %6068 = vmatpush1.msra.mxu0 %v4086
    %6069 = vmatprep.subr.mxu0 %v4093
    %6070 = vmatpush1.msra.mxu0 %v4092
    %6071 = vmatprep.subr.mxu0 %v4099
    %6072 = vmatpush1.msra.mxu0 %v4098
    %6073 = vmatprep.subr.mxu0 %v4105
    %6074 = vmatpush1.msra.mxu0 %v4104
    %6075 = vmatprep.subr.mxu0 %v4111
    %6076 = vmatpush1.msra.mxu0 %v4110
    %6077 = vmatprep.subr.mxu0 %v4117
    %6078 = vmatpush1.msra.mxu0 %v4116
    %6079 = vmatprep.subr.mxu0 %v4123
    %6080 = vmatpush1.msra.mxu0 %v4122
    %6081 = vmatprep.subr.mxu0 %v4129
    %6082 = vmatpush1.msra.mxu0 %v4128
    %6083 = vmatprep.subr.mxu0 %v4135
    %6084 = vmatpush1.msra.mxu0 %v4134
    %6085 = vmatprep.subr.mxu0 %v4141
    %6086 = vmatpush1.msra.mxu0 %v4140
    %6087 = vmatprep.subr.mxu0 %v4147
    %6088 = vmatpush1.msra.mxu0 %v4146
    %6089 = vmatprep.subr.mxu0 %v4153
    %6090 = vmatpush1.msra.mxu0 %v4152
    %6091 = vmatprep.subr.mxu0 %v4159
    %6092 = vmatpush1.msra.mxu0 %v4158
    %6093 = vmatprep.subr.mxu0 %v4165
    %6094 = vmatpush1.msra.mxu0 %v4164
    %6095 = vmatprep.subr.mxu0 %v4171
    %6096 = vmatpush1.msra.mxu0 %v4170
    %6097 = vmatprep.subr.mxu0 %v4177
    %6098 = vmatpush1.msra.mxu0 %v4176
    %6099 = vmatprep.subr.mxu0 %v4183
    %6100 = vmatpush1.msra.mxu0 %v4182
    %6101 = vmatprep.subr.mxu0 %v4189
    %6102 = vmatpush1.msra.mxu0 %v4188
    %6103 = vmatprep.subr.mxu0 %v4195
    %6104 = vmatpush1.msra.mxu0 %v4194
    %6105 = vmatprep.subr.mxu0 %v4201
    %6106 = vmatpush1.msra.mxu0 %v4200
    %6107 = vmatprep.subr.mxu0 %v4207
    %6108 = vmatpush1.msra.mxu0 %v4206
    %6109 = vmatprep.subr.mxu0 %v4213
    %6110 = vmatpush1.msra.mxu0 %v4212
    %6111 = vmatprep.subr.mxu0 %v4219
    %6112 = vmatpush1.msra.mxu0 %v4218
    %6113 = vmatprep.subr.mxu0 %v4225
    %6114 = vmatpush1.msra.mxu0 %v4224
    %6115 = vmatprep.subr.mxu0 %v4231
    %6116 = vmatpush1.msra.mxu0 %v4230
    %6117 = vmatprep.subr.mxu0 %v4237
    %6118 = vmatpush1.msra.mxu0 %v4236
    %6119 = vmatprep.subr.mxu0 %v4243
    %6120 = vmatpush1.msra.mxu0 %v4242
    %6121 = vmatprep.subr.mxu0 %v4249
    %6122 = vmatpush1.msra.mxu0 %v4248
    %6123 = vmatprep.subr.mxu0 %v4255
    %6124 = vmatpush1.msra.mxu0 %v4254
    %6125 = vmatprep.subr.mxu0 %v4261
    %6126 = vmatpush1.msra.mxu0 %v4260
    %6127 = vmatprep.mubr.f32.mxu0 %v6062
    %6128 = vmatmul.mubr.f32.gmra.mrb[0].mxu0 %v6061
    %v6129 = vpop.f32.mrb[0].mxu0
    %v6130 = vadd.f32 0.0, %v6129
    %v6131 = vpop.f32.mrb[0].mxu0
    %v6132 = vadd.f32 0.0, %v6131
    %6133 = vdwg.mxu0
    %6134 = vmatprep.subr.mxu0 %v4077
    %6135 = vmatpush1.msra.mxu0 %v4076
    %6136 = vmatprep.subr.mxu0 %v4083
    %6137 = vmatpush1.msra.mxu0 %v4082
    %6138 = vmatprep.subr.mxu0 %v4089
    %6139 = vmatpush1.msra.mxu0 %v4088
    %6140 = vmatprep.subr.mxu0 %v4095
    %6141 = vmatpush1.msra.mxu0 %v4094
    %6142 = vmatprep.subr.mxu0 %v4101
    %6143 = vmatpush1.msra.mxu0 %v4100
    %6144 = vmatprep.subr.mxu0 %v4107
    %6145 = vmatpush1.msra.mxu0 %v4106
    %6146 = vmatprep.subr.mxu0 %v4113
    %6147 = vmatpush1.msra.mxu0 %v4112
    %6148 = vmatprep.subr.mxu0 %v4119
    %6149 = vmatpush1.msra.mxu0 %v4118
    %6150 = vmatprep.subr.mxu0 %v4125
    %6151 = vmatpush1.msra.mxu0 %v4124
    %6152 = vmatprep.subr.mxu0 %v4131
    %6153 = vmatpush1.msra.mxu0 %v4130
    %6154 = vmatprep.subr.mxu0 %v4137
    %6155 = vmatpush1.msra.mxu0 %v4136
    %6156 = vmatprep.subr.mxu0 %v4143
    %6157 = vmatpush1.msra.mxu0 %v4142
    %6158 = vmatprep.subr.mxu0 %v4149
    %6159 = vmatpush1.msra.mxu0 %v4148
    %6160 = vmatprep.subr.mxu0 %v4155
    %6161 = vmatpush1.msra.mxu0 %v4154
    %6162 = vmatprep.subr.mxu0 %v4161
    %6163 = vmatpush1.msra.mxu0 %v4160
    %6164 = vmatprep.subr.mxu0 %v4167
    %6165 = vmatpush1.msra.mxu0 %v4166
    %6166 = vmatprep.subr.mxu0 %v4173
    %6167 = vmatpush1.msra.mxu0 %v4172
    %6168 = vmatprep.subr.mxu0 %v4179
    %6169 = vmatpush1.msra.mxu0 %v4178
    %6170 = vmatprep.subr.mxu0 %v4185
    %6171 = vmatpush1.msra.mxu0 %v4184
    %6172 = vmatprep.subr.mxu0 %v4191
    %6173 = vmatpush1.msra.mxu0 %v4190
    %6174 = vmatprep.subr.mxu0 %v4197
    %6175 = vmatpush1.msra.mxu0 %v4196
    %6176 = vmatprep.subr.mxu0 %v4203
    %6177 = vmatpush1.msra.mxu0 %v4202
    %6178 = vmatprep.subr.mxu0 %v4209
    %6179 = vmatpush1.msra.mxu0 %v4208
    %6180 = vmatprep.subr.mxu0 %v4215
    %6181 = vmatpush1.msra.mxu0 %v4214
    %6182 = vmatprep.subr.mxu0 %v4221
    %6183 = vmatpush1.msra.mxu0 %v4220
    %6184 = vmatprep.subr.mxu0 %v4227
    %6185 = vmatpush1.msra.mxu0 %v4226
    %6186 = vmatprep.subr.mxu0 %v4233
    %6187 = vmatpush1.msra.mxu0 %v4232
    %6188 = vmatprep.subr.mxu0 %v4239
    %6189 = vmatpush1.msra.mxu0 %v4238
    %6190 = vmatprep.subr.mxu0 %v4245
    %6191 = vmatpush1.msra.mxu0 %v4244
    %6192 = vmatprep.subr.mxu0 %v4251
    %6193 = vmatpush1.msra.mxu0 %v4250
    %6194 = vmatprep.subr.mxu0 %v4257
    %6195 = vmatpush1.msra.mxu0 %v4256
    %6196 = vmatprep.subr.mxu0 %v4263
    %6197 = vmatpush1.msra.mxu0 %v4262
    %6198 = vmatprep.mubr.f32.mxu0 %v6062
    %6199 = vmatmul.mubr.f32.gmra.mrb[0].mxu0 %v6061
    %v6200 = vpop.f32.mrb[0].mxu0
    %v6201 = vadd.f32 0.0, %v6200
    %v6202 = vpop.f32.mrb[0].mxu0
    %v6203 = vadd.f32 0.0, %v6202
    %6204 = vdwg.mxu0
    %6205 = vmatprep.subr.mxu0 %v4079
    %6206 = vmatpush1.msra.mxu0 %v4078
    %6207 = vmatprep.subr.mxu0 %v4085
    %6208 = vmatpush1.msra.mxu0 %v4084
    %6209 = vmatprep.subr.mxu0 %v4091
    %6210 = vmatpush1.msra.mxu0 %v4090
    %6211 = vmatprep.subr.mxu0 %v4097
    %6212 = vmatpush1.msra.mxu0 %v4096
    %6213 = vmatprep.subr.mxu0 %v4103
    %6214 = vmatpush1.msra.mxu0 %v4102
    %6215 = vmatprep.subr.mxu0 %v4109
    %6216 = vmatpush1.msra.mxu0 %v4108
    %6217 = vmatprep.subr.mxu0 %v4115
    %6218 = vmatpush1.msra.mxu0 %v4114
    %6219 = vmatprep.subr.mxu0 %v4121
    %6220 = vmatpush1.msra.mxu0 %v4120
    %6221 = vmatprep.subr.mxu0 %v4127
    %6222 = vmatpush1.msra.mxu0 %v4126
    %6223 = vmatprep.subr.mxu0 %v4133
    %6224 = vmatpush1.msra.mxu0 %v4132
    %6225 = vmatprep.subr.mxu0 %v4139
    %6226 = vmatpush1.msra.mxu0 %v4138
    %6227 = vmatprep.subr.mxu0 %v4145
    %6228 = vmatpush1.msra.mxu0 %v4144
    %6229 = vmatprep.subr.mxu0 %v4151
    %6230 = vmatpush1.msra.mxu0 %v4150
    %6231 = vmatprep.subr.mxu0 %v4157
    %6232 = vmatpush1.msra.mxu0 %v4156
    %6233 = vmatprep.subr.mxu0 %v4163
    %6234 = vmatpush1.msra.mxu0 %v4162
    %6235 = vmatprep.subr.mxu0 %v4169
    %6236 = vmatpush1.msra.mxu0 %v4168
    %6237 = vmatprep.subr.mxu0 %v4175
    %6238 = vmatpush1.msra.mxu0 %v4174
    %6239 = vmatprep.subr.mxu0 %v4181
    %6240 = vmatpush1.msra.mxu0 %v4180
    %6241 = vmatprep.subr.mxu0 %v4187
    %6242 = vmatpush1.msra.mxu0 %v4186
    %6243 = vmatprep.subr.mxu0 %v4193
    %6244 = vmatpush1.msra.mxu0 %v4192
    %6245 = vmatprep.subr.mxu0 %v4199
    %6246 = vmatpush1.msra.mxu0 %v4198
    %6247 = vmatprep.subr.mxu0 %v4205
    %6248 = vmatpush1.msra.mxu0 %v4204
    %6249 = vmatprep.subr.mxu0 %v4211
    %6250 = vmatpush1.msra.mxu0 %v4210
    %6251 = vmatprep.subr.mxu0 %v4217
    %6252 = vmatpush1.msra.mxu0 %v4216
    %6253 = vmatprep.subr.mxu0 %v4223
    %6254 = vmatpush1.msra.mxu0 %v4222
    %6255 = vmatprep.subr.mxu0 %v4229
    %6256 = vmatpush1.msra.mxu0 %v4228
    %6257 = vmatprep.subr.mxu0 %v4235
    %6258 = vmatpush1.msra.mxu0 %v4234
    %6259 = vmatprep.subr.mxu0 %v4241
    %6260 = vmatpush1.msra.mxu0 %v4240
    %6261 = vmatprep.subr.mxu0 %v4247
    %6262 = vmatpush1.msra.mxu0 %v4246
    %6263 = vmatprep.subr.mxu0 %v4253
    %6264 = vmatpush1.msra.mxu0 %v4252
    %6265 = vmatprep.subr.mxu0 %v4259
    %6266 = vmatpush1.msra.mxu0 %v4258
    %6267 = vmatprep.subr.mxu0 %v4265
    %6268 = vmatpush1.msra.mxu0 %v4264
    %6269 = vmatprep.mubr.f32.mxu0 %v6062
    %6270 = vmatmul.mubr.f32.gmra.mrb[0].mxu0 %v6061
    %v6271 = vpop.f32.mrb[0].mxu0
    %v6272 = vadd.f32 0.0, %v6271
    %v6273 = vpop.f32.mrb[0].mxu0
    %v6274 = vadd.f32 0.0, %v6273
    %6275 = vdwg.mxu0
    %v6276 = vadd.f32 %v4068, %v6130
    %v6277 = vadd.f32 %v4069, %v6132
    %v6278 = vadd.f32 %v4070, %v6201
    %v6279 = vadd.f32 %v4071, %v6203
    %v6280 = vxor.u32 %v6276, 2147483648
    %v6281 = vxor.u32 %v6277, 2147483648
    %v6282 = vxor.u32 %v6278, 2147483648
    %v6283 = vxor.u32 %v6279, 2147483648
    %v6284 = vmul.f32 %v6280, 1.442695
    %v6285 = vpow.pop %v6284
    %v6286 = vmul.f32 %v6281, 1.442695
    %v6287 = vpow.pop %v6286
    %v6288 = vmul.f32 %v6282, 1.442695
    %v6289 = vpow.pop %v6288
    %v6290 = vmul.f32 %v6283, 1.442695
    %v6291 = vpow.pop %v6290
    %v6292 = vadd.f32 %v6285, 1.0
    %v6293 = vadd.f32 %v6287, 1.0
    %v6294 = vadd.f32 %v6289, 1.0
    %v6295 = vadd.f32 %v6291, 1.0
    %v6296 = vrcp.pop %v6292
    %v6297 = vmul.f32 1.0, %v6296
    %v6298 = vrcp.pop %v6293
    %v6299 = vmul.f32 1.0, %v6298
    %v6300 = vrcp.pop %v6294
    %v6301 = vmul.f32 1.0, %v6300
    %v6302 = vrcp.pop %v6295
    %v6303 = vmul.f32 1.0, %v6302
    %v6304 = vadd.f32 %v6272, %v4271
    %v6305 = vadd.f32 %v6274, %v4275
    %v6306 = vmul.f32 %v6297, %v6304
    %v6307 = vmul.f32 %v6299, %v6305
    %v6308 = vadd.f32 %v4072, %v6306
    %v6309 = vadd.f32 %v4073, %v6307
    %v6310 = vtanh.pop %v6308
    %v6311 = vtanh.pop %v6309
    %v6312 = vsub.f32 %v6061, %v6310
    %v6313 = vsub.f32 %v6062, %v6311
    %v6314 = vmul.f32 %v6301, %v6312
    %v6315 = vmul.f32 %v6303, %v6313
    %v6316 = vadd.f32 %v6310, %v6314
    %v6317 = vadd.f32 %v6311, %v6315
    %v6318 = vld [vmem:[%s10] sm:$0xff]
    %v6319 = vld [vmem:[%s10 + $0x8] sm:$0xff]
    %v6320 = vld [vmem:[%s10 + $0x10] sm:$0xff]
    %v6321 = vld [vmem:[%s10 + $0x18] sm:$0xff]
    %v6322 = vld [vmem:[%s10 + $0x20] sm:$0xff]
    %v6323 = vld [vmem:[%s10 + $0x28] sm:$0xff]
    %v6324 = vld [vmem:[%s10 + $0x30] sm:$0xff]
    %v6325 = vld [vmem:[%s10 + $0x38] sm:$0xff]
    %v6326 = vld [vmem:[%s10 + $0x40] sm:$0xff]
    %v6327 = vld [vmem:[%s10 + $0x48] sm:$0xff]
    %v6328 = vld [vmem:[%s10 + $0x50] sm:$0xff]
    %v6329 = vld [vmem:[%s10 + $0x58] sm:$0xff]
    %v6330 = vld [vmem:[%s10 + $0x60] sm:$0xff]
    %v6331 = vld [vmem:[%s10 + $0x68] sm:$0xff]
    %v6332 = vld [vmem:[%s10 + $0x70] sm:$0xff]
    %v6333 = vld [vmem:[%s10 + $0x78] sm:$0xff]
    %v6334 = vld [vmem:[%s10 + $0x80] sm:$0xff]
    %v6335 = vld [vmem:[%s10 + $0x88] sm:$0xff]
    %v6336 = vld [vmem:[%s10 + $0x90] sm:$0xff]
    %v6337 = vld [vmem:[%s10 + $0x98] sm:$0xff]
    %v6338 = vld [vmem:[%s10 + $0xa0] sm:$0xff]
    %v6339 = vld [vmem:[%s10 + $0xa8] sm:$0xff]
    %v6340 = vld [vmem:[%s10 + $0xb0] sm:$0xff]
    %v6341 = vld [vmem:[%s10 + $0xb8] sm:$0xff]
    %v6342 = vld [vmem:[%s10 + $0xc0] sm:$0xff]
    %v6343 = vld [vmem:[%s10 + $0xc8] sm:$0xff]
    %v6344 = vld [vmem:[%s10 + $0xd0] sm:$0xff]
    %v6345 = vld [vmem:[%s10 + $0xd8] sm:$0xff]
    %v6346 = vld [vmem:[%s10 + $0xe0] sm:$0xff]
    %v6347 = vld [vmem:[%s10 + $0xe8] sm:$0xff]
    %v6348 = vld [vmem:[%s10 + $0xf0] sm:$0xff]
    %v6349 = vld [vmem:[%s10 + $0xf8] sm:$0xff]
    %v6350 = vld [vmem:[%s11] sm:$0x1]
    %v6352 = vlaneseq
    %v6353 = vshrl.u32 %v6352, 7
    %v6354 = vsub.s32 0, %v6353
    %v6355 = vrot.slane %v6350, %v6354
    %6357 = vmatprep.subr.mxu0 0.0
    %6358 = vmatpush1.msra.mxu0 %v6318
    %6359 = vmatprep.subr.mxu0 0.0
    %6360 = vmatpush1.msra.mxu0 %v6319
    %6361 = vmatprep.subr.mxu0 0.0
    %6362 = vmatpush1.msra.mxu0 %v6320
    %6363 = vmatprep.subr.mxu0 0.0
    %6364 = vmatpush1.msra.mxu0 %v6321
    %6365 = vmatprep.subr.mxu0 0.0
    %6366 = vmatpush1.msra.mxu0 %v6322
    %6367 = vmatprep.subr.mxu0 0.0
    %6368 = vmatpush1.msra.mxu0 %v6323
    %6369 = vmatprep.subr.mxu0 0.0
    %6370 = vmatpush1.msra.mxu0 %v6324
    %6371 = vmatprep.subr.mxu0 0.0
    %6372 = vmatpush1.msra.mxu0 %v6325
    %6373 = vmatprep.subr.mxu0 0.0
    %6374 = vmatpush1.msra.mxu0 %v6326
    %6375 = vmatprep.subr.mxu0 0.0
    %6376 = vmatpush1.msra.mxu0 %v6327
    %6377 = vmatprep.subr.mxu0 0.0
    %6378 = vmatpush1.msra.mxu0 %v6328
    %6379 = vmatprep.subr.mxu0 0.0
    %6380 = vmatpush1.msra.mxu0 %v6329
    %6381 = vmatprep.subr.mxu0 0.0
    %6382 = vmatpush1.msra.mxu0 %v6330
    %6383 = vmatprep.subr.mxu0 0.0
    %6384 = vmatpush1.msra.mxu0 %v6331
    %6385 = vmatprep.subr.mxu0 0.0
    %6386 = vmatpush1.msra.mxu0 %v6332
    %6387 = vmatprep.subr.mxu0 0.0
    %6388 = vmatpush1.msra.mxu0 %v6333
    %6389 = vmatprep.subr.mxu0 0.0
    %6390 = vmatpush1.msra.mxu0 %v6334
    %6391 = vmatprep.subr.mxu0 0.0
    %6392 = vmatpush1.msra.mxu0 %v6335
    %6393 = vmatprep.subr.mxu0 0.0
    %6394 = vmatpush1.msra.mxu0 %v6336
    %6395 = vmatprep.subr.mxu0 0.0
    %6396 = vmatpush1.msra.mxu0 %v6337
    %6397 = vmatprep.subr.mxu0 0.0
    %6398 = vmatpush1.msra.mxu0 %v6338
    %6399 = vmatprep.subr.mxu0 0.0
    %6400 = vmatpush1.msra.mxu0 %v6339
    %6401 = vmatprep.subr.mxu0 0.0
    %6402 = vmatpush1.msra.mxu0 %v6340
    %6403 = vmatprep.subr.mxu0 0.0
    %6404 = vmatpush1.msra.mxu0 %v6341
    %6405 = vmatprep.subr.mxu0 0.0
    %6406 = vmatpush1.msra.mxu0 %v6342
    %6407 = vmatprep.subr.mxu0 0.0
    %6408 = vmatpush1.msra.mxu0 %v6343
    %6409 = vmatprep.subr.mxu0 0.0
    %6410 = vmatpush1.msra.mxu0 %v6344
    %6411 = vmatprep.subr.mxu0 0.0
    %6412 = vmatpush1.msra.mxu0 %v6345
    %6413 = vmatprep.subr.mxu0 0.0
    %6414 = vmatpush1.msra.mxu0 %v6346
    %6415 = vmatprep.subr.mxu0 0.0
    %6416 = vmatpush1.msra.mxu0 %v6347
    %6417 = vmatprep.subr.mxu0 0.0
    %6418 = vmatpush1.msra.mxu0 %v6348
    %6419 = vmatprep.subr.mxu0 0.0
    %6420 = vmatpush1.msra.mxu0 %v6349
    %6421 = vmatprep.mubr.f32.mxu0 %v6317
    %6422 = vmatmul.mubr.f32.gmra.mrb[0].mxu0 %v6316
    %v6423 = vpop.f32.mrb[0].mxu0
    %v6424 = vadd.f32 %v6355, %v6423
    %v6425 = vpop.f32.mrb[0].mxu0
    %6426 = vdwg.mxu0
    %vm6427 = vcmask 31744
    %v6428 = vsel %vm6427, %v6424, -inf
    %6429 = vmax.xlane.f32.xlu0 %v6428
    %v6430 = vpop.xlane.xlu0 %6429
    %v6431 = vsub.f32 %v6424, %v6430
    %v6432 = vmul.f32 %v6431, 1.442695
    %v6433 = vpow.pop %v6432
    %v6434 = vsel %vm6427, %v6433, 0.0
    %6435 = vadd.xlane.f32.xlu0 %v6434
    %v6436 = vpop.xlane.xlu0 %6435
    %v6437 = vrcp.pop %v6436
    %v6438 = vmul.f32 %v6433, %v6437
    %6439 = vst.msk [vmem:[%s12] sm:$0xff] %vm6427, %v6438
    // Predicated region
    $region70: #{birnn_gru_classifier.1} parent=1 // pred_check
      _
    $region71: #{birnn_gru_classifier.1} parent=1 // pred_check_branch
      %6441 = sbr.rel (0) target = $region73
    $region72: #{birnn_gru_classifier.1} parent=1 // pred_region
      _
    $region73: #{birnn_gru_classifier.1} parent=1 // pred_fallthru
      _
    // Predicated region
    $region74: #{birnn_gru_classifier.1} parent=1 // pred_check
      _
    $region75: #{birnn_gru_classifier.1} parent=1 // pred_check_branch
      %6443 = sbr.rel (0) target = $region77
    $region76: #{birnn_gru_classifier.1} parent=1 // pred_region
      _
    $region77: #{birnn_gru_classifier.1} parent=1 // pred_fallthru
      _
    %6444 = vsyncpa [#allocation3], 1
    %6445 = vsyncpa [#allocation5], 1
    %6446 = vsyncpa [#allocation8], 1

</llo_original>
